<compile_context>
chip_gen: v7x
topology: tpu7x:2x2x1
jax: 0.10.0
libtpu: 0.0.40
codegen_flags: <defaults>
</compile_context>

<pallas_src>
import jax
import jax.numpy as jnp
from jax.experimental import pallas as pl
from jax.experimental.pallas import tpu as pltpu

_EPS = 1e-5
_LANE = 128
_VMEM_LIMIT = 32 * 1024 * 1024   # default scoped limit on v6e/v7x; tiles are small


# ----------------------------------------------------------------------------
# small helpers
# ----------------------------------------------------------------------------
def _round_up(x, m):
    return (x + m - 1) // m * m


def _pad_to(a, shape):
    pads = [(0, t - s) for s, t in zip(a.shape, shape)]
    if all(p == (0, 0) for p in pads):
        return a
    return jnp.pad(a, pads)


def _pick_tile_rows(n_rows):
    for t in (2048, 1024, 512, 256, 128, 64, 32, 16, 8):
        if n_rows % t == 0:
            return t
    raise ValueError("N*D*H*W must be a multiple of 8")


def _compiler_params(semantics):
    return pltpu.CompilerParams(dimension_semantics=semantics,
                                vmem_limit_bytes=_VMEM_LIMIT)


def _bn_scale_shift(partials, n_rows, gamma, beta):
    # partials: (..., 2, C) per-tile [sum; sum-of-squares] -> fused scale/shift
    c = partials.shape[-1]
    tot = jnp.sum(partials.reshape(-1, 2, c), axis=0)          # (2, C)
    mean = tot[0] / n_rows
    var = jnp.maximum(tot[1] / n_rows - mean * mean, 0.0)       # biased, clamped
    scale = gamma * jax.lax.rsqrt(var + _EPS)
    shift = beta - mean * scale
    return scale.reshape(1, c), shift.reshape(1, c)


# ----------------------------------------------------------------------------
# Pallas kernels
# ----------------------------------------------------------------------------
def _matmul_stats_kernel(x_ref, w_ref, y_ref, st_ref):
    # x:(TR,Ci) f32 (cast to bf16 at the MXU boundary), w:(Ci,Co) bf16 resident
    # y:(TR,Co) f32, st:(1,2,Co) per-tile [sum; sumsq] for training-mode BN.
    y = jnp.dot(x_ref[...].astype(jnp.bfloat16), w_ref[...],
                preferred_element_type=jnp.float32)
    y_ref[...] = y
    st_ref[0, 0:1, :] = jnp.sum(y, axis=0, keepdims=True)
    st_ref[0, 1:2, :] = jnp.sum(y * y, axis=0, keepdims=True)


def _make_bn_relu_pad_kernel(H, W, C):
    # Fused bn1-affine + ReLU + spatial zero-pad: writes one (H+2,W+2,C) plane.
    def kernel(y_ref, s_ref, t_ref, o_ref):
        h = jnp.maximum(y_ref[0, 0] * s_ref[...] + t_ref[...], 0.0)  # (HW, C)
        o_ref[...] = jnp.zeros_like(o_ref)                           # halo
        o_ref[0, 0, 1:1 + H, 1:1 + W, :] = h.reshape(H, W, C)        # interior
    return kernel


def _make_conv3x3_kernel(H, W, C):
    HW = H * W

    def kernel(hp_ref, w_ref, y_ref, st_ref):
        # hp: (1,1,H+2,W+2,C) f32 padded plane of depth clip(d+kd-1).
        # w : (3, 9*C, C) bf16 resident; rows [j*C:(j+1)*C] = tap (kh=j//3,kw=j%3).
        # y : (1,1,HW,C) f32 output plane, accumulated over the kd grid axis.
        # st: (1,1,2,C) per-plane [sum; sumsq], written on the last kd step.
        d = pl.program_id(1)
        kd = pl.program_id(2)
        nd = pl.num_programs(1)

        @pl.when(kd == 0)
        def _():
            y_ref[...] = jnp.zeros_like(y_ref)

        # source depth d+kd-1 is valid iff 0 <= d+kd-1 < nd
        @pl.when(jnp.logical_and(d + kd >= 1, d + kd <= nd))
        def _():
            wins = []
            for j in range(9):
                kh, kw = j // 3, j % 3
                win = hp_ref[0, 0, kh:kh + H, kw:kw + W, :]          # (H,W,C) f32
                wins.append(win.reshape(HW, C).astype(jnp.bfloat16))
            xcat = jnp.concatenate(wins, axis=1)                     # (HW, 9*C)
            y_ref[0, 0] += jnp.dot(xcat, w_ref[kd],
                                   preferred_element_type=jnp.float32)

        @pl.when(kd == pl.num_programs(2) - 1)
        def _():
            y = y_ref[0, 0]
            st_ref[0, 0, 0:1, :] = jnp.sum(y, axis=0, keepdims=True)
            st_ref[0, 0, 1:2, :] = jnp.sum(y * y, axis=0, keepdims=True)

    return kernel


def _bn_relu_matmul_stats_kernel(y_ref, s_ref, t_ref, w_ref, o_ref, st_ref):
    # Fused: normalize previous conv (scale/shift, f32) + ReLU, then 1x1 conv.
    h = jnp.maximum(y_ref[...] * s_ref[...] + t_ref[...], 0.0)
    y = jnp.dot(h.astype(jnp.bfloat16), w_ref[...],
                preferred_element_type=jnp.float32)
    o_ref[...] = y
    st_ref[0, 0:1, :] = jnp.sum(y, axis=0, keepdims=True)
    st_ref[0, 1:2, :] = jnp.sum(y * y, axis=0, keepdims=True)


def _bn_res_relu_kernel(y_ref, s_ref, t_ref, r_ref, o_ref):
    o_ref[...] = jnp.maximum(
        y_ref[...] * s_ref[...] + t_ref[...] + r_ref[...], 0.0)


# ----------------------------------------------------------------------------
# Module forward
# ----------------------------------------------------------------------------
def init_params(key, n_inCh, n_outCh, exp_coeff=4):
    assert n_outCh * exp_coeff == n_inCh, \
        "residual path with ds_layer=None needs n_inCh == n_outCh * exp_coeff"
    c_out = n_outCh * exp_coeff
    ks = jax.random.split(key, 12)
    nrm = lambda k, s, sc=0.05: jax.random.normal(k, s, jnp.float32) * sc
    return dict(
        w1=nrm(ks[0], (n_inCh, n_outCh)),        # 1x1x1 conv, (Cin, Cmid)
        b1=nrm(ks[1], (n_outCh,)),
        g1=1.0 + nrm(ks[2], (n_outCh,), 0.1), be1=nrm(ks[3], (n_outCh,), 0.1),
        w2=nrm(ks[4], (27, n_outCh, n_outCh)),   # 3x3x3 conv, (kd*9+kh*3+kw, Ci, Co)
        b2=nrm(ks[5], (n_outCh,)),
        g2=1.0 + nrm(ks[6], (n_outCh,), 0.1), be2=nrm(ks[7], (n_outCh,), 0.1),
        w3=nrm(ks[8], (n_outCh, c_out)),         # 1x1x1 conv, (Cmid, Cout)
        b3=nrm(ks[9], (c_out,)),
        g3=1.0 + nrm(ks[10], (c_out,), 0.1), be3=nrm(ks[11], (c_out,), 0.1),
    )


def bottleneck_block3d_l(x_ncdhw, p):
    # x: (N, Cin, D, H, W) f32 -> (N, Cin, D, H, W) f32
    # TODO(synk): stride>1 and ds_layer (projection shortcut) variants are not
    # implemented; this covers the module defaults (stride=1, ds_layer=None).
    N, Cin, D, H, W = x_ncdhw.shape
    Cm = p["w2"].shape[1]
    Cout = p["w3"].shape[1]
    assert Cout == Cin, "ds_layer=None residual needs n_inCh == n_outCh*exp_coeff"
    assert (H * W) % 8 == 0

    Cin_p = _round_up(Cin, _LANE)
    Cm_p = _round_up(Cm, _LANE)
    Cout_p = _round_up(Cout, _LANE)
    HW = H * W
    R = N * D * H * W
    TR = _pick_tile_rows(R)
    n_tiles = R // TR

    # ---- glue: channels-last, zero channel padding ---------------------------
    x_ndhwc = jnp.transpose(x_ncdhw, (0, 2, 3, 4, 1)).astype(jnp.float32)
    x_pad = _pad_to(x_ndhwc.reshape(R, Cin), (R, Cin_p))         # f32 residual

    w1 = _pad_to(p["w1"], (Cin_p, Cm_p)).astype(jnp.bfloat16)
    # conv weight as (3, 9*Cm_p, Cm_p): rows [j*C:(j+1)*C] = tap (kh=j//3, kw=j%3)
    w2 = _pad_to(p["w2"], (27, Cm_p, Cm_p)).astype(jnp.bfloat16)
    w2 = w2.reshape(3, 9 * Cm_p, Cm_p)
    w3 = _pad_to(p["w3"], (Cm_p, Cout_p)).astype(jnp.bfloat16)
    g1, be1 = _pad_to(p["g1"], (Cm_p,)), _pad_to(p["be1"], (Cm_p,))
    g2, be2 = _pad_to(p["g2"], (Cm_p,)), _pad_to(p["be2"], (Cm_p,))
    g3, be3 = _pad_to(p["g3"], (Cout_p,)), _pad_to(p["be3"], (Cout_p,))
    # Conv biases are intentionally unused: they cancel under training-mode BN.

    row_spec = lambda c: pl.BlockSpec((TR, c), lambda i: (i, 0))
    const_spec = lambda shape: pl.BlockSpec(shape, lambda i: (0,) * len(shape))
    stat_spec = lambda c: pl.BlockSpec((1, 2, c), lambda i: (i, 0, 0))

    # ---- stage 1: 1x1x1 conv (Cin -> Cmid) + BN partial stats ----------------
    y1, st1 = pl.pallas_call(
        _matmul_stats_kernel,
        grid=(n_tiles,),
        in_specs=[row_spec(Cin_p), const_spec((Cin_p, Cm_p))],
        out_specs=(row_spec(Cm_p), stat_spec(Cm_p)),
        out_shape=(jax.ShapeDtypeStruct((R, Cm_p), jnp.float32),
                   jax.ShapeDtypeStruct((n_tiles, 2, Cm_p), jnp.float32)),
        compiler_params=_compiler_params(("parallel",)),
    )(x_pad, w1)
    sc1, sh1 = _bn_scale_shift(st1, R, g1, be1)

    # ---- stage 1 pass 2: fused bn1 + ReLU + spatial zero-pad -> h1p ----------
    y1r = y1.reshape(N, D, HW, Cm_p)                              # metadata only
    h1p = pl.pallas_call(
        _make_bn_relu_pad_kernel(H, W, Cm_p),
        grid=(N, D),
        in_specs=[pl.BlockSpec((1, 1, HW, Cm_p), lambda n, d: (n, d, 0, 0)),
                  pl.BlockSpec((1, Cm_p), lambda n, d: (0, 0)),
                  pl.BlockSpec((1, Cm_p), lambda n, d: (0, 0))],
        out_specs=pl.BlockSpec((1, 1, H + 2, W + 2, Cm_p),
                               lambda n, d: (n, d, 0, 0, 0)),
        out_shape=jax.ShapeDtypeStruct((N, D, H + 2, W + 2, Cm_p), jnp.float32),
        compiler_params=_compiler_params(("parallel", "parallel")),
    )(y1r, sc1, sh1)

    # ---- stage 2: direct 3x3x3 conv (one K=9*C matmul per kd) + stats --------
    # Depth boundary handled in-kernel (pl.when); index_map clamps to a valid plane.
    hp_index = lambda n, d, kd: (n, jnp.minimum(jnp.maximum(d + kd - 1, 0), D - 1),
                                 0, 0, 0)
    y2, st2 = pl.pallas_call(
        _make_conv3x3_kernel(H, W, Cm_p),
        grid=(N, D, 3),                                           # kd innermost
        in_specs=[pl.BlockSpec((1, 1, H + 2, W + 2, Cm_p), hp_index),
                  pl.BlockSpec((3, 9 * Cm_p, Cm_p), lambda n, d, kd: (0, 0, 0))],
        out_specs=(pl.BlockSpec((1, 1, HW, Cm_p),
                                lambda n, d, kd: (n, d, 0, 0)),
                   pl.BlockSpec((1, 1, 2, Cm_p),
                                lambda n, d, kd: (n, d, 0, 0))),
        out_shape=(jax.ShapeDtypeStruct((N, D, HW, Cm_p), jnp.float32),
                   jax.ShapeDtypeStruct((N, D, 2, Cm_p), jnp.float32)),
        compiler_params=_compiler_params(("parallel", "parallel", "arbitrary")),
    )(h1p, w2)
    sc2, sh2 = _bn_scale_shift(st2, R, g2, be2)

    # ---- stage 3: fused bn2+ReLU -> 1x1x1 conv (Cmid -> Cout) + stats --------
    y3, st3 = pl.pallas_call(
        _bn_relu_matmul_stats_kernel,
        grid=(n_tiles,),
        in_specs=[row_spec(Cm_p), const_spec((1, Cm_p)), const_spec((1, Cm_p)),
                  const_spec((Cm_p, Cout_p))],
        out_specs=(row_spec(Cout_p), stat_spec(Cout_p)),
        out_shape=(jax.ShapeDtypeStruct((R, Cout_p), jnp.float32),
                   jax.ShapeDtypeStruct((n_tiles, 2, Cout_p), jnp.float32)),
        compiler_params=_compiler_params(("parallel",)),
    )(y2.reshape(R, Cm_p), sc2, sh2, w3)
    sc3, sh3 = _bn_scale_shift(st3, R, g3, be3)

    # ---- final: bn3 + residual + ReLU ----------------------------------------
    out = pl.pallas_call(
        _bn_res_relu_kernel,
        grid=(n_tiles,),
        in_specs=[row_spec(Cout_p), const_spec((1, Cout_p)),
                  const_spec((1, Cout_p)), row_spec(Cout_p)],
        out_specs=row_spec(Cout_p),
        out_shape=jax.ShapeDtypeStruct((R, Cout_p), jnp.float32),
        compiler_params=_compiler_params(("parallel",)),
    )(y3, sc3, sh3, x_pad)

    out = out.reshape(N, D, H, W, Cout_p)[..., :Cout]
    return jnp.transpose(out, (0, 4, 1, 2, 3))                   # back to NCDHW


# ----------------------------------------------------------------------------
# References
# ----------------------------------------------------------------------------
def _reference_mixed(x_ncdhw, p):
    # Same arithmetic class as the kernels: bf16 MXU inputs, f32 accumulation,
    # f32 BN stats / affine / residual / ReLU, biases dropped (they cancel).
    bf = jnp.bfloat16
    x = jnp.transpose(x_ncdhw, (0, 2, 3, 4, 1)).astype(jnp.float32)
    Cm = p["w2"].shape[1]

    def bn(y, g, b):
        n = y.shape[0] * y.shape[1] * y.shape[2] * y.shape[3]
        s = jnp.sum(y, axis=(0, 1, 2, 3))
        sq = jnp.sum(y * y, axis=(0, 1, 2, 3))
        m = s / n
        v = jnp.maximum(sq / n - m * m, 0.0)
        scale = g * jax.lax.rsqrt(v + _EPS)
        return y * scale + (b - m * scale)

    y1 = jnp.einsum("ndhwc,ck->ndhwk", x.astype(bf), p["w1"].astype(bf),
                    preferred_element_type=jnp.float32)
    h1 = jnp.maximum(bn(y1, p["g1"], p["be1"]), 0.0)
    y2 = jax.lax.conv_general_dilated(
        h1.astype(bf), p["w2"].reshape(3, 3, 3, Cm, Cm).astype(bf),
        (1, 1, 1), ((1, 1), (1, 1), (1, 1)),
        dimension_numbers=("NDHWC", "DHWIO", "NDHWC"),
        preferred_element_type=jnp.float32)
    h2 = jnp.maximum(bn(y2, p["g2"], p["be2"]), 0.0)
    y3 = jnp.einsum("ndhwc,ck->ndhwk", h2.astype(bf), p["w3"].astype(bf),
                    preferred_element_type=jnp.float32)
    out = jnp.maximum(bn(y3, p["g3"], p["be3"]) + x, 0.0)
    return jnp.transpose(out, (0, 4, 1, 2, 3))


def _reference_f32(x_ncdhw, p):
    # Faithful full-f32 reference of the PyTorch forward (with conv biases).
    hp = jax.lax.Precision.HIGHEST
    x = jnp.transpose(x_ncdhw, (0, 2, 3, 4, 1)).astype(jnp.float32)
    Cm = p["w2"].shape[1]

    def bn(y, g, b):
        m = jnp.mean(y, axis=(0, 1, 2, 3), keepdims=True)
        v = jnp.mean((y - m) ** 2, axis=(0, 1, 2, 3), keepdims=True)
        return (y - m) * jax.lax.rsqrt(v + _EPS) * g + b

    y1 = jnp.einsum("ndhwc,ck->ndhwk", x, p["w1"], precision=hp) + p["b1"]
    h1 = jnp.maximum(bn(y1, p["g1"], p["be1"]), 0.0)
    y2 = jax.lax.conv_general_dilated(
        h1, p["w2"].reshape(3, 3, 3, Cm, Cm), (1, 1, 1),
        ((1, 1), (1, 1), (1, 1)),
        dimension_numbers=("NDHWC", "DHWIO", "NDHWC"), precision=hp) + p["b2"]
    h2 = jnp.maximum(bn(y2, p["g2"], p["be2"]), 0.0)
    y3 = jnp.einsum("ndhwc,ck->ndhwk", h2, p["w3"], precision=hp) + p["b3"]
    out = jnp.maximum(bn(y3, p["g3"], p["be3"]) + x, 0.0)
    return jnp.transpose(out, (0, 4, 1, 2, 3))


if __name__ == "__main__":
    N, n_outCh, exp_coeff = 2, 8, 4
    Cin = n_outCh * exp_coeff          # residual (ds_layer=None) => Cin == Cout
    D = H = W = 8

    key = jax.random.PRNGKey(0)
    kx, kp = jax.random.split(key)
    x = jax.random.normal(kx, (N, Cin, D, H, W), jnp.float32)
    params = init_params(kp, Cin, n_outCh, exp_coeff)

    fwd = jax.jit(bottleneck_block3d_l)
    out = jax.block_until_ready(fwd(x, params))
    assert out.shape == (N, Cin, D, H, W)
    assert bool(jnp.all(jnp.isfinite(out)))

    ref_mx = jax.block_until_ready(_reference_mixed(x, params))
    ref_fp = jax.block_until_ready(_reference_f32(x, params))

    # Mixed reference shares the kernels' arithmetic class (bf16 MXU inputs,
    # f32 accumulation) but not the accumulation order -> drift through three
    # cascaded BatchNorms is expected; gate with appropriate tolerances.
    err_mx = float(jnp.max(jnp.abs(out - ref_mx)))
    err_fp = float(jnp.max(jnp.abs(out - ref_fp)))
    mean_fp = float(jnp.mean(jnp.abs(out - ref_fp)))

    if err_mx > 5e-2:
        raise AssertionError(f"mismatch vs mixed-precision reference: {err_mx}")
    if err_fp > 2.5e-1:
        raise AssertionError(f"max mismatch vs float32 reference: {err_fp}")
    if mean_fp > 2e-2:
        raise AssertionError(f"mean mismatch vs float32 reference: {mean_fp}")
    print("KERNEL_OK")
</pallas_src>

<mosaic_0001>
module attributes {stable_mosaic.version = 11 : i64} {
  func.func @_matmul_stats_kernel(%arg0: i32, %arg1: memref<1024x128xf32, #tpu.memory_space<vmem>>, %arg2: memref<128x128xbf16, #tpu.memory_space<vmem>>, %arg3: memref<1024x128xf32, #tpu.memory_space<vmem>>, %arg4: memref<1x2x128xf32, #tpu.memory_space<vmem>>) attributes {dimension_semantics = [#tpu.dimension_semantics<parallel>], iteration_bounds = array<i64: 1>, scalar_prefetch = 0 : i64, scratch_operands = 0 : i64, tpu.core_type = #tpu.core_type<tc>, window_params = [{transform_indices = @transform_0, window_bounds = array<i64: 1024, 128>}, {pipeline_mode = #tpu.pipeline_mode<synchronous>, transform_indices = @transform_1, window_bounds = array<i64: 128, 128>}, {transform_indices = @transform_2, window_bounds = array<i64: 1024, 128>}, {transform_indices = @transform_3, window_bounds = array<i64: 1, 2, 128>}]} {
    %c0 = arith.constant 0 : index
    %c0_0 = arith.constant 0 : index
    %0 = vector.load %arg1[%c0, %c0_0] : memref<1024x128xf32, #tpu.memory_space<vmem>>, vector<1024x128xf32>
    %1 = arith.truncf %0 : vector<1024x128xf32> to vector<1024x128xbf16>
    %c0_1 = arith.constant 0 : index
    %c0_2 = arith.constant 0 : index
    %2 = vector.load %arg2[%c0_1, %c0_2] : memref<128x128xbf16, #tpu.memory_space<vmem>>, vector<128x128xbf16>
    %cst = arith.constant dense<0.000000e+00> : vector<1024x128xf32>
    %3 = tpu.matmul %1, %2, %cst {dimension_numbers = #tpu.dot_dimension_numbers<[1], [0], [0], [1], [0, 0, 1, 1], [], []>} : vector<1024x128xbf16>, vector<128x128xbf16>, vector<1024x128xf32> -> vector<1024x128xf32>
    %c0_3 = arith.constant 0 : index
    %c0_4 = arith.constant 0 : index
    %4 = vector.load %arg3[%c0_3, %c0_4] : memref<1024x128xf32, #tpu.memory_space<vmem>>, vector<1024x128xf32>
    tpu.vector_store %arg3[%c0_3, %c0_4], %3 {strides = array<i32>} : memref<1024x128xf32, #tpu.memory_space<vmem>>, vector<1024x128xf32>,
    %cst_5 = arith.constant dense<0.000000e+00> : vector<128xf32>
    %5 = vector.multi_reduction <add>, %3, %cst_5 [0] : vector<1024x128xf32> to vector<128xf32>
    %6 = vector.shape_cast %5 : vector<128xf32> to vector<1x128xf32>
    %c0_6 = arith.constant 0 : index
    %c0_7 = arith.constant 0 : index
    %c0_8 = arith.constant 0 : index
    %7 = vector.load %arg4[%c0_6, %c0_7, %c0_8] : memref<1x2x128xf32, #tpu.memory_space<vmem>>, vector<1x1x128xf32>
    %8 = vector.shape_cast %7 : vector<1x1x128xf32> to vector<1x128xf32>
    %9 = vector.shape_cast %6 : vector<1x128xf32> to vector<1x1x128xf32>
    tpu.vector_store %arg4[%c0_6, %c0_7, %c0_8], %9 {strides = array<i32>} : memref<1x2x128xf32, #tpu.memory_space<vmem>>, vector<1x1x128xf32>,
    %10 = arith.mulf %3, %3 : vector<1024x128xf32>
    %cst_9 = arith.constant dense<0.000000e+00> : vector<128xf32>
    %11 = vector.multi_reduction <add>, %10, %cst_9 [0] : vector<1024x128xf32> to vector<128xf32>
    %12 = vector.shape_cast %11 : vector<128xf32> to vector<1x128xf32>
    %c0_10 = arith.constant 0 : index
    %c1 = arith.constant 1 : index
    %c0_11 = arith.constant 0 : index
    %13 = vector.load %arg4[%c0_10, %c1, %c0_11] : memref<1x2x128xf32, #tpu.memory_space<vmem>>, vector<1x1x128xf32>
    %14 = vector.shape_cast %13 : vector<1x1x128xf32> to vector<1x128xf32>
    %15 = vector.shape_cast %12 : vector<1x128xf32> to vector<1x1x128xf32>
    tpu.vector_store %arg4[%c0_10, %c1, %c0_11], %15 {strides = array<i32>} : memref<1x2x128xf32, #tpu.memory_space<vmem>>, vector<1x1x128xf32>,
    return
  }
  func.func @transform_0(%arg0: i32) -> (i32, i32) {
    %c0_i32 = arith.constant 0 : i32
    %c0_i32_0 = arith.constant 0 : i32
    return %arg0, %c0_i32 : i32, i32
  }
  func.func @transform_1(%arg0: i32) -> (i32, i32) {
    %c0_i32 = arith.constant 0 : i32
    %c0_i32_0 = arith.constant 0 : i32
    %c0_i32_1 = arith.constant 0 : i32
    return %c0_i32, %c0_i32_0 : i32, i32
  }
  func.func @transform_2(%arg0: i32) -> (i32, i32) {
    %c0_i32 = arith.constant 0 : i32
    %c0_i32_0 = arith.constant 0 : i32
    return %arg0, %c0_i32 : i32, i32
  }
  func.func @transform_3(%arg0: i32) -> (i32, i32, i32) {
    %c0_i32 = arith.constant 0 : i32
    %c0_i32_0 = arith.constant 0 : i32
    %c0_i32_1 = arith.constant 0 : i32
    return %arg0, %c0_i32, %c0_i32_0 : i32, i32, i32
  }
}

module attributes {stable_mosaic.version = 11 : i64} {
  func.func @kernel(%arg0: i32, %arg1: i32, %arg2: memref<1x1x64x128xf32, #tpu.memory_space<vmem>>, %arg3: memref<1x128xf32, #tpu.memory_space<vmem>>, %arg4: memref<1x128xf32, #tpu.memory_space<vmem>>, %arg5: memref<1x1x10x10x128xf32, #tpu.memory_space<vmem>>) attributes {dimension_semantics = [#tpu.dimension_semantics<parallel>, #tpu.dimension_semantics<parallel>], iteration_bounds = array<i64: 2, 8>, scalar_prefetch = 0 : i64, scratch_operands = 0 : i64, tpu.core_type = #tpu.core_type<tc>, window_params = [{transform_indices = @transform_0, window_bounds = array<i64: 1, 1, 64, 128>}, {pipeline_mode = #tpu.pipeline_mode<synchronous>, transform_indices = @transform_1, window_bounds = array<i64: 1, 128>}, {pipeline_mode = #tpu.pipeline_mode<synchronous>, transform_indices = @transform_2, window_bounds = array<i64: 1, 128>}, {transform_indices = @transform_3, window_bounds = array<i64: 1, 1, 10, 10, 128>}]} {
    %c0 = arith.constant 0 : index
    %c0_0 = arith.constant 0 : index
    %c0_1 = arith.constant 0 : index
    %c0_2 = arith.constant 0 : index
    %0 = vector.load %arg2[%c0, %c0_0, %c0_1, %c0_2] : memref<1x1x64x128xf32, #tpu.memory_space<vmem>>, vector<1x1x64x128xf32>
    %1 = vector.shape_cast %0 : vector<1x1x64x128xf32> to vector<64x128xf32>
    %c0_3 = arith.constant 0 : index
    %c0_4 = arith.constant 0 : index
    %2 = vector.load %arg3[%c0_3, %c0_4] : memref<1x128xf32, #tpu.memory_space<vmem>>, vector<1x128xf32>
    %3 = vector.broadcast %2 : vector<1x128xf32> to vector<64x128xf32>
    %4 = arith.mulf %1, %3 : vector<64x128xf32>
    %c0_5 = arith.constant 0 : index
    %c0_6 = arith.constant 0 : index
    %5 = vector.load %arg4[%c0_5, %c0_6] : memref<1x128xf32, #tpu.memory_space<vmem>>, vector<1x128xf32>
    %6 = vector.broadcast %5 : vector<1x128xf32> to vector<64x128xf32>
    %7 = arith.addf %4, %6 : vector<64x128xf32>
    %cst = arith.constant 0.000000e+00 : f32
    %8 = vector.broadcast %cst : f32 to vector<64x128xf32>
    %9 = arith.maximumf %7, %8 : vector<64x128xf32>
    %cst_7 = arith.constant 0.000000e+00 : f32
    %10 = vector.broadcast %cst_7 : f32 to vector<1x1x10x10x128xf32>
    %c0_8 = arith.constant 0 : index
    %c0_9 = arith.constant 0 : index
    %c0_10 = arith.constant 0 : index
    %c0_11 = arith.constant 0 : index
    %c0_12 = arith.constant 0 : index
    %11 = vector.load %arg5[%c0_8, %c0_9, %c0_10, %c0_11, %c0_12] : memref<1x1x10x10x128xf32, #tpu.memory_space<vmem>>, vector<1x1x10x10x128xf32>
    tpu.vector_store %arg5[%c0_8, %c0_9, %c0_10, %c0_11, %c0_12], %10 {strides = array<i32>} : memref<1x1x10x10x128xf32, #tpu.memory_space<vmem>>, vector<1x1x10x10x128xf32>,
    %12 = vector.shape_cast %9 : vector<64x128xf32> to vector<8x8x128xf32>
    %c0_13 = arith.constant 0 : index
    %c0_14 = arith.constant 0 : index
    %c1 = arith.constant 1 : index
    %c1_15 = arith.constant 1 : index
    %c0_16 = arith.constant 0 : index
    %13 = vector.load %arg5[%c0_13, %c0_14, %c1, %c1_15, %c0_16] : memref<1x1x10x10x128xf32, #tpu.memory_space<vmem>>, vector<1x1x8x8x128xf32>
    %14 = vector.shape_cast %13 : vector<1x1x8x8x128xf32> to vector<8x8x128xf32>
    %15 = vector.shape_cast %12 : vector<8x8x128xf32> to vector<1x1x8x8x128xf32>
    tpu.vector_store %arg5[%c0_13, %c0_14, %c1, %c1_15, %c0_16], %15 {strides = array<i32>} : memref<1x1x10x10x128xf32, #tpu.memory_space<vmem>>, vector<1x1x8x8x128xf32>,
    return
  }
  func.func @transform_0(%arg0: i32, %arg1: i32) -> (i32, i32, i32, i32) {
    %c0_i32 = arith.constant 0 : i32
    %c0_i32_0 = arith.constant 0 : i32
    %c0_i32_1 = arith.constant 0 : i32
    return %arg0, %arg1, %c0_i32, %c0_i32_0 : i32, i32, i32, i32
  }
  func.func @transform_1(%arg0: i32, %arg1: i32) -> (i32, i32) {
    %c0_i32 = arith.constant 0 : i32
    %c0_i32_0 = arith.constant 0 : i32
    %c0_i32_1 = arith.constant 0 : i32
    return %c0_i32, %c0_i32_0 : i32, i32
  }
  func.func @transform_2(%arg0: i32, %arg1: i32) -> (i32, i32) {
    %c0_i32 = arith.constant 0 : i32
    %c0_i32_0 = arith.constant 0 : i32
    %c0_i32_1 = arith.constant 0 : i32
    return %c0_i32, %c0_i32_0 : i32, i32
  }
  func.func @transform_3(%arg0: i32, %arg1: i32) -> (i32, i32, i32, i32, i32) {
    %c0_i32 = arith.constant 0 : i32
    %c0_i32_0 = arith.constant 0 : i32
    %c0_i32_1 = arith.constant 0 : i32
    %c0_i32_2 = arith.constant 0 : i32
    return %arg0, %arg1, %c0_i32, %c0_i32_0, %c0_i32_1 : i32, i32, i32, i32, i32
  }
}

module attributes {stable_mosaic.version = 11 : i64} {
  func.func @kernel(%arg0: i32, %arg1: i32, %arg2: i32, %arg3: memref<1x1x10x10x128xf32, #tpu.memory_space<vmem>>, %arg4: memref<3x1152x128xbf16, #tpu.memory_space<vmem>>, %arg5: memref<1x1x64x128xf32, #tpu.memory_space<vmem>>, %arg6: memref<1x1x2x128xf32, #tpu.memory_space<vmem>>) attributes {dimension_semantics = [#tpu.dimension_semantics<parallel>, #tpu.dimension_semantics<parallel>, #tpu.dimension_semantics<arbitrary>], iteration_bounds = array<i64: 2, 8, 3>, scalar_prefetch = 0 : i64, scratch_operands = 0 : i64, tpu.core_type = #tpu.core_type<tc>, window_params = [{transform_indices = @transform_0, window_bounds = array<i64: 1, 1, 10, 10, 128>}, {pipeline_mode = #tpu.pipeline_mode<synchronous>, transform_indices = @transform_1, window_bounds = array<i64: 3, 1152, 128>}, {transform_indices = @transform_2, window_bounds = array<i64: 1, 1, 64, 128>}, {transform_indices = @transform_3, window_bounds = array<i64: 1, 1, 2, 128>}]} {
    %c0_i32 = arith.constant 0 : i32
    %0 = arith.cmpi eq, %arg2, %c0_i32 : i32
    %1 = arith.extui %0 : i1 to i32
    %c0_i32_0 = arith.constant 0 : i32
    %2 = arith.cmpi ne, %1, %c0_i32_0 : i32
    scf.if %2 {
      %cst = arith.constant 0.000000e+00 : f32
      %13 = vector.broadcast %cst : f32 to vector<1x1x64x128xf32>
      %c0 = arith.constant 0 : index
      %c0_3 = arith.constant 0 : index
      %c0_4 = arith.constant 0 : index
      %c0_5 = arith.constant 0 : index
      %14 = vector.load %arg5[%c0, %c0_3, %c0_4, %c0_5] : memref<1x1x64x128xf32, #tpu.memory_space<vmem>>, vector<1x1x64x128xf32>
      tpu.vector_store %arg5[%c0, %c0_3, %c0_4, %c0_5], %13 {strides = array<i32>} : memref<1x1x64x128xf32, #tpu.memory_space<vmem>>, vector<1x1x64x128xf32>,
    } else {
    }
    %3 = arith.addi %arg1, %arg2 : i32
    %c1_i32 = arith.constant 1 : i32
    %4 = arith.cmpi sge, %3, %c1_i32 : i32
    %5 = arith.addi %arg1, %arg2 : i32
    %c8_i32 = arith.constant 8 : i32
    %6 = arith.cmpi sle, %5, %c8_i32 : i32
    %7 = arith.andi %4, %6 : i1
    %8 = arith.extui %7 : i1 to i32
    %c0_i32_1 = arith.constant 0 : i32
    %9 = arith.cmpi ne, %8, %c0_i32_1 : i32
    scf.if %9 {
      %c0 = arith.constant 0 : index
      %c0_3 = arith.constant 0 : index
      %c0_4 = arith.constant 0 : index
      %c0_5 = arith.constant 0 : index
      %c0_6 = arith.constant 0 : index
      %13 = vector.load %arg3[%c0, %c0_3, %c0_4, %c0_5, %c0_6] : memref<1x1x10x10x128xf32, #tpu.memory_space<vmem>>, vector<1x1x8x8x128xf32>
      %14 = vector.shape_cast %13 : vector<1x1x8x8x128xf32> to vector<8x8x128xf32>
      %15 = vector.shape_cast %14 : vector<8x8x128xf32> to vector<64x128xf32>
      %16 = arith.truncf %15 : vector<64x128xf32> to vector<64x128xbf16>
      %c0_7 = arith.constant 0 : index
      %c0_8 = arith.constant 0 : index
      %c0_9 = arith.constant 0 : index
      %c1 = arith.constant 1 : index
      %c0_10 = arith.constant 0 : index
      %17 = vector.load %arg3[%c0_7, %c0_8, %c0_9, %c1, %c0_10] : memref<1x1x10x10x128xf32, #tpu.memory_space<vmem>>, vector<1x1x8x8x128xf32>
      %18 = vector.shape_cast %17 : vector<1x1x8x8x128xf32> to vector<8x8x128xf32>
      %19 = vector.shape_cast %18 : vector<8x8x128xf32> to vector<64x128xf32>
      %20 = arith.truncf %19 : vector<64x128xf32> to vector<64x128xbf16>
      %c0_11 = arith.constant 0 : index
      %c0_12 = arith.constant 0 : index
      %c0_13 = arith.constant 0 : index
      %c2 = arith.constant 2 : index
      %c0_14 = arith.constant 0 : index
      %21 = vector.load %arg3[%c0_11, %c0_12, %c0_13, %c2, %c0_14] : memref<1x1x10x10x128xf32, #tpu.memory_space<vmem>>, vector<1x1x8x8x128xf32>
      %22 = vector.shape_cast %21 : vector<1x1x8x8x128xf32> to vector<8x8x128xf32>
      %23 = vector.shape_cast %22 : vector<8x8x128xf32> to vector<64x128xf32>
      %24 = arith.truncf %23 : vector<64x128xf32> to vector<64x128xbf16>
      %c0_15 = arith.constant 0 : index
      %c0_16 = arith.constant 0 : index
      %c1_17 = arith.constant 1 : index
      %c0_18 = arith.constant 0 : index
      %c0_19 = arith.constant 0 : index
      %25 = vector.load %arg3[%c0_15, %c0_16, %c1_17, %c0_18, %c0_19] : memref<1x1x10x10x128xf32, #tpu.memory_space<vmem>>, vector<1x1x8x8x128xf32>
      %26 = vector.shape_cast %25 : vector<1x1x8x8x128xf32> to vector<8x8x128xf32>
      %27 = vector.shape_cast %26 : vector<8x8x128xf32> to vector<64x128xf32>
      %28 = arith.truncf %27 : vector<64x128xf32> to vector<64x128xbf16>
      %c0_20 = arith.constant 0 : index
      %c0_21 = arith.constant 0 : index
      %c1_22 = arith.constant 1 : index
      %c1_23 = arith.constant 1 : index
      %c0_24 = arith.constant 0 : index
      %29 = vector.load %arg3[%c0_20, %c0_21, %c1_22, %c1_23, %c0_24] : memref<1x1x10x10x128xf32, #tpu.memory_space<vmem>>, vector<1x1x8x8x128xf32>
      %30 = vector.shape_cast %29 : vector<1x1x8x8x128xf32> to vector<8x8x128xf32>
      %31 = vector.shape_cast %30 : vector<8x8x128xf32> to vector<64x128xf32>
      %32 = arith.truncf %31 : vector<64x128xf32> to vector<64x128xbf16>
      %c0_25 = arith.constant 0 : index
      %c0_26 = arith.constant 0 : index
      %c1_27 = arith.constant 1 : index
      %c2_28 = arith.constant 2 : index
      %c0_29 = arith.constant 0 : index
      %33 = vector.load %arg3[%c0_25, %c0_26, %c1_27, %c2_28, %c0_29] : memref<1x1x10x10x128xf32, #tpu.memory_space<vmem>>, vector<1x1x8x8x128xf32>
      %34 = vector.shape_cast %33 : vector<1x1x8x8x128xf32> to vector<8x8x128xf32>
      %35 = vector.shape_cast %34 : vector<8x8x128xf32> to vector<64x128xf32>
      %36 = arith.truncf %35 : vector<64x128xf32> to vector<64x128xbf16>
      %c0_30 = arith.constant 0 : index
      %c0_31 = arith.constant 0 : index
      %c2_32 = arith.constant 2 : index
      %c0_33 = arith.constant 0 : index
      %c0_34 = arith.constant 0 : index
      %37 = vector.load %arg3[%c0_30, %c0_31, %c2_32, %c0_33, %c0_34] : memref<1x1x10x10x128xf32, #tpu.memory_space<vmem>>, vector<1x1x8x8x128xf32>
      %38 = vector.shape_cast %37 : vector<1x1x8x8x128xf32> to vector<8x8x128xf32>
      %39 = vector.shape_cast %38 : vector<8x8x128xf32> to vector<64x128xf32>
      %40 = arith.truncf %39 : vector<64x128xf32> to vector<64x128xbf16>
      %c0_35 = arith.constant 0 : index
      %c0_36 = arith.constant 0 : index
      %c2_37 = arith.constant 2 : index
      %c1_38 = arith.constant 1 : index
      %c0_39 = arith.constant 0 : index
      %41 = vector.load %arg3[%c0_35, %c0_36, %c2_37, %c1_38, %c0_39] : memref<1x1x10x10x128xf32, #tpu.memory_space<vmem>>, vector<1x1x8x8x128xf32>
      %42 = vector.shape_cast %41 : vector<1x1x8x8x128xf32> to vector<8x8x128xf32>
      %43 = vector.shape_cast %42 : vector<8x8x128xf32> to vector<64x128xf32>
      %44 = arith.truncf %43 : vector<64x128xf32> to vector<64x128xbf16>
      %c0_40 = arith.constant 0 : index
      %c0_41 = arith.constant 0 : index
      %c2_42 = arith.constant 2 : index
      %c2_43 = arith.constant 2 : index
      %c0_44 = arith.constant 0 : index
      %45 = vector.load %arg3[%c0_40, %c0_41, %c2_42, %c2_43, %c0_44] : memref<1x1x10x10x128xf32, #tpu.memory_space<vmem>>, vector<1x1x8x8x128xf32>
      %46 = vector.shape_cast %45 : vector<1x1x8x8x128xf32> to vector<8x8x128xf32>
      %47 = vector.shape_cast %46 : vector<8x8x128xf32> to vector<64x128xf32>
      %48 = arith.truncf %47 : vector<64x128xf32> to vector<64x128xbf16>
      %49 = tpu.concatenate %16, %20, %24, %28, %32, %36, %40, %44, %48 in 1 : vector<64x128xbf16>, vector<64x128xbf16>, vector<64x128xbf16>, vector<64x128xbf16>, vector<64x128xbf16>, vector<64x128xbf16>, vector<64x128xbf16>, vector<64x128xbf16>, vector<64x128xbf16> -> vector<64x1152xbf16>
      %c0_45 = arith.constant 0 : index
      %c0_46 = arith.constant 0 : index
      %c0_47 = arith.constant 0 : index
      %c0_48 = arith.constant 0 : index
      %50 = vector.load %arg5[%c0_45, %c0_46, %c0_47, %c0_48] : memref<1x1x64x128xf32, #tpu.memory_space<vmem>>, vector<1x1x64x128xf32>
      %51 = vector.shape_cast %50 : vector<1x1x64x128xf32> to vector<64x128xf32>
      %52 = arith.index_cast %arg2 : i32 to index
      %c0_49 = arith.constant 0 : index
      %c0_50 = arith.constant 0 : index
      %53 = vector.load %arg4[%52, %c0_49, %c0_50] : memref<3x1152x128xbf16, #tpu.memory_space<vmem>>, vector<1x1152x128xbf16>
      %54 = vector.shape_cast %53 : vector<1x1152x128xbf16> to vector<1152x128xbf16>
      %cst = arith.constant dense<0.000000e+00> : vector<64x128xf32>
      %55 = tpu.matmul %49, %54, %cst {dimension_numbers = #tpu.dot_dimension_numbers<[1], [0], [0], [1], [0, 0, 1, 1], [], []>} : vector<64x1152xbf16>, vector<1152x128xbf16>, vector<64x128xf32> -> vector<64x128xf32>
      %56 = arith.addf %51, %55 : vector<64x128xf32>
      %c0_51 = arith.constant 0 : index
      %c0_52 = arith.constant 0 : index
      %c0_53 = arith.constant 0 : index
      %c0_54 = arith.constant 0 : index
      %57 = vector.load %arg5[%c0_51, %c0_52, %c0_53, %c0_54] : memref<1x1x64x128xf32, #tpu.memory_space<vmem>>, vector<1x1x64x128xf32>
      %58 = vector.shape_cast %57 : vector<1x1x64x128xf32> to vector<64x128xf32>
      %59 = vector.shape_cast %56 : vector<64x128xf32> to vector<1x1x64x128xf32>
      tpu.vector_store %arg5[%c0_51, %c0_52, %c0_53, %c0_54], %59 {strides = array<i32>} : memref<1x1x64x128xf32, #tpu.memory_space<vmem>>, vector<1x1x64x128xf32>,
    } else {
    }
    %c2_i32 = arith.constant 2 : i32
    %10 = arith.cmpi eq, %arg2, %c2_i32 : i32
    %11 = arith.extui %10 : i1 to i32
    %c0_i32_2 = arith.constant 0 : i32
    %12 = arith.cmpi ne, %11, %c0_i32_2 : i32
    scf.if %12 {
      %c0 = arith.constant 0 : index
      %c0_3 = arith.constant 0 : index
      %c0_4 = arith.constant 0 : index
      %c0_5 = arith.constant 0 : index
      %13 = vector.load %arg5[%c0, %c0_3, %c0_4, %c0_5] : memref<1x1x64x128xf32, #tpu.memory_space<vmem>>, vector<1x1x64x128xf32>
      %14 = vector.shape_cast %13 : vector<1x1x64x128xf32> to vector<64x128xf32>
      %cst = arith.constant dense<0.000000e+00> : vector<128xf32>
      %15 = vector.multi_reduction <add>, %14, %cst [0] : vector<64x128xf32> to vector<128xf32>
      %16 = vector.shape_cast %15 : vector<128xf32> to vector<1x128xf32>
      %c0_6 = arith.constant 0 : index
      %c0_7 = arith.constant 0 : index
      %c0_8 = arith.constant 0 : index
      %c0_9 = arith.constant 0 : index
      %17 = vector.load %arg6[%c0_6, %c0_7, %c0_8, %c0_9] : memref<1x1x2x128xf32, #tpu.memory_space<vmem>>, vector<1x1x1x128xf32>
      %18 = vector.shape_cast %17 : vector<1x1x1x128xf32> to vector<1x128xf32>
      %19 = vector.shape_cast %16 : vector<1x128xf32> to vector<1x1x1x128xf32>
      tpu.vector_store %arg6[%c0_6, %c0_7, %c0_8, %c0_9], %19 {strides = array<i32>} : memref<1x1x2x128xf32, #tpu.memory_space<vmem>>, vector<1x1x1x128xf32>,
      %20 = arith.mulf %14, %14 : vector<64x128xf32>
      %cst_10 = arith.constant dense<0.000000e+00> : vector<128xf32>
      %21 = vector.multi_reduction <add>, %20, %cst_10 [0] : vector<64x128xf32> to vector<128xf32>
      %22 = vector.shape_cast %21 : vector<128xf32> to vector<1x128xf32>
      %c0_11 = arith.constant 0 : index
      %c0_12 = arith.constant 0 : index
      %c1 = arith.constant 1 : index
      %c0_13 = arith.constant 0 : index
      %23 = vector.load %arg6[%c0_11, %c0_12, %c1, %c0_13] : memref<1x1x2x128xf32, #tpu.memory_space<vmem>>, vector<1x1x1x128xf32>
      %24 = vector.shape_cast %23 : vector<1x1x1x128xf32> to vector<1x128xf32>
      %25 = vector.shape_cast %22 : vector<1x128xf32> to vector<1x1x1x128xf32>
      tpu.vector_store %arg6[%c0_11, %c0_12, %c1, %c0_13], %25 {strides = array<i32>} : memref<1x1x2x128xf32, #tpu.memory_space<vmem>>, vector<1x1x1x128xf32>,
    } else {
    }
    return
  }
  func.func @transform_0(%arg0: i32, %arg1: i32, %arg2: i32) -> (i32, i32, i32, i32, i32) {
    %0 = arith.addi %arg1, %arg2 : i32
    %c1_i32 = arith.constant 1 : i32
    %1 = arith.subi %0, %c1_i32 : i32
    %c0_i32 = arith.constant 0 : i32
    %2 = arith.maxsi %1, %c0_i32 : i32
    %c7_i32 = arith.constant 7 : i32
    %3 = arith.minsi %2, %c7_i32 : i32
    %c0_i32_0 = arith.constant 0 : i32
    %c0_i32_1 = arith.constant 0 : i32
    %c0_i32_2 = arith.constant 0 : i32
    %c0_i32_3 = arith.constant 0 : i32
    return %arg0, %3, %c0_i32_0, %c0_i32_1, %c0_i32_2 : i32, i32, i32, i32, i32
  }
  func.func @transform_1(%arg0: i32, %arg1: i32, %arg2: i32) -> (i32, i32, i32) {
    %c0_i32 = arith.constant 0 : i32
    %c0_i32_0 = arith.constant 0 : i32
    %c0_i32_1 = arith.constant 0 : i32
    %c0_i32_2 = arith.constant 0 : i32
    return %c0_i32, %c0_i32_0, %c0_i32_1 : i32, i32, i32
  }
  func.func @transform_2(%arg0: i32, %arg1: i32, %arg2: i32) -> (i32, i32, i32, i32) {
    %c0_i32 = arith.constant 0 : i32
    %c0_i32_0 = arith.constant 0 : i32
    %c0_i32_1 = arith.constant 0 : i32
    return %arg0, %arg1, %c0_i32, %c0_i32_0 : i32, i32, i32, i32
  }
  func.func @transform_3(%arg0: i32, %arg1: i32, %arg2: i32) -> (i32, i32, i32, i32) {
    %c0_i32 = arith.constant 0 : i32
    %c0_i32_0 = arith.constant 0 : i32
    %c0_i32_1 = arith.constant 0 : i32
    return %arg0, %arg1, %c0_i32, %c0_i32_0 : i32, i32, i32, i32
  }
}

module attributes {stable_mosaic.version = 11 : i64} {
  func.func @_bn_relu_matmul_stats_kernel(%arg0: i32, %arg1: memref<1024x128xf32, #tpu.memory_space<vmem>>, %arg2: memref<1x128xf32, #tpu.memory_space<vmem>>, %arg3: memref<1x128xf32, #tpu.memory_space<vmem>>, %arg4: memref<128x128xbf16, #tpu.memory_space<vmem>>, %arg5: memref<1024x128xf32, #tpu.memory_space<vmem>>, %arg6: memref<1x2x128xf32, #tpu.memory_space<vmem>>) attributes {dimension_semantics = [#tpu.dimension_semantics<parallel>], iteration_bounds = array<i64: 1>, scalar_prefetch = 0 : i64, scratch_operands = 0 : i64, tpu.core_type = #tpu.core_type<tc>, window_params = [{transform_indices = @transform_0, window_bounds = array<i64: 1024, 128>}, {pipeline_mode = #tpu.pipeline_mode<synchronous>, transform_indices = @transform_1, window_bounds = array<i64: 1, 128>}, {pipeline_mode = #tpu.pipeline_mode<synchronous>, transform_indices = @transform_2, window_bounds = array<i64: 1, 128>}, {pipeline_mode = #tpu.pipeline_mode<synchronous>, transform_indices = @transform_3, window_bounds = array<i64: 128, 128>}, {transform_indices = @transform_4, window_bounds = array<i64: 1024, 128>}, {transform_indices = @transform_5, window_bounds = array<i64: 1, 2, 128>}]} {
    %c0 = arith.constant 0 : index
    %c0_0 = arith.constant 0 : index
    %0 = vector.load %arg1[%c0, %c0_0] : memref<1024x128xf32, #tpu.memory_space<vmem>>, vector<1024x128xf32>
    %c0_1 = arith.constant 0 : index
    %c0_2 = arith.constant 0 : index
    %1 = vector.load %arg2[%c0_1, %c0_2] : memref<1x128xf32, #tpu.memory_space<vmem>>, vector<1x128xf32>
    %2 = vector.broadcast %1 : vector<1x128xf32> to vector<1024x128xf32>
    %3 = arith.mulf %0, %2 : vector<1024x128xf32>
    %c0_3 = arith.constant 0 : index
    %c0_4 = arith.constant 0 : index
    %4 = vector.load %arg3[%c0_3, %c0_4] : memref<1x128xf32, #tpu.memory_space<vmem>>, vector<1x128xf32>
    %5 = vector.broadcast %4 : vector<1x128xf32> to vector<1024x128xf32>
    %6 = arith.addf %3, %5 : vector<1024x128xf32>
    %cst = arith.constant 0.000000e+00 : f32
    %7 = vector.broadcast %cst : f32 to vector<1024x128xf32>
    %8 = arith.maximumf %6, %7 : vector<1024x128xf32>
    %9 = arith.truncf %8 : vector<1024x128xf32> to vector<1024x128xbf16>
    %c0_5 = arith.constant 0 : index
    %c0_6 = arith.constant 0 : index
    %10 = vector.load %arg4[%c0_5, %c0_6] : memref<128x128xbf16, #tpu.memory_space<vmem>>, vector<128x128xbf16>
    %cst_7 = arith.constant dense<0.000000e+00> : vector<1024x128xf32>
    %11 = tpu.matmul %9, %10, %cst_7 {dimension_numbers = #tpu.dot_dimension_numbers<[1], [0], [0], [1], [0, 0, 1, 1], [], []>} : vector<1024x128xbf16>, vector<128x128xbf16>, vector<1024x128xf32> -> vector<1024x128xf32>
    %c0_8 = arith.constant 0 : index
    %c0_9 = arith.constant 0 : index
    %12 = vector.load %arg5[%c0_8, %c0_9] : memref<1024x128xf32, #tpu.memory_space<vmem>>, vector<1024x128xf32>
    tpu.vector_store %arg5[%c0_8, %c0_9], %11 {strides = array<i32>} : memref<1024x128xf32, #tpu.memory_space<vmem>>, vector<1024x128xf32>,
    %cst_10 = arith.constant dense<0.000000e+00> : vector<128xf32>
    %13 = vector.multi_reduction <add>, %11, %cst_10 [0] : vector<1024x128xf32> to vector<128xf32>
    %14 = vector.shape_cast %13 : vector<128xf32> to vector<1x128xf32>
    %c0_11 = arith.constant 0 : index
    %c0_12 = arith.constant 0 : index
    %c0_13 = arith.constant 0 : index
    %15 = vector.load %arg6[%c0_11, %c0_12, %c0_13] : memref<1x2x128xf32, #tpu.memory_space<vmem>>, vector<1x1x128xf32>
    %16 = vector.shape_cast %15 : vector<1x1x128xf32> to vector<1x128xf32>
    %17 = vector.shape_cast %14 : vector<1x128xf32> to vector<1x1x128xf32>
    tpu.vector_store %arg6[%c0_11, %c0_12, %c0_13], %17 {strides = array<i32>} : memref<1x2x128xf32, #tpu.memory_space<vmem>>, vector<1x1x128xf32>,
    %18 = arith.mulf %11, %11 : vector<1024x128xf32>
    %cst_14 = arith.constant dense<0.000000e+00> : vector<128xf32>
    %19 = vector.multi_reduction <add>, %18, %cst_14 [0] : vector<1024x128xf32> to vector<128xf32>
    %20 = vector.shape_cast %19 : vector<128xf32> to vector<1x128xf32>
    %c0_15 = arith.constant 0 : index
    %c1 = arith.constant 1 : index
    %c0_16 = arith.constant 0 : index
    %21 = vector.load %arg6[%c0_15, %c1, %c0_16] : memref<1x2x128xf32, #tpu.memory_space<vmem>>, vector<1x1x128xf32>
    %22 = vector.shape_cast %21 : vector<1x1x128xf32> to vector<1x128xf32>
    %23 = vector.shape_cast %20 : vector<1x128xf32> to vector<1x1x128xf32>
    tpu.vector_store %arg6[%c0_15, %c1, %c0_16], %23 {strides = array<i32>} : memref<1x2x128xf32, #tpu.memory_space<vmem>>, vector<1x1x128xf32>,
    return
  }
  func.func @transform_0(%arg0: i32) -> (i32, i32) {
    %c0_i32 = arith.constant 0 : i32
    %c0_i32_0 = arith.constant 0 : i32
    return %arg0, %c0_i32 : i32, i32
  }
  func.func @transform_1(%arg0: i32) -> (i32, i32) {
    %c0_i32 = arith.constant 0 : i32
    %c0_i32_0 = arith.constant 0 : i32
    %c0_i32_1 = arith.constant 0 : i32
    return %c0_i32, %c0_i32_0 : i32, i32
  }
  func.func @transform_2(%arg0: i32) -> (i32, i32) {
    %c0_i32 = arith.constant 0 : i32
    %c0_i32_0 = arith.constant 0 : i32
    %c0_i32_1 = arith.constant 0 : i32
    return %c0_i32, %c0_i32_0 : i32, i32
  }
  func.func @transform_3(%arg0: i32) -> (i32, i32) {
    %c0_i32 = arith.constant 0 : i32
    %c0_i32_0 = arith.constant 0 : i32
    %c0_i32_1 = arith.constant 0 : i32
    return %c0_i32, %c0_i32_0 : i32, i32
  }
  func.func @transform_4(%arg0: i32) -> (i32, i32) {
    %c0_i32 = arith.constant 0 : i32
    %c0_i32_0 = arith.constant 0 : i32
    return %arg0, %c0_i32 : i32, i32
  }
  func.func @transform_5(%arg0: i32) -> (i32, i32, i32) {
    %c0_i32 = arith.constant 0 : i32
    %c0_i32_0 = arith.constant 0 : i32
    %c0_i32_1 = arith.constant 0 : i32
    return %arg0, %c0_i32, %c0_i32_0 : i32, i32, i32
  }
}

module attributes {stable_mosaic.version = 11 : i64} {
  func.func @_bn_res_relu_kernel(%arg0: i32, %arg1: memref<1024x128xf32, #tpu.memory_space<vmem>>, %arg2: memref<1x128xf32, #tpu.memory_space<vmem>>, %arg3: memref<1x128xf32, #tpu.memory_space<vmem>>, %arg4: memref<1024x128xf32, #tpu.memory_space<vmem>>, %arg5: memref<1024x128xf32, #tpu.memory_space<vmem>>) attributes {dimension_semantics = [#tpu.dimension_semantics<parallel>], iteration_bounds = array<i64: 1>, scalar_prefetch = 0 : i64, scratch_operands = 0 : i64, tpu.core_type = #tpu.core_type<tc>, window_params = [{transform_indices = @transform_0, window_bounds = array<i64: 1024, 128>}, {pipeline_mode = #tpu.pipeline_mode<synchronous>, transform_indices = @transform_1, window_bounds = array<i64: 1, 128>}, {pipeline_mode = #tpu.pipeline_mode<synchronous>, transform_indices = @transform_2, window_bounds = array<i64: 1, 128>}, {transform_indices = @transform_3, window_bounds = array<i64: 1024, 128>}, {transform_indices = @transform_4, window_bounds = array<i64: 1024, 128>}]} {
    %c0 = arith.constant 0 : index
    %c0_0 = arith.constant 0 : index
    %0 = vector.load %arg1[%c0, %c0_0] : memref<1024x128xf32, #tpu.memory_space<vmem>>, vector<1024x128xf32>
    %c0_1 = arith.constant 0 : index
    %c0_2 = arith.constant 0 : index
    %1 = vector.load %arg2[%c0_1, %c0_2] : memref<1x128xf32, #tpu.memory_space<vmem>>, vector<1x128xf32>
    %2 = vector.broadcast %1 : vector<1x128xf32> to vector<1024x128xf32>
    %3 = arith.mulf %0, %2 : vector<1024x128xf32>
    %c0_3 = arith.constant 0 : index
    %c0_4 = arith.constant 0 : index
    %4 = vector.load %arg3[%c0_3, %c0_4] : memref<1x128xf32, #tpu.memory_space<vmem>>, vector<1x128xf32>
    %5 = vector.broadcast %4 : vector<1x128xf32> to vector<1024x128xf32>
    %6 = arith.addf %3, %5 : vector<1024x128xf32>
    %c0_5 = arith.constant 0 : index
    %c0_6 = arith.constant 0 : index
    %7 = vector.load %arg4[%c0_5, %c0_6] : memref<1024x128xf32, #tpu.memory_space<vmem>>, vector<1024x128xf32>
    %8 = arith.addf %6, %7 : vector<1024x128xf32>
    %cst = arith.constant 0.000000e+00 : f32
    %9 = vector.broadcast %cst : f32 to vector<1024x128xf32>
    %10 = arith.maximumf %8, %9 : vector<1024x128xf32>
    %c0_7 = arith.constant 0 : index
    %c0_8 = arith.constant 0 : index
    %11 = vector.load %arg5[%c0_7, %c0_8] : memref<1024x128xf32, #tpu.memory_space<vmem>>, vector<1024x128xf32>
    tpu.vector_store %arg5[%c0_7, %c0_8], %10 {strides = array<i32>} : memref<1024x128xf32, #tpu.memory_space<vmem>>, vector<1024x128xf32>,
    return
  }
  func.func @transform_0(%arg0: i32) -> (i32, i32) {
    %c0_i32 = arith.constant 0 : i32
    %c0_i32_0 = arith.constant 0 : i32
    return %arg0, %c0_i32 : i32, i32
  }
  func.func @transform_1(%arg0: i32) -> (i32, i32) {
    %c0_i32 = arith.constant 0 : i32
    %c0_i32_0 = arith.constant 0 : i32
    %c0_i32_1 = arith.constant 0 : i32
    return %c0_i32, %c0_i32_0 : i32, i32
  }
  func.func @transform_2(%arg0: i32) -> (i32, i32) {
    %c0_i32 = arith.constant 0 : i32
    %c0_i32_0 = arith.constant 0 : i32
    %c0_i32_1 = arith.constant 0 : i32
    return %c0_i32, %c0_i32_0 : i32, i32
  }
  func.func @transform_3(%arg0: i32) -> (i32, i32) {
    %c0_i32 = arith.constant 0 : i32
    %c0_i32_0 = arith.constant 0 : i32
    return %arg0, %c0_i32 : i32, i32
  }
  func.func @transform_4(%arg0: i32) -> (i32, i32) {
    %c0_i32 = arith.constant 0 : i32
    %c0_i32_0 = arith.constant 0 : i32
    return %arg0, %c0_i32 : i32, i32
  }
}

</mosaic_0001>

<llo_original>
// kernel: bottleneck_block3d_l.6
$region0: #{bottleneck_block3d_l.6}
  #allocation0 [shape = 'u32[]', space=smem, size = 0x4, offset = 0x4, fixed_abs, tag = 'smem constant byte address 0x4 - core index']
  #allocation1 [shape = 'u32[144,128]{1,0:T(1,128)}', space=vmem, size = 0x12000, scoped, tag = 'internal scratch']
  %s0 = inlined_call_operand.vmem [shape: f32[2,8,64,128], index: 0, kind: input, shape index: {}]
  %s1 = inlined_call_operand.vmem [shape: f32[1,128], index: 1, kind: input, shape index: {}]
  %s2 = inlined_call_operand.vmem [shape: f32[1,128], index: 2, kind: input, shape index: {}]
  %s3 = inlined_call_operand.vmem [shape: f32[2,8,10,10,128], index: 3, kind: output, shape index: {}]
  %s4 = sld [smem:[#allocation0]]
  $region45: #{bottleneck_block3d_l.6} parent=0
    _
  %s6 = ssub.s32 1, %s4
  %s7 = scalar_select 0, %s6, %s4
  loop: start=0, step=1, limit=18
  $region2: #{bottleneck_block3d_l.6} parent=0 // loop_pre_header
    _
  $region3: #{bottleneck_block3d_l.6} parent=0 // loop_header
    %s9 = sphi 0, %s13
    %p10 = scmp.ge.s32.totalorder %s9, 18
    %s16 = sphi 0, %s28
    %s17 = sphi 0, %s24
    %s18 = sphi 0, %s16
    %s19 = sphi 0, %s17
    %s20 = sphi 0, %s18
    %s21 = sphi 0, %s19
    %s33 = sphi 0, %s35
    %s36 = sphi 0, %s33
    %s37 = sphi 0, %s36
    %s53 = sphi 0, %s37
    %s57 = sphi 0, %s57
    %s59 = sphi 0, %s57
    %s60 = sphi 0, %s59
    %s74 = sphi 0, %s60
    %s78 = sphi 0, %s78
    %s80 = sphi 0, %s78
    %s81 = sphi 0, %s80
    %s95 = sphi 0, %s81
    %s103 = sphi 0, %s105
    %s106 = sphi 0, %s103
    %s107 = sphi 0, %s106
    %s123 = sphi 0, %s107
  $region4: #{bottleneck_block3d_l.6} parent=0 // loop_header_branch
    %12 = sbr.rel (%p10) target = $region8
  $region5: #{bottleneck_block3d_l.6} parent=0 // loop_body
    %s14 = ssub.s32 %s9, 1
    %s15 = ssub.s32 %s9, 2
    %s22 = sadd.s32 1, %s17
    %p23 = scmp.ge.s32.totalorder %s22, 8
    %s24 = scalar_select %p23, 0, %s22
    %s25 = sadd.s32 1, %s16
    %s26 = scalar_select %p23, %s25, %s16
    %p27 = scmp.ge.s32.totalorder %s26, 2
    %s28 = scalar_select %p27, 0, %s26
    %s29 = ssub.s32 %s16, %s28
    %s30 = ssub.s32 %s17, %s24
    %s31 = sor.u32 %s29, %s30
    %p32 = scmp.eq.s32.totalorder %s31, 0
    %s34 = sadd.s32 %s33, 1
    %s35 = scalar_select %p32, %s33, %s34
    %p38 = pneg %p32
    %p39 = scmp.eq.s32.totalorder %s9, 15
    %p40 = por %p38, %p39
    %p41 = scmp.ne.s32.totalorder %s33, %s36
    %p42 = scmp.eq.s32.totalorder %s9, 0
    %p43 = por %p41, %p42
    %p44 = scmp.ne.s32.totalorder %s33, %s36
    %p45 = scmp.eq.s32.totalorder %s14, 15
    %p46 = por %p44, %p45
    %p47 = scmp.ne.s32.totalorder %s36, %s37
    %p48 = scmp.eq.s32.totalorder %s14, 0
    %p49 = por %p47, %p48
    %p50 = scmp.ne.s32.totalorder %s36, %s37
    %p51 = scmp.eq.s32.totalorder %s15, 15
    %p52 = por %p50, %p51
    %p54 = scmp.ne.s32.totalorder %s37, %s53
    %p55 = scmp.eq.s32.totalorder %s15, 0
    %p56 = por %p54, %p55
    %s58 = sadd.s32 %s57, 1
    %p61 = scmp.eq.s32.totalorder %s9, 15
    %p62 = scmp.ne.s32.totalorder %s57, %s59
    %p63 = scmp.eq.s32.totalorder %s9, 0
    %p64 = por %p62, %p63
    %p65 = scmp.ne.s32.totalorder %s57, %s59
    %p66 = scmp.eq.s32.totalorder %s14, 15
    %p67 = por %p65, %p66
    %p68 = scmp.ne.s32.totalorder %s59, %s60
    %p69 = scmp.eq.s32.totalorder %s14, 0
    %p70 = por %p68, %p69
    %p71 = scmp.ne.s32.totalorder %s59, %s60
    %p72 = scmp.eq.s32.totalorder %s15, 15
    %p73 = por %p71, %p72
    %p75 = scmp.ne.s32.totalorder %s60, %s74
    %p76 = scmp.eq.s32.totalorder %s15, 0
    %p77 = por %p75, %p76
    %s79 = sadd.s32 %s78, 1
    %p82 = scmp.eq.s32.totalorder %s9, 15
    %p83 = scmp.ne.s32.totalorder %s78, %s80
    %p84 = scmp.eq.s32.totalorder %s9, 0
    %p85 = por %p83, %p84
    %p86 = scmp.ne.s32.totalorder %s78, %s80
    %p87 = scmp.eq.s32.totalorder %s14, 15
    %p88 = por %p86, %p87
    %p89 = scmp.ne.s32.totalorder %s80, %s81
    %p90 = scmp.eq.s32.totalorder %s14, 0
    %p91 = por %p89, %p90
    %p92 = scmp.ne.s32.totalorder %s80, %s81
    %p93 = scmp.eq.s32.totalorder %s15, 15
    %p94 = por %p92, %p93
    %p96 = scmp.ne.s32.totalorder %s81, %s95
    %p97 = scmp.eq.s32.totalorder %s15, 0
    %p98 = por %p96, %p97
    %s99 = ssub.s32 %s16, %s28
    %s100 = ssub.s32 %s17, %s24
    %s101 = sor.u32 %s99, %s100
    %p102 = scmp.eq.s32.totalorder %s101, 0
    %s104 = sadd.s32 %s103, 1
    %s105 = scalar_select %p102, %s103, %s104
    %p108 = pneg %p102
    %p109 = scmp.eq.s32.totalorder %s9, 15
    %p110 = por %p108, %p109
    %p111 = scmp.ne.s32.totalorder %s103, %s106
    %p112 = scmp.eq.s32.totalorder %s9, 0
    %p113 = por %p111, %p112
    %p114 = scmp.ne.s32.totalorder %s103, %s106
    %p115 = scmp.eq.s32.totalorder %s14, 15
    %p116 = por %p114, %p115
    %p117 = scmp.ne.s32.totalorder %s106, %s107
    %p118 = scmp.eq.s32.totalorder %s14, 0
    %p119 = por %p117, %p118
    %p120 = scmp.ne.s32.totalorder %s106, %s107
    %p121 = scmp.eq.s32.totalorder %s15, 15
    %p122 = por %p120, %p121
    %p124 = scmp.ne.s32.totalorder %s107, %s123
    %p125 = scmp.eq.s32.totalorder %s15, 0
    %p126 = por %p124, %p125
    %p127 = scmp.le.s32.totalorder 1, %s9
    %p128 = scmp.lt.s32.totalorder %s9, 17
    %p129 = pnand %p127, %p128
    %p130 = pneg %p129
    // Predicated region
    $region9: #{bottleneck_block3d_l.6} parent=5 // pred_check
      _
    $region10: #{bottleneck_block3d_l.6} parent=5 // pred_check_branch
      %132 = sbr.rel (%p129) target = $region12
    $region11: #{bottleneck_block3d_l.6} parent=5 // pred_region
      %s133 = ssub.s32 %s9, 1
      // Predicated region
      $region13: #{bottleneck_block3d_l.6} parent=11 // pred_check
        %p134 = pneg %p70
      $region14: #{bottleneck_block3d_l.6} parent=11 // pred_check_branch
        %136 = sbr.rel (%p134) target = $region16
      $region15: #{bottleneck_block3d_l.6} parent=11 // pred_region
        _
      $region16: #{bottleneck_block3d_l.6} parent=11 // pred_fallthru
        _
      // Predicated region
      $region17: #{bottleneck_block3d_l.6} parent=11 // pred_check
        %p137 = pneg %p91
      $region18: #{bottleneck_block3d_l.6} parent=11 // pred_check_branch
        %139 = sbr.rel (%p137) target = $region20
      $region19: #{bottleneck_block3d_l.6} parent=11 // pred_region
        _
      $region20: #{bottleneck_block3d_l.6} parent=11 // pred_fallthru
        _
    $region12: #{bottleneck_block3d_l.6} parent=5 // pred_fallthru
      _
    %p140 = scmp.lt.s32.totalorder %s9, 16
    // Predicated region
    $region21: #{bottleneck_block3d_l.6} parent=5 // pred_check
      %p141 = pneg %p140
    $region22: #{bottleneck_block3d_l.6} parent=5 // pred_check_branch
      %143 = sbr.rel (%p141) target = $region24
    $region23: #{bottleneck_block3d_l.6} parent=5 // pred_region
      // Predicated region
      $region25: #{bottleneck_block3d_l.6} parent=23 // pred_check
        %p144 = pneg %p43
      $region26: #{bottleneck_block3d_l.6} parent=23 // pred_check_branch
        %146 = sbr.rel (%p144) target = $region28
      $region27: #{bottleneck_block3d_l.6} parent=23 // pred_region
        %p147 = scmp.lt.s32.totalorder %s16, 1
        %s148 = scalar_select %p147, %s16, 1
        %p149 = scmp.lt.s32.totalorder %s17, 7
        %s150 = scalar_select %p149, %s17, 7
        %s151 = smul.addr %s150, 8
        %s152 = smul.addr %s148, 64
        %s153 = sadd.s32 %s151, %s152
        %s154 = smul.addr %s153, 8
        %s155 = scalar_lea.vmem %s0, %s154
      $region28: #{bottleneck_block3d_l.6} parent=23 // pred_fallthru
        _
    $region24: #{bottleneck_block3d_l.6} parent=5 // pred_fallthru
      _
    %p156 = scmp.le.s32.totalorder 1, %s9
    %p157 = scmp.lt.s32.totalorder %s9, 17
    %p158 = pnand %p156, %p157
    %p159 = pneg %p158
    // Predicated region
    $region29: #{bottleneck_block3d_l.6} parent=5 // pred_check
      _
    $region30: #{bottleneck_block3d_l.6} parent=5 // pred_check_branch
      %161 = sbr.rel (%p158) target = $region32
    $region31: #{bottleneck_block3d_l.6} parent=5 // pred_region
      %s162 = ssub.s32 %s9, 1
      %p163 = scmp.lt.s32.totalorder %s18, 1
      %s164 = scalar_select %p163, %s18, 1
      %p165 = scmp.lt.s32.totalorder %s19, 7
      %s166 = scalar_select %p165, %s19, 7
      %s167 = smul.addr %s166, 8
      %s168 = smul.addr %s164, 64
      %s169 = sadd.s32 %s167, %s168
      %s170 = smul.addr %s169, 8
      %s171 = scalar_lea.vmem %s0, %s170
      %p172 = pneg %p49
      %p173 = pneg %p46
      %p174 = pneg %p70
      %p175 = pneg %p67
      %p176 = pneg %p91
      %p177 = pneg %p88
      %p178 = pneg %p119
      %p179 = pneg %p116
      %p180 = scmp.lt.s32.totalorder %s18, 1
      %s181 = scalar_select %p180, %s18, 1
      %p182 = scmp.lt.s32.totalorder %s19, 7
      %s183 = scalar_select %p182, %s19, 7
      %s184 = smul.addr %s183, 20
      %s185 = smul.addr %s181, 160
      %s186 = sadd.s32 %s184, %s185
      %s187 = smul.addr %s186, 8
      %s188 = scalar_lea.vmem %s3, %s187
      %p189 = scmp.lt.s32.totalorder %s18, 1
      %s190 = scalar_select %p189, %s18, 1
      %p191 = scmp.lt.s32.totalorder %s19, 7
      %s192 = scalar_select %p191, %s19, 7
      %s193 = smul.addr %s192, 8
      %s194 = smul.addr %s190, 64
      %s195 = sadd.s32 %s193, %s194
      %s196 = smul.addr %s195, 8
      %s197 = scalar_lea.vmem %s0, %s196
      %p198 = scmp.lt.s32.totalorder %s18, 1
      %s199 = scalar_select %p198, %s18, 1
      %p200 = scmp.lt.s32.totalorder %s19, 7
      %s201 = scalar_select %p200, %s19, 7
      %s202 = smul.addr %s201, 20
      %s203 = smul.addr %s199, 160
      %s204 = sadd.s32 %s202, %s203
      %s205 = smul.addr %s204, 8
      %s206 = scalar_lea.vmem %s3, %s205
      %v207 = vld [vmem:[%s197] sm:$0xff]
      %v208 = vld [vmem:[%s197 + $0x8] sm:$0xff]
      %v209 = vld [vmem:[%s197 + $0x10] sm:$0xff]
      %v210 = vld [vmem:[%s197 + $0x18] sm:$0xff]
      %v211 = vld [vmem:[%s197 + $0x20] sm:$0xff]
      %v212 = vld [vmem:[%s197 + $0x28] sm:$0xff]
      %v213 = vld [vmem:[%s197 + $0x30] sm:$0xff]
      %v214 = vld [vmem:[%s197 + $0x38] sm:$0xff]
      %v215 = vld [vmem:[%s1] sm:$0x1]
      %v217 = vlaneseq
      %v218 = vshrl.u32 %v217, 7
      %v219 = vsub.s32 0, %v218
      %v220 = vrot.slane %v215, %v219
      %v222 = vmul.f32 %v207, %v220
      %v223 = vmul.f32 %v208, %v220
      %v224 = vmul.f32 %v209, %v220
      %v225 = vmul.f32 %v210, %v220
      %v226 = vmul.f32 %v211, %v220
      %v227 = vmul.f32 %v212, %v220
      %v228 = vmul.f32 %v213, %v220
      %v229 = vmul.f32 %v214, %v220
      %v230 = vld [vmem:[%s2] sm:$0x1]
      %v232 = vlaneseq
      %v233 = vshrl.u32 %v232, 7
      %v234 = vsub.s32 0, %v233
      %v235 = vrot.slane %v230, %v234
      %v237 = vadd.f32 %v222, %v235
      %v238 = vadd.f32 %v223, %v235
      %v239 = vadd.f32 %v224, %v235
      %v240 = vadd.f32 %v225, %v235
      %v241 = vadd.f32 %v226, %v235
      %v242 = vadd.f32 %v227, %v235
      %v243 = vadd.f32 %v228, %v235
      %v244 = vadd.f32 %v229, %v235
      %v245 = vmax.f32 %v237, 0.0
      %v246 = vmax.f32 %v238, 0.0
      %v247 = vmax.f32 %v239, 0.0
      %v248 = vmax.f32 %v240, 0.0
      %v249 = vmax.f32 %v241, 0.0
      %v250 = vmax.f32 %v242, 0.0
      %v251 = vmax.f32 %v243, 0.0
      %v252 = vmax.f32 %v244, 0.0
      %253 = vst [vmem:[%s206] sm:$0xff] 0.0
      %254 = vst [vmem:[%s206 + $0x8] sm:$0x3] 0.0
      %255 = vst [vmem:[%s206 + $0x10] sm:$0xff] 0.0
      %256 = vst [vmem:[%s206 + $0x18] sm:$0x3] 0.0
      %257 = vst [vmem:[%s206 + $0x20] sm:$0xff] 0.0
      %258 = vst [vmem:[%s206 + $0x28] sm:$0x3] 0.0
      %259 = vst [vmem:[%s206 + $0x30] sm:$0xff] 0.0
      %260 = vst [vmem:[%s206 + $0x38] sm:$0x3] 0.0
      %261 = vst [vmem:[%s206 + $0x40] sm:$0xff] 0.0
      %262 = vst [vmem:[%s206 + $0x48] sm:$0x3] 0.0
      %263 = vst [vmem:[%s206 + $0x50] sm:$0xff] 0.0
      %264 = vst [vmem:[%s206 + $0x58] sm:$0x3] 0.0
      %265 = vst [vmem:[%s206 + $0x60] sm:$0xff] 0.0
      %266 = vst [vmem:[%s206 + $0x68] sm:$0x3] 0.0
      %267 = vst [vmem:[%s206 + $0x70] sm:$0xff] 0.0
      %268 = vst [vmem:[%s206 + $0x78] sm:$0x3] 0.0
      %269 = vst [vmem:[%s206 + $0x80] sm:$0xff] 0.0
      %270 = vst [vmem:[%s206 + $0x88] sm:$0x3] 0.0
      %271 = vst [vmem:[%s206 + $0x90] sm:$0xff] 0.0
      %272 = vst [vmem:[%s206 + $0x98] sm:$0x3] 0.0
      %s273 = scalar_lea.vmem %s206, 16
      %274 = vst [vmem:[%s273 + $0x1] sm:$0xff] %v245
      %275 = vst [vmem:[%s273 + $0x11] sm:$0xff] %v246
      %276 = vst [vmem:[%s273 + $0x21] sm:$0xff] %v247
      %277 = vst [vmem:[%s273 + $0x31] sm:$0xff] %v248
      %278 = vst [vmem:[%s273 + $0x41] sm:$0xff] %v249
      %279 = vst [vmem:[%s273 + $0x51] sm:$0xff] %v250
      %280 = vst [vmem:[%s273 + $0x61] sm:$0xff] %v251
      %281 = vst [vmem:[%s273 + $0x71] sm:$0xff] %v252
      %p282 = scmp.lt.s32.totalorder %s18, 1
      %s283 = scalar_select %p282, %s18, 1
      %p284 = scmp.lt.s32.totalorder %s19, 7
      %s285 = scalar_select %p284, %s19, 7
      %s286 = smul.addr %s285, 20
      %s287 = smul.addr %s283, 160
      %s288 = sadd.s32 %s286, %s287
      %s289 = smul.addr %s288, 8
      %s290 = scalar_lea.vmem %s3, %s289
      // Predicated region
      $region33: #{bottleneck_block3d_l.6} parent=31 // pred_check
        %p291 = pneg %p116
      $region34: #{bottleneck_block3d_l.6} parent=31 // pred_check_branch
        %293 = sbr.rel (%p291) target = $region36
      $region35: #{bottleneck_block3d_l.6} parent=31 // pred_region
        _
      $region36: #{bottleneck_block3d_l.6} parent=31 // pred_fallthru
        _
    $region32: #{bottleneck_block3d_l.6} parent=5 // pred_fallthru
      _
    %p294 = scmp.le.s32.totalorder 2, %s9
    // Predicated region
    $region37: #{bottleneck_block3d_l.6} parent=5 // pred_check
      %p295 = pneg %p294
    $region38: #{bottleneck_block3d_l.6} parent=5 // pred_check_branch
      %297 = sbr.rel (%p295) target = $region40
    $region39: #{bottleneck_block3d_l.6} parent=5 // pred_region
      %s298 = ssub.s32 %s9, 2
      // Predicated region
      $region41: #{bottleneck_block3d_l.6} parent=39 // pred_check
        %p299 = pneg %p122
      $region42: #{bottleneck_block3d_l.6} parent=39 // pred_check_branch
        %301 = sbr.rel (%p299) target = $region44
      $region43: #{bottleneck_block3d_l.6} parent=39 // pred_region
        %p302 = scmp.lt.s32.totalorder %s20, 1
        %s303 = scalar_select %p302, %s20, 1
        %p304 = scmp.lt.s32.totalorder %s21, 7
        %s305 = scalar_select %p304, %s21, 7
        %s306 = smul.addr %s305, 20
        %s307 = smul.addr %s303, 160
        %s308 = sadd.s32 %s306, %s307
        %s309 = smul.addr %s308, 8
        %s310 = scalar_lea.vmem %s3, %s309
      $region44: #{bottleneck_block3d_l.6} parent=39 // pred_fallthru
        _
    $region40: #{bottleneck_block3d_l.6} parent=5 // pred_fallthru
      _
  $region6: #{bottleneck_block3d_l.6} parent=0 // loop_footer
    %s13 = sadd.s32 1, %s9
  $region7: #{bottleneck_block3d_l.6} parent=0 // loop_footer_branch
    %8 = sbr.rel target = $region3
  $region8: #{bottleneck_block3d_l.6} parent=0 // loop_exit
    _

// kernel: bottleneck_block3d_l.5
$region0: #{bottleneck_block3d_l.5}
  #allocation0 [shape = 'u32[]', space=smem, size = 0x4, offset = 0x4, fixed_abs, tag = 'smem constant byte address 0x4 - core index']
  #allocation1 [shape = 'u32[144,128]{1,0:T(1,128)}', space=vmem, size = 0x12000, scoped, tag = 'internal scratch']
  %s0 = inlined_call_operand.vmem [shape: f32[1024,128], index: 0, kind: input, shape index: {}]
  %s1 = inlined_call_operand.vmem [shape: bf16[128,128], index: 1, kind: input, shape index: {}]
  %s2 = inlined_call_operand.vmem [shape: f32[1024,128], index: 2, kind: output, shape index: {0}]
  %s3 = inlined_call_operand.vmem [shape: f32[1,2,128], index: 3, kind: output, shape index: {1}]
  %4 = xla_tuple %s2, %s3
  %s5 = sld [smem:[#allocation0]]
  $region26: #{bottleneck_block3d_l.5} parent=0
    _
  %s7 = ssub.s32 1, %s5
  %s8 = scalar_select 0, %s7, %s5
  // Predicated region
  $region2: #{bottleneck_block3d_l.5} parent=0 // pred_check
    _
  $region3: #{bottleneck_block3d_l.5} parent=0 // pred_check_branch
    %10 = sbr.rel (0) target = $region5
  $region4: #{bottleneck_block3d_l.5} parent=0 // pred_region
    _
  $region5: #{bottleneck_block3d_l.5} parent=0 // pred_fallthru
    _
  // Predicated region
  $region6: #{bottleneck_block3d_l.5} parent=0 // pred_check
    _
  $region7: #{bottleneck_block3d_l.5} parent=0 // pred_check_branch
    %12 = sbr.rel (0) target = $region9
  $region8: #{bottleneck_block3d_l.5} parent=0 // pred_region
    _
  $region9: #{bottleneck_block3d_l.5} parent=0 // pred_fallthru
    _
  %v14 = vld [vmem:[%s0] sm:$0xff]
  %v15 = vld [vmem:[%s0 + $0x8] sm:$0xff]
  %v16 = vld [vmem:[%s0 + $0x10] sm:$0xff]
  %v17 = vld [vmem:[%s0 + $0x18] sm:$0xff]
  %v18 = vld [vmem:[%s0 + $0x20] sm:$0xff]
  %v19 = vld [vmem:[%s0 + $0x28] sm:$0xff]
  %v20 = vld [vmem:[%s0 + $0x30] sm:$0xff]
  %v21 = vld [vmem:[%s0 + $0x38] sm:$0xff]
  %v22 = vld [vmem:[%s0 + $0x40] sm:$0xff]
  %v23 = vld [vmem:[%s0 + $0x48] sm:$0xff]
  %v24 = vld [vmem:[%s0 + $0x50] sm:$0xff]
  %v25 = vld [vmem:[%s0 + $0x58] sm:$0xff]
  %v26 = vld [vmem:[%s0 + $0x60] sm:$0xff]
  %v27 = vld [vmem:[%s0 + $0x68] sm:$0xff]
  %v28 = vld [vmem:[%s0 + $0x70] sm:$0xff]
  %v29 = vld [vmem:[%s0 + $0x78] sm:$0xff]
  %v30 = vld [vmem:[%s0 + $0x80] sm:$0xff]
  %v31 = vld [vmem:[%s0 + $0x88] sm:$0xff]
  %v32 = vld [vmem:[%s0 + $0x90] sm:$0xff]
  %v33 = vld [vmem:[%s0 + $0x98] sm:$0xff]
  %v34 = vld [vmem:[%s0 + $0xa0] sm:$0xff]
  %v35 = vld [vmem:[%s0 + $0xa8] sm:$0xff]
  %v36 = vld [vmem:[%s0 + $0xb0] sm:$0xff]
  %v37 = vld [vmem:[%s0 + $0xb8] sm:$0xff]
  %v38 = vld [vmem:[%s0 + $0xc0] sm:$0xff]
  %v39 = vld [vmem:[%s0 + $0xc8] sm:$0xff]
  %v40 = vld [vmem:[%s0 + $0xd0] sm:$0xff]
  %v41 = vld [vmem:[%s0 + $0xd8] sm:$0xff]
  %v42 = vld [vmem:[%s0 + $0xe0] sm:$0xff]
  %v43 = vld [vmem:[%s0 + $0xe8] sm:$0xff]
  %v44 = vld [vmem:[%s0 + $0xf0] sm:$0xff]
  %v45 = vld [vmem:[%s0 + $0xf8] sm:$0xff]
  %v46 = vld [vmem:[%s0 + $0x100] sm:$0xff]
  %v47 = vld [vmem:[%s0 + $0x108] sm:$0xff]
  %v48 = vld [vmem:[%s0 + $0x110] sm:$0xff]
  %v49 = vld [vmem:[%s0 + $0x118] sm:$0xff]
  %v50 = vld [vmem:[%s0 + $0x120] sm:$0xff]
  %v51 = vld [vmem:[%s0 + $0x128] sm:$0xff]
  %v52 = vld [vmem:[%s0 + $0x130] sm:$0xff]
  %v53 = vld [vmem:[%s0 + $0x138] sm:$0xff]
  %v54 = vld [vmem:[%s0 + $0x140] sm:$0xff]
  %v55 = vld [vmem:[%s0 + $0x148] sm:$0xff]
  %v56 = vld [vmem:[%s0 + $0x150] sm:$0xff]
  %v57 = vld [vmem:[%s0 + $0x158] sm:$0xff]
  %v58 = vld [vmem:[%s0 + $0x160] sm:$0xff]
  %v59 = vld [vmem:[%s0 + $0x168] sm:$0xff]
  %v60 = vld [vmem:[%s0 + $0x170] sm:$0xff]
  %v61 = vld [vmem:[%s0 + $0x178] sm:$0xff]
  %v62 = vld [vmem:[%s0 + $0x180] sm:$0xff]
  %v63 = vld [vmem:[%s0 + $0x188] sm:$0xff]
  %v64 = vld [vmem:[%s0 + $0x190] sm:$0xff]
  %v65 = vld [vmem:[%s0 + $0x198] sm:$0xff]
  %v66 = vld [vmem:[%s0 + $0x1a0] sm:$0xff]
  %v67 = vld [vmem:[%s0 + $0x1a8] sm:$0xff]
  %v68 = vld [vmem:[%s0 + $0x1b0] sm:$0xff]
  %v69 = vld [vmem:[%s0 + $0x1b8] sm:$0xff]
  %v70 = vld [vmem:[%s0 + $0x1c0] sm:$0xff]
  %v71 = vld [vmem:[%s0 + $0x1c8] sm:$0xff]
  %v72 = vld [vmem:[%s0 + $0x1d0] sm:$0xff]
  %v73 = vld [vmem:[%s0 + $0x1d8] sm:$0xff]
  %v74 = vld [vmem:[%s0 + $0x1e0] sm:$0xff]
  %v75 = vld [vmem:[%s0 + $0x1e8] sm:$0xff]
  %v76 = vld [vmem:[%s0 + $0x1f0] sm:$0xff]
  %v77 = vld [vmem:[%s0 + $0x1f8] sm:$0xff]
  %v78 = vld [vmem:[%s0 + $0x200] sm:$0xff]
  %v79 = vld [vmem:[%s0 + $0x208] sm:$0xff]
  %v80 = vld [vmem:[%s0 + $0x210] sm:$0xff]
  %v81 = vld [vmem:[%s0 + $0x218] sm:$0xff]
  %v82 = vld [vmem:[%s0 + $0x220] sm:$0xff]
  %v83 = vld [vmem:[%s0 + $0x228] sm:$0xff]
  %v84 = vld [vmem:[%s0 + $0x230] sm:$0xff]
  %v85 = vld [vmem:[%s0 + $0x238] sm:$0xff]
  %v86 = vld [vmem:[%s0 + $0x240] sm:$0xff]
  %v87 = vld [vmem:[%s0 + $0x248] sm:$0xff]
  %v88 = vld [vmem:[%s0 + $0x250] sm:$0xff]
  %v89 = vld [vmem:[%s0 + $0x258] sm:$0xff]
  %v90 = vld [vmem:[%s0 + $0x260] sm:$0xff]
  %v91 = vld [vmem:[%s0 + $0x268] sm:$0xff]
  %v92 = vld [vmem:[%s0 + $0x270] sm:$0xff]
  %v93 = vld [vmem:[%s0 + $0x278] sm:$0xff]
  %v94 = vld [vmem:[%s0 + $0x280] sm:$0xff]
  %v95 = vld [vmem:[%s0 + $0x288] sm:$0xff]
  %v96 = vld [vmem:[%s0 + $0x290] sm:$0xff]
  %v97 = vld [vmem:[%s0 + $0x298] sm:$0xff]
  %v98 = vld [vmem:[%s0 + $0x2a0] sm:$0xff]
  %v99 = vld [vmem:[%s0 + $0x2a8] sm:$0xff]
  %v100 = vld [vmem:[%s0 + $0x2b0] sm:$0xff]
  %v101 = vld [vmem:[%s0 + $0x2b8] sm:$0xff]
  %v102 = vld [vmem:[%s0 + $0x2c0] sm:$0xff]
  %v103 = vld [vmem:[%s0 + $0x2c8] sm:$0xff]
  %v104 = vld [vmem:[%s0 + $0x2d0] sm:$0xff]
  %v105 = vld [vmem:[%s0 + $0x2d8] sm:$0xff]
  %v106 = vld [vmem:[%s0 + $0x2e0] sm:$0xff]
  %v107 = vld [vmem:[%s0 + $0x2e8] sm:$0xff]
  %v108 = vld [vmem:[%s0 + $0x2f0] sm:$0xff]
  %v109 = vld [vmem:[%s0 + $0x2f8] sm:$0xff]
  %v110 = vld [vmem:[%s0 + $0x300] sm:$0xff]
  %v111 = vld [vmem:[%s0 + $0x308] sm:$0xff]
  %v112 = vld [vmem:[%s0 + $0x310] sm:$0xff]
  %v113 = vld [vmem:[%s0 + $0x318] sm:$0xff]
  %v114 = vld [vmem:[%s0 + $0x320] sm:$0xff]
  %v115 = vld [vmem:[%s0 + $0x328] sm:$0xff]
  %v116 = vld [vmem:[%s0 + $0x330] sm:$0xff]
  %v117 = vld [vmem:[%s0 + $0x338] sm:$0xff]
  %v118 = vld [vmem:[%s0 + $0x340] sm:$0xff]
  %v119 = vld [vmem:[%s0 + $0x348] sm:$0xff]
  %v120 = vld [vmem:[%s0 + $0x350] sm:$0xff]
  %v121 = vld [vmem:[%s0 + $0x358] sm:$0xff]
  %v122 = vld [vmem:[%s0 + $0x360] sm:$0xff]
  %v123 = vld [vmem:[%s0 + $0x368] sm:$0xff]
  %v124 = vld [vmem:[%s0 + $0x370] sm:$0xff]
  %v125 = vld [vmem:[%s0 + $0x378] sm:$0xff]
  %v126 = vld [vmem:[%s0 + $0x380] sm:$0xff]
  %v127 = vld [vmem:[%s0 + $0x388] sm:$0xff]
  %v128 = vld [vmem:[%s0 + $0x390] sm:$0xff]
  %v129 = vld [vmem:[%s0 + $0x398] sm:$0xff]
  %v130 = vld [vmem:[%s0 + $0x3a0] sm:$0xff]
  %v131 = vld [vmem:[%s0 + $0x3a8] sm:$0xff]
  %v132 = vld [vmem:[%s0 + $0x3b0] sm:$0xff]
  %v133 = vld [vmem:[%s0 + $0x3b8] sm:$0xff]
  %v134 = vld [vmem:[%s0 + $0x3c0] sm:$0xff]
  %v135 = vld [vmem:[%s0 + $0x3c8] sm:$0xff]
  %v136 = vld [vmem:[%s0 + $0x3d0] sm:$0xff]
  %v137 = vld [vmem:[%s0 + $0x3d8] sm:$0xff]
  %v138 = vld [vmem:[%s0 + $0x3e0] sm:$0xff]
  %v139 = vld [vmem:[%s0 + $0x3e8] sm:$0xff]
  %v140 = vld [vmem:[%s0 + $0x3f0] sm:$0xff]
  %v141 = vld [vmem:[%s0 + $0x3f8] sm:$0xff]
  %v142 = vpack.c.bf16 %v15, %v14
  %v143 = vpack.c.bf16 %v17, %v16
  %v144 = vpack.c.bf16 %v19, %v18
  %v145 = vpack.c.bf16 %v21, %v20
  %v146 = vpack.c.bf16 %v23, %v22
  %v147 = vpack.c.bf16 %v25, %v24
  %v148 = vpack.c.bf16 %v27, %v26
  %v149 = vpack.c.bf16 %v29, %v28
  %v150 = vpack.c.bf16 %v31, %v30
  %v151 = vpack.c.bf16 %v33, %v32
  %v152 = vpack.c.bf16 %v35, %v34
  %v153 = vpack.c.bf16 %v37, %v36
  %v154 = vpack.c.bf16 %v39, %v38
  %v155 = vpack.c.bf16 %v41, %v40
  %v156 = vpack.c.bf16 %v43, %v42
  %v157 = vpack.c.bf16 %v45, %v44
  %v158 = vpack.c.bf16 %v47, %v46
  %v159 = vpack.c.bf16 %v49, %v48
  %v160 = vpack.c.bf16 %v51, %v50
  %v161 = vpack.c.bf16 %v53, %v52
  %v162 = vpack.c.bf16 %v55, %v54
  %v163 = vpack.c.bf16 %v57, %v56
  %v164 = vpack.c.bf16 %v59, %v58
  %v165 = vpack.c.bf16 %v61, %v60
  %v166 = vpack.c.bf16 %v63, %v62
  %v167 = vpack.c.bf16 %v65, %v64
  %v168 = vpack.c.bf16 %v67, %v66
  %v169 = vpack.c.bf16 %v69, %v68
  %v170 = vpack.c.bf16 %v71, %v70
  %v171 = vpack.c.bf16 %v73, %v72
  %v172 = vpack.c.bf16 %v75, %v74
  %v173 = vpack.c.bf16 %v77, %v76
  %v174 = vpack.c.bf16 %v79, %v78
  %v175 = vpack.c.bf16 %v81, %v80
  %v176 = vpack.c.bf16 %v83, %v82
  %v177 = vpack.c.bf16 %v85, %v84
  %v178 = vpack.c.bf16 %v87, %v86
  %v179 = vpack.c.bf16 %v89, %v88
  %v180 = vpack.c.bf16 %v91, %v90
  %v181 = vpack.c.bf16 %v93, %v92
  %v182 = vpack.c.bf16 %v95, %v94
  %v183 = vpack.c.bf16 %v97, %v96
  %v184 = vpack.c.bf16 %v99, %v98
  %v185 = vpack.c.bf16 %v101, %v100
  %v186 = vpack.c.bf16 %v103, %v102
  %v187 = vpack.c.bf16 %v105, %v104
  %v188 = vpack.c.bf16 %v107, %v106
  %v189 = vpack.c.bf16 %v109, %v108
  %v190 = vpack.c.bf16 %v111, %v110
  %v191 = vpack.c.bf16 %v113, %v112
  %v192 = vpack.c.bf16 %v115, %v114
  %v193 = vpack.c.bf16 %v117, %v116
  %v194 = vpack.c.bf16 %v119, %v118
  %v195 = vpack.c.bf16 %v121, %v120
  %v196 = vpack.c.bf16 %v123, %v122
  %v197 = vpack.c.bf16 %v125, %v124
  %v198 = vpack.c.bf16 %v127, %v126
  %v199 = vpack.c.bf16 %v129, %v128
  %v200 = vpack.c.bf16 %v131, %v130
  %v201 = vpack.c.bf16 %v133, %v132
  %v202 = vpack.c.bf16 %v135, %v134
  %v203 = vpack.c.bf16 %v137, %v136
  %v204 = vpack.c.bf16 %v139, %v138
  %v205 = vpack.c.bf16 %v141, %v140
  %v206 = vld [vmem:[%s1] sm:$0xf]
  %v207 = vld [vmem:[%s1 + $0x4] sm:$0xf]
  %v208 = vld [vmem:[%s1 + $0x8] sm:$0xf]
  %v209 = vld [vmem:[%s1 + $0xc] sm:$0xf]
  %v210 = vld [vmem:[%s1 + $0x10] sm:$0xf]
  %v211 = vld [vmem:[%s1 + $0x14] sm:$0xf]
  %v212 = vld [vmem:[%s1 + $0x18] sm:$0xf]
  %v213 = vld [vmem:[%s1 + $0x1c] sm:$0xf]
  %v214 = vld [vmem:[%s1 + $0x20] sm:$0xf]
  %v215 = vld [vmem:[%s1 + $0x24] sm:$0xf]
  %v216 = vld [vmem:[%s1 + $0x28] sm:$0xf]
  %v217 = vld [vmem:[%s1 + $0x2c] sm:$0xf]
  %v218 = vld [vmem:[%s1 + $0x30] sm:$0xf]
  %v219 = vld [vmem:[%s1 + $0x34] sm:$0xf]
  %v220 = vld [vmem:[%s1 + $0x38] sm:$0xf]
  %v221 = vld [vmem:[%s1 + $0x3c] sm:$0xf]
  %v238 = vunpack.c.l.b16 %v206
  %v239 = vunpack.c.l.b16 %v207
  %v240 = vunpack.c.l.b16 %v208
  %v241 = vunpack.c.l.b16 %v209
  %v242 = vunpack.c.l.b16 %v210
  %v243 = vunpack.c.l.b16 %v211
  %v244 = vunpack.c.l.b16 %v212
  %v245 = vunpack.c.l.b16 %v213
  %v246 = vunpack.c.l.b16 %v214
  %v247 = vunpack.c.l.b16 %v215
  %v248 = vunpack.c.l.b16 %v216
  %v249 = vunpack.c.l.b16 %v217
  %v250 = vunpack.c.l.b16 %v218
  %v251 = vunpack.c.l.b16 %v219
  %v252 = vunpack.c.l.b16 %v220
  %v253 = vunpack.c.l.b16 %v221
  %v254 = vpack.c.b16 %v239, %v238
  %v255 = vpack.c.b16 %v241, %v240
  %v256 = vpack.c.b16 %v243, %v242
  %v257 = vpack.c.b16 %v245, %v244
  %v258 = vpack.c.b16 %v247, %v246
  %v259 = vpack.c.b16 %v249, %v248
  %v260 = vpack.c.b16 %v251, %v250
  %v261 = vpack.c.b16 %v253, %v252
  %270 = vmatprep.subr.bf16.mxu0 0
  %271 = vmatpush1.bf16.msra.mxu0 %v254
  %272 = vmatprep.subr.bf16.mxu0 0
  %273 = vmatpush1.bf16.msra.mxu0 %v255
  %274 = vmatprep.subr.bf16.mxu0 0
  %275 = vmatpush1.bf16.msra.mxu0 %v256
  %276 = vmatprep.subr.bf16.mxu0 0
  %277 = vmatpush1.bf16.msra.mxu0 %v257
  %278 = vmatprep.subr.bf16.mxu0 0
  %279 = vmatpush1.bf16.msra.mxu0 %v258
  %280 = vmatprep.subr.bf16.mxu0 0
  %281 = vmatpush1.bf16.msra.mxu0 %v259
  %282 = vmatprep.subr.bf16.mxu0 0
  %283 = vmatpush1.bf16.msra.mxu0 %v260
  %284 = vmatprep.subr.bf16.mxu0 0
  %285 = vmatpush1.bf16.msra.mxu0 %v261
  %286 = vmatprep.subr.bf16.mxu0 0
  %287 = vmatpush1.bf16.msra.mxu0 0
  %288 = vmatprep.subr.bf16.mxu0 0
  %289 = vmatpush1.bf16.msra.mxu0 0
  %290 = vmatprep.subr.bf16.mxu0 0
  %291 = vmatpush1.bf16.msra.mxu0 0
  %292 = vmatprep.subr.bf16.mxu0 0
  %293 = vmatpush1.bf16.msra.mxu0 0
  %294 = vmatprep.subr.bf16.mxu0 0
  %295 = vmatpush1.bf16.msra.mxu0 0
  %296 = vmatprep.subr.bf16.mxu0 0
  %297 = vmatpush1.bf16.msra.mxu0 0
  %298 = vmatprep.subr.bf16.mxu0 0
  %299 = vmatpush1.bf16.msra.mxu0 0
  %300 = vmatprep.subr.bf16.mxu0 0
  %301 = vmatpush1.bf16.msra.mxu0 0
  %302 = vmatprep.mubr.bf16.mxu0 0
  %303 = vmatmul.mubr.bf16.gmra.mrb[0].mxu0 %v142
  %v304 = vpop.f32.mrb[0].mxu0
  %v305 = vadd.f32 0.0, %v304
  %v306 = vpop.f32.mrb[0].mxu0
  %v307 = vpop.f32.mrb[0].mxu0
  %v308 = vadd.f32 0.0, %v307
  %v309 = vpop.f32.mrb[0].mxu0
  %310 = vmatprep.mubr.bf16.mxu0 0
  %311 = vmatmul.mubr.bf16.gmra.mrb[0].mxu0 %v143
  %v312 = vpop.f32.mrb[0].mxu0
  %v313 = vadd.f32 0.0, %v312
  %v314 = vpop.f32.mrb[0].mxu0
  %v315 = vpop.f32.mrb[0].mxu0
  %v316 = vadd.f32 0.0, %v315
  %v317 = vpop.f32.mrb[0].mxu0
  %318 = vmatprep.mubr.bf16.mxu0 0
  %319 = vmatmul.mubr.bf16.gmra.mrb[0].mxu0 %v144
  %v320 = vpop.f32.mrb[0].mxu0
  %v321 = vadd.f32 0.0, %v320
  %v322 = vpop.f32.mrb[0].mxu0
  %v323 = vpop.f32.mrb[0].mxu0
  %v324 = vadd.f32 0.0, %v323
  %v325 = vpop.f32.mrb[0].mxu0
  %326 = vmatprep.mubr.bf16.mxu0 0
  %327 = vmatmul.mubr.bf16.gmra.mrb[0].mxu0 %v145
  %v328 = vpop.f32.mrb[0].mxu0
  %v329 = vadd.f32 0.0, %v328
  %v330 = vpop.f32.mrb[0].mxu0
  %v331 = vpop.f32.mrb[0].mxu0
  %v332 = vadd.f32 0.0, %v331
  %v333 = vpop.f32.mrb[0].mxu0
  %334 = vmatprep.mubr.bf16.mxu0 0
  %335 = vmatmul.mubr.bf16.gmra.mrb[0].mxu0 %v146
  %v336 = vpop.f32.mrb[0].mxu0
  %v337 = vadd.f32 0.0, %v336
  %v338 = vpop.f32.mrb[0].mxu0
  %v339 = vpop.f32.mrb[0].mxu0
  %v340 = vadd.f32 0.0, %v339
  %v341 = vpop.f32.mrb[0].mxu0
  %342 = vmatprep.mubr.bf16.mxu0 0
  %343 = vmatmul.mubr.bf16.gmra.mrb[0].mxu0 %v147
  %v344 = vpop.f32.mrb[0].mxu0
  %v345 = vadd.f32 0.0, %v344
  %v346 = vpop.f32.mrb[0].mxu0
  %v347 = vpop.f32.mrb[0].mxu0
  %v348 = vadd.f32 0.0, %v347
  %v349 = vpop.f32.mrb[0].mxu0
  %350 = vmatprep.mubr.bf16.mxu0 0
  %351 = vmatmul.mubr.bf16.gmra.mrb[0].mxu0 %v148
  %v352 = vpop.f32.mrb[0].mxu0
  %v353 = vadd.f32 0.0, %v352
  %v354 = vpop.f32.mrb[0].mxu0
  %v355 = vpop.f32.mrb[0].mxu0
  %v356 = vadd.f32 0.0, %v355
  %v357 = vpop.f32.mrb[0].mxu0
  %358 = vmatprep.mubr.bf16.mxu0 0
  %359 = vmatmul.mubr.bf16.gmra.mrb[0].mxu0 %v149
  %v360 = vpop.f32.mrb[0].mxu0
  %v361 = vadd.f32 0.0, %v360
  %v362 = vpop.f32.mrb[0].mxu0
  %v363 = vpop.f32.mrb[0].mxu0
  %v364 = vadd.f32 0.0, %v363
  %v365 = vpop.f32.mrb[0].mxu0
  %366 = vmatprep.mubr.bf16.mxu0 0
  %367 = vmatmul.mubr.bf16.gmra.mrb[0].mxu0 %v150
  %v368 = vpop.f32.mrb[0].mxu0
  %v369 = vadd.f32 0.0, %v368
  %v370 = vpop.f32.mrb[0].mxu0
  %v371 = vpop.f32.mrb[0].mxu0
  %v372 = vadd.f32 0.0, %v371
  %v373 = vpop.f32.mrb[0].mxu0
  %374 = vmatprep.mubr.bf16.mxu0 0
  %375 = vmatmul.mubr.bf16.gmra.mrb[0].mxu0 %v151
  %v376 = vpop.f32.mrb[0].mxu0
  %v377 = vadd.f32 0.0, %v376
  %v378 = vpop.f32.mrb[0].mxu0
  %v379 = vpop.f32.mrb[0].mxu0
  %v380 = vadd.f32 0.0, %v379
  %v381 = vpop.f32.mrb[0].mxu0
  %382 = vmatprep.mubr.bf16.mxu0 0
  %383 = vmatmul.mubr.bf16.gmra.mrb[0].mxu0 %v152
  %v384 = vpop.f32.mrb[0].mxu0
  %v385 = vadd.f32 0.0, %v384
  %v386 = vpop.f32.mrb[0].mxu0
  %v387 = vpop.f32.mrb[0].mxu0
  %v388 = vadd.f32 0.0, %v387
  %v389 = vpop.f32.mrb[0].mxu0
  %390 = vmatprep.mubr.bf16.mxu0 0
  %391 = vmatmul.mubr.bf16.gmra.mrb[0].mxu0 %v153
  %v392 = vpop.f32.mrb[0].mxu0
  %v393 = vadd.f32 0.0, %v392
  %v394 = vpop.f32.mrb[0].mxu0
  %v395 = vpop.f32.mrb[0].mxu0
  %v396 = vadd.f32 0.0, %v395
  %v397 = vpop.f32.mrb[0].mxu0
  %398 = vmatprep.mubr.bf16.mxu0 0
  %399 = vmatmul.mubr.bf16.gmra.mrb[0].mxu0 %v154
  %v400 = vpop.f32.mrb[0].mxu0
  %v401 = vadd.f32 0.0, %v400
  %v402 = vpop.f32.mrb[0].mxu0
  %v403 = vpop.f32.mrb[0].mxu0
  %v404 = vadd.f32 0.0, %v403
  %v405 = vpop.f32.mrb[0].mxu0
  %406 = vmatprep.mubr.bf16.mxu0 0
  %407 = vmatmul.mubr.bf16.gmra.mrb[0].mxu0 %v155
  %v408 = vpop.f32.mrb[0].mxu0
  %v409 = vadd.f32 0.0, %v408
  %v410 = vpop.f32.mrb[0].mxu0
  %v411 = vpop.f32.mrb[0].mxu0
  %v412 = vadd.f32 0.0, %v411
  %v413 = vpop.f32.mrb[0].mxu0
  %414 = vmatprep.mubr.bf16.mxu0 0
  %415 = vmatmul.mubr.bf16.gmra.mrb[0].mxu0 %v156
  %v416 = vpop.f32.mrb[0].mxu0
  %v417 = vadd.f32 0.0, %v416
  %v418 = vpop.f32.mrb[0].mxu0
  %v419 = vpop.f32.mrb[0].mxu0
  %v420 = vadd.f32 0.0, %v419
  %v421 = vpop.f32.mrb[0].mxu0
  %422 = vmatprep.mubr.bf16.mxu0 0
  %423 = vmatmul.mubr.bf16.gmra.mrb[0].mxu0 %v157
  %v424 = vpop.f32.mrb[0].mxu0
  %v425 = vadd.f32 0.0, %v424
  %v426 = vpop.f32.mrb[0].mxu0
  %v427 = vpop.f32.mrb[0].mxu0
  %v428 = vadd.f32 0.0, %v427
  %v429 = vpop.f32.mrb[0].mxu0
  %430 = vmatprep.mubr.bf16.mxu0 0
  %431 = vmatmul.mubr.bf16.gmra.mrb[0].mxu0 %v158
  %v432 = vpop.f32.mrb[0].mxu0
  %v433 = vadd.f32 0.0, %v432
  %v434 = vpop.f32.mrb[0].mxu0
  %v435 = vpop.f32.mrb[0].mxu0
  %v436 = vadd.f32 0.0, %v435
  %v437 = vpop.f32.mrb[0].mxu0
  %438 = vmatprep.mubr.bf16.mxu0 0
  %439 = vmatmul.mubr.bf16.gmra.mrb[0].mxu0 %v159
  %v440 = vpop.f32.mrb[0].mxu0
  %v441 = vadd.f32 0.0, %v440
  %v442 = vpop.f32.mrb[0].mxu0
  %v443 = vpop.f32.mrb[0].mxu0
  %v444 = vadd.f32 0.0, %v443
  %v445 = vpop.f32.mrb[0].mxu0
  %446 = vmatprep.mubr.bf16.mxu0 0
  %447 = vmatmul.mubr.bf16.gmra.mrb[0].mxu0 %v160
  %v448 = vpop.f32.mrb[0].mxu0
  %v449 = vadd.f32 0.0, %v448
  %v450 = vpop.f32.mrb[0].mxu0
  %v451 = vpop.f32.mrb[0].mxu0
  %v452 = vadd.f32 0.0, %v451
  %v453 = vpop.f32.mrb[0].mxu0
  %454 = vmatprep.mubr.bf16.mxu0 0
  %455 = vmatmul.mubr.bf16.gmra.mrb[0].mxu0 %v161
  %v456 = vpop.f32.mrb[0].mxu0
  %v457 = vadd.f32 0.0, %v456
  %v458 = vpop.f32.mrb[0].mxu0
  %v459 = vpop.f32.mrb[0].mxu0
  %v460 = vadd.f32 0.0, %v459
  %v461 = vpop.f32.mrb[0].mxu0
  %462 = vmatprep.mubr.bf16.mxu0 0
  %463 = vmatmul.mubr.bf16.gmra.mrb[0].mxu0 %v162
  %v464 = vpop.f32.mrb[0].mxu0
  %v465 = vadd.f32 0.0, %v464
  %v466 = vpop.f32.mrb[0].mxu0
  %v467 = vpop.f32.mrb[0].mxu0
  %v468 = vadd.f32 0.0, %v467
  %v469 = vpop.f32.mrb[0].mxu0
  %470 = vmatprep.mubr.bf16.mxu0 0
  %471 = vmatmul.mubr.bf16.gmra.mrb[0].mxu0 %v163
  %v472 = vpop.f32.mrb[0].mxu0
  %v473 = vadd.f32 0.0, %v472
  %v474 = vpop.f32.mrb[0].mxu0
  %v475 = vpop.f32.mrb[0].mxu0
  %v476 = vadd.f32 0.0, %v475
  %v477 = vpop.f32.mrb[0].mxu0
  %478 = vmatprep.mubr.bf16.mxu0 0
  %479 = vmatmul.mubr.bf16.gmra.mrb[0].mxu0 %v164
  %v480 = vpop.f32.mrb[0].mxu0
  %v481 = vadd.f32 0.0, %v480
  %v482 = vpop.f32.mrb[0].mxu0
  %v483 = vpop.f32.mrb[0].mxu0
  %v484 = vadd.f32 0.0, %v483
  %v485 = vpop.f32.mrb[0].mxu0
  %486 = vmatprep.mubr.bf16.mxu0 0
  %487 = vmatmul.mubr.bf16.gmra.mrb[0].mxu0 %v165
  %v488 = vpop.f32.mrb[0].mxu0
  %v489 = vadd.f32 0.0, %v488
  %v490 = vpop.f32.mrb[0].mxu0
  %v491 = vpop.f32.mrb[0].mxu0
  %v492 = vadd.f32 0.0, %v491
  %v493 = vpop.f32.mrb[0].mxu0
  %494 = vmatprep.mubr.bf16.mxu0 0
  %495 = vmatmul.mubr.bf16.gmra.mrb[0].mxu0 %v166
  %v496 = vpop.f32.mrb[0].mxu0
  %v497 = vadd.f32 0.0, %v496
  %v498 = vpop.f32.mrb[0].mxu0
  %v499 = vpop.f32.mrb[0].mxu0
  %v500 = vadd.f32 0.0, %v499
  %v501 = vpop.f32.mrb[0].mxu0
  %502 = vmatprep.mubr.bf16.mxu0 0
  %503 = vmatmul.mubr.bf16.gmra.mrb[0].mxu0 %v167
  %v504 = vpop.f32.mrb[0].mxu0
  %v505 = vadd.f32 0.0, %v504
  %v506 = vpop.f32.mrb[0].mxu0
  %v507 = vpop.f32.mrb[0].mxu0
  %v508 = vadd.f32 0.0, %v507
  %v509 = vpop.f32.mrb[0].mxu0
  %510 = vmatprep.mubr.bf16.mxu0 0
  %511 = vmatmul.mubr.bf16.gmra.mrb[0].mxu0 %v168
  %v512 = vpop.f32.mrb[0].mxu0
  %v513 = vadd.f32 0.0, %v512
  %v514 = vpop.f32.mrb[0].mxu0
  %v515 = vpop.f32.mrb[0].mxu0
  %v516 = vadd.f32 0.0, %v515
  %v517 = vpop.f32.mrb[0].mxu0
  %518 = vmatprep.mubr.bf16.mxu0 0
  %519 = vmatmul.mubr.bf16.gmra.mrb[0].mxu0 %v169
  %v520 = vpop.f32.mrb[0].mxu0
  %v521 = vadd.f32 0.0, %v520
  %v522 = vpop.f32.mrb[0].mxu0
  %v523 = vpop.f32.mrb[0].mxu0
  %v524 = vadd.f32 0.0, %v523
  %v525 = vpop.f32.mrb[0].mxu0
  %526 = vmatprep.mubr.bf16.mxu0 0
  %527 = vmatmul.mubr.bf16.gmra.mrb[0].mxu0 %v170
  %v528 = vpop.f32.mrb[0].mxu0
  %v529 = vadd.f32 0.0, %v528
  %v530 = vpop.f32.mrb[0].mxu0
  %v531 = vpop.f32.mrb[0].mxu0
  %v532 = vadd.f32 0.0, %v531
  %v533 = vpop.f32.mrb[0].mxu0
  %534 = vmatprep.mubr.bf16.mxu0 0
  %535 = vmatmul.mubr.bf16.gmra.mrb[0].mxu0 %v171
  %v536 = vpop.f32.mrb[0].mxu0
  %v537 = vadd.f32 0.0, %v536
  %v538 = vpop.f32.mrb[0].mxu0
  %v539 = vpop.f32.mrb[0].mxu0
  %v540 = vadd.f32 0.0, %v539
  %v541 = vpop.f32.mrb[0].mxu0
  %542 = vmatprep.mubr.bf16.mxu0 0
  %543 = vmatmul.mubr.bf16.gmra.mrb[0].mxu0 %v172
  %v544 = vpop.f32.mrb[0].mxu0
  %v545 = vadd.f32 0.0, %v544
  %v546 = vpop.f32.mrb[0].mxu0
  %v547 = vpop.f32.mrb[0].mxu0
  %v548 = vadd.f32 0.0, %v547
  %v549 = vpop.f32.mrb[0].mxu0
  %550 = vmatprep.mubr.bf16.mxu0 0
  %551 = vmatmul.mubr.bf16.gmra.mrb[0].mxu0 %v173
  %v552 = vpop.f32.mrb[0].mxu0
  %v553 = vadd.f32 0.0, %v552
  %v554 = vpop.f32.mrb[0].mxu0
  %v555 = vpop.f32.mrb[0].mxu0
  %v556 = vadd.f32 0.0, %v555
  %v557 = vpop.f32.mrb[0].mxu0
  %558 = vmatprep.mubr.bf16.mxu0 0
  %559 = vmatmul.mubr.bf16.gmra.mrb[0].mxu0 %v174
  %v560 = vpop.f32.mrb[0].mxu0
  %v561 = vadd.f32 0.0, %v560
  %v562 = vpop.f32.mrb[0].mxu0
  %v563 = vpop.f32.mrb[0].mxu0
  %v564 = vadd.f32 0.0, %v563
  %v565 = vpop.f32.mrb[0].mxu0
  %566 = vmatprep.mubr.bf16.mxu0 0
  %567 = vmatmul.mubr.bf16.gmra.mrb[0].mxu0 %v175
  %v568 = vpop.f32.mrb[0].mxu0
  %v569 = vadd.f32 0.0, %v568
  %v570 = vpop.f32.mrb[0].mxu0
  %v571 = vpop.f32.mrb[0].mxu0
  %v572 = vadd.f32 0.0, %v571
  %v573 = vpop.f32.mrb[0].mxu0
  %574 = vmatprep.mubr.bf16.mxu0 0
  %575 = vmatmul.mubr.bf16.gmra.mrb[0].mxu0 %v176
  %v576 = vpop.f32.mrb[0].mxu0
  %v577 = vadd.f32 0.0, %v576
  %v578 = vpop.f32.mrb[0].mxu0
  %v579 = vpop.f32.mrb[0].mxu0
  %v580 = vadd.f32 0.0, %v579
  %v581 = vpop.f32.mrb[0].mxu0
  %582 = vmatprep.mubr.bf16.mxu0 0
  %583 = vmatmul.mubr.bf16.gmra.mrb[0].mxu0 %v177
  %v584 = vpop.f32.mrb[0].mxu0
  %v585 = vadd.f32 0.0, %v584
  %v586 = vpop.f32.mrb[0].mxu0
  %v587 = vpop.f32.mrb[0].mxu0
  %v588 = vadd.f32 0.0, %v587
  %v589 = vpop.f32.mrb[0].mxu0
  %590 = vmatprep.mubr.bf16.mxu0 0
  %591 = vmatmul.mubr.bf16.gmra.mrb[0].mxu0 %v178
  %v592 = vpop.f32.mrb[0].mxu0
  %v593 = vadd.f32 0.0, %v592
  %v594 = vpop.f32.mrb[0].mxu0
  %v595 = vpop.f32.mrb[0].mxu0
  %v596 = vadd.f32 0.0, %v595
  %v597 = vpop.f32.mrb[0].mxu0
  %598 = vmatprep.mubr.bf16.mxu0 0
  %599 = vmatmul.mubr.bf16.gmra.mrb[0].mxu0 %v179
  %v600 = vpop.f32.mrb[0].mxu0
  %v601 = vadd.f32 0.0, %v600
  %v602 = vpop.f32.mrb[0].mxu0
  %v603 = vpop.f32.mrb[0].mxu0
  %v604 = vadd.f32 0.0, %v603
  %v605 = vpop.f32.mrb[0].mxu0
  %606 = vmatprep.mubr.bf16.mxu0 0
  %607 = vmatmul.mubr.bf16.gmra.mrb[0].mxu0 %v180
  %v608 = vpop.f32.mrb[0].mxu0
  %v609 = vadd.f32 0.0, %v608
  %v610 = vpop.f32.mrb[0].mxu0
  %v611 = vpop.f32.mrb[0].mxu0
  %v612 = vadd.f32 0.0, %v611
  %v613 = vpop.f32.mrb[0].mxu0
  %614 = vmatprep.mubr.bf16.mxu0 0
  %615 = vmatmul.mubr.bf16.gmra.mrb[0].mxu0 %v181
  %v616 = vpop.f32.mrb[0].mxu0
  %v617 = vadd.f32 0.0, %v616
  %v618 = vpop.f32.mrb[0].mxu0
  %v619 = vpop.f32.mrb[0].mxu0
  %v620 = vadd.f32 0.0, %v619
  %v621 = vpop.f32.mrb[0].mxu0
  %622 = vmatprep.mubr.bf16.mxu0 0
  %623 = vmatmul.mubr.bf16.gmra.mrb[0].mxu0 %v182
  %v624 = vpop.f32.mrb[0].mxu0
  %v625 = vadd.f32 0.0, %v624
  %v626 = vpop.f32.mrb[0].mxu0
  %v627 = vpop.f32.mrb[0].mxu0
  %v628 = vadd.f32 0.0, %v627
  %v629 = vpop.f32.mrb[0].mxu0
  %630 = vmatprep.mubr.bf16.mxu0 0
  %631 = vmatmul.mubr.bf16.gmra.mrb[0].mxu0 %v183
  %v632 = vpop.f32.mrb[0].mxu0
  %v633 = vadd.f32 0.0, %v632
  %v634 = vpop.f32.mrb[0].mxu0
  %v635 = vpop.f32.mrb[0].mxu0
  %v636 = vadd.f32 0.0, %v635
  %v637 = vpop.f32.mrb[0].mxu0
  %638 = vmatprep.mubr.bf16.mxu0 0
  %639 = vmatmul.mubr.bf16.gmra.mrb[0].mxu0 %v184
  %v640 = vpop.f32.mrb[0].mxu0
  %v641 = vadd.f32 0.0, %v640
  %v642 = vpop.f32.mrb[0].mxu0
  %v643 = vpop.f32.mrb[0].mxu0
  %v644 = vadd.f32 0.0, %v643
  %v645 = vpop.f32.mrb[0].mxu0
  %646 = vmatprep.mubr.bf16.mxu0 0
  %647 = vmatmul.mubr.bf16.gmra.mrb[0].mxu0 %v185
  %v648 = vpop.f32.mrb[0].mxu0
  %v649 = vadd.f32 0.0, %v648
  %v650 = vpop.f32.mrb[0].mxu0
  %v651 = vpop.f32.mrb[0].mxu0
  %v652 = vadd.f32 0.0, %v651
  %v653 = vpop.f32.mrb[0].mxu0
  %654 = vmatprep.mubr.bf16.mxu0 0
  %655 = vmatmul.mubr.bf16.gmra.mrb[0].mxu0 %v186
  %v656 = vpop.f32.mrb[0].mxu0
  %v657 = vadd.f32 0.0, %v656
  %v658 = vpop.f32.mrb[0].mxu0
  %v659 = vpop.f32.mrb[0].mxu0
  %v660 = vadd.f32 0.0, %v659
  %v661 = vpop.f32.mrb[0].mxu0
  %662 = vmatprep.mubr.bf16.mxu0 0
  %663 = vmatmul.mubr.bf16.gmra.mrb[0].mxu0 %v187
  %v664 = vpop.f32.mrb[0].mxu0
  %v665 = vadd.f32 0.0, %v664
  %v666 = vpop.f32.mrb[0].mxu0
  %v667 = vpop.f32.mrb[0].mxu0
  %v668 = vadd.f32 0.0, %v667
  %v669 = vpop.f32.mrb[0].mxu0
  %670 = vmatprep.mubr.bf16.mxu0 0
  %671 = vmatmul.mubr.bf16.gmra.mrb[0].mxu0 %v188
  %v672 = vpop.f32.mrb[0].mxu0
  %v673 = vadd.f32 0.0, %v672
  %v674 = vpop.f32.mrb[0].mxu0
  %v675 = vpop.f32.mrb[0].mxu0
  %v676 = vadd.f32 0.0, %v675
  %v677 = vpop.f32.mrb[0].mxu0
  %678 = vmatprep.mubr.bf16.mxu0 0
  %679 = vmatmul.mubr.bf16.gmra.mrb[0].mxu0 %v189
  %v680 = vpop.f32.mrb[0].mxu0
  %v681 = vadd.f32 0.0, %v680
  %v682 = vpop.f32.mrb[0].mxu0
  %v683 = vpop.f32.mrb[0].mxu0
  %v684 = vadd.f32 0.0, %v683
  %v685 = vpop.f32.mrb[0].mxu0
  %686 = vmatprep.mubr.bf16.mxu0 0
  %687 = vmatmul.mubr.bf16.gmra.mrb[0].mxu0 %v190
  %v688 = vpop.f32.mrb[0].mxu0
  %v689 = vadd.f32 0.0, %v688
  %v690 = vpop.f32.mrb[0].mxu0
  %v691 = vpop.f32.mrb[0].mxu0
  %v692 = vadd.f32 0.0, %v691
  %v693 = vpop.f32.mrb[0].mxu0
  %694 = vmatprep.mubr.bf16.mxu0 0
  %695 = vmatmul.mubr.bf16.gmra.mrb[0].mxu0 %v191
  %v696 = vpop.f32.mrb[0].mxu0
  %v697 = vadd.f32 0.0, %v696
  %v698 = vpop.f32.mrb[0].mxu0
  %v699 = vpop.f32.mrb[0].mxu0
  %v700 = vadd.f32 0.0, %v699
  %v701 = vpop.f32.mrb[0].mxu0
  %702 = vmatprep.mubr.bf16.mxu0 0
  %703 = vmatmul.mubr.bf16.gmra.mrb[0].mxu0 %v192
  %v704 = vpop.f32.mrb[0].mxu0
  %v705 = vadd.f32 0.0, %v704
  %v706 = vpop.f32.mrb[0].mxu0
  %v707 = vpop.f32.mrb[0].mxu0
  %v708 = vadd.f32 0.0, %v707
  %v709 = vpop.f32.mrb[0].mxu0
  %710 = vmatprep.mubr.bf16.mxu0 0
  %711 = vmatmul.mubr.bf16.gmra.mrb[0].mxu0 %v193
  %v712 = vpop.f32.mrb[0].mxu0
  %v713 = vadd.f32 0.0, %v712
  %v714 = vpop.f32.mrb[0].mxu0
  %v715 = vpop.f32.mrb[0].mxu0
  %v716 = vadd.f32 0.0, %v715
  %v717 = vpop.f32.mrb[0].mxu0
  %718 = vmatprep.mubr.bf16.mxu0 0
  %719 = vmatmul.mubr.bf16.gmra.mrb[0].mxu0 %v194
  %v720 = vpop.f32.mrb[0].mxu0
  %v721 = vadd.f32 0.0, %v720
  %v722 = vpop.f32.mrb[0].mxu0
  %v723 = vpop.f32.mrb[0].mxu0
  %v724 = vadd.f32 0.0, %v723
  %v725 = vpop.f32.mrb[0].mxu0
  %726 = vmatprep.mubr.bf16.mxu0 0
  %727 = vmatmul.mubr.bf16.gmra.mrb[0].mxu0 %v195
  %v728 = vpop.f32.mrb[0].mxu0
  %v729 = vadd.f32 0.0, %v728
  %v730 = vpop.f32.mrb[0].mxu0
  %v731 = vpop.f32.mrb[0].mxu0
  %v732 = vadd.f32 0.0, %v731
  %v733 = vpop.f32.mrb[0].mxu0
  %734 = vmatprep.mubr.bf16.mxu0 0
  %735 = vmatmul.mubr.bf16.gmra.mrb[0].mxu0 %v196
  %v736 = vpop.f32.mrb[0].mxu0
  %v737 = vadd.f32 0.0, %v736
  %v738 = vpop.f32.mrb[0].mxu0
  %v739 = vpop.f32.mrb[0].mxu0
  %v740 = vadd.f32 0.0, %v739
  %v741 = vpop.f32.mrb[0].mxu0
  %742 = vmatprep.mubr.bf16.mxu0 0
  %743 = vmatmul.mubr.bf16.gmra.mrb[0].mxu0 %v197
  %v744 = vpop.f32.mrb[0].mxu0
  %v745 = vadd.f32 0.0, %v744
  %v746 = vpop.f32.mrb[0].mxu0
  %v747 = vpop.f32.mrb[0].mxu0
  %v748 = vadd.f32 0.0, %v747
  %v749 = vpop.f32.mrb[0].mxu0
  %750 = vmatprep.mubr.bf16.mxu0 0
  %751 = vmatmul.mubr.bf16.gmra.mrb[0].mxu0 %v198
  %v752 = vpop.f32.mrb[0].mxu0
  %v753 = vadd.f32 0.0, %v752
  %v754 = vpop.f32.mrb[0].mxu0
  %v755 = vpop.f32.mrb[0].mxu0
  %v756 = vadd.f32 0.0, %v755
  %v757 = vpop.f32.mrb[0].mxu0
  %758 = vmatprep.mubr.bf16.mxu0 0
  %759 = vmatmul.mubr.bf16.gmra.mrb[0].mxu0 %v199
  %v760 = vpop.f32.mrb[0].mxu0
  %v761 = vadd.f32 0.0, %v760
  %v762 = vpop.f32.mrb[0].mxu0
  %v763 = vpop.f32.mrb[0].mxu0
  %v764 = vadd.f32 0.0, %v763
  %v765 = vpop.f32.mrb[0].mxu0
  %766 = vmatprep.mubr.bf16.mxu0 0
  %767 = vmatmul.mubr.bf16.gmra.mrb[0].mxu0 %v200
  %v768 = vpop.f32.mrb[0].mxu0
  %v769 = vadd.f32 0.0, %v768
  %v770 = vpop.f32.mrb[0].mxu0
  %v771 = vpop.f32.mrb[0].mxu0
  %v772 = vadd.f32 0.0, %v771
  %v773 = vpop.f32.mrb[0].mxu0
  %774 = vmatprep.mubr.bf16.mxu0 0
  %775 = vmatmul.mubr.bf16.gmra.mrb[0].mxu0 %v201
  %v776 = vpop.f32.mrb[0].mxu0
  %v777 = vadd.f32 0.0, %v776
  %v778 = vpop.f32.mrb[0].mxu0
  %v779 = vpop.f32.mrb[0].mxu0
  %v780 = vadd.f32 0.0, %v779
  %v781 = vpop.f32.mrb[0].mxu0
  %782 = vmatprep.mubr.bf16.mxu0 0
  %783 = vmatmul.mubr.bf16.gmra.mrb[0].mxu0 %v202
  %v784 = vpop.f32.mrb[0].mxu0
  %v785 = vadd.f32 0.0, %v784
  %v786 = vpop.f32.mrb[0].mxu0
  %v787 = vpop.f32.mrb[0].mxu0
  %v788 = vadd.f32 0.0, %v787
  %v789 = vpop.f32.mrb[0].mxu0
  %790 = vmatprep.mubr.bf16.mxu0 0
  %791 = vmatmul.mubr.bf16.gmra.mrb[0].mxu0 %v203
  %v792 = vpop.f32.mrb[0].mxu0
  %v793 = vadd.f32 0.0, %v792
  %v794 = vpop.f32.mrb[0].mxu0
  %v795 = vpop.f32.mrb[0].mxu0
  %v796 = vadd.f32 0.0, %v795
  %v797 = vpop.f32.mrb[0].mxu0
  %798 = vmatprep.mubr.bf16.mxu0 0
  %799 = vmatmul.mubr.bf16.gmra.mrb[0].mxu0 %v204
  %v800 = vpop.f32.mrb[0].mxu0
  %v801 = vadd.f32 0.0, %v800
  %v802 = vpop.f32.mrb[0].mxu0
  %v803 = vpop.f32.mrb[0].mxu0
  %v804 = vadd.f32 0.0, %v803
  %v805 = vpop.f32.mrb[0].mxu0
  %806 = vmatprep.mubr.bf16.mxu0 0
  %807 = vmatmul.mubr.bf16.gmra.mrb[0].mxu0 %v205
  %v808 = vpop.f32.mrb[0].mxu0
  %v809 = vadd.f32 0.0, %v808
  %v810 = vpop.f32.mrb[0].mxu0
  %v811 = vpop.f32.mrb[0].mxu0
  %v812 = vadd.f32 0.0, %v811
  %v813 = vpop.f32.mrb[0].mxu0
  %814 = vdwg.mxu0
  %815 = vst [vmem:[%s2] sm:$0xff] %v305
  %816 = vst [vmem:[%s2 + $0x8] sm:$0xff] %v308
  %817 = vst [vmem:[%s2 + $0x10] sm:$0xff] %v313
  %818 = vst [vmem:[%s2 + $0x18] sm:$0xff] %v316
  %819 = vst [vmem:[%s2 + $0x20] sm:$0xff] %v321
  %820 = vst [vmem:[%s2 + $0x28] sm:$0xff] %v324
  %821 = vst [vmem:[%s2 + $0x30] sm:$0xff] %v329
  %822 = vst [vmem:[%s2 + $0x38] sm:$0xff] %v332
  %823 = vst [vmem:[%s2 + $0x40] sm:$0xff] %v337
  %824 = vst [vmem:[%s2 + $0x48] sm:$0xff] %v340
  %825 = vst [vmem:[%s2 + $0x50] sm:$0xff] %v345
  %826 = vst [vmem:[%s2 + $0x58] sm:$0xff] %v348
  %827 = vst [vmem:[%s2 + $0x60] sm:$0xff] %v353
  %828 = vst [vmem:[%s2 + $0x68] sm:$0xff] %v356
  %829 = vst [vmem:[%s2 + $0x70] sm:$0xff] %v361
  %830 = vst [vmem:[%s2 + $0x78] sm:$0xff] %v364
  %831 = vst [vmem:[%s2 + $0x80] sm:$0xff] %v369
  %832 = vst [vmem:[%s2 + $0x88] sm:$0xff] %v372
  %833 = vst [vmem:[%s2 + $0x90] sm:$0xff] %v377
  %834 = vst [vmem:[%s2 + $0x98] sm:$0xff] %v380
  %835 = vst [vmem:[%s2 + $0xa0] sm:$0xff] %v385
  %836 = vst [vmem:[%s2 + $0xa8] sm:$0xff] %v388
  %837 = vst [vmem:[%s2 + $0xb0] sm:$0xff] %v393
  %838 = vst [vmem:[%s2 + $0xb8] sm:$0xff] %v396
  %839 = vst [vmem:[%s2 + $0xc0] sm:$0xff] %v401
  %840 = vst [vmem:[%s2 + $0xc8] sm:$0xff] %v404
  %841 = vst [vmem:[%s2 + $0xd0] sm:$0xff] %v409
  %842 = vst [vmem:[%s2 + $0xd8] sm:$0xff] %v412
  %843 = vst [vmem:[%s2 + $0xe0] sm:$0xff] %v417
  %844 = vst [vmem:[%s2 + $0xe8] sm:$0xff] %v420
  %845 = vst [vmem:[%s2 + $0xf0] sm:$0xff] %v425
  %846 = vst [vmem:[%s2 + $0xf8] sm:$0xff] %v428
  %847 = vst [vmem:[%s2 + $0x100] sm:$0xff] %v433
  %848 = vst [vmem:[%s2 + $0x108] sm:$0xff] %v436
  %849 = vst [vmem:[%s2 + $0x110] sm:$0xff] %v441
  %850 = vst [vmem:[%s2 + $0x118] sm:$0xff] %v444
  %851 = vst [vmem:[%s2 + $0x120] sm:$0xff] %v449
  %852 = vst [vmem:[%s2 + $0x128] sm:$0xff] %v452
  %853 = vst [vmem:[%s2 + $0x130] sm:$0xff] %v457
  %854 = vst [vmem:[%s2 + $0x138] sm:$0xff] %v460
  %855 = vst [vmem:[%s2 + $0x140] sm:$0xff] %v465
  %856 = vst [vmem:[%s2 + $0x148] sm:$0xff] %v468
  %857 = vst [vmem:[%s2 + $0x150] sm:$0xff] %v473
  %858 = vst [vmem:[%s2 + $0x158] sm:$0xff] %v476
  %859 = vst [vmem:[%s2 + $0x160] sm:$0xff] %v481
  %860 = vst [vmem:[%s2 + $0x168] sm:$0xff] %v484
  %861 = vst [vmem:[%s2 + $0x170] sm:$0xff] %v489
  %862 = vst [vmem:[%s2 + $0x178] sm:$0xff] %v492
  %863 = vst [vmem:[%s2 + $0x180] sm:$0xff] %v497
  %864 = vst [vmem:[%s2 + $0x188] sm:$0xff] %v500
  %865 = vst [vmem:[%s2 + $0x190] sm:$0xff] %v505
  %866 = vst [vmem:[%s2 + $0x198] sm:$0xff] %v508
  %867 = vst [vmem:[%s2 + $0x1a0] sm:$0xff] %v513
  %868 = vst [vmem:[%s2 + $0x1a8] sm:$0xff] %v516
  %869 = vst [vmem:[%s2 + $0x1b0] sm:$0xff] %v521
  %870 = vst [vmem:[%s2 + $0x1b8] sm:$0xff] %v524
  %871 = vst [vmem:[%s2 + $0x1c0] sm:$0xff] %v529
  %872 = vst [vmem:[%s2 + $0x1c8] sm:$0xff] %v532
  %873 = vst [vmem:[%s2 + $0x1d0] sm:$0xff] %v537
  %874 = vst [vmem:[%s2 + $0x1d8] sm:$0xff] %v540
  %875 = vst [vmem:[%s2 + $0x1e0] sm:$0xff] %v545
  %876 = vst [vmem:[%s2 + $0x1e8] sm:$0xff] %v548
  %877 = vst [vmem:[%s2 + $0x1f0] sm:$0xff] %v553
  %878 = vst [vmem:[%s2 + $0x1f8] sm:$0xff] %v556
  %879 = vst [vmem:[%s2 + $0x200] sm:$0xff] %v561
  %880 = vst [vmem:[%s2 + $0x208] sm:$0xff] %v564
  %881 = vst [vmem:[%s2 + $0x210] sm:$0xff] %v569
  %882 = vst [vmem:[%s2 + $0x218] sm:$0xff] %v572
  %883 = vst [vmem:[%s2 + $0x220] sm:$0xff] %v577
  %884 = vst [vmem:[%s2 + $0x228] sm:$0xff] %v580
  %885 = vst [vmem:[%s2 + $0x230] sm:$0xff] %v585
  %886 = vst [vmem:[%s2 + $0x238] sm:$0xff] %v588
  %887 = vst [vmem:[%s2 + $0x240] sm:$0xff] %v593
  %888 = vst [vmem:[%s2 + $0x248] sm:$0xff] %v596
  %889 = vst [vmem:[%s2 + $0x250] sm:$0xff] %v601
  %890 = vst [vmem:[%s2 + $0x258] sm:$0xff] %v604
  %891 = vst [vmem:[%s2 + $0x260] sm:$0xff] %v609
  %892 = vst [vmem:[%s2 + $0x268] sm:$0xff] %v612
  %893 = vst [vmem:[%s2 + $0x270] sm:$0xff] %v617
  %894 = vst [vmem:[%s2 + $0x278] sm:$0xff] %v620
  %895 = vst [vmem:[%s2 + $0x280] sm:$0xff] %v625
  %896 = vst [vmem:[%s2 + $0x288] sm:$0xff] %v628
  %897 = vst [vmem:[%s2 + $0x290] sm:$0xff] %v633
  %898 = vst [vmem:[%s2 + $0x298] sm:$0xff] %v636
  %899 = vst [vmem:[%s2 + $0x2a0] sm:$0xff] %v641
  %900 = vst [vmem:[%s2 + $0x2a8] sm:$0xff] %v644
  %901 = vst [vmem:[%s2 + $0x2b0] sm:$0xff] %v649
  %902 = vst [vmem:[%s2 + $0x2b8] sm:$0xff] %v652
  %903 = vst [vmem:[%s2 + $0x2c0] sm:$0xff] %v657
  %904 = vst [vmem:[%s2 + $0x2c8] sm:$0xff] %v660
  %905 = vst [vmem:[%s2 + $0x2d0] sm:$0xff] %v665
  %906 = vst [vmem:[%s2 + $0x2d8] sm:$0xff] %v668
  %907 = vst [vmem:[%s2 + $0x2e0] sm:$0xff] %v673
  %908 = vst [vmem:[%s2 + $0x2e8] sm:$0xff] %v676
  %909 = vst [vmem:[%s2 + $0x2f0] sm:$0xff] %v681
  %910 = vst [vmem:[%s2 + $0x2f8] sm:$0xff] %v684
  %911 = vst [vmem:[%s2 + $0x300] sm:$0xff] %v689
  %912 = vst [vmem:[%s2 + $0x308] sm:$0xff] %v692
  %913 = vst [vmem:[%s2 + $0x310] sm:$0xff] %v697
  %914 = vst [vmem:[%s2 + $0x318] sm:$0xff] %v700
  %915 = vst [vmem:[%s2 + $0x320] sm:$0xff] %v705
  %916 = vst [vmem:[%s2 + $0x328] sm:$0xff] %v708
  %917 = vst [vmem:[%s2 + $0x330] sm:$0xff] %v713
  %918 = vst [vmem:[%s2 + $0x338] sm:$0xff] %v716
  %919 = vst [vmem:[%s2 + $0x340] sm:$0xff] %v721
  %920 = vst [vmem:[%s2 + $0x348] sm:$0xff] %v724
  %921 = vst [vmem:[%s2 + $0x350] sm:$0xff] %v729
  %922 = vst [vmem:[%s2 + $0x358] sm:$0xff] %v732
  %923 = vst [vmem:[%s2 + $0x360] sm:$0xff] %v737
  %924 = vst [vmem:[%s2 + $0x368] sm:$0xff] %v740
  %925 = vst [vmem:[%s2 + $0x370] sm:$0xff] %v745
  %926 = vst [vmem:[%s2 + $0x378] sm:$0xff] %v748
  %927 = vst [vmem:[%s2 + $0x380] sm:$0xff] %v753
  %928 = vst [vmem:[%s2 + $0x388] sm:$0xff] %v756
  %929 = vst [vmem:[%s2 + $0x390] sm:$0xff] %v761
  %930 = vst [vmem:[%s2 + $0x398] sm:$0xff] %v764
  %931 = vst [vmem:[%s2 + $0x3a0] sm:$0xff] %v769
  %932 = vst [vmem:[%s2 + $0x3a8] sm:$0xff] %v772
  %933 = vst [vmem:[%s2 + $0x3b0] sm:$0xff] %v777
  %934 = vst [vmem:[%s2 + $0x3b8] sm:$0xff] %v780
  %935 = vst [vmem:[%s2 + $0x3c0] sm:$0xff] %v785
  %936 = vst [vmem:[%s2 + $0x3c8] sm:$0xff] %v788
  %937 = vst [vmem:[%s2 + $0x3d0] sm:$0xff] %v793
  %938 = vst [vmem:[%s2 + $0x3d8] sm:$0xff] %v796
  %939 = vst [vmem:[%s2 + $0x3e0] sm:$0xff] %v801
  %940 = vst [vmem:[%s2 + $0x3e8] sm:$0xff] %v804
  %941 = vst [vmem:[%s2 + $0x3f0] sm:$0xff] %v809
  %942 = vst [vmem:[%s2 + $0x3f8] sm:$0xff] %v812
  %v943 = vadd.f32 %v305, %v308
  %v944 = vadd.f32 %v943, %v313
  %v945 = vadd.f32 %v944, %v316
  %v946 = vadd.f32 %v945, %v321
  %v947 = vadd.f32 %v946, %v324
  %v948 = vadd.f32 %v947, %v329
  %v949 = vadd.f32 %v948, %v332
  %v950 = vadd.f32 %v949, %v337
  %v951 = vadd.f32 %v950, %v340
  %v952 = vadd.f32 %v951, %v345
  %v953 = vadd.f32 %v952, %v348
  %v954 = vadd.f32 %v953, %v353
  %v955 = vadd.f32 %v954, %v356
  %v956 = vadd.f32 %v955, %v361
  %v957 = vadd.f32 %v956, %v364
  %v958 = vadd.f32 %v957, %v369
  %v959 = vadd.f32 %v958, %v372
  %v960 = vadd.f32 %v959, %v377
  %v961 = vadd.f32 %v960, %v380
  %v962 = vadd.f32 %v961, %v385
  %v963 = vadd.f32 %v962, %v388
  %v964 = vadd.f32 %v963, %v393
  %v965 = vadd.f32 %v964, %v396
  %v966 = vadd.f32 %v965, %v401
  %v967 = vadd.f32 %v966, %v404
  %v968 = vadd.f32 %v967, %v409
  %v969 = vadd.f32 %v968, %v412
  %v970 = vadd.f32 %v969, %v417
  %v971 = vadd.f32 %v970, %v420
  %v972 = vadd.f32 %v971, %v425
  %v973 = vadd.f32 %v972, %v428
  %v974 = vadd.f32 %v973, %v433
  %v975 = vadd.f32 %v974, %v436
  %v976 = vadd.f32 %v975, %v441
  %v977 = vadd.f32 %v976, %v444
  %v978 = vadd.f32 %v977, %v449
  %v979 = vadd.f32 %v978, %v452
  %v980 = vadd.f32 %v979, %v457
  %v981 = vadd.f32 %v980, %v460
  %v982 = vadd.f32 %v981, %v465
  %v983 = vadd.f32 %v982, %v468
  %v984 = vadd.f32 %v983, %v473
  %v985 = vadd.f32 %v984, %v476
  %v986 = vadd.f32 %v985, %v481
  %v987 = vadd.f32 %v986, %v484
  %v988 = vadd.f32 %v987, %v489
  %v989 = vadd.f32 %v988, %v492
  %v990 = vadd.f32 %v989, %v497
  %v991 = vadd.f32 %v990, %v500
  %v992 = vadd.f32 %v991, %v505
  %v993 = vadd.f32 %v992, %v508
  %v994 = vadd.f32 %v993, %v513
  %v995 = vadd.f32 %v994, %v516
  %v996 = vadd.f32 %v995, %v521
  %v997 = vadd.f32 %v996, %v524
  %v998 = vadd.f32 %v997, %v529
  %v999 = vadd.f32 %v998, %v532
  %v1000 = vadd.f32 %v999, %v537
  %v1001 = vadd.f32 %v1000, %v540
  %v1002 = vadd.f32 %v1001, %v545
  %v1003 = vadd.f32 %v1002, %v548
  %v1004 = vadd.f32 %v1003, %v553
  %v1005 = vadd.f32 %v1004, %v556
  %v1006 = vadd.f32 %v1005, %v561
  %v1007 = vadd.f32 %v1006, %v564
  %v1008 = vadd.f32 %v1007, %v569
  %v1009 = vadd.f32 %v1008, %v572
  %v1010 = vadd.f32 %v1009, %v577
  %v1011 = vadd.f32 %v1010, %v580
  %v1012 = vadd.f32 %v1011, %v585
  %v1013 = vadd.f32 %v1012, %v588
  %v1014 = vadd.f32 %v1013, %v593
  %v1015 = vadd.f32 %v1014, %v596
  %v1016 = vadd.f32 %v1015, %v601
  %v1017 = vadd.f32 %v1016, %v604
  %v1018 = vadd.f32 %v1017, %v609
  %v1019 = vadd.f32 %v1018, %v612
  %v1020 = vadd.f32 %v1019, %v617
  %v1021 = vadd.f32 %v1020, %v620
  %v1022 = vadd.f32 %v1021, %v625
  %v1023 = vadd.f32 %v1022, %v628
  %v1024 = vadd.f32 %v1023, %v633
  %v1025 = vadd.f32 %v1024, %v636
  %v1026 = vadd.f32 %v1025, %v641
  %v1027 = vadd.f32 %v1026, %v644
  %v1028 = vadd.f32 %v1027, %v649
  %v1029 = vadd.f32 %v1028, %v652
  %v1030 = vadd.f32 %v1029, %v657
  %v1031 = vadd.f32 %v1030, %v660
  %v1032 = vadd.f32 %v1031, %v665
  %v1033 = vadd.f32 %v1032, %v668
  %v1034 = vadd.f32 %v1033, %v673
  %v1035 = vadd.f32 %v1034, %v676
  %v1036 = vadd.f32 %v1035, %v681
  %v1037 = vadd.f32 %v1036, %v684
  %v1038 = vadd.f32 %v1037, %v689
  %v1039 = vadd.f32 %v1038, %v692
  %v1040 = vadd.f32 %v1039, %v697
  %v1041 = vadd.f32 %v1040, %v700
  %v1042 = vadd.f32 %v1041, %v705
  %v1043 = vadd.f32 %v1042, %v708
  %v1044 = vadd.f32 %v1043, %v713
  %v1045 = vadd.f32 %v1044, %v716
  %v1046 = vadd.f32 %v1045, %v721
  %v1047 = vadd.f32 %v1046, %v724
  %v1048 = vadd.f32 %v1047, %v729
  %v1049 = vadd.f32 %v1048, %v732
  %v1050 = vadd.f32 %v1049, %v737
  %v1051 = vadd.f32 %v1050, %v740
  %v1052 = vadd.f32 %v1051, %v745
  %v1053 = vadd.f32 %v1052, %v748
  %v1054 = vadd.f32 %v1053, %v753
  %v1055 = vadd.f32 %v1054, %v756
  %v1056 = vadd.f32 %v1055, %v761
  %v1057 = vadd.f32 %v1056, %v764
  %v1058 = vadd.f32 %v1057, %v769
  %v1059 = vadd.f32 %v1058, %v772
  %v1060 = vadd.f32 %v1059, %v777
  %v1061 = vadd.f32 %v1060, %v780
  %v1062 = vadd.f32 %v1061, %v785
  %v1063 = vadd.f32 %v1062, %v788
  %v1064 = vadd.f32 %v1063, %v793
  %v1065 = vadd.f32 %v1064, %v796
  %v1066 = vadd.f32 %v1065, %v801
  %v1067 = vadd.f32 %v1066, %v804
  %v1068 = vadd.f32 %v1067, %v809
  %v1069 = vadd.f32 %v1068, %v812
  %v1070 = vrot.slane %v1069, 4
  %v1071 = vadd.f32 %v1069, %v1070
  %v1072 = vrot.slane %v1071, 2
  %v1073 = vadd.f32 %v1071, %v1072
  %v1074 = vrot.slane %v1073, 1
  %v1075 = vadd.f32 %v1073, %v1074
  %1076 = vst [vmem:[%s3] sm:$0x1] %v1075
  %v1077 = vmul.f32 %v305, %v305
  %v1078 = vmul.f32 %v308, %v308
  %v1079 = vmul.f32 %v313, %v313
  %v1080 = vmul.f32 %v316, %v316
  %v1081 = vmul.f32 %v321, %v321
  %v1082 = vmul.f32 %v324, %v324
  %v1083 = vmul.f32 %v329, %v329
  %v1084 = vmul.f32 %v332, %v332
  %v1085 = vmul.f32 %v337, %v337
  %v1086 = vmul.f32 %v340, %v340
  %v1087 = vmul.f32 %v345, %v345
  %v1088 = vmul.f32 %v348, %v348
  %v1089 = vmul.f32 %v353, %v353
  %v1090 = vmul.f32 %v356, %v356
  %v1091 = vmul.f32 %v361, %v361
  %v1092 = vmul.f32 %v364, %v364
  %v1093 = vmul.f32 %v369, %v369
  %v1094 = vmul.f32 %v372, %v372
  %v1095 = vmul.f32 %v377, %v377
  %v1096 = vmul.f32 %v380, %v380
  %v1097 = vmul.f32 %v385, %v385
  %v1098 = vmul.f32 %v388, %v388
  %v1099 = vmul.f32 %v393, %v393
  %v1100 = vmul.f32 %v396, %v396
  %v1101 = vmul.f32 %v401, %v401
  %v1102 = vmul.f32 %v404, %v404
  %v1103 = vmul.f32 %v409, %v409
  %v1104 = vmul.f32 %v412, %v412
  %v1105 = vmul.f32 %v417, %v417
  %v1106 = vmul.f32 %v420, %v420
  %v1107 = vmul.f32 %v425, %v425
  %v1108 = vmul.f32 %v428, %v428
  %v1109 = vmul.f32 %v433, %v433
  %v1110 = vmul.f32 %v436, %v436
  %v1111 = vmul.f32 %v441, %v441
  %v1112 = vmul.f32 %v444, %v444
  %v1113 = vmul.f32 %v449, %v449
  %v1114 = vmul.f32 %v452, %v452
  %v1115 = vmul.f32 %v457, %v457
  %v1116 = vmul.f32 %v460, %v460
  %v1117 = vmul.f32 %v465, %v465
  %v1118 = vmul.f32 %v468, %v468
  %v1119 = vmul.f32 %v473, %v473
  %v1120 = vmul.f32 %v476, %v476
  %v1121 = vmul.f32 %v481, %v481
  %v1122 = vmul.f32 %v484, %v484
  %v1123 = vmul.f32 %v489, %v489
  %v1124 = vmul.f32 %v492, %v492
  %v1125 = vmul.f32 %v497, %v497
  %v1126 = vmul.f32 %v500, %v500
  %v1127 = vmul.f32 %v505, %v505
  %v1128 = vmul.f32 %v508, %v508
  %v1129 = vmul.f32 %v513, %v513
  %v1130 = vmul.f32 %v516, %v516
  %v1131 = vmul.f32 %v521, %v521
  %v1132 = vmul.f32 %v524, %v524
  %v1133 = vmul.f32 %v529, %v529
  %v1134 = vmul.f32 %v532, %v532
  %v1135 = vmul.f32 %v537, %v537
  %v1136 = vmul.f32 %v540, %v540
  %v1137 = vmul.f32 %v545, %v545
  %v1138 = vmul.f32 %v548, %v548
  %v1139 = vmul.f32 %v553, %v553
  %v1140 = vmul.f32 %v556, %v556
  %v1141 = vmul.f32 %v561, %v561
  %v1142 = vmul.f32 %v564, %v564
  %v1143 = vmul.f32 %v569, %v569
  %v1144 = vmul.f32 %v572, %v572
  %v1145 = vmul.f32 %v577, %v577
  %v1146 = vmul.f32 %v580, %v580
  %v1147 = vmul.f32 %v585, %v585
  %v1148 = vmul.f32 %v588, %v588
  %v1149 = vmul.f32 %v593, %v593
  %v1150 = vmul.f32 %v596, %v596
  %v1151 = vmul.f32 %v601, %v601
  %v1152 = vmul.f32 %v604, %v604
  %v1153 = vmul.f32 %v609, %v609
  %v1154 = vmul.f32 %v612, %v612
  %v1155 = vmul.f32 %v617, %v617
  %v1156 = vmul.f32 %v620, %v620
  %v1157 = vmul.f32 %v625, %v625
  %v1158 = vmul.f32 %v628, %v628
  %v1159 = vmul.f32 %v633, %v633
  %v1160 = vmul.f32 %v636, %v636
  %v1161 = vmul.f32 %v641, %v641
  %v1162 = vmul.f32 %v644, %v644
  %v1163 = vmul.f32 %v649, %v649
  %v1164 = vmul.f32 %v652, %v652
  %v1165 = vmul.f32 %v657, %v657
  %v1166 = vmul.f32 %v660, %v660
  %v1167 = vmul.f32 %v665, %v665
  %v1168 = vmul.f32 %v668, %v668
  %v1169 = vmul.f32 %v673, %v673
  %v1170 = vmul.f32 %v676, %v676
  %v1171 = vmul.f32 %v681, %v681
  %v1172 = vmul.f32 %v684, %v684
  %v1173 = vmul.f32 %v689, %v689
  %v1174 = vmul.f32 %v692, %v692
  %v1175 = vmul.f32 %v697, %v697
  %v1176 = vmul.f32 %v700, %v700
  %v1177 = vmul.f32 %v705, %v705
  %v1178 = vmul.f32 %v708, %v708
  %v1179 = vmul.f32 %v713, %v713
  %v1180 = vmul.f32 %v716, %v716
  %v1181 = vmul.f32 %v721, %v721
  %v1182 = vmul.f32 %v724, %v724
  %v1183 = vmul.f32 %v729, %v729
  %v1184 = vmul.f32 %v732, %v732
  %v1185 = vmul.f32 %v737, %v737
  %v1186 = vmul.f32 %v740, %v740
  %v1187 = vmul.f32 %v745, %v745
  %v1188 = vmul.f32 %v748, %v748
  %v1189 = vmul.f32 %v753, %v753
  %v1190 = vmul.f32 %v756, %v756
  %v1191 = vmul.f32 %v761, %v761
  %v1192 = vmul.f32 %v764, %v764
  %v1193 = vmul.f32 %v769, %v769
  %v1194 = vmul.f32 %v772, %v772
  %v1195 = vmul.f32 %v777, %v777
  %v1196 = vmul.f32 %v780, %v780
  %v1197 = vmul.f32 %v785, %v785
  %v1198 = vmul.f32 %v788, %v788
  %v1199 = vmul.f32 %v793, %v793
  %v1200 = vmul.f32 %v796, %v796
  %v1201 = vmul.f32 %v801, %v801
  %v1202 = vmul.f32 %v804, %v804
  %v1203 = vmul.f32 %v809, %v809
  %v1204 = vmul.f32 %v812, %v812
  %v1205 = vadd.f32 %v1077, %v1078
  %v1206 = vadd.f32 %v1205, %v1079
  %v1207 = vadd.f32 %v1206, %v1080
  %v1208 = vadd.f32 %v1207, %v1081
  %v1209 = vadd.f32 %v1208, %v1082
  %v1210 = vadd.f32 %v1209, %v1083
  %v1211 = vadd.f32 %v1210, %v1084
  %v1212 = vadd.f32 %v1211, %v1085
  %v1213 = vadd.f32 %v1212, %v1086
  %v1214 = vadd.f32 %v1213, %v1087
  %v1215 = vadd.f32 %v1214, %v1088
  %v1216 = vadd.f32 %v1215, %v1089
  %v1217 = vadd.f32 %v1216, %v1090
  %v1218 = vadd.f32 %v1217, %v1091
  %v1219 = vadd.f32 %v1218, %v1092
  %v1220 = vadd.f32 %v1219, %v1093
  %v1221 = vadd.f32 %v1220, %v1094
  %v1222 = vadd.f32 %v1221, %v1095
  %v1223 = vadd.f32 %v1222, %v1096
  %v1224 = vadd.f32 %v1223, %v1097
  %v1225 = vadd.f32 %v1224, %v1098
  %v1226 = vadd.f32 %v1225, %v1099
  %v1227 = vadd.f32 %v1226, %v1100
  %v1228 = vadd.f32 %v1227, %v1101
  %v1229 = vadd.f32 %v1228, %v1102
  %v1230 = vadd.f32 %v1229, %v1103
  %v1231 = vadd.f32 %v1230, %v1104
  %v1232 = vadd.f32 %v1231, %v1105
  %v1233 = vadd.f32 %v1232, %v1106
  %v1234 = vadd.f32 %v1233, %v1107
  %v1235 = vadd.f32 %v1234, %v1108
  %v1236 = vadd.f32 %v1235, %v1109
  %v1237 = vadd.f32 %v1236, %v1110
  %v1238 = vadd.f32 %v1237, %v1111
  %v1239 = vadd.f32 %v1238, %v1112
  %v1240 = vadd.f32 %v1239, %v1113
  %v1241 = vadd.f32 %v1240, %v1114
  %v1242 = vadd.f32 %v1241, %v1115
  %v1243 = vadd.f32 %v1242, %v1116
  %v1244 = vadd.f32 %v1243, %v1117
  %v1245 = vadd.f32 %v1244, %v1118
  %v1246 = vadd.f32 %v1245, %v1119
  %v1247 = vadd.f32 %v1246, %v1120
  %v1248 = vadd.f32 %v1247, %v1121
  %v1249 = vadd.f32 %v1248, %v1122
  %v1250 = vadd.f32 %v1249, %v1123
  %v1251 = vadd.f32 %v1250, %v1124
  %v1252 = vadd.f32 %v1251, %v1125
  %v1253 = vadd.f32 %v1252, %v1126
  %v1254 = vadd.f32 %v1253, %v1127
  %v1255 = vadd.f32 %v1254, %v1128
  %v1256 = vadd.f32 %v1255, %v1129
  %v1257 = vadd.f32 %v1256, %v1130
  %v1258 = vadd.f32 %v1257, %v1131
  %v1259 = vadd.f32 %v1258, %v1132
  %v1260 = vadd.f32 %v1259, %v1133
  %v1261 = vadd.f32 %v1260, %v1134
  %v1262 = vadd.f32 %v1261, %v1135
  %v1263 = vadd.f32 %v1262, %v1136
  %v1264 = vadd.f32 %v1263, %v1137
  %v1265 = vadd.f32 %v1264, %v1138
  %v1266 = vadd.f32 %v1265, %v1139
  %v1267 = vadd.f32 %v1266, %v1140
  %v1268 = vadd.f32 %v1267, %v1141
  %v1269 = vadd.f32 %v1268, %v1142
  %v1270 = vadd.f32 %v1269, %v1143
  %v1271 = vadd.f32 %v1270, %v1144
  %v1272 = vadd.f32 %v1271, %v1145
  %v1273 = vadd.f32 %v1272, %v1146
  %v1274 = vadd.f32 %v1273, %v1147
  %v1275 = vadd.f32 %v1274, %v1148
  %v1276 = vadd.f32 %v1275, %v1149
  %v1277 = vadd.f32 %v1276, %v1150
  %v1278 = vadd.f32 %v1277, %v1151
  %v1279 = vadd.f32 %v1278, %v1152
  %v1280 = vadd.f32 %v1279, %v1153
  %v1281 = vadd.f32 %v1280, %v1154
  %v1282 = vadd.f32 %v1281, %v1155
  %v1283 = vadd.f32 %v1282, %v1156
  %v1284 = vadd.f32 %v1283, %v1157
  %v1285 = vadd.f32 %v1284, %v1158
  %v1286 = vadd.f32 %v1285, %v1159
  %v1287 = vadd.f32 %v1286, %v1160
  %v1288 = vadd.f32 %v1287, %v1161
  %v1289 = vadd.f32 %v1288, %v1162
  %v1290 = vadd.f32 %v1289, %v1163
  %v1291 = vadd.f32 %v1290, %v1164
  %v1292 = vadd.f32 %v1291, %v1165
  %v1293 = vadd.f32 %v1292, %v1166
  %v1294 = vadd.f32 %v1293, %v1167
  %v1295 = vadd.f32 %v1294, %v1168
  %v1296 = vadd.f32 %v1295, %v1169
  %v1297 = vadd.f32 %v1296, %v1170
  %v1298 = vadd.f32 %v1297, %v1171
  %v1299 = vadd.f32 %v1298, %v1172
  %v1300 = vadd.f32 %v1299, %v1173
  %v1301 = vadd.f32 %v1300, %v1174
  %v1302 = vadd.f32 %v1301, %v1175
  %v1303 = vadd.f32 %v1302, %v1176
  %v1304 = vadd.f32 %v1303, %v1177
  %v1305 = vadd.f32 %v1304, %v1178
  %v1306 = vadd.f32 %v1305, %v1179
  %v1307 = vadd.f32 %v1306, %v1180
  %v1308 = vadd.f32 %v1307, %v1181
  %v1309 = vadd.f32 %v1308, %v1182
  %v1310 = vadd.f32 %v1309, %v1183
  %v1311 = vadd.f32 %v1310, %v1184
  %v1312 = vadd.f32 %v1311, %v1185
  %v1313 = vadd.f32 %v1312, %v1186
  %v1314 = vadd.f32 %v1313, %v1187
  %v1315 = vadd.f32 %v1314, %v1188
  %v1316 = vadd.f32 %v1315, %v1189
  %v1317 = vadd.f32 %v1316, %v1190
  %v1318 = vadd.f32 %v1317, %v1191
  %v1319 = vadd.f32 %v1318, %v1192
  %v1320 = vadd.f32 %v1319, %v1193
  %v1321 = vadd.f32 %v1320, %v1194
  %v1322 = vadd.f32 %v1321, %v1195
  %v1323 = vadd.f32 %v1322, %v1196
  %v1324 = vadd.f32 %v1323, %v1197
  %v1325 = vadd.f32 %v1324, %v1198
  %v1326 = vadd.f32 %v1325, %v1199
  %v1327 = vadd.f32 %v1326, %v1200
  %v1328 = vadd.f32 %v1327, %v1201
  %v1329 = vadd.f32 %v1328, %v1202
  %v1330 = vadd.f32 %v1329, %v1203
  %v1331 = vadd.f32 %v1330, %v1204
  %v1332 = vrot.slane %v1331, 4
  %v1333 = vadd.f32 %v1331, %v1332
  %v1334 = vrot.slane %v1333, 2
  %v1335 = vadd.f32 %v1333, %v1334
  %v1336 = vrot.slane %v1335, 1
  %v1337 = vadd.f32 %v1335, %v1336
  %1338 = vst [vmem:[%s3 + $0x1] sm:$0x1] %v1337
  // Predicated region
  $region10: #{bottleneck_block3d_l.5} parent=0 // pred_check
    _
  $region11: #{bottleneck_block3d_l.5} parent=0 // pred_check_branch
    %1340 = sbr.rel (0) target = $region13
  $region12: #{bottleneck_block3d_l.5} parent=0 // pred_region
    _
  $region13: #{bottleneck_block3d_l.5} parent=0 // pred_fallthru
    _
  // Predicated region
  $region14: #{bottleneck_block3d_l.5} parent=0 // pred_check
    _
  $region15: #{bottleneck_block3d_l.5} parent=0 // pred_check_branch
    %1342 = sbr.rel (0) target = $region17
  $region16: #{bottleneck_block3d_l.5} parent=0 // pred_region
    _
  $region17: #{bottleneck_block3d_l.5} parent=0 // pred_fallthru
    _
  // Predicated region
  $region18: #{bottleneck_block3d_l.5} parent=0 // pred_check
    _
  $region19: #{bottleneck_block3d_l.5} parent=0 // pred_check_branch
    %1344 = sbr.rel (0) target = $region21
  $region20: #{bottleneck_block3d_l.5} parent=0 // pred_region
    _
  $region21: #{bottleneck_block3d_l.5} parent=0 // pred_fallthru
    _
  // Predicated region
  $region22: #{bottleneck_block3d_l.5} parent=0 // pred_check
    _
  $region23: #{bottleneck_block3d_l.5} parent=0 // pred_check_branch
    %1346 = sbr.rel (0) target = $region25
  $region24: #{bottleneck_block3d_l.5} parent=0 // pred_region
    _
  $region25: #{bottleneck_block3d_l.5} parent=0 // pred_fallthru
    _

// kernel: bottleneck_block3d_l.7
$region0: #{bottleneck_block3d_l.7}
  #allocation0 [shape = 'u32[]', space=smem, size = 0x4, offset = 0x4, fixed_abs, tag = 'smem constant byte address 0x4 - core index']
  #allocation1 [shape = 'u32[144,128]{1,0:T(1,128)}', space=vmem, size = 0x12000, scoped, tag = 'internal scratch']
  %s0 = inlined_call_operand.vmem [shape: f32[2,8,10,10,128], index: 0, kind: input, shape index: {}]
  %s1 = inlined_call_operand.vmem [shape: bf16[3,1152,128], index: 1, kind: input, shape index: {}]
  %s2 = inlined_call_operand.vmem [shape: f32[2,8,64,128], index: 2, kind: output, shape index: {0}]
  %s3 = inlined_call_operand.vmem [shape: f32[2,8,2,128], index: 3, kind: output, shape index: {1}]
  %4 = xla_tuple %s2, %s3
  %s5 = sld [smem:[#allocation0]]
  $region61: #{bottleneck_block3d_l.7} parent=0
    _
  %s7 = ssub.s32 1, %s5
  %s8 = scalar_select 0, %s7, %s5
  loop: start=0, step=1, limit=50
  $region2: #{bottleneck_block3d_l.7} parent=0 // loop_pre_header
    _
  $region3: #{bottleneck_block3d_l.7} parent=0 // loop_header
    %s10 = sphi 0, %s14
    %p11 = scmp.ge.s32.totalorder %s10, 50
    %s17 = sphi 0, %s36
    %s18 = sphi 0, %s32
    %s19 = sphi 0, %s28
    %s20 = sphi 0, %s17
    %s21 = sphi 0, %s18
    %s22 = sphi 0, %s19
    %s23 = sphi 0, %s20
    %s24 = sphi 0, %s21
    %s25 = sphi 0, %s22
    %s53 = sphi 0, %s55
    %s56 = sphi 0, %s53
    %s57 = sphi 0, %s56
    %s73 = sphi 0, %s57
    %s77 = sphi 0, %s77
    %s79 = sphi 0, %s77
    %s80 = sphi 0, %s79
    %s94 = sphi 0, %s80
    %s102 = sphi 0, %s104
    %s105 = sphi 0, %s102
    %s106 = sphi 0, %s105
    %s122 = sphi 0, %s106
    %s130 = sphi 0, %s132
    %s133 = sphi 0, %s130
    %s134 = sphi 0, %s133
    %s150 = sphi 0, %s134
  $region4: #{bottleneck_block3d_l.7} parent=0 // loop_header_branch
    %13 = sbr.rel (%p11) target = $region8
  $region5: #{bottleneck_block3d_l.7} parent=0 // loop_body
    %s15 = ssub.s32 %s10, 1
    %s16 = ssub.s32 %s10, 2
    %s26 = sadd.s32 1, %s19
    %p27 = scmp.ge.s32.totalorder %s26, 3
    %s28 = scalar_select %p27, 0, %s26
    %s29 = sadd.s32 1, %s18
    %s30 = scalar_select %p27, %s29, %s18
    %p31 = scmp.ge.s32.totalorder %s30, 8
    %s32 = scalar_select %p31, 0, %s30
    %s33 = sadd.s32 1, %s17
    %s34 = scalar_select %p31, %s33, %s17
    %p35 = scmp.ge.s32.totalorder %s34, 2
    %s36 = scalar_select %p35, 0, %s34
    %s37 = sadd.s32 %s18, %s19
    %s38 = ssub.s32 %s37, 1
    %p39 = scmp.gt.s32.totalorder %s38, 0
    %s40 = scalar_select %p39, %s38, 0
    %p41 = scmp.lt.s32.totalorder %s40, 7
    %s42 = scalar_select %p41, %s40, 7
    %s43 = sadd.s32 %s32, %s28
    %s44 = ssub.s32 %s43, 1
    %p45 = scmp.gt.s32.totalorder %s44, 0
    %s46 = scalar_select %p45, %s44, 0
    %p47 = scmp.lt.s32.totalorder %s46, 7
    %s48 = scalar_select %p47, %s46, 7
    %s49 = ssub.s32 %s17, %s36
    %s50 = ssub.s32 %s42, %s48
    %s51 = sor.u32 %s49, %s50
    %p52 = scmp.eq.s32.totalorder %s51, 0
    %s54 = sadd.s32 %s53, 1
    %s55 = scalar_select %p52, %s53, %s54
    %p58 = pneg %p52
    %p59 = scmp.eq.s32.totalorder %s10, 47
    %p60 = por %p58, %p59
    %p61 = scmp.ne.s32.totalorder %s53, %s56
    %p62 = scmp.eq.s32.totalorder %s10, 0
    %p63 = por %p61, %p62
    %p64 = scmp.ne.s32.totalorder %s53, %s56
    %p65 = scmp.eq.s32.totalorder %s15, 47
    %p66 = por %p64, %p65
    %p67 = scmp.ne.s32.totalorder %s56, %s57
    %p68 = scmp.eq.s32.totalorder %s15, 0
    %p69 = por %p67, %p68
    %p70 = scmp.ne.s32.totalorder %s56, %s57
    %p71 = scmp.eq.s32.totalorder %s16, 47
    %p72 = por %p70, %p71
    %p74 = scmp.ne.s32.totalorder %s57, %s73
    %p75 = scmp.eq.s32.totalorder %s16, 0
    %p76 = por %p74, %p75
    %s78 = sadd.s32 %s77, 1
    %p81 = scmp.eq.s32.totalorder %s10, 47
    %p82 = scmp.ne.s32.totalorder %s77, %s79
    %p83 = scmp.eq.s32.totalorder %s10, 0
    %p84 = por %p82, %p83
    %p85 = scmp.ne.s32.totalorder %s77, %s79
    %p86 = scmp.eq.s32.totalorder %s15, 47
    %p87 = por %p85, %p86
    %p88 = scmp.ne.s32.totalorder %s79, %s80
    %p89 = scmp.eq.s32.totalorder %s15, 0
    %p90 = por %p88, %p89
    %p91 = scmp.ne.s32.totalorder %s79, %s80
    %p92 = scmp.eq.s32.totalorder %s16, 47
    %p93 = por %p91, %p92
    %p95 = scmp.ne.s32.totalorder %s80, %s94
    %p96 = scmp.eq.s32.totalorder %s16, 0
    %p97 = por %p95, %p96
    %s98 = ssub.s32 %s17, %s36
    %s99 = ssub.s32 %s18, %s32
    %s100 = sor.u32 %s98, %s99
    %p101 = scmp.eq.s32.totalorder %s100, 0
    %s103 = sadd.s32 %s102, 1
    %s104 = scalar_select %p101, %s102, %s103
    %p107 = pneg %p101
    %p108 = scmp.eq.s32.totalorder %s10, 47
    %p109 = por %p107, %p108
    %p110 = scmp.ne.s32.totalorder %s102, %s105
    %p111 = scmp.eq.s32.totalorder %s10, 0
    %p112 = por %p110, %p111
    %p113 = scmp.ne.s32.totalorder %s102, %s105
    %p114 = scmp.eq.s32.totalorder %s15, 47
    %p115 = por %p113, %p114
    %p116 = scmp.ne.s32.totalorder %s105, %s106
    %p117 = scmp.eq.s32.totalorder %s15, 0
    %p118 = por %p116, %p117
    %p119 = scmp.ne.s32.totalorder %s105, %s106
    %p120 = scmp.eq.s32.totalorder %s16, 47
    %p121 = por %p119, %p120
    %p123 = scmp.ne.s32.totalorder %s106, %s122
    %p124 = scmp.eq.s32.totalorder %s16, 0
    %p125 = por %p123, %p124
    %s126 = ssub.s32 %s17, %s36
    %s127 = ssub.s32 %s18, %s32
    %s128 = sor.u32 %s126, %s127
    %p129 = scmp.eq.s32.totalorder %s128, 0
    %s131 = sadd.s32 %s130, 1
    %s132 = scalar_select %p129, %s130, %s131
    %p135 = pneg %p129
    %p136 = scmp.eq.s32.totalorder %s10, 47
    %p137 = por %p135, %p136
    %p138 = scmp.ne.s32.totalorder %s130, %s133
    %p139 = scmp.eq.s32.totalorder %s10, 0
    %p140 = por %p138, %p139
    %p141 = scmp.ne.s32.totalorder %s130, %s133
    %p142 = scmp.eq.s32.totalorder %s15, 47
    %p143 = por %p141, %p142
    %p144 = scmp.ne.s32.totalorder %s133, %s134
    %p145 = scmp.eq.s32.totalorder %s15, 0
    %p146 = por %p144, %p145
    %p147 = scmp.ne.s32.totalorder %s133, %s134
    %p148 = scmp.eq.s32.totalorder %s16, 47
    %p149 = por %p147, %p148
    %p151 = scmp.ne.s32.totalorder %s134, %s150
    %p152 = scmp.eq.s32.totalorder %s16, 0
    %p153 = por %p151, %p152
    %p154 = scmp.le.s32.totalorder 1, %s10
    %p155 = scmp.lt.s32.totalorder %s10, 49
    %p156 = pnand %p154, %p155
    %p157 = pneg %p156
    // Predicated region
    $region9: #{bottleneck_block3d_l.7} parent=5 // pred_check
      _
    $region10: #{bottleneck_block3d_l.7} parent=5 // pred_check_branch
      %159 = sbr.rel (%p156) target = $region12
    $region11: #{bottleneck_block3d_l.7} parent=5 // pred_region
      %s160 = ssub.s32 %s10, 1
      // Predicated region
      $region13: #{bottleneck_block3d_l.7} parent=11 // pred_check
        %p161 = pneg %p90
      $region14: #{bottleneck_block3d_l.7} parent=11 // pred_check_branch
        %163 = sbr.rel (%p161) target = $region16
      $region15: #{bottleneck_block3d_l.7} parent=11 // pred_region
        _
      $region16: #{bottleneck_block3d_l.7} parent=11 // pred_fallthru
        _
    $region12: #{bottleneck_block3d_l.7} parent=5 // pred_fallthru
      _
    %p164 = scmp.lt.s32.totalorder %s10, 48
    // Predicated region
    $region17: #{bottleneck_block3d_l.7} parent=5 // pred_check
      %p165 = pneg %p164
    $region18: #{bottleneck_block3d_l.7} parent=5 // pred_check_branch
      %167 = sbr.rel (%p165) target = $region20
    $region19: #{bottleneck_block3d_l.7} parent=5 // pred_region
      // Predicated region
      $region21: #{bottleneck_block3d_l.7} parent=19 // pred_check
        %p168 = pneg %p63
      $region22: #{bottleneck_block3d_l.7} parent=19 // pred_check_branch
        %170 = sbr.rel (%p168) target = $region24
      $region23: #{bottleneck_block3d_l.7} parent=19 // pred_region
        %s171 = sadd.s32 %s18, %s19
        %s172 = ssub.s32 %s171, 1
        %p173 = scmp.gt.s32.totalorder %s172, 0
        %s174 = scalar_select %p173, %s172, 0
        %p175 = scmp.lt.s32.totalorder %s174, 7
        %s176 = scalar_select %p175, %s174, 7
        %p177 = scmp.lt.s32.totalorder %s17, 1
        %s178 = scalar_select %p177, %s17, 1
        %p179 = scmp.lt.s32.totalorder %s176, 7
        %s180 = scalar_select %p179, %s176, 7
        %s181 = smul.addr %s180, 20
        %s182 = smul.addr %s178, 160
        %s183 = sadd.s32 %s181, %s182
        %s184 = smul.addr %s183, 8
        %s185 = scalar_lea.vmem %s0, %s184
        %s186 = sadd.s32 %s18, %s19
        %s187 = ssub.s32 %s186, 1
        %p188 = scmp.gt.s32.totalorder %s187, 0
        %s189 = scalar_select %p188, %s187, 0
        %p190 = scmp.lt.s32.totalorder %s189, 7
        %s191 = scalar_select %p190, %s189, 7
      $region24: #{bottleneck_block3d_l.7} parent=19 // pred_fallthru
        _
    $region20: #{bottleneck_block3d_l.7} parent=5 // pred_fallthru
      _
    %p192 = scmp.le.s32.totalorder 1, %s10
    %p193 = scmp.lt.s32.totalorder %s10, 49
    %p194 = pnand %p192, %p193
    %p195 = pneg %p194
    // Predicated region
    $region25: #{bottleneck_block3d_l.7} parent=5 // pred_check
      _
    $region26: #{bottleneck_block3d_l.7} parent=5 // pred_check_branch
      %197 = sbr.rel (%p194) target = $region28
    $region27: #{bottleneck_block3d_l.7} parent=5 // pred_region
      %s198 = ssub.s32 %s10, 1
      %s199 = sadd.s32 %s21, %s22
      %s200 = ssub.s32 %s199, 1
      %p201 = scmp.gt.s32.totalorder %s200, 0
      %s202 = scalar_select %p201, %s200, 0
      %p203 = scmp.lt.s32.totalorder %s202, 7
      %s204 = scalar_select %p203, %s202, 7
      %p205 = scmp.lt.s32.totalorder %s20, 1
      %s206 = scalar_select %p205, %s20, 1
      %p207 = scmp.lt.s32.totalorder %s204, 7
      %s208 = scalar_select %p207, %s204, 7
      %s209 = smul.addr %s208, 20
      %s210 = smul.addr %s206, 160
      %s211 = sadd.s32 %s209, %s210
      %s212 = smul.addr %s211, 8
      %s213 = scalar_lea.vmem %s0, %s212
      %p214 = pneg %p69
      %p215 = pneg %p66
      %p216 = pneg %p90
      %p217 = pneg %p87
      %p218 = pneg %p118
      %p219 = pneg %p115
      %p220 = scmp.lt.s32.totalorder %s20, 1
      %s221 = scalar_select %p220, %s20, 1
      %p222 = scmp.lt.s32.totalorder %s21, 7
      %s223 = scalar_select %p222, %s21, 7
      %s224 = smul.addr %s223, 8
      %s225 = smul.addr %s221, 64
      %s226 = sadd.s32 %s224, %s225
      %s227 = smul.addr %s226, 8
      %s228 = scalar_lea.vmem %s2, %s227
      %p229 = pneg %p146
      %p230 = pneg %p143
      %p231 = scmp.lt.s32.totalorder %s20, 1
      %s232 = scalar_select %p231, %s20, 1
      %p233 = scmp.lt.s32.totalorder %s21, 7
      %s234 = scalar_select %p233, %s21, 7
      %s235 = smul.addr %s232, 8
      %s236 = sadd.s32 %s234, %s235
      %s237 = smul.addr %s236, 2
      %s238 = scalar_lea.vmem %s3, %s237
      %s239 = sadd.s32 %s21, %s22
      %s240 = ssub.s32 %s239, 1
      %p241 = scmp.gt.s32.totalorder %s240, 0
      %s242 = scalar_select %p241, %s240, 0
      %p243 = scmp.lt.s32.totalorder %s242, 7
      %s244 = scalar_select %p243, %s242, 7
      %p245 = scmp.lt.s32.totalorder %s20, 1
      %s246 = scalar_select %p245, %s20, 1
      %p247 = scmp.lt.s32.totalorder %s244, 7
      %s248 = scalar_select %p247, %s244, 7
      %s249 = smul.addr %s248, 20
      %s250 = smul.addr %s246, 160
      %s251 = sadd.s32 %s249, %s250
      %s252 = smul.addr %s251, 8
      %s253 = scalar_lea.vmem %s0, %s252
      %s254 = sadd.s32 %s21, %s22
      %s255 = ssub.s32 %s254, 1
      %p256 = scmp.gt.s32.totalorder %s255, 0
      %s257 = scalar_select %p256, %s255, 0
      %p258 = scmp.lt.s32.totalorder %s257, 7
      %s259 = scalar_select %p258, %s257, 7
      %p260 = scmp.lt.s32.totalorder %s20, 1
      %s261 = scalar_select %p260, %s20, 1
      %p262 = scmp.lt.s32.totalorder %s21, 7
      %s263 = scalar_select %p262, %s21, 7
      %s264 = smul.addr %s263, 8
      %s265 = smul.addr %s261, 64
      %s266 = sadd.s32 %s264, %s265
      %s267 = smul.addr %s266, 8
      %s268 = scalar_lea.vmem %s2, %s267
      %p269 = scmp.lt.s32.totalorder %s20, 1
      %s270 = scalar_select %p269, %s20, 1
      %p271 = scmp.lt.s32.totalorder %s21, 7
      %s272 = scalar_select %p271, %s21, 7
      %s273 = smul.addr %s270, 8
      %s274 = sadd.s32 %s272, %s273
      %s275 = smul.addr %s274, 2
      %s276 = scalar_lea.vmem %s3, %s275
      %p278 = scmp.eq.s32.totalorder %s22, 0
      // Predicated region
      $region29: #{bottleneck_block3d_l.7} parent=27 // pred_check
        %p279 = pneg %p278
      $region30: #{bottleneck_block3d_l.7} parent=27 // pred_check_branch
        %281 = sbr.rel (%p279) target = $region32
      $region31: #{bottleneck_block3d_l.7} parent=27 // pred_region
        %282 = vst [vmem:[%s268] sm:$0xff] 0.0
        %283 = vst [vmem:[%s268 + $0x8] sm:$0xff] 0.0
        %284 = vst [vmem:[%s268 + $0x10] sm:$0xff] 0.0
        %285 = vst [vmem:[%s268 + $0x18] sm:$0xff] 0.0
        %286 = vst [vmem:[%s268 + $0x20] sm:$0xff] 0.0
        %287 = vst [vmem:[%s268 + $0x28] sm:$0xff] 0.0
        %288 = vst [vmem:[%s268 + $0x30] sm:$0xff] 0.0
        %289 = vst [vmem:[%s268 + $0x38] sm:$0xff] 0.0
      $region32: #{bottleneck_block3d_l.7} parent=27 // pred_fallthru
        _
      %s290 = sadd.s32 %s21, %s22
      %p291 = scmp.ge.s32.totalorder %s290, 1
      %p292 = scmp.le.s32.totalorder %s290, 8
      %p293 = pnand %p291, %p292
      %p294 = pneg %p293
      // Predicated region
      $region33: #{bottleneck_block3d_l.7} parent=27 // pred_check
        _
      $region34: #{bottleneck_block3d_l.7} parent=27 // pred_check_branch
        %296 = sbr.rel (%p293) target = $region36
      $region35: #{bottleneck_block3d_l.7} parent=27 // pred_region
        %v297 = vld [vmem:[%s253] sm:$0xff]
        %v298 = vld [vmem:[%s253 + $0x10] sm:$0xff]
        %v299 = vld [vmem:[%s253 + $0x20] sm:$0xff]
        %v300 = vld [vmem:[%s253 + $0x30] sm:$0xff]
        %v301 = vld [vmem:[%s253 + $0x40] sm:$0xff]
        %v302 = vld [vmem:[%s253 + $0x50] sm:$0xff]
        %v303 = vld [vmem:[%s253 + $0x60] sm:$0xff]
        %v304 = vld [vmem:[%s253 + $0x70] sm:$0xff]
        %v305 = vpack.c.bf16 %v298, %v297
        %v306 = vpack.c.bf16 %v300, %v299
        %v307 = vpack.c.bf16 %v302, %v301
        %v308 = vpack.c.bf16 %v304, %v303
        %v309 = vld [vmem:[%s253 + $0x1] sm:$0xff]
        %v310 = vld [vmem:[%s253 + $0x11] sm:$0xff]
        %v311 = vld [vmem:[%s253 + $0x21] sm:$0xff]
        %v312 = vld [vmem:[%s253 + $0x31] sm:$0xff]
        %v313 = vld [vmem:[%s253 + $0x41] sm:$0xff]
        %v314 = vld [vmem:[%s253 + $0x51] sm:$0xff]
        %v315 = vld [vmem:[%s253 + $0x61] sm:$0xff]
        %v316 = vld [vmem:[%s253 + $0x71] sm:$0xff]
        %v317 = vpack.c.bf16 %v310, %v309
        %v318 = vpack.c.bf16 %v312, %v311
        %v319 = vpack.c.bf16 %v314, %v313
        %v320 = vpack.c.bf16 %v316, %v315
        %v321 = vld [vmem:[%s253 + $0x2] sm:$0xff]
        %v322 = vld [vmem:[%s253 + $0x12] sm:$0xff]
        %v323 = vld [vmem:[%s253 + $0x22] sm:$0xff]
        %v324 = vld [vmem:[%s253 + $0x32] sm:$0xff]
        %v325 = vld [vmem:[%s253 + $0x42] sm:$0xff]
        %v326 = vld [vmem:[%s253 + $0x52] sm:$0xff]
        %v327 = vld [vmem:[%s253 + $0x62] sm:$0xff]
        %v328 = vld [vmem:[%s253 + $0x72] sm:$0xff]
        %v329 = vpack.c.bf16 %v322, %v321
        %v330 = vpack.c.bf16 %v324, %v323
        %v331 = vpack.c.bf16 %v326, %v325
        %v332 = vpack.c.bf16 %v328, %v327
        %s333 = scalar_lea.vmem %s253, 16
        %v334 = vld [vmem:[%s333] sm:$0xff]
        %v335 = vld [vmem:[%s333 + $0x10] sm:$0xff]
        %v336 = vld [vmem:[%s333 + $0x20] sm:$0xff]
        %v337 = vld [vmem:[%s333 + $0x30] sm:$0xff]
        %v338 = vld [vmem:[%s333 + $0x40] sm:$0xff]
        %v339 = vld [vmem:[%s333 + $0x50] sm:$0xff]
        %v340 = vld [vmem:[%s333 + $0x60] sm:$0xff]
        %v341 = vld [vmem:[%s333 + $0x70] sm:$0xff]
        %v342 = vpack.c.bf16 %v335, %v334
        %v343 = vpack.c.bf16 %v337, %v336
        %v344 = vpack.c.bf16 %v339, %v338
        %v345 = vpack.c.bf16 %v341, %v340
        %v346 = vld [vmem:[%s333 + $0x1] sm:$0xff]
        %v347 = vld [vmem:[%s333 + $0x11] sm:$0xff]
        %v348 = vld [vmem:[%s333 + $0x21] sm:$0xff]
        %v349 = vld [vmem:[%s333 + $0x31] sm:$0xff]
        %v350 = vld [vmem:[%s333 + $0x41] sm:$0xff]
        %v351 = vld [vmem:[%s333 + $0x51] sm:$0xff]
        %v352 = vld [vmem:[%s333 + $0x61] sm:$0xff]
        %v353 = vld [vmem:[%s333 + $0x71] sm:$0xff]
        %v354 = vpack.c.bf16 %v347, %v346
        %v355 = vpack.c.bf16 %v349, %v348
        %v356 = vpack.c.bf16 %v351, %v350
        %v357 = vpack.c.bf16 %v353, %v352
        %v358 = vld [vmem:[%s333 + $0x2] sm:$0xff]
        %v359 = vld [vmem:[%s333 + $0x12] sm:$0xff]
        %v360 = vld [vmem:[%s333 + $0x22] sm:$0xff]
        %v361 = vld [vmem:[%s333 + $0x32] sm:$0xff]
        %v362 = vld [vmem:[%s333 + $0x42] sm:$0xff]
        %v363 = vld [vmem:[%s333 + $0x52] sm:$0xff]
        %v364 = vld [vmem:[%s333 + $0x62] sm:$0xff]
        %v365 = vld [vmem:[%s333 + $0x72] sm:$0xff]
        %v366 = vpack.c.bf16 %v359, %v358
        %v367 = vpack.c.bf16 %v361, %v360
        %v368 = vpack.c.bf16 %v363, %v362
        %v369 = vpack.c.bf16 %v365, %v364
        %s370 = scalar_lea.vmem %s253, 32
        %v371 = vld [vmem:[%s370] sm:$0xff]
        %v372 = vld [vmem:[%s370 + $0x10] sm:$0xff]
        %v373 = vld [vmem:[%s370 + $0x20] sm:$0xff]
        %v374 = vld [vmem:[%s370 + $0x30] sm:$0xff]
        %v375 = vld [vmem:[%s370 + $0x40] sm:$0xff]
        %v376 = vld [vmem:[%s370 + $0x50] sm:$0xff]
        %v377 = vld [vmem:[%s370 + $0x60] sm:$0xff]
        %v378 = vld [vmem:[%s370 + $0x70] sm:$0xff]
        %v379 = vpack.c.bf16 %v372, %v371
        %v380 = vpack.c.bf16 %v374, %v373
        %v381 = vpack.c.bf16 %v376, %v375
        %v382 = vpack.c.bf16 %v378, %v377
        %v383 = vld [vmem:[%s370 + $0x1] sm:$0xff]
        %v384 = vld [vmem:[%s370 + $0x11] sm:$0xff]
        %v385 = vld [vmem:[%s370 + $0x21] sm:$0xff]
        %v386 = vld [vmem:[%s370 + $0x31] sm:$0xff]
        %v387 = vld [vmem:[%s370 + $0x41] sm:$0xff]
        %v388 = vld [vmem:[%s370 + $0x51] sm:$0xff]
        %v389 = vld [vmem:[%s370 + $0x61] sm:$0xff]
        %v390 = vld [vmem:[%s370 + $0x71] sm:$0xff]
        %v391 = vpack.c.bf16 %v384, %v383
        %v392 = vpack.c.bf16 %v386, %v385
        %v393 = vpack.c.bf16 %v388, %v387
        %v394 = vpack.c.bf16 %v390, %v389
        %v395 = vld [vmem:[%s370 + $0x2] sm:$0xff]
        %v396 = vld [vmem:[%s370 + $0x12] sm:$0xff]
        %v397 = vld [vmem:[%s370 + $0x22] sm:$0xff]
        %v398 = vld [vmem:[%s370 + $0x32] sm:$0xff]
        %v399 = vld [vmem:[%s370 + $0x42] sm:$0xff]
        %v400 = vld [vmem:[%s370 + $0x52] sm:$0xff]
        %v401 = vld [vmem:[%s370 + $0x62] sm:$0xff]
        %v402 = vld [vmem:[%s370 + $0x72] sm:$0xff]
        %v403 = vpack.c.bf16 %v396, %v395
        %v404 = vpack.c.bf16 %v398, %v397
        %v405 = vpack.c.bf16 %v400, %v399
        %v406 = vpack.c.bf16 %v402, %v401
        %v407 = vld [vmem:[%s268] sm:$0xff]
        %v408 = vld [vmem:[%s268 + $0x8] sm:$0xff]
        %v409 = vld [vmem:[%s268 + $0x10] sm:$0xff]
        %v410 = vld [vmem:[%s268 + $0x18] sm:$0xff]
        %v411 = vld [vmem:[%s268 + $0x20] sm:$0xff]
        %v412 = vld [vmem:[%s268 + $0x28] sm:$0xff]
        %v413 = vld [vmem:[%s268 + $0x30] sm:$0xff]
        %v414 = vld [vmem:[%s268 + $0x38] sm:$0xff]
        %s415 = smul.u32 %s22, 144
        %s416 = smul.addr %s415, 4
        %s417 = scalar_lea.vmem %s1, %s416
        %v418 = vld [vmem:[%s417] sm:$0xf]
        %v419 = vld [vmem:[%s417 + $0x4] sm:$0xf]
        %v420 = vld [vmem:[%s417 + $0x8] sm:$0xf]
        %v421 = vld [vmem:[%s417 + $0xc] sm:$0xf]
        %v422 = vld [vmem:[%s417 + $0x10] sm:$0xf]
        %v423 = vld [vmem:[%s417 + $0x14] sm:$0xf]
        %v424 = vld [vmem:[%s417 + $0x18] sm:$0xf]
        %v425 = vld [vmem:[%s417 + $0x1c] sm:$0xf]
        %v426 = vld [vmem:[%s417 + $0x20] sm:$0xf]
        %v427 = vld [vmem:[%s417 + $0x24] sm:$0xf]
        %v428 = vld [vmem:[%s417 + $0x28] sm:$0xf]
        %v429 = vld [vmem:[%s417 + $0x2c] sm:$0xf]
        %v430 = vld [vmem:[%s417 + $0x30] sm:$0xf]
        %v431 = vld [vmem:[%s417 + $0x34] sm:$0xf]
        %v432 = vld [vmem:[%s417 + $0x38] sm:$0xf]
        %v433 = vld [vmem:[%s417 + $0x3c] sm:$0xf]
        %v434 = vld [vmem:[%s417 + $0x40] sm:$0xf]
        %v435 = vld [vmem:[%s417 + $0x44] sm:$0xf]
        %v436 = vld [vmem:[%s417 + $0x48] sm:$0xf]
        %v437 = vld [vmem:[%s417 + $0x4c] sm:$0xf]
        %v438 = vld [vmem:[%s417 + $0x50] sm:$0xf]
        %v439 = vld [vmem:[%s417 + $0x54] sm:$0xf]
        %v440 = vld [vmem:[%s417 + $0x58] sm:$0xf]
        %v441 = vld [vmem:[%s417 + $0x5c] sm:$0xf]
        %v442 = vld [vmem:[%s417 + $0x60] sm:$0xf]
        %v443 = vld [vmem:[%s417 + $0x64] sm:$0xf]
        %v444 = vld [vmem:[%s417 + $0x68] sm:$0xf]
        %v445 = vld [vmem:[%s417 + $0x6c] sm:$0xf]
        %v446 = vld [vmem:[%s417 + $0x70] sm:$0xf]
        %v447 = vld [vmem:[%s417 + $0x74] sm:$0xf]
        %v448 = vld [vmem:[%s417 + $0x78] sm:$0xf]
        %v449 = vld [vmem:[%s417 + $0x7c] sm:$0xf]
        %v450 = vld [vmem:[%s417 + $0x80] sm:$0xf]
        %v451 = vld [vmem:[%s417 + $0x84] sm:$0xf]
        %v452 = vld [vmem:[%s417 + $0x88] sm:$0xf]
        %v453 = vld [vmem:[%s417 + $0x8c] sm:$0xf]
        %v454 = vld [vmem:[%s417 + $0x90] sm:$0xf]
        %v455 = vld [vmem:[%s417 + $0x94] sm:$0xf]
        %v456 = vld [vmem:[%s417 + $0x98] sm:$0xf]
        %v457 = vld [vmem:[%s417 + $0x9c] sm:$0xf]
        %v458 = vld [vmem:[%s417 + $0xa0] sm:$0xf]
        %v459 = vld [vmem:[%s417 + $0xa4] sm:$0xf]
        %v460 = vld [vmem:[%s417 + $0xa8] sm:$0xf]
        %v461 = vld [vmem:[%s417 + $0xac] sm:$0xf]
        %v462 = vld [vmem:[%s417 + $0xb0] sm:$0xf]
        %v463 = vld [vmem:[%s417 + $0xb4] sm:$0xf]
        %v464 = vld [vmem:[%s417 + $0xb8] sm:$0xf]
        %v465 = vld [vmem:[%s417 + $0xbc] sm:$0xf]
        %v466 = vld [vmem:[%s417 + $0xc0] sm:$0xf]
        %v467 = vld [vmem:[%s417 + $0xc4] sm:$0xf]
        %v468 = vld [vmem:[%s417 + $0xc8] sm:$0xf]
        %v469 = vld [vmem:[%s417 + $0xcc] sm:$0xf]
        %v470 = vld [vmem:[%s417 + $0xd0] sm:$0xf]
        %v471 = vld [vmem:[%s417 + $0xd4] sm:$0xf]
        %v472 = vld [vmem:[%s417 + $0xd8] sm:$0xf]
        %v473 = vld [vmem:[%s417 + $0xdc] sm:$0xf]
        %v474 = vld [vmem:[%s417 + $0xe0] sm:$0xf]
        %v475 = vld [vmem:[%s417 + $0xe4] sm:$0xf]
        %v476 = vld [vmem:[%s417 + $0xe8] sm:$0xf]
        %v477 = vld [vmem:[%s417 + $0xec] sm:$0xf]
        %v478 = vld [vmem:[%s417 + $0xf0] sm:$0xf]
        %v479 = vld [vmem:[%s417 + $0xf4] sm:$0xf]
        %v480 = vld [vmem:[%s417 + $0xf8] sm:$0xf]
        %v481 = vld [vmem:[%s417 + $0xfc] sm:$0xf]
        %v482 = vld [vmem:[%s417 + $0x100] sm:$0xf]
        %v483 = vld [vmem:[%s417 + $0x104] sm:$0xf]
        %v484 = vld [vmem:[%s417 + $0x108] sm:$0xf]
        %v485 = vld [vmem:[%s417 + $0x10c] sm:$0xf]
        %v486 = vld [vmem:[%s417 + $0x110] sm:$0xf]
        %v487 = vld [vmem:[%s417 + $0x114] sm:$0xf]
        %v488 = vld [vmem:[%s417 + $0x118] sm:$0xf]
        %v489 = vld [vmem:[%s417 + $0x11c] sm:$0xf]
        %v490 = vld [vmem:[%s417 + $0x120] sm:$0xf]
        %v491 = vld [vmem:[%s417 + $0x124] sm:$0xf]
        %v492 = vld [vmem:[%s417 + $0x128] sm:$0xf]
        %v493 = vld [vmem:[%s417 + $0x12c] sm:$0xf]
        %v494 = vld [vmem:[%s417 + $0x130] sm:$0xf]
        %v495 = vld [vmem:[%s417 + $0x134] sm:$0xf]
        %v496 = vld [vmem:[%s417 + $0x138] sm:$0xf]
        %v497 = vld [vmem:[%s417 + $0x13c] sm:$0xf]
        %v498 = vld [vmem:[%s417 + $0x140] sm:$0xf]
        %v499 = vld [vmem:[%s417 + $0x144] sm:$0xf]
        %v500 = vld [vmem:[%s417 + $0x148] sm:$0xf]
        %v501 = vld [vmem:[%s417 + $0x14c] sm:$0xf]
        %v502 = vld [vmem:[%s417 + $0x150] sm:$0xf]
        %v503 = vld [vmem:[%s417 + $0x154] sm:$0xf]
        %v504 = vld [vmem:[%s417 + $0x158] sm:$0xf]
        %v505 = vld [vmem:[%s417 + $0x15c] sm:$0xf]
        %v506 = vld [vmem:[%s417 + $0x160] sm:$0xf]
        %v507 = vld [vmem:[%s417 + $0x164] sm:$0xf]
        %v508 = vld [vmem:[%s417 + $0x168] sm:$0xf]
        %v509 = vld [vmem:[%s417 + $0x16c] sm:$0xf]
        %v510 = vld [vmem:[%s417 + $0x170] sm:$0xf]
        %v511 = vld [vmem:[%s417 + $0x174] sm:$0xf]
        %v512 = vld [vmem:[%s417 + $0x178] sm:$0xf]
        %v513 = vld [vmem:[%s417 + $0x17c] sm:$0xf]
        %v514 = vld [vmem:[%s417 + $0x180] sm:$0xf]
        %v515 = vld [vmem:[%s417 + $0x184] sm:$0xf]
        %v516 = vld [vmem:[%s417 + $0x188] sm:$0xf]
        %v517 = vld [vmem:[%s417 + $0x18c] sm:$0xf]
        %v518 = vld [vmem:[%s417 + $0x190] sm:$0xf]
        %v519 = vld [vmem:[%s417 + $0x194] sm:$0xf]
        %v520 = vld [vmem:[%s417 + $0x198] sm:$0xf]
        %v521 = vld [vmem:[%s417 + $0x19c] sm:$0xf]
        %v522 = vld [vmem:[%s417 + $0x1a0] sm:$0xf]
        %v523 = vld [vmem:[%s417 + $0x1a4] sm:$0xf]
        %v524 = vld [vmem:[%s417 + $0x1a8] sm:$0xf]
        %v525 = vld [vmem:[%s417 + $0x1ac] sm:$0xf]
        %v526 = vld [vmem:[%s417 + $0x1b0] sm:$0xf]
        %v527 = vld [vmem:[%s417 + $0x1b4] sm:$0xf]
        %v528 = vld [vmem:[%s417 + $0x1b8] sm:$0xf]
        %v529 = vld [vmem:[%s417 + $0x1bc] sm:$0xf]
        %v530 = vld [vmem:[%s417 + $0x1c0] sm:$0xf]
        %v531 = vld [vmem:[%s417 + $0x1c4] sm:$0xf]
        %v532 = vld [vmem:[%s417 + $0x1c8] sm:$0xf]
        %v533 = vld [vmem:[%s417 + $0x1cc] sm:$0xf]
        %v534 = vld [vmem:[%s417 + $0x1d0] sm:$0xf]
        %v535 = vld [vmem:[%s417 + $0x1d4] sm:$0xf]
        %v536 = vld [vmem:[%s417 + $0x1d8] sm:$0xf]
        %v537 = vld [vmem:[%s417 + $0x1dc] sm:$0xf]
        %v538 = vld [vmem:[%s417 + $0x1e0] sm:$0xf]
        %v539 = vld [vmem:[%s417 + $0x1e4] sm:$0xf]
        %v540 = vld [vmem:[%s417 + $0x1e8] sm:$0xf]
        %v541 = vld [vmem:[%s417 + $0x1ec] sm:$0xf]
        %v542 = vld [vmem:[%s417 + $0x1f0] sm:$0xf]
        %v543 = vld [vmem:[%s417 + $0x1f4] sm:$0xf]
        %v544 = vld [vmem:[%s417 + $0x1f8] sm:$0xf]
        %v545 = vld [vmem:[%s417 + $0x1fc] sm:$0xf]
        %v546 = vld [vmem:[%s417 + $0x200] sm:$0xf]
        %v547 = vld [vmem:[%s417 + $0x204] sm:$0xf]
        %v548 = vld [vmem:[%s417 + $0x208] sm:$0xf]
        %v549 = vld [vmem:[%s417 + $0x20c] sm:$0xf]
        %v550 = vld [vmem:[%s417 + $0x210] sm:$0xf]
        %v551 = vld [vmem:[%s417 + $0x214] sm:$0xf]
        %v552 = vld [vmem:[%s417 + $0x218] sm:$0xf]
        %v553 = vld [vmem:[%s417 + $0x21c] sm:$0xf]
        %v554 = vld [vmem:[%s417 + $0x220] sm:$0xf]
        %v555 = vld [vmem:[%s417 + $0x224] sm:$0xf]
        %v556 = vld [vmem:[%s417 + $0x228] sm:$0xf]
        %v557 = vld [vmem:[%s417 + $0x22c] sm:$0xf]
        %v558 = vld [vmem:[%s417 + $0x230] sm:$0xf]
        %v559 = vld [vmem:[%s417 + $0x234] sm:$0xf]
        %v560 = vld [vmem:[%s417 + $0x238] sm:$0xf]
        %v561 = vld [vmem:[%s417 + $0x23c] sm:$0xf]
        %v706 = vunpack.c.l.b16 %v418
        %v707 = vunpack.c.l.b16 %v419
        %v708 = vunpack.c.l.b16 %v420
        %v709 = vunpack.c.l.b16 %v421
        %v710 = vunpack.c.l.b16 %v422
        %v711 = vunpack.c.l.b16 %v423
        %v712 = vunpack.c.l.b16 %v424
        %v713 = vunpack.c.l.b16 %v425
        %v714 = vunpack.c.l.b16 %v426
        %v715 = vunpack.c.l.b16 %v427
        %v716 = vunpack.c.l.b16 %v428
        %v717 = vunpack.c.l.b16 %v429
        %v718 = vunpack.c.l.b16 %v430
        %v719 = vunpack.c.l.b16 %v431
        %v720 = vunpack.c.l.b16 %v432
        %v721 = vunpack.c.l.b16 %v433
        %v722 = vunpack.c.l.b16 %v434
        %v723 = vunpack.c.l.b16 %v435
        %v724 = vunpack.c.l.b16 %v436
        %v725 = vunpack.c.l.b16 %v437
        %v726 = vunpack.c.l.b16 %v438
        %v727 = vunpack.c.l.b16 %v439
        %v728 = vunpack.c.l.b16 %v440
        %v729 = vunpack.c.l.b16 %v441
        %v730 = vunpack.c.l.b16 %v442
        %v731 = vunpack.c.l.b16 %v443
        %v732 = vunpack.c.l.b16 %v444
        %v733 = vunpack.c.l.b16 %v445
        %v734 = vunpack.c.l.b16 %v446
        %v735 = vunpack.c.l.b16 %v447
        %v736 = vunpack.c.l.b16 %v448
        %v737 = vunpack.c.l.b16 %v449
        %v738 = vunpack.c.l.b16 %v450
        %v739 = vunpack.c.l.b16 %v451
        %v740 = vunpack.c.l.b16 %v452
        %v741 = vunpack.c.l.b16 %v453
        %v742 = vunpack.c.l.b16 %v454
        %v743 = vunpack.c.l.b16 %v455
        %v744 = vunpack.c.l.b16 %v456
        %v745 = vunpack.c.l.b16 %v457
        %v746 = vunpack.c.l.b16 %v458
        %v747 = vunpack.c.l.b16 %v459
        %v748 = vunpack.c.l.b16 %v460
        %v749 = vunpack.c.l.b16 %v461
        %v750 = vunpack.c.l.b16 %v462
        %v751 = vunpack.c.l.b16 %v463
        %v752 = vunpack.c.l.b16 %v464
        %v753 = vunpack.c.l.b16 %v465
        %v754 = vunpack.c.l.b16 %v466
        %v755 = vunpack.c.l.b16 %v467
        %v756 = vunpack.c.l.b16 %v468
        %v757 = vunpack.c.l.b16 %v469
        %v758 = vunpack.c.l.b16 %v470
        %v759 = vunpack.c.l.b16 %v471
        %v760 = vunpack.c.l.b16 %v472
        %v761 = vunpack.c.l.b16 %v473
        %v762 = vunpack.c.l.b16 %v474
        %v763 = vunpack.c.l.b16 %v475
        %v764 = vunpack.c.l.b16 %v476
        %v765 = vunpack.c.l.b16 %v477
        %v766 = vunpack.c.l.b16 %v478
        %v767 = vunpack.c.l.b16 %v479
        %v768 = vunpack.c.l.b16 %v480
        %v769 = vunpack.c.l.b16 %v481
        %v770 = vunpack.c.l.b16 %v482
        %v771 = vunpack.c.l.b16 %v483
        %v772 = vunpack.c.l.b16 %v484
        %v773 = vunpack.c.l.b16 %v485
        %v774 = vunpack.c.l.b16 %v486
        %v775 = vunpack.c.l.b16 %v487
        %v776 = vunpack.c.l.b16 %v488
        %v777 = vunpack.c.l.b16 %v489
        %v778 = vunpack.c.l.b16 %v490
        %v779 = vunpack.c.l.b16 %v491
        %v780 = vunpack.c.l.b16 %v492
        %v781 = vunpack.c.l.b16 %v493
        %v782 = vunpack.c.l.b16 %v494
        %v783 = vunpack.c.l.b16 %v495
        %v784 = vunpack.c.l.b16 %v496
        %v785 = vunpack.c.l.b16 %v497
        %v786 = vunpack.c.l.b16 %v498
        %v787 = vunpack.c.l.b16 %v499
        %v788 = vunpack.c.l.b16 %v500
        %v789 = vunpack.c.l.b16 %v501
        %v790 = vunpack.c.l.b16 %v502
        %v791 = vunpack.c.l.b16 %v503
        %v792 = vunpack.c.l.b16 %v504
        %v793 = vunpack.c.l.b16 %v505
        %v794 = vunpack.c.l.b16 %v506
        %v795 = vunpack.c.l.b16 %v507
        %v796 = vunpack.c.l.b16 %v508
        %v797 = vunpack.c.l.b16 %v509
        %v798 = vunpack.c.l.b16 %v510
        %v799 = vunpack.c.l.b16 %v511
        %v800 = vunpack.c.l.b16 %v512
        %v801 = vunpack.c.l.b16 %v513
        %v802 = vunpack.c.l.b16 %v514
        %v803 = vunpack.c.l.b16 %v515
        %v804 = vunpack.c.l.b16 %v516
        %v805 = vunpack.c.l.b16 %v517
        %v806 = vunpack.c.l.b16 %v518
        %v807 = vunpack.c.l.b16 %v519
        %v808 = vunpack.c.l.b16 %v520
        %v809 = vunpack.c.l.b16 %v521
        %v810 = vunpack.c.l.b16 %v522
        %v811 = vunpack.c.l.b16 %v523
        %v812 = vunpack.c.l.b16 %v524
        %v813 = vunpack.c.l.b16 %v525
        %v814 = vunpack.c.l.b16 %v526
        %v815 = vunpack.c.l.b16 %v527
        %v816 = vunpack.c.l.b16 %v528
        %v817 = vunpack.c.l.b16 %v529
        %v818 = vunpack.c.l.b16 %v530
        %v819 = vunpack.c.l.b16 %v531
        %v820 = vunpack.c.l.b16 %v532
        %v821 = vunpack.c.l.b16 %v533
        %v822 = vunpack.c.l.b16 %v534
        %v823 = vunpack.c.l.b16 %v535
        %v824 = vunpack.c.l.b16 %v536
        %v825 = vunpack.c.l.b16 %v537
        %v826 = vunpack.c.l.b16 %v538
        %v827 = vunpack.c.l.b16 %v539
        %v828 = vunpack.c.l.b16 %v540
        %v829 = vunpack.c.l.b16 %v541
        %v830 = vunpack.c.l.b16 %v542
        %v831 = vunpack.c.l.b16 %v543
        %v832 = vunpack.c.l.b16 %v544
        %v833 = vunpack.c.l.b16 %v545
        %v834 = vunpack.c.l.b16 %v546
        %v835 = vunpack.c.l.b16 %v547
        %v836 = vunpack.c.l.b16 %v548
        %v837 = vunpack.c.l.b16 %v549
        %v838 = vunpack.c.l.b16 %v550
        %v839 = vunpack.c.l.b16 %v551
        %v840 = vunpack.c.l.b16 %v552
        %v841 = vunpack.c.l.b16 %v553
        %v842 = vunpack.c.l.b16 %v554
        %v843 = vunpack.c.l.b16 %v555
        %v844 = vunpack.c.l.b16 %v556
        %v845 = vunpack.c.l.b16 %v557
        %v846 = vunpack.c.l.b16 %v558
        %v847 = vunpack.c.l.b16 %v559
        %v848 = vunpack.c.l.b16 %v560
        %v849 = vunpack.c.l.b16 %v561
        %v850 = vpack.c.b16 %v707, %v706
        %v851 = vpack.c.b16 %v709, %v708
        %v852 = vpack.c.b16 %v711, %v710
        %v853 = vpack.c.b16 %v713, %v712
        %v854 = vpack.c.b16 %v715, %v714
        %v855 = vpack.c.b16 %v717, %v716
        %v856 = vpack.c.b16 %v719, %v718
        %v857 = vpack.c.b16 %v721, %v720
        %v858 = vpack.c.b16 %v723, %v722
        %v859 = vpack.c.b16 %v725, %v724
        %v860 = vpack.c.b16 %v727, %v726
        %v861 = vpack.c.b16 %v729, %v728
        %v862 = vpack.c.b16 %v731, %v730
        %v863 = vpack.c.b16 %v733, %v732
        %v864 = vpack.c.b16 %v735, %v734
        %v865 = vpack.c.b16 %v737, %v736
        %v866 = vpack.c.b16 %v739, %v738
        %v867 = vpack.c.b16 %v741, %v740
        %v868 = vpack.c.b16 %v743, %v742
        %v869 = vpack.c.b16 %v745, %v744
        %v870 = vpack.c.b16 %v747, %v746
        %v871 = vpack.c.b16 %v749, %v748
        %v872 = vpack.c.b16 %v751, %v750
        %v873 = vpack.c.b16 %v753, %v752
        %v874 = vpack.c.b16 %v755, %v754
        %v875 = vpack.c.b16 %v757, %v756
        %v876 = vpack.c.b16 %v759, %v758
        %v877 = vpack.c.b16 %v761, %v760
        %v878 = vpack.c.b16 %v763, %v762
        %v879 = vpack.c.b16 %v765, %v764
        %v880 = vpack.c.b16 %v767, %v766
        %v881 = vpack.c.b16 %v769, %v768
        %v882 = vpack.c.b16 %v771, %v770
        %v883 = vpack.c.b16 %v773, %v772
        %v884 = vpack.c.b16 %v775, %v774
        %v885 = vpack.c.b16 %v777, %v776
        %v886 = vpack.c.b16 %v779, %v778
        %v887 = vpack.c.b16 %v781, %v780
        %v888 = vpack.c.b16 %v783, %v782
        %v889 = vpack.c.b16 %v785, %v784
        %v890 = vpack.c.b16 %v787, %v786
        %v891 = vpack.c.b16 %v789, %v788
        %v892 = vpack.c.b16 %v791, %v790
        %v893 = vpack.c.b16 %v793, %v792
        %v894 = vpack.c.b16 %v795, %v794
        %v895 = vpack.c.b16 %v797, %v796
        %v896 = vpack.c.b16 %v799, %v798
        %v897 = vpack.c.b16 %v801, %v800
        %v898 = vpack.c.b16 %v803, %v802
        %v899 = vpack.c.b16 %v805, %v804
        %v900 = vpack.c.b16 %v807, %v806
        %v901 = vpack.c.b16 %v809, %v808
        %v902 = vpack.c.b16 %v811, %v810
        %v903 = vpack.c.b16 %v813, %v812
        %v904 = vpack.c.b16 %v815, %v814
        %v905 = vpack.c.b16 %v817, %v816
        %v906 = vpack.c.b16 %v819, %v818
        %v907 = vpack.c.b16 %v821, %v820
        %v908 = vpack.c.b16 %v823, %v822
        %v909 = vpack.c.b16 %v825, %v824
        %v910 = vpack.c.b16 %v827, %v826
        %v911 = vpack.c.b16 %v829, %v828
        %v912 = vpack.c.b16 %v831, %v830
        %v913 = vpack.c.b16 %v833, %v832
        %v914 = vpack.c.b16 %v835, %v834
        %v915 = vpack.c.b16 %v837, %v836
        %v916 = vpack.c.b16 %v839, %v838
        %v917 = vpack.c.b16 %v841, %v840
        %v918 = vpack.c.b16 %v843, %v842
        %v919 = vpack.c.b16 %v845, %v844
        %v920 = vpack.c.b16 %v847, %v846
        %v921 = vpack.c.b16 %v849, %v848
        %994 = vmatprep.subr.bf16.mxu0 0
        %995 = vmatpush1.bf16.msra.mxu0 %v850
        %996 = vmatprep.subr.bf16.mxu0 0
        %997 = vmatpush1.bf16.msra.mxu0 %v851
        %998 = vmatprep.subr.bf16.mxu0 0
        %999 = vmatpush1.bf16.msra.mxu0 %v852
        %1000 = vmatprep.subr.bf16.mxu0 0
        %1001 = vmatpush1.bf16.msra.mxu0 %v853
        %1002 = vmatprep.subr.bf16.mxu0 0
        %1003 = vmatpush1.bf16.msra.mxu0 %v854
        %1004 = vmatprep.subr.bf16.mxu0 0
        %1005 = vmatpush1.bf16.msra.mxu0 %v855
        %1006 = vmatprep.subr.bf16.mxu0 0
        %1007 = vmatpush1.bf16.msra.mxu0 %v856
        %1008 = vmatprep.subr.bf16.mxu0 0
        %1009 = vmatpush1.bf16.msra.mxu0 %v857
        %1010 = vmatprep.subr.bf16.mxu0 0
        %1011 = vmatpush1.bf16.msra.mxu0 %v858
        %1012 = vmatprep.subr.bf16.mxu0 0
        %1013 = vmatpush1.bf16.msra.mxu0 %v859
        %1014 = vmatprep.subr.bf16.mxu0 0
        %1015 = vmatpush1.bf16.msra.mxu0 %v860
        %1016 = vmatprep.subr.bf16.mxu0 0
        %1017 = vmatpush1.bf16.msra.mxu0 %v861
        %1018 = vmatprep.subr.bf16.mxu0 0
        %1019 = vmatpush1.bf16.msra.mxu0 %v862
        %1020 = vmatprep.subr.bf16.mxu0 0
        %1021 = vmatpush1.bf16.msra.mxu0 %v863
        %1022 = vmatprep.subr.bf16.mxu0 0
        %1023 = vmatpush1.bf16.msra.mxu0 %v864
        %1024 = vmatprep.subr.bf16.mxu0 0
        %1025 = vmatpush1.bf16.msra.mxu0 %v865
        %1026 = vmatprep.mubr.bf16.mxu0 %v317
        %1027 = vmatmul.mubr.bf16.gmra.mrb[0].mxu0 %v305
        %v1028 = vpop.f32.mrb[0].mxu0
        %v1029 = vadd.f32 0.0, %v1028
        %v1030 = vpop.f32.mrb[0].mxu0
        %v1031 = vpop.f32.mrb[0].mxu0
        %v1032 = vadd.f32 0.0, %v1031
        %v1033 = vpop.f32.mrb[0].mxu0
        %1034 = vmatprep.mubr.bf16.mxu0 %v318
        %1035 = vmatmul.mubr.bf16.gmra.mrb[0].mxu0 %v306
        %v1036 = vpop.f32.mrb[0].mxu0
        %v1037 = vadd.f32 0.0, %v1036
        %v1038 = vpop.f32.mrb[0].mxu0
        %v1039 = vpop.f32.mrb[0].mxu0
        %v1040 = vadd.f32 0.0, %v1039
        %v1041 = vpop.f32.mrb[0].mxu0
        %1042 = vmatprep.mubr.bf16.mxu0 %v319
        %1043 = vmatmul.mubr.bf16.gmra.mrb[0].mxu0 %v307
        %v1044 = vpop.f32.mrb[0].mxu0
        %v1045 = vadd.f32 0.0, %v1044
        %v1046 = vpop.f32.mrb[0].mxu0
        %v1047 = vpop.f32.mrb[0].mxu0
        %v1048 = vadd.f32 0.0, %v1047
        %v1049 = vpop.f32.mrb[0].mxu0
        %1050 = vmatprep.mubr.bf16.mxu0 %v320
        %1051 = vmatmul.mubr.bf16.gmra.mrb[0].mxu0 %v308
        %v1052 = vpop.f32.mrb[0].mxu0
        %v1053 = vadd.f32 0.0, %v1052
        %v1054 = vpop.f32.mrb[0].mxu0
        %v1055 = vpop.f32.mrb[0].mxu0
        %v1056 = vadd.f32 0.0, %v1055
        %v1057 = vpop.f32.mrb[0].mxu0
        %1058 = vdwg.mxu0
        %1059 = vmatprep.subr.bf16.mxu0 0
        %1060 = vmatpush1.bf16.msra.mxu0 %v866
        %1061 = vmatprep.subr.bf16.mxu0 0
        %1062 = vmatpush1.bf16.msra.mxu0 %v867
        %1063 = vmatprep.subr.bf16.mxu0 0
        %1064 = vmatpush1.bf16.msra.mxu0 %v868
        %1065 = vmatprep.subr.bf16.mxu0 0
        %1066 = vmatpush1.bf16.msra.mxu0 %v869
        %1067 = vmatprep.subr.bf16.mxu0 0
        %1068 = vmatpush1.bf16.msra.mxu0 %v870
        %1069 = vmatprep.subr.bf16.mxu0 0
        %1070 = vmatpush1.bf16.msra.mxu0 %v871
        %1071 = vmatprep.subr.bf16.mxu0 0
        %1072 = vmatpush1.bf16.msra.mxu0 %v872
        %1073 = vmatprep.subr.bf16.mxu0 0
        %1074 = vmatpush1.bf16.msra.mxu0 %v873
        %1075 = vmatprep.subr.bf16.mxu0 0
        %1076 = vmatpush1.bf16.msra.mxu0 %v874
        %1077 = vmatprep.subr.bf16.mxu0 0
        %1078 = vmatpush1.bf16.msra.mxu0 %v875
        %1079 = vmatprep.subr.bf16.mxu0 0
        %1080 = vmatpush1.bf16.msra.mxu0 %v876
        %1081 = vmatprep.subr.bf16.mxu0 0
        %1082 = vmatpush1.bf16.msra.mxu0 %v877
        %1083 = vmatprep.subr.bf16.mxu0 0
        %1084 = vmatpush1.bf16.msra.mxu0 %v878
        %1085 = vmatprep.subr.bf16.mxu0 0
        %1086 = vmatpush1.bf16.msra.mxu0 %v879
        %1087 = vmatprep.subr.bf16.mxu0 0
        %1088 = vmatpush1.bf16.msra.mxu0 %v880
        %1089 = vmatprep.subr.bf16.mxu0 0
        %1090 = vmatpush1.bf16.msra.mxu0 %v881
        %1091 = vmatprep.mubr.bf16.mxu0 %v342
        %1092 = vmatmul.mubr.bf16.gmra.mrb[0].mxu0 %v329
        %v1093 = vpop.f32.mrb[0].mxu0
        %v1094 = vadd.f32 %v1029, %v1093
        %v1095 = vpop.f32.mrb[0].mxu0
        %v1096 = vpop.f32.mrb[0].mxu0
        %v1097 = vadd.f32 %v1032, %v1096
        %v1098 = vpop.f32.mrb[0].mxu0
        %1099 = vmatprep.mubr.bf16.mxu0 %v343
        %1100 = vmatmul.mubr.bf16.gmra.mrb[0].mxu0 %v330
        %v1101 = vpop.f32.mrb[0].mxu0
        %v1102 = vadd.f32 %v1037, %v1101
        %v1103 = vpop.f32.mrb[0].mxu0
        %v1104 = vpop.f32.mrb[0].mxu0
        %v1105 = vadd.f32 %v1040, %v1104
        %v1106 = vpop.f32.mrb[0].mxu0
        %1107 = vmatprep.mubr.bf16.mxu0 %v344
        %1108 = vmatmul.mubr.bf16.gmra.mrb[0].mxu0 %v331
        %v1109 = vpop.f32.mrb[0].mxu0
        %v1110 = vadd.f32 %v1045, %v1109
        %v1111 = vpop.f32.mrb[0].mxu0
        %v1112 = vpop.f32.mrb[0].mxu0
        %v1113 = vadd.f32 %v1048, %v1112
        %v1114 = vpop.f32.mrb[0].mxu0
        %1115 = vmatprep.mubr.bf16.mxu0 %v345
        %1116 = vmatmul.mubr.bf16.gmra.mrb[0].mxu0 %v332
        %v1117 = vpop.f32.mrb[0].mxu0
        %v1118 = vadd.f32 %v1053, %v1117
        %v1119 = vpop.f32.mrb[0].mxu0
        %v1120 = vpop.f32.mrb[0].mxu0
        %v1121 = vadd.f32 %v1056, %v1120
        %v1122 = vpop.f32.mrb[0].mxu0
        %1123 = vdwg.mxu0
        %1124 = vmatprep.subr.bf16.mxu0 0
        %1125 = vmatpush1.bf16.msra.mxu0 %v882
        %1126 = vmatprep.subr.bf16.mxu0 0
        %1127 = vmatpush1.bf16.msra.mxu0 %v883
        %1128 = vmatprep.subr.bf16.mxu0 0
        %1129 = vmatpush1.bf16.msra.mxu0 %v884
        %1130 = vmatprep.subr.bf16.mxu0 0
        %1131 = vmatpush1.bf16.msra.mxu0 %v885
        %1132 = vmatprep.subr.bf16.mxu0 0
        %1133 = vmatpush1.bf16.msra.mxu0 %v886
        %1134 = vmatprep.subr.bf16.mxu0 0
        %1135 = vmatpush1.bf16.msra.mxu0 %v887
        %1136 = vmatprep.subr.bf16.mxu0 0
        %1137 = vmatpush1.bf16.msra.mxu0 %v888
        %1138 = vmatprep.subr.bf16.mxu0 0
        %1139 = vmatpush1.bf16.msra.mxu0 %v889
        %1140 = vmatprep.subr.bf16.mxu0 0
        %1141 = vmatpush1.bf16.msra.mxu0 %v890
        %1142 = vmatprep.subr.bf16.mxu0 0
        %1143 = vmatpush1.bf16.msra.mxu0 %v891
        %1144 = vmatprep.subr.bf16.mxu0 0
        %1145 = vmatpush1.bf16.msra.mxu0 %v892
        %1146 = vmatprep.subr.bf16.mxu0 0
        %1147 = vmatpush1.bf16.msra.mxu0 %v893
        %1148 = vmatprep.subr.bf16.mxu0 0
        %1149 = vmatpush1.bf16.msra.mxu0 %v894
        %1150 = vmatprep.subr.bf16.mxu0 0
        %1151 = vmatpush1.bf16.msra.mxu0 %v895
        %1152 = vmatprep.subr.bf16.mxu0 0
        %1153 = vmatpush1.bf16.msra.mxu0 %v896
        %1154 = vmatprep.subr.bf16.mxu0 0
        %1155 = vmatpush1.bf16.msra.mxu0 %v897
        %1156 = vmatprep.mubr.bf16.mxu0 %v366
        %1157 = vmatmul.mubr.bf16.gmra.mrb[0].mxu0 %v354
        %v1158 = vpop.f32.mrb[0].mxu0
        %v1159 = vadd.f32 %v1094, %v1158
        %v1160 = vpop.f32.mrb[0].mxu0
        %v1161 = vpop.f32.mrb[0].mxu0
        %v1162 = vadd.f32 %v1097, %v1161
        %v1163 = vpop.f32.mrb[0].mxu0
        %1164 = vmatprep.mubr.bf16.mxu0 %v367
        %1165 = vmatmul.mubr.bf16.gmra.mrb[0].mxu0 %v355
        %v1166 = vpop.f32.mrb[0].mxu0
        %v1167 = vadd.f32 %v1102, %v1166
        %v1168 = vpop.f32.mrb[0].mxu0
        %v1169 = vpop.f32.mrb[0].mxu0
        %v1170 = vadd.f32 %v1105, %v1169
        %v1171 = vpop.f32.mrb[0].mxu0
        %1172 = vmatprep.mubr.bf16.mxu0 %v368
        %1173 = vmatmul.mubr.bf16.gmra.mrb[0].mxu0 %v356
        %v1174 = vpop.f32.mrb[0].mxu0
        %v1175 = vadd.f32 %v1110, %v1174
        %v1176 = vpop.f32.mrb[0].mxu0
        %v1177 = vpop.f32.mrb[0].mxu0
        %v1178 = vadd.f32 %v1113, %v1177
        %v1179 = vpop.f32.mrb[0].mxu0
        %1180 = vmatprep.mubr.bf16.mxu0 %v369
        %1181 = vmatmul.mubr.bf16.gmra.mrb[0].mxu0 %v357
        %v1182 = vpop.f32.mrb[0].mxu0
        %v1183 = vadd.f32 %v1118, %v1182
        %v1184 = vpop.f32.mrb[0].mxu0
        %v1185 = vpop.f32.mrb[0].mxu0
        %v1186 = vadd.f32 %v1121, %v1185
        %v1187 = vpop.f32.mrb[0].mxu0
        %1188 = vdwg.mxu0
        %1189 = vmatprep.subr.bf16.mxu0 0
        %1190 = vmatpush1.bf16.msra.mxu0 %v898
        %1191 = vmatprep.subr.bf16.mxu0 0
        %1192 = vmatpush1.bf16.msra.mxu0 %v899
        %1193 = vmatprep.subr.bf16.mxu0 0
        %1194 = vmatpush1.bf16.msra.mxu0 %v900
        %1195 = vmatprep.subr.bf16.mxu0 0
        %1196 = vmatpush1.bf16.msra.mxu0 %v901
        %1197 = vmatprep.subr.bf16.mxu0 0
        %1198 = vmatpush1.bf16.msra.mxu0 %v902
        %1199 = vmatprep.subr.bf16.mxu0 0
        %1200 = vmatpush1.bf16.msra.mxu0 %v903
        %1201 = vmatprep.subr.bf16.mxu0 0
        %1202 = vmatpush1.bf16.msra.mxu0 %v904
        %1203 = vmatprep.subr.bf16.mxu0 0
        %1204 = vmatpush1.bf16.msra.mxu0 %v905
        %1205 = vmatprep.subr.bf16.mxu0 0
        %1206 = vmatpush1.bf16.msra.mxu0 %v906
        %1207 = vmatprep.subr.bf16.mxu0 0
        %1208 = vmatpush1.bf16.msra.mxu0 %v907
        %1209 = vmatprep.subr.bf16.mxu0 0
        %1210 = vmatpush1.bf16.msra.mxu0 %v908
        %1211 = vmatprep.subr.bf16.mxu0 0
        %1212 = vmatpush1.bf16.msra.mxu0 %v909
        %1213 = vmatprep.subr.bf16.mxu0 0
        %1214 = vmatpush1.bf16.msra.mxu0 %v910
        %1215 = vmatprep.subr.bf16.mxu0 0
        %1216 = vmatpush1.bf16.msra.mxu0 %v911
        %1217 = vmatprep.subr.bf16.mxu0 0
        %1218 = vmatpush1.bf16.msra.mxu0 %v912
        %1219 = vmatprep.subr.bf16.mxu0 0
        %1220 = vmatpush1.bf16.msra.mxu0 %v913
        %1221 = vmatprep.mubr.bf16.mxu0 %v391
        %1222 = vmatmul.mubr.bf16.gmra.mrb[0].mxu0 %v379
        %v1223 = vpop.f32.mrb[0].mxu0
        %v1224 = vadd.f32 %v1159, %v1223
        %v1225 = vpop.f32.mrb[0].mxu0
        %v1226 = vpop.f32.mrb[0].mxu0
        %v1227 = vadd.f32 %v1162, %v1226
        %v1228 = vpop.f32.mrb[0].mxu0
        %1229 = vmatprep.mubr.bf16.mxu0 %v392
        %1230 = vmatmul.mubr.bf16.gmra.mrb[0].mxu0 %v380
        %v1231 = vpop.f32.mrb[0].mxu0
        %v1232 = vadd.f32 %v1167, %v1231
        %v1233 = vpop.f32.mrb[0].mxu0
        %v1234 = vpop.f32.mrb[0].mxu0
        %v1235 = vadd.f32 %v1170, %v1234
        %v1236 = vpop.f32.mrb[0].mxu0
        %1237 = vmatprep.mubr.bf16.mxu0 %v393
        %1238 = vmatmul.mubr.bf16.gmra.mrb[0].mxu0 %v381
        %v1239 = vpop.f32.mrb[0].mxu0
        %v1240 = vadd.f32 %v1175, %v1239
        %v1241 = vpop.f32.mrb[0].mxu0
        %v1242 = vpop.f32.mrb[0].mxu0
        %v1243 = vadd.f32 %v1178, %v1242
        %v1244 = vpop.f32.mrb[0].mxu0
        %1245 = vmatprep.mubr.bf16.mxu0 %v394
        %1246 = vmatmul.mubr.bf16.gmra.mrb[0].mxu0 %v382
        %v1247 = vpop.f32.mrb[0].mxu0
        %v1248 = vadd.f32 %v1183, %v1247
        %v1249 = vpop.f32.mrb[0].mxu0
        %v1250 = vpop.f32.mrb[0].mxu0
        %v1251 = vadd.f32 %v1186, %v1250
        %v1252 = vpop.f32.mrb[0].mxu0
        %1253 = vdwg.mxu0
        %1254 = vmatprep.subr.bf16.mxu0 0
        %1255 = vmatpush1.bf16.msra.mxu0 %v914
        %1256 = vmatprep.subr.bf16.mxu0 0
        %1257 = vmatpush1.bf16.msra.mxu0 %v915
        %1258 = vmatprep.subr.bf16.mxu0 0
        %1259 = vmatpush1.bf16.msra.mxu0 %v916
        %1260 = vmatprep.subr.bf16.mxu0 0
        %1261 = vmatpush1.bf16.msra.mxu0 %v917
        %1262 = vmatprep.subr.bf16.mxu0 0
        %1263 = vmatpush1.bf16.msra.mxu0 %v918
        %1264 = vmatprep.subr.bf16.mxu0 0
        %1265 = vmatpush1.bf16.msra.mxu0 %v919
        %1266 = vmatprep.subr.bf16.mxu0 0
        %1267 = vmatpush1.bf16.msra.mxu0 %v920
        %1268 = vmatprep.subr.bf16.mxu0 0
        %1269 = vmatpush1.bf16.msra.mxu0 %v921
        %1270 = vmatprep.subr.bf16.mxu0 0
        %1271 = vmatpush1.bf16.msra.mxu0 0
        %1272 = vmatprep.subr.bf16.mxu0 0
        %1273 = vmatpush1.bf16.msra.mxu0 0
        %1274 = vmatprep.subr.bf16.mxu0 0
        %1275 = vmatpush1.bf16.msra.mxu0 0
        %1276 = vmatprep.subr.bf16.mxu0 0
        %1277 = vmatpush1.bf16.msra.mxu0 0
        %1278 = vmatprep.subr.bf16.mxu0 0
        %1279 = vmatpush1.bf16.msra.mxu0 0
        %1280 = vmatprep.subr.bf16.mxu0 0
        %1281 = vmatpush1.bf16.msra.mxu0 0
        %1282 = vmatprep.subr.bf16.mxu0 0
        %1283 = vmatpush1.bf16.msra.mxu0 0
        %1284 = vmatprep.subr.bf16.mxu0 0
        %1285 = vmatpush1.bf16.msra.mxu0 0
        %1286 = vmatprep.mubr.bf16.mxu0 0
        %1287 = vmatmul.mubr.bf16.gmra.mrb[0].mxu0 %v403
        %v1288 = vpop.f32.mrb[0].mxu0
        %v1289 = vadd.f32 %v1224, %v1288
        %v1290 = vpop.f32.mrb[0].mxu0
        %v1291 = vpop.f32.mrb[0].mxu0
        %v1292 = vadd.f32 %v1227, %v1291
        %v1293 = vpop.f32.mrb[0].mxu0
        %1294 = vmatprep.mubr.bf16.mxu0 0
        %1295 = vmatmul.mubr.bf16.gmra.mrb[0].mxu0 %v404
        %v1296 = vpop.f32.mrb[0].mxu0
        %v1297 = vadd.f32 %v1232, %v1296
        %v1298 = vpop.f32.mrb[0].mxu0
        %v1299 = vpop.f32.mrb[0].mxu0
        %v1300 = vadd.f32 %v1235, %v1299
        %v1301 = vpop.f32.mrb[0].mxu0
        %1302 = vmatprep.mubr.bf16.mxu0 0
        %1303 = vmatmul.mubr.bf16.gmra.mrb[0].mxu0 %v405
        %v1304 = vpop.f32.mrb[0].mxu0
        %v1305 = vadd.f32 %v1240, %v1304
        %v1306 = vpop.f32.mrb[0].mxu0
        %v1307 = vpop.f32.mrb[0].mxu0
        %v1308 = vadd.f32 %v1243, %v1307
        %v1309 = vpop.f32.mrb[0].mxu0
        %1310 = vmatprep.mubr.bf16.mxu0 0
        %1311 = vmatmul.mubr.bf16.gmra.mrb[0].mxu0 %v406
        %v1312 = vpop.f32.mrb[0].mxu0
        %v1313 = vadd.f32 %v1248, %v1312
        %v1314 = vpop.f32.mrb[0].mxu0
        %v1315 = vpop.f32.mrb[0].mxu0
        %v1316 = vadd.f32 %v1251, %v1315
        %v1317 = vpop.f32.mrb[0].mxu0
        %1318 = vdwg.mxu0
        %v1319 = vadd.f32 %v407, %v1289
        %v1320 = vadd.f32 %v408, %v1292
        %v1321 = vadd.f32 %v409, %v1297
        %v1322 = vadd.f32 %v410, %v1300
        %v1323 = vadd.f32 %v411, %v1305
        %v1324 = vadd.f32 %v412, %v1308
        %v1325 = vadd.f32 %v413, %v1313
        %v1326 = vadd.f32 %v414, %v1316
        %1327 = vst [vmem:[%s268] sm:$0xff] %v1319
        %1328 = vst [vmem:[%s268 + $0x8] sm:$0xff] %v1320
        %1329 = vst [vmem:[%s268 + $0x10] sm:$0xff] %v1321
        %1330 = vst [vmem:[%s268 + $0x18] sm:$0xff] %v1322
        %1331 = vst [vmem:[%s268 + $0x20] sm:$0xff] %v1323
        %1332 = vst [vmem:[%s268 + $0x28] sm:$0xff] %v1324
        %1333 = vst [vmem:[%s268 + $0x30] sm:$0xff] %v1325
        %1334 = vst [vmem:[%s268 + $0x38] sm:$0xff] %v1326
      $region36: #{bottleneck_block3d_l.7} parent=27 // pred_fallthru
        _
      %p1335 = scmp.eq.s32.totalorder %s22, 2
      // Predicated region
      $region37: #{bottleneck_block3d_l.7} parent=27 // pred_check
        %p1336 = pneg %p1335
      $region38: #{bottleneck_block3d_l.7} parent=27 // pred_check_branch
        %1338 = sbr.rel (%p1336) target = $region40
      $region39: #{bottleneck_block3d_l.7} parent=27 // pred_region
        %v1339 = vld [vmem:[%s268] sm:$0xff]
        %v1340 = vld [vmem:[%s268 + $0x8] sm:$0xff]
        %v1341 = vld [vmem:[%s268 + $0x10] sm:$0xff]
        %v1342 = vld [vmem:[%s268 + $0x18] sm:$0xff]
        %v1343 = vld [vmem:[%s268 + $0x20] sm:$0xff]
        %v1344 = vld [vmem:[%s268 + $0x28] sm:$0xff]
        %v1345 = vld [vmem:[%s268 + $0x30] sm:$0xff]
        %v1346 = vld [vmem:[%s268 + $0x38] sm:$0xff]
        %v1347 = vadd.f32 %v1339, %v1340
        %v1348 = vadd.f32 %v1347, %v1341
        %v1349 = vadd.f32 %v1348, %v1342
        %v1350 = vadd.f32 %v1349, %v1343
        %v1351 = vadd.f32 %v1350, %v1344
        %v1352 = vadd.f32 %v1351, %v1345
        %v1353 = vadd.f32 %v1352, %v1346
        %v1354 = vrot.slane %v1353, 4
        %v1355 = vadd.f32 %v1353, %v1354
        %v1356 = vrot.slane %v1355, 2
        %v1357 = vadd.f32 %v1355, %v1356
        %v1358 = vrot.slane %v1357, 1
        %v1359 = vadd.f32 %v1357, %v1358
        %1360 = vst [vmem:[%s276] sm:$0x1] %v1359
        %v1361 = vmul.f32 %v1339, %v1339
        %v1362 = vmul.f32 %v1340, %v1340
        %v1363 = vmul.f32 %v1341, %v1341
        %v1364 = vmul.f32 %v1342, %v1342
        %v1365 = vmul.f32 %v1343, %v1343
        %v1366 = vmul.f32 %v1344, %v1344
        %v1367 = vmul.f32 %v1345, %v1345
        %v1368 = vmul.f32 %v1346, %v1346
        %v1369 = vadd.f32 %v1361, %v1362
        %v1370 = vadd.f32 %v1369, %v1363
        %v1371 = vadd.f32 %v1370, %v1364
        %v1372 = vadd.f32 %v1371, %v1365
        %v1373 = vadd.f32 %v1372, %v1366
        %v1374 = vadd.f32 %v1373, %v1367
        %v1375 = vadd.f32 %v1374, %v1368
        %v1376 = vrot.slane %v1375, 4
        %v1377 = vadd.f32 %v1375, %v1376
        %v1378 = vrot.slane %v1377, 2
        %v1379 = vadd.f32 %v1377, %v1378
        %v1380 = vrot.slane %v1379, 1
        %v1381 = vadd.f32 %v1379, %v1380
        %1382 = vst [vmem:[%s276 + $0x1] sm:$0x1] %v1381
      $region40: #{bottleneck_block3d_l.7} parent=27 // pred_fallthru
        _
      %p1383 = scmp.lt.s32.totalorder %s20, 1
      %s1384 = scalar_select %p1383, %s20, 1
      %p1385 = scmp.lt.s32.totalorder %s21, 7
      %s1386 = scalar_select %p1385, %s21, 7
      %s1387 = smul.addr %s1386, 8
      %s1388 = smul.addr %s1384, 64
      %s1389 = sadd.s32 %s1387, %s1388
      %s1390 = smul.addr %s1389, 8
      %s1391 = scalar_lea.vmem %s2, %s1390
      %p1392 = scmp.lt.s32.totalorder %s20, 1
      %s1393 = scalar_select %p1392, %s20, 1
      %p1394 = scmp.lt.s32.totalorder %s21, 7
      %s1395 = scalar_select %p1394, %s21, 7
      %s1396 = smul.addr %s1393, 8
      %s1397 = sadd.s32 %s1395, %s1396
      %s1398 = smul.addr %s1397, 2
      %s1399 = scalar_lea.vmem %s3, %s1398
      // Predicated region
      $region41: #{bottleneck_block3d_l.7} parent=27 // pred_check
        %p1400 = pneg %p115
      $region42: #{bottleneck_block3d_l.7} parent=27 // pred_check_branch
        %1402 = sbr.rel (%p1400) target = $region44
      $region43: #{bottleneck_block3d_l.7} parent=27 // pred_region
        _
      $region44: #{bottleneck_block3d_l.7} parent=27 // pred_fallthru
        _
      // Predicated region
      $region45: #{bottleneck_block3d_l.7} parent=27 // pred_check
        %p1403 = pneg %p143
      $region46: #{bottleneck_block3d_l.7} parent=27 // pred_check_branch
        %1405 = sbr.rel (%p1403) target = $region48
      $region47: #{bottleneck_block3d_l.7} parent=27 // pred_region
        _
      $region48: #{bottleneck_block3d_l.7} parent=27 // pred_fallthru
        _
    $region28: #{bottleneck_block3d_l.7} parent=5 // pred_fallthru
      _
    %p1406 = scmp.le.s32.totalorder 2, %s10
    // Predicated region
    $region49: #{bottleneck_block3d_l.7} parent=5 // pred_check
      %p1407 = pneg %p1406
    $region50: #{bottleneck_block3d_l.7} parent=5 // pred_check_branch
      %1409 = sbr.rel (%p1407) target = $region52
    $region51: #{bottleneck_block3d_l.7} parent=5 // pred_region
      %s1410 = ssub.s32 %s10, 2
      // Predicated region
      $region53: #{bottleneck_block3d_l.7} parent=51 // pred_check
        %p1411 = pneg %p121
      $region54: #{bottleneck_block3d_l.7} parent=51 // pred_check_branch
        %1413 = sbr.rel (%p1411) target = $region56
      $region55: #{bottleneck_block3d_l.7} parent=51 // pred_region
        %p1414 = scmp.lt.s32.totalorder %s23, 1
        %s1415 = scalar_select %p1414, %s23, 1
        %p1416 = scmp.lt.s32.totalorder %s24, 7
        %s1417 = scalar_select %p1416, %s24, 7
        %s1418 = smul.addr %s1417, 8
        %s1419 = smul.addr %s1415, 64
        %s1420 = sadd.s32 %s1418, %s1419
        %s1421 = smul.addr %s1420, 8
        %s1422 = scalar_lea.vmem %s2, %s1421
      $region56: #{bottleneck_block3d_l.7} parent=51 // pred_fallthru
        _
      // Predicated region
      $region57: #{bottleneck_block3d_l.7} parent=51 // pred_check
        %p1423 = pneg %p149
      $region58: #{bottleneck_block3d_l.7} parent=51 // pred_check_branch
        %1425 = sbr.rel (%p1423) target = $region60
      $region59: #{bottleneck_block3d_l.7} parent=51 // pred_region
        %p1426 = scmp.lt.s32.totalorder %s23, 1
        %s1427 = scalar_select %p1426, %s23, 1
        %p1428 = scmp.lt.s32.totalorder %s24, 7
        %s1429 = scalar_select %p1428, %s24, 7
        %s1430 = smul.addr %s1427, 8
        %s1431 = sadd.s32 %s1429, %s1430
        %s1432 = smul.addr %s1431, 2
        %s1433 = scalar_lea.vmem %s3, %s1432
      $region60: #{bottleneck_block3d_l.7} parent=51 // pred_fallthru
        _
    $region52: #{bottleneck_block3d_l.7} parent=5 // pred_fallthru
      _
  $region6: #{bottleneck_block3d_l.7} parent=0 // loop_footer
    %s14 = sadd.s32 1, %s10
  $region7: #{bottleneck_block3d_l.7} parent=0 // loop_footer_branch
    %9 = sbr.rel target = $region3
  $region8: #{bottleneck_block3d_l.7} parent=0 // loop_exit
    _

// kernel: bottleneck_block3d_l.8
$region0: #{bottleneck_block3d_l.8}
  #allocation0 [shape = 'u32[]', space=smem, size = 0x4, offset = 0x4, fixed_abs, tag = 'smem constant byte address 0x4 - core index']
  #allocation1 [shape = 'u32[144,128]{1,0:T(1,128)}', space=vmem, size = 0x12000, scoped, tag = 'internal scratch']
  %s0 = inlined_call_operand.vmem [shape: f32[1024,128], index: 0, kind: input, shape index: {}]
  %s1 = inlined_call_operand.vmem [shape: f32[1,128], index: 1, kind: input, shape index: {}]
  %s2 = inlined_call_operand.vmem [shape: f32[1,128], index: 2, kind: input, shape index: {}]
  %s3 = inlined_call_operand.vmem [shape: bf16[128,128], index: 3, kind: input, shape index: {}]
  %s4 = inlined_call_operand.vmem [shape: f32[1024,128], index: 4, kind: output, shape index: {0}]
  %s5 = inlined_call_operand.vmem [shape: f32[1,2,128], index: 5, kind: output, shape index: {1}]
  %6 = xla_tuple %s4, %s5
  %s7 = sld [smem:[#allocation0]]
  $region34: #{bottleneck_block3d_l.8} parent=0
    _
  %s9 = ssub.s32 1, %s7
  %s10 = scalar_select 0, %s9, %s7
  // Predicated region
  $region2: #{bottleneck_block3d_l.8} parent=0 // pred_check
    _
  $region3: #{bottleneck_block3d_l.8} parent=0 // pred_check_branch
    %12 = sbr.rel (0) target = $region5
  $region4: #{bottleneck_block3d_l.8} parent=0 // pred_region
    _
  $region5: #{bottleneck_block3d_l.8} parent=0 // pred_fallthru
    _
  // Predicated region
  $region6: #{bottleneck_block3d_l.8} parent=0 // pred_check
    _
  $region7: #{bottleneck_block3d_l.8} parent=0 // pred_check_branch
    %14 = sbr.rel (0) target = $region9
  $region8: #{bottleneck_block3d_l.8} parent=0 // pred_region
    _
  $region9: #{bottleneck_block3d_l.8} parent=0 // pred_fallthru
    _
  // Predicated region
  $region10: #{bottleneck_block3d_l.8} parent=0 // pred_check
    _
  $region11: #{bottleneck_block3d_l.8} parent=0 // pred_check_branch
    %16 = sbr.rel (0) target = $region13
  $region12: #{bottleneck_block3d_l.8} parent=0 // pred_region
    _
  $region13: #{bottleneck_block3d_l.8} parent=0 // pred_fallthru
    _
  // Predicated region
  $region14: #{bottleneck_block3d_l.8} parent=0 // pred_check
    _
  $region15: #{bottleneck_block3d_l.8} parent=0 // pred_check_branch
    %18 = sbr.rel (0) target = $region17
  $region16: #{bottleneck_block3d_l.8} parent=0 // pred_region
    _
  $region17: #{bottleneck_block3d_l.8} parent=0 // pred_fallthru
    _
  %v20 = vld [vmem:[%s0] sm:$0xff]
  %v21 = vld [vmem:[%s0 + $0x8] sm:$0xff]
  %v22 = vld [vmem:[%s0 + $0x10] sm:$0xff]
  %v23 = vld [vmem:[%s0 + $0x18] sm:$0xff]
  %v24 = vld [vmem:[%s0 + $0x20] sm:$0xff]
  %v25 = vld [vmem:[%s0 + $0x28] sm:$0xff]
  %v26 = vld [vmem:[%s0 + $0x30] sm:$0xff]
  %v27 = vld [vmem:[%s0 + $0x38] sm:$0xff]
  %v28 = vld [vmem:[%s0 + $0x40] sm:$0xff]
  %v29 = vld [vmem:[%s0 + $0x48] sm:$0xff]
  %v30 = vld [vmem:[%s0 + $0x50] sm:$0xff]
  %v31 = vld [vmem:[%s0 + $0x58] sm:$0xff]
  %v32 = vld [vmem:[%s0 + $0x60] sm:$0xff]
  %v33 = vld [vmem:[%s0 + $0x68] sm:$0xff]
  %v34 = vld [vmem:[%s0 + $0x70] sm:$0xff]
  %v35 = vld [vmem:[%s0 + $0x78] sm:$0xff]
  %v36 = vld [vmem:[%s0 + $0x80] sm:$0xff]
  %v37 = vld [vmem:[%s0 + $0x88] sm:$0xff]
  %v38 = vld [vmem:[%s0 + $0x90] sm:$0xff]
  %v39 = vld [vmem:[%s0 + $0x98] sm:$0xff]
  %v40 = vld [vmem:[%s0 + $0xa0] sm:$0xff]
  %v41 = vld [vmem:[%s0 + $0xa8] sm:$0xff]
  %v42 = vld [vmem:[%s0 + $0xb0] sm:$0xff]
  %v43 = vld [vmem:[%s0 + $0xb8] sm:$0xff]
  %v44 = vld [vmem:[%s0 + $0xc0] sm:$0xff]
  %v45 = vld [vmem:[%s0 + $0xc8] sm:$0xff]
  %v46 = vld [vmem:[%s0 + $0xd0] sm:$0xff]
  %v47 = vld [vmem:[%s0 + $0xd8] sm:$0xff]
  %v48 = vld [vmem:[%s0 + $0xe0] sm:$0xff]
  %v49 = vld [vmem:[%s0 + $0xe8] sm:$0xff]
  %v50 = vld [vmem:[%s0 + $0xf0] sm:$0xff]
  %v51 = vld [vmem:[%s0 + $0xf8] sm:$0xff]
  %v52 = vld [vmem:[%s0 + $0x100] sm:$0xff]
  %v53 = vld [vmem:[%s0 + $0x108] sm:$0xff]
  %v54 = vld [vmem:[%s0 + $0x110] sm:$0xff]
  %v55 = vld [vmem:[%s0 + $0x118] sm:$0xff]
  %v56 = vld [vmem:[%s0 + $0x120] sm:$0xff]
  %v57 = vld [vmem:[%s0 + $0x128] sm:$0xff]
  %v58 = vld [vmem:[%s0 + $0x130] sm:$0xff]
  %v59 = vld [vmem:[%s0 + $0x138] sm:$0xff]
  %v60 = vld [vmem:[%s0 + $0x140] sm:$0xff]
  %v61 = vld [vmem:[%s0 + $0x148] sm:$0xff]
  %v62 = vld [vmem:[%s0 + $0x150] sm:$0xff]
  %v63 = vld [vmem:[%s0 + $0x158] sm:$0xff]
  %v64 = vld [vmem:[%s0 + $0x160] sm:$0xff]
  %v65 = vld [vmem:[%s0 + $0x168] sm:$0xff]
  %v66 = vld [vmem:[%s0 + $0x170] sm:$0xff]
  %v67 = vld [vmem:[%s0 + $0x178] sm:$0xff]
  %v68 = vld [vmem:[%s0 + $0x180] sm:$0xff]
  %v69 = vld [vmem:[%s0 + $0x188] sm:$0xff]
  %v70 = vld [vmem:[%s0 + $0x190] sm:$0xff]
  %v71 = vld [vmem:[%s0 + $0x198] sm:$0xff]
  %v72 = vld [vmem:[%s0 + $0x1a0] sm:$0xff]
  %v73 = vld [vmem:[%s0 + $0x1a8] sm:$0xff]
  %v74 = vld [vmem:[%s0 + $0x1b0] sm:$0xff]
  %v75 = vld [vmem:[%s0 + $0x1b8] sm:$0xff]
  %v76 = vld [vmem:[%s0 + $0x1c0] sm:$0xff]
  %v77 = vld [vmem:[%s0 + $0x1c8] sm:$0xff]
  %v78 = vld [vmem:[%s0 + $0x1d0] sm:$0xff]
  %v79 = vld [vmem:[%s0 + $0x1d8] sm:$0xff]
  %v80 = vld [vmem:[%s0 + $0x1e0] sm:$0xff]
  %v81 = vld [vmem:[%s0 + $0x1e8] sm:$0xff]
  %v82 = vld [vmem:[%s0 + $0x1f0] sm:$0xff]
  %v83 = vld [vmem:[%s0 + $0x1f8] sm:$0xff]
  %v84 = vld [vmem:[%s0 + $0x200] sm:$0xff]
  %v85 = vld [vmem:[%s0 + $0x208] sm:$0xff]
  %v86 = vld [vmem:[%s0 + $0x210] sm:$0xff]
  %v87 = vld [vmem:[%s0 + $0x218] sm:$0xff]
  %v88 = vld [vmem:[%s0 + $0x220] sm:$0xff]
  %v89 = vld [vmem:[%s0 + $0x228] sm:$0xff]
  %v90 = vld [vmem:[%s0 + $0x230] sm:$0xff]
  %v91 = vld [vmem:[%s0 + $0x238] sm:$0xff]
  %v92 = vld [vmem:[%s0 + $0x240] sm:$0xff]
  %v93 = vld [vmem:[%s0 + $0x248] sm:$0xff]
  %v94 = vld [vmem:[%s0 + $0x250] sm:$0xff]
  %v95 = vld [vmem:[%s0 + $0x258] sm:$0xff]
  %v96 = vld [vmem:[%s0 + $0x260] sm:$0xff]
  %v97 = vld [vmem:[%s0 + $0x268] sm:$0xff]
  %v98 = vld [vmem:[%s0 + $0x270] sm:$0xff]
  %v99 = vld [vmem:[%s0 + $0x278] sm:$0xff]
  %v100 = vld [vmem:[%s0 + $0x280] sm:$0xff]
  %v101 = vld [vmem:[%s0 + $0x288] sm:$0xff]
  %v102 = vld [vmem:[%s0 + $0x290] sm:$0xff]
  %v103 = vld [vmem:[%s0 + $0x298] sm:$0xff]
  %v104 = vld [vmem:[%s0 + $0x2a0] sm:$0xff]
  %v105 = vld [vmem:[%s0 + $0x2a8] sm:$0xff]
  %v106 = vld [vmem:[%s0 + $0x2b0] sm:$0xff]
  %v107 = vld [vmem:[%s0 + $0x2b8] sm:$0xff]
  %v108 = vld [vmem:[%s0 + $0x2c0] sm:$0xff]
  %v109 = vld [vmem:[%s0 + $0x2c8] sm:$0xff]
  %v110 = vld [vmem:[%s0 + $0x2d0] sm:$0xff]
  %v111 = vld [vmem:[%s0 + $0x2d8] sm:$0xff]
  %v112 = vld [vmem:[%s0 + $0x2e0] sm:$0xff]
  %v113 = vld [vmem:[%s0 + $0x2e8] sm:$0xff]
  %v114 = vld [vmem:[%s0 + $0x2f0] sm:$0xff]
  %v115 = vld [vmem:[%s0 + $0x2f8] sm:$0xff]
  %v116 = vld [vmem:[%s0 + $0x300] sm:$0xff]
  %v117 = vld [vmem:[%s0 + $0x308] sm:$0xff]
  %v118 = vld [vmem:[%s0 + $0x310] sm:$0xff]
  %v119 = vld [vmem:[%s0 + $0x318] sm:$0xff]
  %v120 = vld [vmem:[%s0 + $0x320] sm:$0xff]
  %v121 = vld [vmem:[%s0 + $0x328] sm:$0xff]
  %v122 = vld [vmem:[%s0 + $0x330] sm:$0xff]
  %v123 = vld [vmem:[%s0 + $0x338] sm:$0xff]
  %v124 = vld [vmem:[%s0 + $0x340] sm:$0xff]
  %v125 = vld [vmem:[%s0 + $0x348] sm:$0xff]
  %v126 = vld [vmem:[%s0 + $0x350] sm:$0xff]
  %v127 = vld [vmem:[%s0 + $0x358] sm:$0xff]
  %v128 = vld [vmem:[%s0 + $0x360] sm:$0xff]
  %v129 = vld [vmem:[%s0 + $0x368] sm:$0xff]
  %v130 = vld [vmem:[%s0 + $0x370] sm:$0xff]
  %v131 = vld [vmem:[%s0 + $0x378] sm:$0xff]
  %v132 = vld [vmem:[%s0 + $0x380] sm:$0xff]
  %v133 = vld [vmem:[%s0 + $0x388] sm:$0xff]
  %v134 = vld [vmem:[%s0 + $0x390] sm:$0xff]
  %v135 = vld [vmem:[%s0 + $0x398] sm:$0xff]
  %v136 = vld [vmem:[%s0 + $0x3a0] sm:$0xff]
  %v137 = vld [vmem:[%s0 + $0x3a8] sm:$0xff]
  %v138 = vld [vmem:[%s0 + $0x3b0] sm:$0xff]
  %v139 = vld [vmem:[%s0 + $0x3b8] sm:$0xff]
  %v140 = vld [vmem:[%s0 + $0x3c0] sm:$0xff]
  %v141 = vld [vmem:[%s0 + $0x3c8] sm:$0xff]
  %v142 = vld [vmem:[%s0 + $0x3d0] sm:$0xff]
  %v143 = vld [vmem:[%s0 + $0x3d8] sm:$0xff]
  %v144 = vld [vmem:[%s0 + $0x3e0] sm:$0xff]
  %v145 = vld [vmem:[%s0 + $0x3e8] sm:$0xff]
  %v146 = vld [vmem:[%s0 + $0x3f0] sm:$0xff]
  %v147 = vld [vmem:[%s0 + $0x3f8] sm:$0xff]
  %v148 = vld [vmem:[%s1] sm:$0x1]
  %v150 = vlaneseq
  %v151 = vshrl.u32 %v150, 7
  %v152 = vsub.s32 0, %v151
  %v153 = vrot.slane %v148, %v152
  %v155 = vmul.f32 %v20, %v153
  %v156 = vmul.f32 %v21, %v153
  %v157 = vmul.f32 %v22, %v153
  %v158 = vmul.f32 %v23, %v153
  %v159 = vmul.f32 %v24, %v153
  %v160 = vmul.f32 %v25, %v153
  %v161 = vmul.f32 %v26, %v153
  %v162 = vmul.f32 %v27, %v153
  %v163 = vmul.f32 %v28, %v153
  %v164 = vmul.f32 %v29, %v153
  %v165 = vmul.f32 %v30, %v153
  %v166 = vmul.f32 %v31, %v153
  %v167 = vmul.f32 %v32, %v153
  %v168 = vmul.f32 %v33, %v153
  %v169 = vmul.f32 %v34, %v153
  %v170 = vmul.f32 %v35, %v153
  %v171 = vmul.f32 %v36, %v153
  %v172 = vmul.f32 %v37, %v153
  %v173 = vmul.f32 %v38, %v153
  %v174 = vmul.f32 %v39, %v153
  %v175 = vmul.f32 %v40, %v153
  %v176 = vmul.f32 %v41, %v153
  %v177 = vmul.f32 %v42, %v153
  %v178 = vmul.f32 %v43, %v153
  %v179 = vmul.f32 %v44, %v153
  %v180 = vmul.f32 %v45, %v153
  %v181 = vmul.f32 %v46, %v153
  %v182 = vmul.f32 %v47, %v153
  %v183 = vmul.f32 %v48, %v153
  %v184 = vmul.f32 %v49, %v153
  %v185 = vmul.f32 %v50, %v153
  %v186 = vmul.f32 %v51, %v153
  %v187 = vmul.f32 %v52, %v153
  %v188 = vmul.f32 %v53, %v153
  %v189 = vmul.f32 %v54, %v153
  %v190 = vmul.f32 %v55, %v153
  %v191 = vmul.f32 %v56, %v153
  %v192 = vmul.f32 %v57, %v153
  %v193 = vmul.f32 %v58, %v153
  %v194 = vmul.f32 %v59, %v153
  %v195 = vmul.f32 %v60, %v153
  %v196 = vmul.f32 %v61, %v153
  %v197 = vmul.f32 %v62, %v153
  %v198 = vmul.f32 %v63, %v153
  %v199 = vmul.f32 %v64, %v153
  %v200 = vmul.f32 %v65, %v153
  %v201 = vmul.f32 %v66, %v153
  %v202 = vmul.f32 %v67, %v153
  %v203 = vmul.f32 %v68, %v153
  %v204 = vmul.f32 %v69, %v153
  %v205 = vmul.f32 %v70, %v153
  %v206 = vmul.f32 %v71, %v153
  %v207 = vmul.f32 %v72, %v153
  %v208 = vmul.f32 %v73, %v153
  %v209 = vmul.f32 %v74, %v153
  %v210 = vmul.f32 %v75, %v153
  %v211 = vmul.f32 %v76, %v153
  %v212 = vmul.f32 %v77, %v153
  %v213 = vmul.f32 %v78, %v153
  %v214 = vmul.f32 %v79, %v153
  %v215 = vmul.f32 %v80, %v153
  %v216 = vmul.f32 %v81, %v153
  %v217 = vmul.f32 %v82, %v153
  %v218 = vmul.f32 %v83, %v153
  %v219 = vmul.f32 %v84, %v153
  %v220 = vmul.f32 %v85, %v153
  %v221 = vmul.f32 %v86, %v153
  %v222 = vmul.f32 %v87, %v153
  %v223 = vmul.f32 %v88, %v153
  %v224 = vmul.f32 %v89, %v153
  %v225 = vmul.f32 %v90, %v153
  %v226 = vmul.f32 %v91, %v153
  %v227 = vmul.f32 %v92, %v153
  %v228 = vmul.f32 %v93, %v153
  %v229 = vmul.f32 %v94, %v153
  %v230 = vmul.f32 %v95, %v153
  %v231 = vmul.f32 %v96, %v153
  %v232 = vmul.f32 %v97, %v153
  %v233 = vmul.f32 %v98, %v153
  %v234 = vmul.f32 %v99, %v153
  %v235 = vmul.f32 %v100, %v153
  %v236 = vmul.f32 %v101, %v153
  %v237 = vmul.f32 %v102, %v153
  %v238 = vmul.f32 %v103, %v153
  %v239 = vmul.f32 %v104, %v153
  %v240 = vmul.f32 %v105, %v153
  %v241 = vmul.f32 %v106, %v153
  %v242 = vmul.f32 %v107, %v153
  %v243 = vmul.f32 %v108, %v153
  %v244 = vmul.f32 %v109, %v153
  %v245 = vmul.f32 %v110, %v153
  %v246 = vmul.f32 %v111, %v153
  %v247 = vmul.f32 %v112, %v153
  %v248 = vmul.f32 %v113, %v153
  %v249 = vmul.f32 %v114, %v153
  %v250 = vmul.f32 %v115, %v153
  %v251 = vmul.f32 %v116, %v153
  %v252 = vmul.f32 %v117, %v153
  %v253 = vmul.f32 %v118, %v153
  %v254 = vmul.f32 %v119, %v153
  %v255 = vmul.f32 %v120, %v153
  %v256 = vmul.f32 %v121, %v153
  %v257 = vmul.f32 %v122, %v153
  %v258 = vmul.f32 %v123, %v153
  %v259 = vmul.f32 %v124, %v153
  %v260 = vmul.f32 %v125, %v153
  %v261 = vmul.f32 %v126, %v153
  %v262 = vmul.f32 %v127, %v153
  %v263 = vmul.f32 %v128, %v153
  %v264 = vmul.f32 %v129, %v153
  %v265 = vmul.f32 %v130, %v153
  %v266 = vmul.f32 %v131, %v153
  %v267 = vmul.f32 %v132, %v153
  %v268 = vmul.f32 %v133, %v153
  %v269 = vmul.f32 %v134, %v153
  %v270 = vmul.f32 %v135, %v153
  %v271 = vmul.f32 %v136, %v153
  %v272 = vmul.f32 %v137, %v153
  %v273 = vmul.f32 %v138, %v153
  %v274 = vmul.f32 %v139, %v153
  %v275 = vmul.f32 %v140, %v153
  %v276 = vmul.f32 %v141, %v153
  %v277 = vmul.f32 %v142, %v153
  %v278 = vmul.f32 %v143, %v153
  %v279 = vmul.f32 %v144, %v153
  %v280 = vmul.f32 %v145, %v153
  %v281 = vmul.f32 %v146, %v153
  %v282 = vmul.f32 %v147, %v153
  %v283 = vld [vmem:[%s2] sm:$0x1]
  %v285 = vlaneseq
  %v286 = vshrl.u32 %v285, 7
  %v287 = vsub.s32 0, %v286
  %v288 = vrot.slane %v283, %v287
  %v290 = vadd.f32 %v155, %v288
  %v291 = vadd.f32 %v156, %v288
  %v292 = vadd.f32 %v157, %v288
  %v293 = vadd.f32 %v158, %v288
  %v294 = vadd.f32 %v159, %v288
  %v295 = vadd.f32 %v160, %v288
  %v296 = vadd.f32 %v161, %v288
  %v297 = vadd.f32 %v162, %v288
  %v298 = vadd.f32 %v163, %v288
  %v299 = vadd.f32 %v164, %v288
  %v300 = vadd.f32 %v165, %v288
  %v301 = vadd.f32 %v166, %v288
  %v302 = vadd.f32 %v167, %v288
  %v303 = vadd.f32 %v168, %v288
  %v304 = vadd.f32 %v169, %v288
  %v305 = vadd.f32 %v170, %v288
  %v306 = vadd.f32 %v171, %v288
  %v307 = vadd.f32 %v172, %v288
  %v308 = vadd.f32 %v173, %v288
  %v309 = vadd.f32 %v174, %v288
  %v310 = vadd.f32 %v175, %v288
  %v311 = vadd.f32 %v176, %v288
  %v312 = vadd.f32 %v177, %v288
  %v313 = vadd.f32 %v178, %v288
  %v314 = vadd.f32 %v179, %v288
  %v315 = vadd.f32 %v180, %v288
  %v316 = vadd.f32 %v181, %v288
  %v317 = vadd.f32 %v182, %v288
  %v318 = vadd.f32 %v183, %v288
  %v319 = vadd.f32 %v184, %v288
  %v320 = vadd.f32 %v185, %v288
  %v321 = vadd.f32 %v186, %v288
  %v322 = vadd.f32 %v187, %v288
  %v323 = vadd.f32 %v188, %v288
  %v324 = vadd.f32 %v189, %v288
  %v325 = vadd.f32 %v190, %v288
  %v326 = vadd.f32 %v191, %v288
  %v327 = vadd.f32 %v192, %v288
  %v328 = vadd.f32 %v193, %v288
  %v329 = vadd.f32 %v194, %v288
  %v330 = vadd.f32 %v195, %v288
  %v331 = vadd.f32 %v196, %v288
  %v332 = vadd.f32 %v197, %v288
  %v333 = vadd.f32 %v198, %v288
  %v334 = vadd.f32 %v199, %v288
  %v335 = vadd.f32 %v200, %v288
  %v336 = vadd.f32 %v201, %v288
  %v337 = vadd.f32 %v202, %v288
  %v338 = vadd.f32 %v203, %v288
  %v339 = vadd.f32 %v204, %v288
  %v340 = vadd.f32 %v205, %v288
  %v341 = vadd.f32 %v206, %v288
  %v342 = vadd.f32 %v207, %v288
  %v343 = vadd.f32 %v208, %v288
  %v344 = vadd.f32 %v209, %v288
  %v345 = vadd.f32 %v210, %v288
  %v346 = vadd.f32 %v211, %v288
  %v347 = vadd.f32 %v212, %v288
  %v348 = vadd.f32 %v213, %v288
  %v349 = vadd.f32 %v214, %v288
  %v350 = vadd.f32 %v215, %v288
  %v351 = vadd.f32 %v216, %v288
  %v352 = vadd.f32 %v217, %v288
  %v353 = vadd.f32 %v218, %v288
  %v354 = vadd.f32 %v219, %v288
  %v355 = vadd.f32 %v220, %v288
  %v356 = vadd.f32 %v221, %v288
  %v357 = vadd.f32 %v222, %v288
  %v358 = vadd.f32 %v223, %v288
  %v359 = vadd.f32 %v224, %v288
  %v360 = vadd.f32 %v225, %v288
  %v361 = vadd.f32 %v226, %v288
  %v362 = vadd.f32 %v227, %v288
  %v363 = vadd.f32 %v228, %v288
  %v364 = vadd.f32 %v229, %v288
  %v365 = vadd.f32 %v230, %v288
  %v366 = vadd.f32 %v231, %v288
  %v367 = vadd.f32 %v232, %v288
  %v368 = vadd.f32 %v233, %v288
  %v369 = vadd.f32 %v234, %v288
  %v370 = vadd.f32 %v235, %v288
  %v371 = vadd.f32 %v236, %v288
  %v372 = vadd.f32 %v237, %v288
  %v373 = vadd.f32 %v238, %v288
  %v374 = vadd.f32 %v239, %v288
  %v375 = vadd.f32 %v240, %v288
  %v376 = vadd.f32 %v241, %v288
  %v377 = vadd.f32 %v242, %v288
  %v378 = vadd.f32 %v243, %v288
  %v379 = vadd.f32 %v244, %v288
  %v380 = vadd.f32 %v245, %v288
  %v381 = vadd.f32 %v246, %v288
  %v382 = vadd.f32 %v247, %v288
  %v383 = vadd.f32 %v248, %v288
  %v384 = vadd.f32 %v249, %v288
  %v385 = vadd.f32 %v250, %v288
  %v386 = vadd.f32 %v251, %v288
  %v387 = vadd.f32 %v252, %v288
  %v388 = vadd.f32 %v253, %v288
  %v389 = vadd.f32 %v254, %v288
  %v390 = vadd.f32 %v255, %v288
  %v391 = vadd.f32 %v256, %v288
  %v392 = vadd.f32 %v257, %v288
  %v393 = vadd.f32 %v258, %v288
  %v394 = vadd.f32 %v259, %v288
  %v395 = vadd.f32 %v260, %v288
  %v396 = vadd.f32 %v261, %v288
  %v397 = vadd.f32 %v262, %v288
  %v398 = vadd.f32 %v263, %v288
  %v399 = vadd.f32 %v264, %v288
  %v400 = vadd.f32 %v265, %v288
  %v401 = vadd.f32 %v266, %v288
  %v402 = vadd.f32 %v267, %v288
  %v403 = vadd.f32 %v268, %v288
  %v404 = vadd.f32 %v269, %v288
  %v405 = vadd.f32 %v270, %v288
  %v406 = vadd.f32 %v271, %v288
  %v407 = vadd.f32 %v272, %v288
  %v408 = vadd.f32 %v273, %v288
  %v409 = vadd.f32 %v274, %v288
  %v410 = vadd.f32 %v275, %v288
  %v411 = vadd.f32 %v276, %v288
  %v412 = vadd.f32 %v277, %v288
  %v413 = vadd.f32 %v278, %v288
  %v414 = vadd.f32 %v279, %v288
  %v415 = vadd.f32 %v280, %v288
  %v416 = vadd.f32 %v281, %v288
  %v417 = vadd.f32 %v282, %v288
  %v418 = vmax.f32 %v290, 0.0
  %v419 = vmax.f32 %v291, 0.0
  %v420 = vmax.f32 %v292, 0.0
  %v421 = vmax.f32 %v293, 0.0
  %v422 = vmax.f32 %v294, 0.0
  %v423 = vmax.f32 %v295, 0.0
  %v424 = vmax.f32 %v296, 0.0
  %v425 = vmax.f32 %v297, 0.0
  %v426 = vmax.f32 %v298, 0.0
  %v427 = vmax.f32 %v299, 0.0
  %v428 = vmax.f32 %v300, 0.0
  %v429 = vmax.f32 %v301, 0.0
  %v430 = vmax.f32 %v302, 0.0
  %v431 = vmax.f32 %v303, 0.0
  %v432 = vmax.f32 %v304, 0.0
  %v433 = vmax.f32 %v305, 0.0
  %v434 = vmax.f32 %v306, 0.0
  %v435 = vmax.f32 %v307, 0.0
  %v436 = vmax.f32 %v308, 0.0
  %v437 = vmax.f32 %v309, 0.0
  %v438 = vmax.f32 %v310, 0.0
  %v439 = vmax.f32 %v311, 0.0
  %v440 = vmax.f32 %v312, 0.0
  %v441 = vmax.f32 %v313, 0.0
  %v442 = vmax.f32 %v314, 0.0
  %v443 = vmax.f32 %v315, 0.0
  %v444 = vmax.f32 %v316, 0.0
  %v445 = vmax.f32 %v317, 0.0
  %v446 = vmax.f32 %v318, 0.0
  %v447 = vmax.f32 %v319, 0.0
  %v448 = vmax.f32 %v320, 0.0
  %v449 = vmax.f32 %v321, 0.0
  %v450 = vmax.f32 %v322, 0.0
  %v451 = vmax.f32 %v323, 0.0
  %v452 = vmax.f32 %v324, 0.0
  %v453 = vmax.f32 %v325, 0.0
  %v454 = vmax.f32 %v326, 0.0
  %v455 = vmax.f32 %v327, 0.0
  %v456 = vmax.f32 %v328, 0.0
  %v457 = vmax.f32 %v329, 0.0
  %v458 = vmax.f32 %v330, 0.0
  %v459 = vmax.f32 %v331, 0.0
  %v460 = vmax.f32 %v332, 0.0
  %v461 = vmax.f32 %v333, 0.0
  %v462 = vmax.f32 %v334, 0.0
  %v463 = vmax.f32 %v335, 0.0
  %v464 = vmax.f32 %v336, 0.0
  %v465 = vmax.f32 %v337, 0.0
  %v466 = vmax.f32 %v338, 0.0
  %v467 = vmax.f32 %v339, 0.0
  %v468 = vmax.f32 %v340, 0.0
  %v469 = vmax.f32 %v341, 0.0
  %v470 = vmax.f32 %v342, 0.0
  %v471 = vmax.f32 %v343, 0.0
  %v472 = vmax.f32 %v344, 0.0
  %v473 = vmax.f32 %v345, 0.0
  %v474 = vmax.f32 %v346, 0.0
  %v475 = vmax.f32 %v347, 0.0
  %v476 = vmax.f32 %v348, 0.0
  %v477 = vmax.f32 %v349, 0.0
  %v478 = vmax.f32 %v350, 0.0
  %v479 = vmax.f32 %v351, 0.0
  %v480 = vmax.f32 %v352, 0.0
  %v481 = vmax.f32 %v353, 0.0
  %v482 = vmax.f32 %v354, 0.0
  %v483 = vmax.f32 %v355, 0.0
  %v484 = vmax.f32 %v356, 0.0
  %v485 = vmax.f32 %v357, 0.0
  %v486 = vmax.f32 %v358, 0.0
  %v487 = vmax.f32 %v359, 0.0
  %v488 = vmax.f32 %v360, 0.0
  %v489 = vmax.f32 %v361, 0.0
  %v490 = vmax.f32 %v362, 0.0
  %v491 = vmax.f32 %v363, 0.0
  %v492 = vmax.f32 %v364, 0.0
  %v493 = vmax.f32 %v365, 0.0
  %v494 = vmax.f32 %v366, 0.0
  %v495 = vmax.f32 %v367, 0.0
  %v496 = vmax.f32 %v368, 0.0
  %v497 = vmax.f32 %v369, 0.0
  %v498 = vmax.f32 %v370, 0.0
  %v499 = vmax.f32 %v371, 0.0
  %v500 = vmax.f32 %v372, 0.0
  %v501 = vmax.f32 %v373, 0.0
  %v502 = vmax.f32 %v374, 0.0
  %v503 = vmax.f32 %v375, 0.0
  %v504 = vmax.f32 %v376, 0.0
  %v505 = vmax.f32 %v377, 0.0
  %v506 = vmax.f32 %v378, 0.0
  %v507 = vmax.f32 %v379, 0.0
  %v508 = vmax.f32 %v380, 0.0
  %v509 = vmax.f32 %v381, 0.0
  %v510 = vmax.f32 %v382, 0.0
  %v511 = vmax.f32 %v383, 0.0
  %v512 = vmax.f32 %v384, 0.0
  %v513 = vmax.f32 %v385, 0.0
  %v514 = vmax.f32 %v386, 0.0
  %v515 = vmax.f32 %v387, 0.0
  %v516 = vmax.f32 %v388, 0.0
  %v517 = vmax.f32 %v389, 0.0
  %v518 = vmax.f32 %v390, 0.0
  %v519 = vmax.f32 %v391, 0.0
  %v520 = vmax.f32 %v392, 0.0
  %v521 = vmax.f32 %v393, 0.0
  %v522 = vmax.f32 %v394, 0.0
  %v523 = vmax.f32 %v395, 0.0
  %v524 = vmax.f32 %v396, 0.0
  %v525 = vmax.f32 %v397, 0.0
  %v526 = vmax.f32 %v398, 0.0
  %v527 = vmax.f32 %v399, 0.0
  %v528 = vmax.f32 %v400, 0.0
  %v529 = vmax.f32 %v401, 0.0
  %v530 = vmax.f32 %v402, 0.0
  %v531 = vmax.f32 %v403, 0.0
  %v532 = vmax.f32 %v404, 0.0
  %v533 = vmax.f32 %v405, 0.0
  %v534 = vmax.f32 %v406, 0.0
  %v535 = vmax.f32 %v407, 0.0
  %v536 = vmax.f32 %v408, 0.0
  %v537 = vmax.f32 %v409, 0.0
  %v538 = vmax.f32 %v410, 0.0
  %v539 = vmax.f32 %v411, 0.0
  %v540 = vmax.f32 %v412, 0.0
  %v541 = vmax.f32 %v413, 0.0
  %v542 = vmax.f32 %v414, 0.0
  %v543 = vmax.f32 %v415, 0.0
  %v544 = vmax.f32 %v416, 0.0
  %v545 = vmax.f32 %v417, 0.0
  %v546 = vpack.c.bf16 %v419, %v418
  %v547 = vpack.c.bf16 %v421, %v420
  %v548 = vpack.c.bf16 %v423, %v422
  %v549 = vpack.c.bf16 %v425, %v424
  %v550 = vpack.c.bf16 %v427, %v426
  %v551 = vpack.c.bf16 %v429, %v428
  %v552 = vpack.c.bf16 %v431, %v430
  %v553 = vpack.c.bf16 %v433, %v432
  %v554 = vpack.c.bf16 %v435, %v434
  %v555 = vpack.c.bf16 %v437, %v436
  %v556 = vpack.c.bf16 %v439, %v438
  %v557 = vpack.c.bf16 %v441, %v440
  %v558 = vpack.c.bf16 %v443, %v442
  %v559 = vpack.c.bf16 %v445, %v444
  %v560 = vpack.c.bf16 %v447, %v446
  %v561 = vpack.c.bf16 %v449, %v448
  %v562 = vpack.c.bf16 %v451, %v450
  %v563 = vpack.c.bf16 %v453, %v452
  %v564 = vpack.c.bf16 %v455, %v454
  %v565 = vpack.c.bf16 %v457, %v456
  %v566 = vpack.c.bf16 %v459, %v458
  %v567 = vpack.c.bf16 %v461, %v460
  %v568 = vpack.c.bf16 %v463, %v462
  %v569 = vpack.c.bf16 %v465, %v464
  %v570 = vpack.c.bf16 %v467, %v466
  %v571 = vpack.c.bf16 %v469, %v468
  %v572 = vpack.c.bf16 %v471, %v470
  %v573 = vpack.c.bf16 %v473, %v472
  %v574 = vpack.c.bf16 %v475, %v474
  %v575 = vpack.c.bf16 %v477, %v476
  %v576 = vpack.c.bf16 %v479, %v478
  %v577 = vpack.c.bf16 %v481, %v480
  %v578 = vpack.c.bf16 %v483, %v482
  %v579 = vpack.c.bf16 %v485, %v484
  %v580 = vpack.c.bf16 %v487, %v486
  %v581 = vpack.c.bf16 %v489, %v488
  %v582 = vpack.c.bf16 %v491, %v490
  %v583 = vpack.c.bf16 %v493, %v492
  %v584 = vpack.c.bf16 %v495, %v494
  %v585 = vpack.c.bf16 %v497, %v496
  %v586 = vpack.c.bf16 %v499, %v498
  %v587 = vpack.c.bf16 %v501, %v500
  %v588 = vpack.c.bf16 %v503, %v502
  %v589 = vpack.c.bf16 %v505, %v504
  %v590 = vpack.c.bf16 %v507, %v506
  %v591 = vpack.c.bf16 %v509, %v508
  %v592 = vpack.c.bf16 %v511, %v510
  %v593 = vpack.c.bf16 %v513, %v512
  %v594 = vpack.c.bf16 %v515, %v514
  %v595 = vpack.c.bf16 %v517, %v516
  %v596 = vpack.c.bf16 %v519, %v518
  %v597 = vpack.c.bf16 %v521, %v520
  %v598 = vpack.c.bf16 %v523, %v522
  %v599 = vpack.c.bf16 %v525, %v524
  %v600 = vpack.c.bf16 %v527, %v526
  %v601 = vpack.c.bf16 %v529, %v528
  %v602 = vpack.c.bf16 %v531, %v530
  %v603 = vpack.c.bf16 %v533, %v532
  %v604 = vpack.c.bf16 %v535, %v534
  %v605 = vpack.c.bf16 %v537, %v536
  %v606 = vpack.c.bf16 %v539, %v538
  %v607 = vpack.c.bf16 %v541, %v540
  %v608 = vpack.c.bf16 %v543, %v542
  %v609 = vpack.c.bf16 %v545, %v544
  %v610 = vld [vmem:[%s3] sm:$0xf]
  %v611 = vld [vmem:[%s3 + $0x4] sm:$0xf]
  %v612 = vld [vmem:[%s3 + $0x8] sm:$0xf]
  %v613 = vld [vmem:[%s3 + $0xc] sm:$0xf]
  %v614 = vld [vmem:[%s3 + $0x10] sm:$0xf]
  %v615 = vld [vmem:[%s3 + $0x14] sm:$0xf]
  %v616 = vld [vmem:[%s3 + $0x18] sm:$0xf]
  %v617 = vld [vmem:[%s3 + $0x1c] sm:$0xf]
  %v618 = vld [vmem:[%s3 + $0x20] sm:$0xf]
  %v619 = vld [vmem:[%s3 + $0x24] sm:$0xf]
  %v620 = vld [vmem:[%s3 + $0x28] sm:$0xf]
  %v621 = vld [vmem:[%s3 + $0x2c] sm:$0xf]
  %v622 = vld [vmem:[%s3 + $0x30] sm:$0xf]
  %v623 = vld [vmem:[%s3 + $0x34] sm:$0xf]
  %v624 = vld [vmem:[%s3 + $0x38] sm:$0xf]
  %v625 = vld [vmem:[%s3 + $0x3c] sm:$0xf]
  %v642 = vunpack.c.l.b16 %v610
  %v643 = vunpack.c.l.b16 %v611
  %v644 = vunpack.c.l.b16 %v612
  %v645 = vunpack.c.l.b16 %v613
  %v646 = vunpack.c.l.b16 %v614
  %v647 = vunpack.c.l.b16 %v615
  %v648 = vunpack.c.l.b16 %v616
  %v649 = vunpack.c.l.b16 %v617
  %v650 = vunpack.c.l.b16 %v618
  %v651 = vunpack.c.l.b16 %v619
  %v652 = vunpack.c.l.b16 %v620
  %v653 = vunpack.c.l.b16 %v621
  %v654 = vunpack.c.l.b16 %v622
  %v655 = vunpack.c.l.b16 %v623
  %v656 = vunpack.c.l.b16 %v624
  %v657 = vunpack.c.l.b16 %v625
  %v658 = vpack.c.b16 %v643, %v642
  %v659 = vpack.c.b16 %v645, %v644
  %v660 = vpack.c.b16 %v647, %v646
  %v661 = vpack.c.b16 %v649, %v648
  %v662 = vpack.c.b16 %v651, %v650
  %v663 = vpack.c.b16 %v653, %v652
  %v664 = vpack.c.b16 %v655, %v654
  %v665 = vpack.c.b16 %v657, %v656
  %674 = vmatprep.subr.bf16.mxu0 0
  %675 = vmatpush1.bf16.msra.mxu0 %v658
  %676 = vmatprep.subr.bf16.mxu0 0
  %677 = vmatpush1.bf16.msra.mxu0 %v659
  %678 = vmatprep.subr.bf16.mxu0 0
  %679 = vmatpush1.bf16.msra.mxu0 %v660
  %680 = vmatprep.subr.bf16.mxu0 0
  %681 = vmatpush1.bf16.msra.mxu0 %v661
  %682 = vmatprep.subr.bf16.mxu0 0
  %683 = vmatpush1.bf16.msra.mxu0 %v662
  %684 = vmatprep.subr.bf16.mxu0 0
  %685 = vmatpush1.bf16.msra.mxu0 %v663
  %686 = vmatprep.subr.bf16.mxu0 0
  %687 = vmatpush1.bf16.msra.mxu0 %v664
  %688 = vmatprep.subr.bf16.mxu0 0
  %689 = vmatpush1.bf16.msra.mxu0 %v665
  %690 = vmatprep.subr.bf16.mxu0 0
  %691 = vmatpush1.bf16.msra.mxu0 0
  %692 = vmatprep.subr.bf16.mxu0 0
  %693 = vmatpush1.bf16.msra.mxu0 0
  %694 = vmatprep.subr.bf16.mxu0 0
  %695 = vmatpush1.bf16.msra.mxu0 0
  %696 = vmatprep.subr.bf16.mxu0 0
  %697 = vmatpush1.bf16.msra.mxu0 0
  %698 = vmatprep.subr.bf16.mxu0 0
  %699 = vmatpush1.bf16.msra.mxu0 0
  %700 = vmatprep.subr.bf16.mxu0 0
  %701 = vmatpush1.bf16.msra.mxu0 0
  %702 = vmatprep.subr.bf16.mxu0 0
  %703 = vmatpush1.bf16.msra.mxu0 0
  %704 = vmatprep.subr.bf16.mxu0 0
  %705 = vmatpush1.bf16.msra.mxu0 0
  %706 = vmatprep.mubr.bf16.mxu0 0
  %707 = vmatmul.mubr.bf16.gmra.mrb[0].mxu0 %v546
  %v708 = vpop.f32.mrb[0].mxu0
  %v709 = vadd.f32 0.0, %v708
  %v710 = vpop.f32.mrb[0].mxu0
  %v711 = vpop.f32.mrb[0].mxu0
  %v712 = vadd.f32 0.0, %v711
  %v713 = vpop.f32.mrb[0].mxu0
  %714 = vmatprep.mubr.bf16.mxu0 0
  %715 = vmatmul.mubr.bf16.gmra.mrb[0].mxu0 %v547
  %v716 = vpop.f32.mrb[0].mxu0
  %v717 = vadd.f32 0.0, %v716
  %v718 = vpop.f32.mrb[0].mxu0
  %v719 = vpop.f32.mrb[0].mxu0
  %v720 = vadd.f32 0.0, %v719
  %v721 = vpop.f32.mrb[0].mxu0
  %722 = vmatprep.mubr.bf16.mxu0 0
  %723 = vmatmul.mubr.bf16.gmra.mrb[0].mxu0 %v548
  %v724 = vpop.f32.mrb[0].mxu0
  %v725 = vadd.f32 0.0, %v724
  %v726 = vpop.f32.mrb[0].mxu0
  %v727 = vpop.f32.mrb[0].mxu0
  %v728 = vadd.f32 0.0, %v727
  %v729 = vpop.f32.mrb[0].mxu0
  %730 = vmatprep.mubr.bf16.mxu0 0
  %731 = vmatmul.mubr.bf16.gmra.mrb[0].mxu0 %v549
  %v732 = vpop.f32.mrb[0].mxu0
  %v733 = vadd.f32 0.0, %v732
  %v734 = vpop.f32.mrb[0].mxu0
  %v735 = vpop.f32.mrb[0].mxu0
  %v736 = vadd.f32 0.0, %v735
  %v737 = vpop.f32.mrb[0].mxu0
  %738 = vmatprep.mubr.bf16.mxu0 0
  %739 = vmatmul.mubr.bf16.gmra.mrb[0].mxu0 %v550
  %v740 = vpop.f32.mrb[0].mxu0
  %v741 = vadd.f32 0.0, %v740
  %v742 = vpop.f32.mrb[0].mxu0
  %v743 = vpop.f32.mrb[0].mxu0
  %v744 = vadd.f32 0.0, %v743
  %v745 = vpop.f32.mrb[0].mxu0
  %746 = vmatprep.mubr.bf16.mxu0 0
  %747 = vmatmul.mubr.bf16.gmra.mrb[0].mxu0 %v551
  %v748 = vpop.f32.mrb[0].mxu0
  %v749 = vadd.f32 0.0, %v748
  %v750 = vpop.f32.mrb[0].mxu0
  %v751 = vpop.f32.mrb[0].mxu0
  %v752 = vadd.f32 0.0, %v751
  %v753 = vpop.f32.mrb[0].mxu0
  %754 = vmatprep.mubr.bf16.mxu0 0
  %755 = vmatmul.mubr.bf16.gmra.mrb[0].mxu0 %v552
  %v756 = vpop.f32.mrb[0].mxu0
  %v757 = vadd.f32 0.0, %v756
  %v758 = vpop.f32.mrb[0].mxu0
  %v759 = vpop.f32.mrb[0].mxu0
  %v760 = vadd.f32 0.0, %v759
  %v761 = vpop.f32.mrb[0].mxu0
  %762 = vmatprep.mubr.bf16.mxu0 0
  %763 = vmatmul.mubr.bf16.gmra.mrb[0].mxu0 %v553
  %v764 = vpop.f32.mrb[0].mxu0
  %v765 = vadd.f32 0.0, %v764
  %v766 = vpop.f32.mrb[0].mxu0
  %v767 = vpop.f32.mrb[0].mxu0
  %v768 = vadd.f32 0.0, %v767
  %v769 = vpop.f32.mrb[0].mxu0
  %770 = vmatprep.mubr.bf16.mxu0 0
  %771 = vmatmul.mubr.bf16.gmra.mrb[0].mxu0 %v554
  %v772 = vpop.f32.mrb[0].mxu0
  %v773 = vadd.f32 0.0, %v772
  %v774 = vpop.f32.mrb[0].mxu0
  %v775 = vpop.f32.mrb[0].mxu0
  %v776 = vadd.f32 0.0, %v775
  %v777 = vpop.f32.mrb[0].mxu0
  %778 = vmatprep.mubr.bf16.mxu0 0
  %779 = vmatmul.mubr.bf16.gmra.mrb[0].mxu0 %v555
  %v780 = vpop.f32.mrb[0].mxu0
  %v781 = vadd.f32 0.0, %v780
  %v782 = vpop.f32.mrb[0].mxu0
  %v783 = vpop.f32.mrb[0].mxu0
  %v784 = vadd.f32 0.0, %v783
  %v785 = vpop.f32.mrb[0].mxu0
  %786 = vmatprep.mubr.bf16.mxu0 0
  %787 = vmatmul.mubr.bf16.gmra.mrb[0].mxu0 %v556
  %v788 = vpop.f32.mrb[0].mxu0
  %v789 = vadd.f32 0.0, %v788
  %v790 = vpop.f32.mrb[0].mxu0
  %v791 = vpop.f32.mrb[0].mxu0
  %v792 = vadd.f32 0.0, %v791
  %v793 = vpop.f32.mrb[0].mxu0
  %794 = vmatprep.mubr.bf16.mxu0 0
  %795 = vmatmul.mubr.bf16.gmra.mrb[0].mxu0 %v557
  %v796 = vpop.f32.mrb[0].mxu0
  %v797 = vadd.f32 0.0, %v796
  %v798 = vpop.f32.mrb[0].mxu0
  %v799 = vpop.f32.mrb[0].mxu0
  %v800 = vadd.f32 0.0, %v799
  %v801 = vpop.f32.mrb[0].mxu0
  %802 = vmatprep.mubr.bf16.mxu0 0
  %803 = vmatmul.mubr.bf16.gmra.mrb[0].mxu0 %v558
  %v804 = vpop.f32.mrb[0].mxu0
  %v805 = vadd.f32 0.0, %v804
  %v806 = vpop.f32.mrb[0].mxu0
  %v807 = vpop.f32.mrb[0].mxu0
  %v808 = vadd.f32 0.0, %v807
  %v809 = vpop.f32.mrb[0].mxu0
  %810 = vmatprep.mubr.bf16.mxu0 0
  %811 = vmatmul.mubr.bf16.gmra.mrb[0].mxu0 %v559
  %v812 = vpop.f32.mrb[0].mxu0
  %v813 = vadd.f32 0.0, %v812
  %v814 = vpop.f32.mrb[0].mxu0
  %v815 = vpop.f32.mrb[0].mxu0
  %v816 = vadd.f32 0.0, %v815
  %v817 = vpop.f32.mrb[0].mxu0
  %818 = vmatprep.mubr.bf16.mxu0 0
  %819 = vmatmul.mubr.bf16.gmra.mrb[0].mxu0 %v560
  %v820 = vpop.f32.mrb[0].mxu0
  %v821 = vadd.f32 0.0, %v820
  %v822 = vpop.f32.mrb[0].mxu0
  %v823 = vpop.f32.mrb[0].mxu0
  %v824 = vadd.f32 0.0, %v823
  %v825 = vpop.f32.mrb[0].mxu0
  %826 = vmatprep.mubr.bf16.mxu0 0
  %827 = vmatmul.mubr.bf16.gmra.mrb[0].mxu0 %v561
  %v828 = vpop.f32.mrb[0].mxu0
  %v829 = vadd.f32 0.0, %v828
  %v830 = vpop.f32.mrb[0].mxu0
  %v831 = vpop.f32.mrb[0].mxu0
  %v832 = vadd.f32 0.0, %v831
  %v833 = vpop.f32.mrb[0].mxu0
  %834 = vmatprep.mubr.bf16.mxu0 0
  %835 = vmatmul.mubr.bf16.gmra.mrb[0].mxu0 %v562
  %v836 = vpop.f32.mrb[0].mxu0
  %v837 = vadd.f32 0.0, %v836
  %v838 = vpop.f32.mrb[0].mxu0
  %v839 = vpop.f32.mrb[0].mxu0
  %v840 = vadd.f32 0.0, %v839
  %v841 = vpop.f32.mrb[0].mxu0
  %842 = vmatprep.mubr.bf16.mxu0 0
  %843 = vmatmul.mubr.bf16.gmra.mrb[0].mxu0 %v563
  %v844 = vpop.f32.mrb[0].mxu0
  %v845 = vadd.f32 0.0, %v844
  %v846 = vpop.f32.mrb[0].mxu0
  %v847 = vpop.f32.mrb[0].mxu0
  %v848 = vadd.f32 0.0, %v847
  %v849 = vpop.f32.mrb[0].mxu0
  %850 = vmatprep.mubr.bf16.mxu0 0
  %851 = vmatmul.mubr.bf16.gmra.mrb[0].mxu0 %v564
  %v852 = vpop.f32.mrb[0].mxu0
  %v853 = vadd.f32 0.0, %v852
  %v854 = vpop.f32.mrb[0].mxu0
  %v855 = vpop.f32.mrb[0].mxu0
  %v856 = vadd.f32 0.0, %v855
  %v857 = vpop.f32.mrb[0].mxu0
  %858 = vmatprep.mubr.bf16.mxu0 0
  %859 = vmatmul.mubr.bf16.gmra.mrb[0].mxu0 %v565
  %v860 = vpop.f32.mrb[0].mxu0
  %v861 = vadd.f32 0.0, %v860
  %v862 = vpop.f32.mrb[0].mxu0
  %v863 = vpop.f32.mrb[0].mxu0
  %v864 = vadd.f32 0.0, %v863
  %v865 = vpop.f32.mrb[0].mxu0
  %866 = vmatprep.mubr.bf16.mxu0 0
  %867 = vmatmul.mubr.bf16.gmra.mrb[0].mxu0 %v566
  %v868 = vpop.f32.mrb[0].mxu0
  %v869 = vadd.f32 0.0, %v868
  %v870 = vpop.f32.mrb[0].mxu0
  %v871 = vpop.f32.mrb[0].mxu0
  %v872 = vadd.f32 0.0, %v871
  %v873 = vpop.f32.mrb[0].mxu0
  %874 = vmatprep.mubr.bf16.mxu0 0
  %875 = vmatmul.mubr.bf16.gmra.mrb[0].mxu0 %v567
  %v876 = vpop.f32.mrb[0].mxu0
  %v877 = vadd.f32 0.0, %v876
  %v878 = vpop.f32.mrb[0].mxu0
  %v879 = vpop.f32.mrb[0].mxu0
  %v880 = vadd.f32 0.0, %v879
  %v881 = vpop.f32.mrb[0].mxu0
  %882 = vmatprep.mubr.bf16.mxu0 0
  %883 = vmatmul.mubr.bf16.gmra.mrb[0].mxu0 %v568
  %v884 = vpop.f32.mrb[0].mxu0
  %v885 = vadd.f32 0.0, %v884
  %v886 = vpop.f32.mrb[0].mxu0
  %v887 = vpop.f32.mrb[0].mxu0
  %v888 = vadd.f32 0.0, %v887
  %v889 = vpop.f32.mrb[0].mxu0
  %890 = vmatprep.mubr.bf16.mxu0 0
  %891 = vmatmul.mubr.bf16.gmra.mrb[0].mxu0 %v569
  %v892 = vpop.f32.mrb[0].mxu0
  %v893 = vadd.f32 0.0, %v892
  %v894 = vpop.f32.mrb[0].mxu0
  %v895 = vpop.f32.mrb[0].mxu0
  %v896 = vadd.f32 0.0, %v895
  %v897 = vpop.f32.mrb[0].mxu0
  %898 = vmatprep.mubr.bf16.mxu0 0
  %899 = vmatmul.mubr.bf16.gmra.mrb[0].mxu0 %v570
  %v900 = vpop.f32.mrb[0].mxu0
  %v901 = vadd.f32 0.0, %v900
  %v902 = vpop.f32.mrb[0].mxu0
  %v903 = vpop.f32.mrb[0].mxu0
  %v904 = vadd.f32 0.0, %v903
  %v905 = vpop.f32.mrb[0].mxu0
  %906 = vmatprep.mubr.bf16.mxu0 0
  %907 = vmatmul.mubr.bf16.gmra.mrb[0].mxu0 %v571
  %v908 = vpop.f32.mrb[0].mxu0
  %v909 = vadd.f32 0.0, %v908
  %v910 = vpop.f32.mrb[0].mxu0
  %v911 = vpop.f32.mrb[0].mxu0
  %v912 = vadd.f32 0.0, %v911
  %v913 = vpop.f32.mrb[0].mxu0
  %914 = vmatprep.mubr.bf16.mxu0 0
  %915 = vmatmul.mubr.bf16.gmra.mrb[0].mxu0 %v572
  %v916 = vpop.f32.mrb[0].mxu0
  %v917 = vadd.f32 0.0, %v916
  %v918 = vpop.f32.mrb[0].mxu0
  %v919 = vpop.f32.mrb[0].mxu0
  %v920 = vadd.f32 0.0, %v919
  %v921 = vpop.f32.mrb[0].mxu0
  %922 = vmatprep.mubr.bf16.mxu0 0
  %923 = vmatmul.mubr.bf16.gmra.mrb[0].mxu0 %v573
  %v924 = vpop.f32.mrb[0].mxu0
  %v925 = vadd.f32 0.0, %v924
  %v926 = vpop.f32.mrb[0].mxu0
  %v927 = vpop.f32.mrb[0].mxu0
  %v928 = vadd.f32 0.0, %v927
  %v929 = vpop.f32.mrb[0].mxu0
  %930 = vmatprep.mubr.bf16.mxu0 0
  %931 = vmatmul.mubr.bf16.gmra.mrb[0].mxu0 %v574
  %v932 = vpop.f32.mrb[0].mxu0
  %v933 = vadd.f32 0.0, %v932
  %v934 = vpop.f32.mrb[0].mxu0
  %v935 = vpop.f32.mrb[0].mxu0
  %v936 = vadd.f32 0.0, %v935
  %v937 = vpop.f32.mrb[0].mxu0
  %938 = vmatprep.mubr.bf16.mxu0 0
  %939 = vmatmul.mubr.bf16.gmra.mrb[0].mxu0 %v575
  %v940 = vpop.f32.mrb[0].mxu0
  %v941 = vadd.f32 0.0, %v940
  %v942 = vpop.f32.mrb[0].mxu0
  %v943 = vpop.f32.mrb[0].mxu0
  %v944 = vadd.f32 0.0, %v943
  %v945 = vpop.f32.mrb[0].mxu0
  %946 = vmatprep.mubr.bf16.mxu0 0
  %947 = vmatmul.mubr.bf16.gmra.mrb[0].mxu0 %v576
  %v948 = vpop.f32.mrb[0].mxu0
  %v949 = vadd.f32 0.0, %v948
  %v950 = vpop.f32.mrb[0].mxu0
  %v951 = vpop.f32.mrb[0].mxu0
  %v952 = vadd.f32 0.0, %v951
  %v953 = vpop.f32.mrb[0].mxu0
  %954 = vmatprep.mubr.bf16.mxu0 0
  %955 = vmatmul.mubr.bf16.gmra.mrb[0].mxu0 %v577
  %v956 = vpop.f32.mrb[0].mxu0
  %v957 = vadd.f32 0.0, %v956
  %v958 = vpop.f32.mrb[0].mxu0
  %v959 = vpop.f32.mrb[0].mxu0
  %v960 = vadd.f32 0.0, %v959
  %v961 = vpop.f32.mrb[0].mxu0
  %962 = vmatprep.mubr.bf16.mxu0 0
  %963 = vmatmul.mubr.bf16.gmra.mrb[0].mxu0 %v578
  %v964 = vpop.f32.mrb[0].mxu0
  %v965 = vadd.f32 0.0, %v964
  %v966 = vpop.f32.mrb[0].mxu0
  %v967 = vpop.f32.mrb[0].mxu0
  %v968 = vadd.f32 0.0, %v967
  %v969 = vpop.f32.mrb[0].mxu0
  %970 = vmatprep.mubr.bf16.mxu0 0
  %971 = vmatmul.mubr.bf16.gmra.mrb[0].mxu0 %v579
  %v972 = vpop.f32.mrb[0].mxu0
  %v973 = vadd.f32 0.0, %v972
  %v974 = vpop.f32.mrb[0].mxu0
  %v975 = vpop.f32.mrb[0].mxu0
  %v976 = vadd.f32 0.0, %v975
  %v977 = vpop.f32.mrb[0].mxu0
  %978 = vmatprep.mubr.bf16.mxu0 0
  %979 = vmatmul.mubr.bf16.gmra.mrb[0].mxu0 %v580
  %v980 = vpop.f32.mrb[0].mxu0
  %v981 = vadd.f32 0.0, %v980
  %v982 = vpop.f32.mrb[0].mxu0
  %v983 = vpop.f32.mrb[0].mxu0
  %v984 = vadd.f32 0.0, %v983
  %v985 = vpop.f32.mrb[0].mxu0
  %986 = vmatprep.mubr.bf16.mxu0 0
  %987 = vmatmul.mubr.bf16.gmra.mrb[0].mxu0 %v581
  %v988 = vpop.f32.mrb[0].mxu0
  %v989 = vadd.f32 0.0, %v988
  %v990 = vpop.f32.mrb[0].mxu0
  %v991 = vpop.f32.mrb[0].mxu0
  %v992 = vadd.f32 0.0, %v991
  %v993 = vpop.f32.mrb[0].mxu0
  %994 = vmatprep.mubr.bf16.mxu0 0
  %995 = vmatmul.mubr.bf16.gmra.mrb[0].mxu0 %v582
  %v996 = vpop.f32.mrb[0].mxu0
  %v997 = vadd.f32 0.0, %v996
  %v998 = vpop.f32.mrb[0].mxu0
  %v999 = vpop.f32.mrb[0].mxu0
  %v1000 = vadd.f32 0.0, %v999
  %v1001 = vpop.f32.mrb[0].mxu0
  %1002 = vmatprep.mubr.bf16.mxu0 0
  %1003 = vmatmul.mubr.bf16.gmra.mrb[0].mxu0 %v583
  %v1004 = vpop.f32.mrb[0].mxu0
  %v1005 = vadd.f32 0.0, %v1004
  %v1006 = vpop.f32.mrb[0].mxu0
  %v1007 = vpop.f32.mrb[0].mxu0
  %v1008 = vadd.f32 0.0, %v1007
  %v1009 = vpop.f32.mrb[0].mxu0
  %1010 = vmatprep.mubr.bf16.mxu0 0
  %1011 = vmatmul.mubr.bf16.gmra.mrb[0].mxu0 %v584
  %v1012 = vpop.f32.mrb[0].mxu0
  %v1013 = vadd.f32 0.0, %v1012
  %v1014 = vpop.f32.mrb[0].mxu0
  %v1015 = vpop.f32.mrb[0].mxu0
  %v1016 = vadd.f32 0.0, %v1015
  %v1017 = vpop.f32.mrb[0].mxu0
  %1018 = vmatprep.mubr.bf16.mxu0 0
  %1019 = vmatmul.mubr.bf16.gmra.mrb[0].mxu0 %v585
  %v1020 = vpop.f32.mrb[0].mxu0
  %v1021 = vadd.f32 0.0, %v1020
  %v1022 = vpop.f32.mrb[0].mxu0
  %v1023 = vpop.f32.mrb[0].mxu0
  %v1024 = vadd.f32 0.0, %v1023
  %v1025 = vpop.f32.mrb[0].mxu0
  %1026 = vmatprep.mubr.bf16.mxu0 0
  %1027 = vmatmul.mubr.bf16.gmra.mrb[0].mxu0 %v586
  %v1028 = vpop.f32.mrb[0].mxu0
  %v1029 = vadd.f32 0.0, %v1028
  %v1030 = vpop.f32.mrb[0].mxu0
  %v1031 = vpop.f32.mrb[0].mxu0
  %v1032 = vadd.f32 0.0, %v1031
  %v1033 = vpop.f32.mrb[0].mxu0
  %1034 = vmatprep.mubr.bf16.mxu0 0
  %1035 = vmatmul.mubr.bf16.gmra.mrb[0].mxu0 %v587
  %v1036 = vpop.f32.mrb[0].mxu0
  %v1037 = vadd.f32 0.0, %v1036
  %v1038 = vpop.f32.mrb[0].mxu0
  %v1039 = vpop.f32.mrb[0].mxu0
  %v1040 = vadd.f32 0.0, %v1039
  %v1041 = vpop.f32.mrb[0].mxu0
  %1042 = vmatprep.mubr.bf16.mxu0 0
  %1043 = vmatmul.mubr.bf16.gmra.mrb[0].mxu0 %v588
  %v1044 = vpop.f32.mrb[0].mxu0
  %v1045 = vadd.f32 0.0, %v1044
  %v1046 = vpop.f32.mrb[0].mxu0
  %v1047 = vpop.f32.mrb[0].mxu0
  %v1048 = vadd.f32 0.0, %v1047
  %v1049 = vpop.f32.mrb[0].mxu0
  %1050 = vmatprep.mubr.bf16.mxu0 0
  %1051 = vmatmul.mubr.bf16.gmra.mrb[0].mxu0 %v589
  %v1052 = vpop.f32.mrb[0].mxu0
  %v1053 = vadd.f32 0.0, %v1052
  %v1054 = vpop.f32.mrb[0].mxu0
  %v1055 = vpop.f32.mrb[0].mxu0
  %v1056 = vadd.f32 0.0, %v1055
  %v1057 = vpop.f32.mrb[0].mxu0
  %1058 = vmatprep.mubr.bf16.mxu0 0
  %1059 = vmatmul.mubr.bf16.gmra.mrb[0].mxu0 %v590
  %v1060 = vpop.f32.mrb[0].mxu0
  %v1061 = vadd.f32 0.0, %v1060
  %v1062 = vpop.f32.mrb[0].mxu0
  %v1063 = vpop.f32.mrb[0].mxu0
  %v1064 = vadd.f32 0.0, %v1063
  %v1065 = vpop.f32.mrb[0].mxu0
  %1066 = vmatprep.mubr.bf16.mxu0 0
  %1067 = vmatmul.mubr.bf16.gmra.mrb[0].mxu0 %v591
  %v1068 = vpop.f32.mrb[0].mxu0
  %v1069 = vadd.f32 0.0, %v1068
  %v1070 = vpop.f32.mrb[0].mxu0
  %v1071 = vpop.f32.mrb[0].mxu0
  %v1072 = vadd.f32 0.0, %v1071
  %v1073 = vpop.f32.mrb[0].mxu0
  %1074 = vmatprep.mubr.bf16.mxu0 0
  %1075 = vmatmul.mubr.bf16.gmra.mrb[0].mxu0 %v592
  %v1076 = vpop.f32.mrb[0].mxu0
  %v1077 = vadd.f32 0.0, %v1076
  %v1078 = vpop.f32.mrb[0].mxu0
  %v1079 = vpop.f32.mrb[0].mxu0
  %v1080 = vadd.f32 0.0, %v1079
  %v1081 = vpop.f32.mrb[0].mxu0
  %1082 = vmatprep.mubr.bf16.mxu0 0
  %1083 = vmatmul.mubr.bf16.gmra.mrb[0].mxu0 %v593
  %v1084 = vpop.f32.mrb[0].mxu0
  %v1085 = vadd.f32 0.0, %v1084
  %v1086 = vpop.f32.mrb[0].mxu0
  %v1087 = vpop.f32.mrb[0].mxu0
  %v1088 = vadd.f32 0.0, %v1087
  %v1089 = vpop.f32.mrb[0].mxu0
  %1090 = vmatprep.mubr.bf16.mxu0 0
  %1091 = vmatmul.mubr.bf16.gmra.mrb[0].mxu0 %v594
  %v1092 = vpop.f32.mrb[0].mxu0
  %v1093 = vadd.f32 0.0, %v1092
  %v1094 = vpop.f32.mrb[0].mxu0
  %v1095 = vpop.f32.mrb[0].mxu0
  %v1096 = vadd.f32 0.0, %v1095
  %v1097 = vpop.f32.mrb[0].mxu0
  %1098 = vmatprep.mubr.bf16.mxu0 0
  %1099 = vmatmul.mubr.bf16.gmra.mrb[0].mxu0 %v595
  %v1100 = vpop.f32.mrb[0].mxu0
  %v1101 = vadd.f32 0.0, %v1100
  %v1102 = vpop.f32.mrb[0].mxu0
  %v1103 = vpop.f32.mrb[0].mxu0
  %v1104 = vadd.f32 0.0, %v1103
  %v1105 = vpop.f32.mrb[0].mxu0
  %1106 = vmatprep.mubr.bf16.mxu0 0
  %1107 = vmatmul.mubr.bf16.gmra.mrb[0].mxu0 %v596
  %v1108 = vpop.f32.mrb[0].mxu0
  %v1109 = vadd.f32 0.0, %v1108
  %v1110 = vpop.f32.mrb[0].mxu0
  %v1111 = vpop.f32.mrb[0].mxu0
  %v1112 = vadd.f32 0.0, %v1111
  %v1113 = vpop.f32.mrb[0].mxu0
  %1114 = vmatprep.mubr.bf16.mxu0 0
  %1115 = vmatmul.mubr.bf16.gmra.mrb[0].mxu0 %v597
  %v1116 = vpop.f32.mrb[0].mxu0
  %v1117 = vadd.f32 0.0, %v1116
  %v1118 = vpop.f32.mrb[0].mxu0
  %v1119 = vpop.f32.mrb[0].mxu0
  %v1120 = vadd.f32 0.0, %v1119
  %v1121 = vpop.f32.mrb[0].mxu0
  %1122 = vmatprep.mubr.bf16.mxu0 0
  %1123 = vmatmul.mubr.bf16.gmra.mrb[0].mxu0 %v598
  %v1124 = vpop.f32.mrb[0].mxu0
  %v1125 = vadd.f32 0.0, %v1124
  %v1126 = vpop.f32.mrb[0].mxu0
  %v1127 = vpop.f32.mrb[0].mxu0
  %v1128 = vadd.f32 0.0, %v1127
  %v1129 = vpop.f32.mrb[0].mxu0
  %1130 = vmatprep.mubr.bf16.mxu0 0
  %1131 = vmatmul.mubr.bf16.gmra.mrb[0].mxu0 %v599
  %v1132 = vpop.f32.mrb[0].mxu0
  %v1133 = vadd.f32 0.0, %v1132
  %v1134 = vpop.f32.mrb[0].mxu0
  %v1135 = vpop.f32.mrb[0].mxu0
  %v1136 = vadd.f32 0.0, %v1135
  %v1137 = vpop.f32.mrb[0].mxu0
  %1138 = vmatprep.mubr.bf16.mxu0 0
  %1139 = vmatmul.mubr.bf16.gmra.mrb[0].mxu0 %v600
  %v1140 = vpop.f32.mrb[0].mxu0
  %v1141 = vadd.f32 0.0, %v1140
  %v1142 = vpop.f32.mrb[0].mxu0
  %v1143 = vpop.f32.mrb[0].mxu0
  %v1144 = vadd.f32 0.0, %v1143
  %v1145 = vpop.f32.mrb[0].mxu0
  %1146 = vmatprep.mubr.bf16.mxu0 0
  %1147 = vmatmul.mubr.bf16.gmra.mrb[0].mxu0 %v601
  %v1148 = vpop.f32.mrb[0].mxu0
  %v1149 = vadd.f32 0.0, %v1148
  %v1150 = vpop.f32.mrb[0].mxu0
  %v1151 = vpop.f32.mrb[0].mxu0
  %v1152 = vadd.f32 0.0, %v1151
  %v1153 = vpop.f32.mrb[0].mxu0
  %1154 = vmatprep.mubr.bf16.mxu0 0
  %1155 = vmatmul.mubr.bf16.gmra.mrb[0].mxu0 %v602
  %v1156 = vpop.f32.mrb[0].mxu0
  %v1157 = vadd.f32 0.0, %v1156
  %v1158 = vpop.f32.mrb[0].mxu0
  %v1159 = vpop.f32.mrb[0].mxu0
  %v1160 = vadd.f32 0.0, %v1159
  %v1161 = vpop.f32.mrb[0].mxu0
  %1162 = vmatprep.mubr.bf16.mxu0 0
  %1163 = vmatmul.mubr.bf16.gmra.mrb[0].mxu0 %v603
  %v1164 = vpop.f32.mrb[0].mxu0
  %v1165 = vadd.f32 0.0, %v1164
  %v1166 = vpop.f32.mrb[0].mxu0
  %v1167 = vpop.f32.mrb[0].mxu0
  %v1168 = vadd.f32 0.0, %v1167
  %v1169 = vpop.f32.mrb[0].mxu0
  %1170 = vmatprep.mubr.bf16.mxu0 0
  %1171 = vmatmul.mubr.bf16.gmra.mrb[0].mxu0 %v604
  %v1172 = vpop.f32.mrb[0].mxu0
  %v1173 = vadd.f32 0.0, %v1172
  %v1174 = vpop.f32.mrb[0].mxu0
  %v1175 = vpop.f32.mrb[0].mxu0
  %v1176 = vadd.f32 0.0, %v1175
  %v1177 = vpop.f32.mrb[0].mxu0
  %1178 = vmatprep.mubr.bf16.mxu0 0
  %1179 = vmatmul.mubr.bf16.gmra.mrb[0].mxu0 %v605
  %v1180 = vpop.f32.mrb[0].mxu0
  %v1181 = vadd.f32 0.0, %v1180
  %v1182 = vpop.f32.mrb[0].mxu0
  %v1183 = vpop.f32.mrb[0].mxu0
  %v1184 = vadd.f32 0.0, %v1183
  %v1185 = vpop.f32.mrb[0].mxu0
  %1186 = vmatprep.mubr.bf16.mxu0 0
  %1187 = vmatmul.mubr.bf16.gmra.mrb[0].mxu0 %v606
  %v1188 = vpop.f32.mrb[0].mxu0
  %v1189 = vadd.f32 0.0, %v1188
  %v1190 = vpop.f32.mrb[0].mxu0
  %v1191 = vpop.f32.mrb[0].mxu0
  %v1192 = vadd.f32 0.0, %v1191
  %v1193 = vpop.f32.mrb[0].mxu0
  %1194 = vmatprep.mubr.bf16.mxu0 0
  %1195 = vmatmul.mubr.bf16.gmra.mrb[0].mxu0 %v607
  %v1196 = vpop.f32.mrb[0].mxu0
  %v1197 = vadd.f32 0.0, %v1196
  %v1198 = vpop.f32.mrb[0].mxu0
  %v1199 = vpop.f32.mrb[0].mxu0
  %v1200 = vadd.f32 0.0, %v1199
  %v1201 = vpop.f32.mrb[0].mxu0
  %1202 = vmatprep.mubr.bf16.mxu0 0
  %1203 = vmatmul.mubr.bf16.gmra.mrb[0].mxu0 %v608
  %v1204 = vpop.f32.mrb[0].mxu0
  %v1205 = vadd.f32 0.0, %v1204
  %v1206 = vpop.f32.mrb[0].mxu0
  %v1207 = vpop.f32.mrb[0].mxu0
  %v1208 = vadd.f32 0.0, %v1207
  %v1209 = vpop.f32.mrb[0].mxu0
  %1210 = vmatprep.mubr.bf16.mxu0 0
  %1211 = vmatmul.mubr.bf16.gmra.mrb[0].mxu0 %v609
  %v1212 = vpop.f32.mrb[0].mxu0
  %v1213 = vadd.f32 0.0, %v1212
  %v1214 = vpop.f32.mrb[0].mxu0
  %v1215 = vpop.f32.mrb[0].mxu0
  %v1216 = vadd.f32 0.0, %v1215
  %v1217 = vpop.f32.mrb[0].mxu0
  %1218 = vdwg.mxu0
  %1219 = vst [vmem:[%s4] sm:$0xff] %v709
  %1220 = vst [vmem:[%s4 + $0x8] sm:$0xff] %v712
  %1221 = vst [vmem:[%s4 + $0x10] sm:$0xff] %v717
  %1222 = vst [vmem:[%s4 + $0x18] sm:$0xff] %v720
  %1223 = vst [vmem:[%s4 + $0x20] sm:$0xff] %v725
  %1224 = vst [vmem:[%s4 + $0x28] sm:$0xff] %v728
  %1225 = vst [vmem:[%s4 + $0x30] sm:$0xff] %v733
  %1226 = vst [vmem:[%s4 + $0x38] sm:$0xff] %v736
  %1227 = vst [vmem:[%s4 + $0x40] sm:$0xff] %v741
  %1228 = vst [vmem:[%s4 + $0x48] sm:$0xff] %v744
  %1229 = vst [vmem:[%s4 + $0x50] sm:$0xff] %v749
  %1230 = vst [vmem:[%s4 + $0x58] sm:$0xff] %v752
  %1231 = vst [vmem:[%s4 + $0x60] sm:$0xff] %v757
  %1232 = vst [vmem:[%s4 + $0x68] sm:$0xff] %v760
  %1233 = vst [vmem:[%s4 + $0x70] sm:$0xff] %v765
  %1234 = vst [vmem:[%s4 + $0x78] sm:$0xff] %v768
  %1235 = vst [vmem:[%s4 + $0x80] sm:$0xff] %v773
  %1236 = vst [vmem:[%s4 + $0x88] sm:$0xff] %v776
  %1237 = vst [vmem:[%s4 + $0x90] sm:$0xff] %v781
  %1238 = vst [vmem:[%s4 + $0x98] sm:$0xff] %v784
  %1239 = vst [vmem:[%s4 + $0xa0] sm:$0xff] %v789
  %1240 = vst [vmem:[%s4 + $0xa8] sm:$0xff] %v792
  %1241 = vst [vmem:[%s4 + $0xb0] sm:$0xff] %v797
  %1242 = vst [vmem:[%s4 + $0xb8] sm:$0xff] %v800
  %1243 = vst [vmem:[%s4 + $0xc0] sm:$0xff] %v805
  %1244 = vst [vmem:[%s4 + $0xc8] sm:$0xff] %v808
  %1245 = vst [vmem:[%s4 + $0xd0] sm:$0xff] %v813
  %1246 = vst [vmem:[%s4 + $0xd8] sm:$0xff] %v816
  %1247 = vst [vmem:[%s4 + $0xe0] sm:$0xff] %v821
  %1248 = vst [vmem:[%s4 + $0xe8] sm:$0xff] %v824
  %1249 = vst [vmem:[%s4 + $0xf0] sm:$0xff] %v829
  %1250 = vst [vmem:[%s4 + $0xf8] sm:$0xff] %v832
  %1251 = vst [vmem:[%s4 + $0x100] sm:$0xff] %v837
  %1252 = vst [vmem:[%s4 + $0x108] sm:$0xff] %v840
  %1253 = vst [vmem:[%s4 + $0x110] sm:$0xff] %v845
  %1254 = vst [vmem:[%s4 + $0x118] sm:$0xff] %v848
  %1255 = vst [vmem:[%s4 + $0x120] sm:$0xff] %v853
  %1256 = vst [vmem:[%s4 + $0x128] sm:$0xff] %v856
  %1257 = vst [vmem:[%s4 + $0x130] sm:$0xff] %v861
  %1258 = vst [vmem:[%s4 + $0x138] sm:$0xff] %v864
  %1259 = vst [vmem:[%s4 + $0x140] sm:$0xff] %v869
  %1260 = vst [vmem:[%s4 + $0x148] sm:$0xff] %v872
  %1261 = vst [vmem:[%s4 + $0x150] sm:$0xff] %v877
  %1262 = vst [vmem:[%s4 + $0x158] sm:$0xff] %v880
  %1263 = vst [vmem:[%s4 + $0x160] sm:$0xff] %v885
  %1264 = vst [vmem:[%s4 + $0x168] sm:$0xff] %v888
  %1265 = vst [vmem:[%s4 + $0x170] sm:$0xff] %v893
  %1266 = vst [vmem:[%s4 + $0x178] sm:$0xff] %v896
  %1267 = vst [vmem:[%s4 + $0x180] sm:$0xff] %v901
  %1268 = vst [vmem:[%s4 + $0x188] sm:$0xff] %v904
  %1269 = vst [vmem:[%s4 + $0x190] sm:$0xff] %v909
  %1270 = vst [vmem:[%s4 + $0x198] sm:$0xff] %v912
  %1271 = vst [vmem:[%s4 + $0x1a0] sm:$0xff] %v917
  %1272 = vst [vmem:[%s4 + $0x1a8] sm:$0xff] %v920
  %1273 = vst [vmem:[%s4 + $0x1b0] sm:$0xff] %v925
  %1274 = vst [vmem:[%s4 + $0x1b8] sm:$0xff] %v928
  %1275 = vst [vmem:[%s4 + $0x1c0] sm:$0xff] %v933
  %1276 = vst [vmem:[%s4 + $0x1c8] sm:$0xff] %v936
  %1277 = vst [vmem:[%s4 + $0x1d0] sm:$0xff] %v941
  %1278 = vst [vmem:[%s4 + $0x1d8] sm:$0xff] %v944
  %1279 = vst [vmem:[%s4 + $0x1e0] sm:$0xff] %v949
  %1280 = vst [vmem:[%s4 + $0x1e8] sm:$0xff] %v952
  %1281 = vst [vmem:[%s4 + $0x1f0] sm:$0xff] %v957
  %1282 = vst [vmem:[%s4 + $0x1f8] sm:$0xff] %v960
  %1283 = vst [vmem:[%s4 + $0x200] sm:$0xff] %v965
  %1284 = vst [vmem:[%s4 + $0x208] sm:$0xff] %v968
  %1285 = vst [vmem:[%s4 + $0x210] sm:$0xff] %v973
  %1286 = vst [vmem:[%s4 + $0x218] sm:$0xff] %v976
  %1287 = vst [vmem:[%s4 + $0x220] sm:$0xff] %v981
  %1288 = vst [vmem:[%s4 + $0x228] sm:$0xff] %v984
  %1289 = vst [vmem:[%s4 + $0x230] sm:$0xff] %v989
  %1290 = vst [vmem:[%s4 + $0x238] sm:$0xff] %v992
  %1291 = vst [vmem:[%s4 + $0x240] sm:$0xff] %v997
  %1292 = vst [vmem:[%s4 + $0x248] sm:$0xff] %v1000
  %1293 = vst [vmem:[%s4 + $0x250] sm:$0xff] %v1005
  %1294 = vst [vmem:[%s4 + $0x258] sm:$0xff] %v1008
  %1295 = vst [vmem:[%s4 + $0x260] sm:$0xff] %v1013
  %1296 = vst [vmem:[%s4 + $0x268] sm:$0xff] %v1016
  %1297 = vst [vmem:[%s4 + $0x270] sm:$0xff] %v1021
  %1298 = vst [vmem:[%s4 + $0x278] sm:$0xff] %v1024
  %1299 = vst [vmem:[%s4 + $0x280] sm:$0xff] %v1029
  %1300 = vst [vmem:[%s4 + $0x288] sm:$0xff] %v1032
  %1301 = vst [vmem:[%s4 + $0x290] sm:$0xff] %v1037
  %1302 = vst [vmem:[%s4 + $0x298] sm:$0xff] %v1040
  %1303 = vst [vmem:[%s4 + $0x2a0] sm:$0xff] %v1045
  %1304 = vst [vmem:[%s4 + $0x2a8] sm:$0xff] %v1048
  %1305 = vst [vmem:[%s4 + $0x2b0] sm:$0xff] %v1053
  %1306 = vst [vmem:[%s4 + $0x2b8] sm:$0xff] %v1056
  %1307 = vst [vmem:[%s4 + $0x2c0] sm:$0xff] %v1061
  %1308 = vst [vmem:[%s4 + $0x2c8] sm:$0xff] %v1064
  %1309 = vst [vmem:[%s4 + $0x2d0] sm:$0xff] %v1069
  %1310 = vst [vmem:[%s4 + $0x2d8] sm:$0xff] %v1072
  %1311 = vst [vmem:[%s4 + $0x2e0] sm:$0xff] %v1077
  %1312 = vst [vmem:[%s4 + $0x2e8] sm:$0xff] %v1080
  %1313 = vst [vmem:[%s4 + $0x2f0] sm:$0xff] %v1085
  %1314 = vst [vmem:[%s4 + $0x2f8] sm:$0xff] %v1088
  %1315 = vst [vmem:[%s4 + $0x300] sm:$0xff] %v1093
  %1316 = vst [vmem:[%s4 + $0x308] sm:$0xff] %v1096
  %1317 = vst [vmem:[%s4 + $0x310] sm:$0xff] %v1101
  %1318 = vst [vmem:[%s4 + $0x318] sm:$0xff] %v1104
  %1319 = vst [vmem:[%s4 + $0x320] sm:$0xff] %v1109
  %1320 = vst [vmem:[%s4 + $0x328] sm:$0xff] %v1112
  %1321 = vst [vmem:[%s4 + $0x330] sm:$0xff] %v1117
  %1322 = vst [vmem:[%s4 + $0x338] sm:$0xff] %v1120
  %1323 = vst [vmem:[%s4 + $0x340] sm:$0xff] %v1125
  %1324 = vst [vmem:[%s4 + $0x348] sm:$0xff] %v1128
  %1325 = vst [vmem:[%s4 + $0x350] sm:$0xff] %v1133
  %1326 = vst [vmem:[%s4 + $0x358] sm:$0xff] %v1136
  %1327 = vst [vmem:[%s4 + $0x360] sm:$0xff] %v1141
  %1328 = vst [vmem:[%s4 + $0x368] sm:$0xff] %v1144
  %1329 = vst [vmem:[%s4 + $0x370] sm:$0xff] %v1149
  %1330 = vst [vmem:[%s4 + $0x378] sm:$0xff] %v1152
  %1331 = vst [vmem:[%s4 + $0x380] sm:$0xff] %v1157
  %1332 = vst [vmem:[%s4 + $0x388] sm:$0xff] %v1160
  %1333 = vst [vmem:[%s4 + $0x390] sm:$0xff] %v1165
  %1334 = vst [vmem:[%s4 + $0x398] sm:$0xff] %v1168
  %1335 = vst [vmem:[%s4 + $0x3a0] sm:$0xff] %v1173
  %1336 = vst [vmem:[%s4 + $0x3a8] sm:$0xff] %v1176
  %1337 = vst [vmem:[%s4 + $0x3b0] sm:$0xff] %v1181
  %1338 = vst [vmem:[%s4 + $0x3b8] sm:$0xff] %v1184
  %1339 = vst [vmem:[%s4 + $0x3c0] sm:$0xff] %v1189
  %1340 = vst [vmem:[%s4 + $0x3c8] sm:$0xff] %v1192
  %1341 = vst [vmem:[%s4 + $0x3d0] sm:$0xff] %v1197
  %1342 = vst [vmem:[%s4 + $0x3d8] sm:$0xff] %v1200
  %1343 = vst [vmem:[%s4 + $0x3e0] sm:$0xff] %v1205
  %1344 = vst [vmem:[%s4 + $0x3e8] sm:$0xff] %v1208
  %1345 = vst [vmem:[%s4 + $0x3f0] sm:$0xff] %v1213
  %1346 = vst [vmem:[%s4 + $0x3f8] sm:$0xff] %v1216
  %v1347 = vadd.f32 %v709, %v712
  %v1348 = vadd.f32 %v1347, %v717
  %v1349 = vadd.f32 %v1348, %v720
  %v1350 = vadd.f32 %v1349, %v725
  %v1351 = vadd.f32 %v1350, %v728
  %v1352 = vadd.f32 %v1351, %v733
  %v1353 = vadd.f32 %v1352, %v736
  %v1354 = vadd.f32 %v1353, %v741
  %v1355 = vadd.f32 %v1354, %v744
  %v1356 = vadd.f32 %v1355, %v749
  %v1357 = vadd.f32 %v1356, %v752
  %v1358 = vadd.f32 %v1357, %v757
  %v1359 = vadd.f32 %v1358, %v760
  %v1360 = vadd.f32 %v1359, %v765
  %v1361 = vadd.f32 %v1360, %v768
  %v1362 = vadd.f32 %v1361, %v773
  %v1363 = vadd.f32 %v1362, %v776
  %v1364 = vadd.f32 %v1363, %v781
  %v1365 = vadd.f32 %v1364, %v784
  %v1366 = vadd.f32 %v1365, %v789
  %v1367 = vadd.f32 %v1366, %v792
  %v1368 = vadd.f32 %v1367, %v797
  %v1369 = vadd.f32 %v1368, %v800
  %v1370 = vadd.f32 %v1369, %v805
  %v1371 = vadd.f32 %v1370, %v808
  %v1372 = vadd.f32 %v1371, %v813
  %v1373 = vadd.f32 %v1372, %v816
  %v1374 = vadd.f32 %v1373, %v821
  %v1375 = vadd.f32 %v1374, %v824
  %v1376 = vadd.f32 %v1375, %v829
  %v1377 = vadd.f32 %v1376, %v832
  %v1378 = vadd.f32 %v1377, %v837
  %v1379 = vadd.f32 %v1378, %v840
  %v1380 = vadd.f32 %v1379, %v845
  %v1381 = vadd.f32 %v1380, %v848
  %v1382 = vadd.f32 %v1381, %v853
  %v1383 = vadd.f32 %v1382, %v856
  %v1384 = vadd.f32 %v1383, %v861
  %v1385 = vadd.f32 %v1384, %v864
  %v1386 = vadd.f32 %v1385, %v869
  %v1387 = vadd.f32 %v1386, %v872
  %v1388 = vadd.f32 %v1387, %v877
  %v1389 = vadd.f32 %v1388, %v880
  %v1390 = vadd.f32 %v1389, %v885
  %v1391 = vadd.f32 %v1390, %v888
  %v1392 = vadd.f32 %v1391, %v893
  %v1393 = vadd.f32 %v1392, %v896
  %v1394 = vadd.f32 %v1393, %v901
  %v1395 = vadd.f32 %v1394, %v904
  %v1396 = vadd.f32 %v1395, %v909
  %v1397 = vadd.f32 %v1396, %v912
  %v1398 = vadd.f32 %v1397, %v917
  %v1399 = vadd.f32 %v1398, %v920
  %v1400 = vadd.f32 %v1399, %v925
  %v1401 = vadd.f32 %v1400, %v928
  %v1402 = vadd.f32 %v1401, %v933
  %v1403 = vadd.f32 %v1402, %v936
  %v1404 = vadd.f32 %v1403, %v941
  %v1405 = vadd.f32 %v1404, %v944
  %v1406 = vadd.f32 %v1405, %v949
  %v1407 = vadd.f32 %v1406, %v952
  %v1408 = vadd.f32 %v1407, %v957
  %v1409 = vadd.f32 %v1408, %v960
  %v1410 = vadd.f32 %v1409, %v965
  %v1411 = vadd.f32 %v1410, %v968
  %v1412 = vadd.f32 %v1411, %v973
  %v1413 = vadd.f32 %v1412, %v976
  %v1414 = vadd.f32 %v1413, %v981
  %v1415 = vadd.f32 %v1414, %v984
  %v1416 = vadd.f32 %v1415, %v989
  %v1417 = vadd.f32 %v1416, %v992
  %v1418 = vadd.f32 %v1417, %v997
  %v1419 = vadd.f32 %v1418, %v1000
  %v1420 = vadd.f32 %v1419, %v1005
  %v1421 = vadd.f32 %v1420, %v1008
  %v1422 = vadd.f32 %v1421, %v1013
  %v1423 = vadd.f32 %v1422, %v1016
  %v1424 = vadd.f32 %v1423, %v1021
  %v1425 = vadd.f32 %v1424, %v1024
  %v1426 = vadd.f32 %v1425, %v1029
  %v1427 = vadd.f32 %v1426, %v1032
  %v1428 = vadd.f32 %v1427, %v1037
  %v1429 = vadd.f32 %v1428, %v1040
  %v1430 = vadd.f32 %v1429, %v1045
  %v1431 = vadd.f32 %v1430, %v1048
  %v1432 = vadd.f32 %v1431, %v1053
  %v1433 = vadd.f32 %v1432, %v1056
  %v1434 = vadd.f32 %v1433, %v1061
  %v1435 = vadd.f32 %v1434, %v1064
  %v1436 = vadd.f32 %v1435, %v1069
  %v1437 = vadd.f32 %v1436, %v1072
  %v1438 = vadd.f32 %v1437, %v1077
  %v1439 = vadd.f32 %v1438, %v1080
  %v1440 = vadd.f32 %v1439, %v1085
  %v1441 = vadd.f32 %v1440, %v1088
  %v1442 = vadd.f32 %v1441, %v1093
  %v1443 = vadd.f32 %v1442, %v1096
  %v1444 = vadd.f32 %v1443, %v1101
  %v1445 = vadd.f32 %v1444, %v1104
  %v1446 = vadd.f32 %v1445, %v1109
  %v1447 = vadd.f32 %v1446, %v1112
  %v1448 = vadd.f32 %v1447, %v1117
  %v1449 = vadd.f32 %v1448, %v1120
  %v1450 = vadd.f32 %v1449, %v1125
  %v1451 = vadd.f32 %v1450, %v1128
  %v1452 = vadd.f32 %v1451, %v1133
  %v1453 = vadd.f32 %v1452, %v1136
  %v1454 = vadd.f32 %v1453, %v1141
  %v1455 = vadd.f32 %v1454, %v1144
  %v1456 = vadd.f32 %v1455, %v1149
  %v1457 = vadd.f32 %v1456, %v1152
  %v1458 = vadd.f32 %v1457, %v1157
  %v1459 = vadd.f32 %v1458, %v1160
  %v1460 = vadd.f32 %v1459, %v1165
  %v1461 = vadd.f32 %v1460, %v1168
  %v1462 = vadd.f32 %v1461, %v1173
  %v1463 = vadd.f32 %v1462, %v1176
  %v1464 = vadd.f32 %v1463, %v1181
  %v1465 = vadd.f32 %v1464, %v1184
  %v1466 = vadd.f32 %v1465, %v1189
  %v1467 = vadd.f32 %v1466, %v1192
  %v1468 = vadd.f32 %v1467, %v1197
  %v1469 = vadd.f32 %v1468, %v1200
  %v1470 = vadd.f32 %v1469, %v1205
  %v1471 = vadd.f32 %v1470, %v1208
  %v1472 = vadd.f32 %v1471, %v1213
  %v1473 = vadd.f32 %v1472, %v1216
  %v1474 = vrot.slane %v1473, 4
  %v1475 = vadd.f32 %v1473, %v1474
  %v1476 = vrot.slane %v1475, 2
  %v1477 = vadd.f32 %v1475, %v1476
  %v1478 = vrot.slane %v1477, 1
  %v1479 = vadd.f32 %v1477, %v1478
  %1480 = vst [vmem:[%s5] sm:$0x1] %v1479
  %v1481 = vmul.f32 %v709, %v709
  %v1482 = vmul.f32 %v712, %v712
  %v1483 = vmul.f32 %v717, %v717
  %v1484 = vmul.f32 %v720, %v720
  %v1485 = vmul.f32 %v725, %v725
  %v1486 = vmul.f32 %v728, %v728
  %v1487 = vmul.f32 %v733, %v733
  %v1488 = vmul.f32 %v736, %v736
  %v1489 = vmul.f32 %v741, %v741
  %v1490 = vmul.f32 %v744, %v744
  %v1491 = vmul.f32 %v749, %v749
  %v1492 = vmul.f32 %v752, %v752
  %v1493 = vmul.f32 %v757, %v757
  %v1494 = vmul.f32 %v760, %v760
  %v1495 = vmul.f32 %v765, %v765
  %v1496 = vmul.f32 %v768, %v768
  %v1497 = vmul.f32 %v773, %v773
  %v1498 = vmul.f32 %v776, %v776
  %v1499 = vmul.f32 %v781, %v781
  %v1500 = vmul.f32 %v784, %v784
  %v1501 = vmul.f32 %v789, %v789
  %v1502 = vmul.f32 %v792, %v792
  %v1503 = vmul.f32 %v797, %v797
  %v1504 = vmul.f32 %v800, %v800
  %v1505 = vmul.f32 %v805, %v805
  %v1506 = vmul.f32 %v808, %v808
  %v1507 = vmul.f32 %v813, %v813
  %v1508 = vmul.f32 %v816, %v816
  %v1509 = vmul.f32 %v821, %v821
  %v1510 = vmul.f32 %v824, %v824
  %v1511 = vmul.f32 %v829, %v829
  %v1512 = vmul.f32 %v832, %v832
  %v1513 = vmul.f32 %v837, %v837
  %v1514 = vmul.f32 %v840, %v840
  %v1515 = vmul.f32 %v845, %v845
  %v1516 = vmul.f32 %v848, %v848
  %v1517 = vmul.f32 %v853, %v853
  %v1518 = vmul.f32 %v856, %v856
  %v1519 = vmul.f32 %v861, %v861
  %v1520 = vmul.f32 %v864, %v864
  %v1521 = vmul.f32 %v869, %v869
  %v1522 = vmul.f32 %v872, %v872
  %v1523 = vmul.f32 %v877, %v877
  %v1524 = vmul.f32 %v880, %v880
  %v1525 = vmul.f32 %v885, %v885
  %v1526 = vmul.f32 %v888, %v888
  %v1527 = vmul.f32 %v893, %v893
  %v1528 = vmul.f32 %v896, %v896
  %v1529 = vmul.f32 %v901, %v901
  %v1530 = vmul.f32 %v904, %v904
  %v1531 = vmul.f32 %v909, %v909
  %v1532 = vmul.f32 %v912, %v912
  %v1533 = vmul.f32 %v917, %v917
  %v1534 = vmul.f32 %v920, %v920
  %v1535 = vmul.f32 %v925, %v925
  %v1536 = vmul.f32 %v928, %v928
  %v1537 = vmul.f32 %v933, %v933
  %v1538 = vmul.f32 %v936, %v936
  %v1539 = vmul.f32 %v941, %v941
  %v1540 = vmul.f32 %v944, %v944
  %v1541 = vmul.f32 %v949, %v949
  %v1542 = vmul.f32 %v952, %v952
  %v1543 = vmul.f32 %v957, %v957
  %v1544 = vmul.f32 %v960, %v960
  %v1545 = vmul.f32 %v965, %v965
  %v1546 = vmul.f32 %v968, %v968
  %v1547 = vmul.f32 %v973, %v973
  %v1548 = vmul.f32 %v976, %v976
  %v1549 = vmul.f32 %v981, %v981
  %v1550 = vmul.f32 %v984, %v984
  %v1551 = vmul.f32 %v989, %v989
  %v1552 = vmul.f32 %v992, %v992
  %v1553 = vmul.f32 %v997, %v997
  %v1554 = vmul.f32 %v1000, %v1000
  %v1555 = vmul.f32 %v1005, %v1005
  %v1556 = vmul.f32 %v1008, %v1008
  %v1557 = vmul.f32 %v1013, %v1013
  %v1558 = vmul.f32 %v1016, %v1016
  %v1559 = vmul.f32 %v1021, %v1021
  %v1560 = vmul.f32 %v1024, %v1024
  %v1561 = vmul.f32 %v1029, %v1029
  %v1562 = vmul.f32 %v1032, %v1032
  %v1563 = vmul.f32 %v1037, %v1037
  %v1564 = vmul.f32 %v1040, %v1040
  %v1565 = vmul.f32 %v1045, %v1045
  %v1566 = vmul.f32 %v1048, %v1048
  %v1567 = vmul.f32 %v1053, %v1053
  %v1568 = vmul.f32 %v1056, %v1056
  %v1569 = vmul.f32 %v1061, %v1061
  %v1570 = vmul.f32 %v1064, %v1064
  %v1571 = vmul.f32 %v1069, %v1069
  %v1572 = vmul.f32 %v1072, %v1072
  %v1573 = vmul.f32 %v1077, %v1077
  %v1574 = vmul.f32 %v1080, %v1080
  %v1575 = vmul.f32 %v1085, %v1085
  %v1576 = vmul.f32 %v1088, %v1088
  %v1577 = vmul.f32 %v1093, %v1093
  %v1578 = vmul.f32 %v1096, %v1096
  %v1579 = vmul.f32 %v1101, %v1101
  %v1580 = vmul.f32 %v1104, %v1104
  %v1581 = vmul.f32 %v1109, %v1109
  %v1582 = vmul.f32 %v1112, %v1112
  %v1583 = vmul.f32 %v1117, %v1117
  %v1584 = vmul.f32 %v1120, %v1120
  %v1585 = vmul.f32 %v1125, %v1125
  %v1586 = vmul.f32 %v1128, %v1128
  %v1587 = vmul.f32 %v1133, %v1133
  %v1588 = vmul.f32 %v1136, %v1136
  %v1589 = vmul.f32 %v1141, %v1141
  %v1590 = vmul.f32 %v1144, %v1144
  %v1591 = vmul.f32 %v1149, %v1149
  %v1592 = vmul.f32 %v1152, %v1152
  %v1593 = vmul.f32 %v1157, %v1157
  %v1594 = vmul.f32 %v1160, %v1160
  %v1595 = vmul.f32 %v1165, %v1165
  %v1596 = vmul.f32 %v1168, %v1168
  %v1597 = vmul.f32 %v1173, %v1173
  %v1598 = vmul.f32 %v1176, %v1176
  %v1599 = vmul.f32 %v1181, %v1181
  %v1600 = vmul.f32 %v1184, %v1184
  %v1601 = vmul.f32 %v1189, %v1189
  %v1602 = vmul.f32 %v1192, %v1192
  %v1603 = vmul.f32 %v1197, %v1197
  %v1604 = vmul.f32 %v1200, %v1200
  %v1605 = vmul.f32 %v1205, %v1205
  %v1606 = vmul.f32 %v1208, %v1208
  %v1607 = vmul.f32 %v1213, %v1213
  %v1608 = vmul.f32 %v1216, %v1216
  %v1609 = vadd.f32 %v1481, %v1482
  %v1610 = vadd.f32 %v1609, %v1483
  %v1611 = vadd.f32 %v1610, %v1484
  %v1612 = vadd.f32 %v1611, %v1485
  %v1613 = vadd.f32 %v1612, %v1486
  %v1614 = vadd.f32 %v1613, %v1487
  %v1615 = vadd.f32 %v1614, %v1488
  %v1616 = vadd.f32 %v1615, %v1489
  %v1617 = vadd.f32 %v1616, %v1490
  %v1618 = vadd.f32 %v1617, %v1491
  %v1619 = vadd.f32 %v1618, %v1492
  %v1620 = vadd.f32 %v1619, %v1493
  %v1621 = vadd.f32 %v1620, %v1494
  %v1622 = vadd.f32 %v1621, %v1495
  %v1623 = vadd.f32 %v1622, %v1496
  %v1624 = vadd.f32 %v1623, %v1497
  %v1625 = vadd.f32 %v1624, %v1498
  %v1626 = vadd.f32 %v1625, %v1499
  %v1627 = vadd.f32 %v1626, %v1500
  %v1628 = vadd.f32 %v1627, %v1501
  %v1629 = vadd.f32 %v1628, %v1502
  %v1630 = vadd.f32 %v1629, %v1503
  %v1631 = vadd.f32 %v1630, %v1504
  %v1632 = vadd.f32 %v1631, %v1505
  %v1633 = vadd.f32 %v1632, %v1506
  %v1634 = vadd.f32 %v1633, %v1507
  %v1635 = vadd.f32 %v1634, %v1508
  %v1636 = vadd.f32 %v1635, %v1509
  %v1637 = vadd.f32 %v1636, %v1510
  %v1638 = vadd.f32 %v1637, %v1511
  %v1639 = vadd.f32 %v1638, %v1512
  %v1640 = vadd.f32 %v1639, %v1513
  %v1641 = vadd.f32 %v1640, %v1514
  %v1642 = vadd.f32 %v1641, %v1515
  %v1643 = vadd.f32 %v1642, %v1516
  %v1644 = vadd.f32 %v1643, %v1517
  %v1645 = vadd.f32 %v1644, %v1518
  %v1646 = vadd.f32 %v1645, %v1519
  %v1647 = vadd.f32 %v1646, %v1520
  %v1648 = vadd.f32 %v1647, %v1521
  %v1649 = vadd.f32 %v1648, %v1522
  %v1650 = vadd.f32 %v1649, %v1523
  %v1651 = vadd.f32 %v1650, %v1524
  %v1652 = vadd.f32 %v1651, %v1525
  %v1653 = vadd.f32 %v1652, %v1526
  %v1654 = vadd.f32 %v1653, %v1527
  %v1655 = vadd.f32 %v1654, %v1528
  %v1656 = vadd.f32 %v1655, %v1529
  %v1657 = vadd.f32 %v1656, %v1530
  %v1658 = vadd.f32 %v1657, %v1531
  %v1659 = vadd.f32 %v1658, %v1532
  %v1660 = vadd.f32 %v1659, %v1533
  %v1661 = vadd.f32 %v1660, %v1534
  %v1662 = vadd.f32 %v1661, %v1535
  %v1663 = vadd.f32 %v1662, %v1536
  %v1664 = vadd.f32 %v1663, %v1537
  %v1665 = vadd.f32 %v1664, %v1538
  %v1666 = vadd.f32 %v1665, %v1539
  %v1667 = vadd.f32 %v1666, %v1540
  %v1668 = vadd.f32 %v1667, %v1541
  %v1669 = vadd.f32 %v1668, %v1542
  %v1670 = vadd.f32 %v1669, %v1543
  %v1671 = vadd.f32 %v1670, %v1544
  %v1672 = vadd.f32 %v1671, %v1545
  %v1673 = vadd.f32 %v1672, %v1546
  %v1674 = vadd.f32 %v1673, %v1547
  %v1675 = vadd.f32 %v1674, %v1548
  %v1676 = vadd.f32 %v1675, %v1549
  %v1677 = vadd.f32 %v1676, %v1550
  %v1678 = vadd.f32 %v1677, %v1551
  %v1679 = vadd.f32 %v1678, %v1552
  %v1680 = vadd.f32 %v1679, %v1553
  %v1681 = vadd.f32 %v1680, %v1554
  %v1682 = vadd.f32 %v1681, %v1555
  %v1683 = vadd.f32 %v1682, %v1556
  %v1684 = vadd.f32 %v1683, %v1557
  %v1685 = vadd.f32 %v1684, %v1558
  %v1686 = vadd.f32 %v1685, %v1559
  %v1687 = vadd.f32 %v1686, %v1560
  %v1688 = vadd.f32 %v1687, %v1561
  %v1689 = vadd.f32 %v1688, %v1562
  %v1690 = vadd.f32 %v1689, %v1563
  %v1691 = vadd.f32 %v1690, %v1564
  %v1692 = vadd.f32 %v1691, %v1565
  %v1693 = vadd.f32 %v1692, %v1566
  %v1694 = vadd.f32 %v1693, %v1567
  %v1695 = vadd.f32 %v1694, %v1568
  %v1696 = vadd.f32 %v1695, %v1569
  %v1697 = vadd.f32 %v1696, %v1570
  %v1698 = vadd.f32 %v1697, %v1571
  %v1699 = vadd.f32 %v1698, %v1572
  %v1700 = vadd.f32 %v1699, %v1573
  %v1701 = vadd.f32 %v1700, %v1574
  %v1702 = vadd.f32 %v1701, %v1575
  %v1703 = vadd.f32 %v1702, %v1576
  %v1704 = vadd.f32 %v1703, %v1577
  %v1705 = vadd.f32 %v1704, %v1578
  %v1706 = vadd.f32 %v1705, %v1579
  %v1707 = vadd.f32 %v1706, %v1580
  %v1708 = vadd.f32 %v1707, %v1581
  %v1709 = vadd.f32 %v1708, %v1582
  %v1710 = vadd.f32 %v1709, %v1583
  %v1711 = vadd.f32 %v1710, %v1584
  %v1712 = vadd.f32 %v1711, %v1585
  %v1713 = vadd.f32 %v1712, %v1586
  %v1714 = vadd.f32 %v1713, %v1587
  %v1715 = vadd.f32 %v1714, %v1588
  %v1716 = vadd.f32 %v1715, %v1589
  %v1717 = vadd.f32 %v1716, %v1590
  %v1718 = vadd.f32 %v1717, %v1591
  %v1719 = vadd.f32 %v1718, %v1592
  %v1720 = vadd.f32 %v1719, %v1593
  %v1721 = vadd.f32 %v1720, %v1594
  %v1722 = vadd.f32 %v1721, %v1595
  %v1723 = vadd.f32 %v1722, %v1596
  %v1724 = vadd.f32 %v1723, %v1597
  %v1725 = vadd.f32 %v1724, %v1598
  %v1726 = vadd.f32 %v1725, %v1599
  %v1727 = vadd.f32 %v1726, %v1600
  %v1728 = vadd.f32 %v1727, %v1601
  %v1729 = vadd.f32 %v1728, %v1602
  %v1730 = vadd.f32 %v1729, %v1603
  %v1731 = vadd.f32 %v1730, %v1604
  %v1732 = vadd.f32 %v1731, %v1605
  %v1733 = vadd.f32 %v1732, %v1606
  %v1734 = vadd.f32 %v1733, %v1607
  %v1735 = vadd.f32 %v1734, %v1608
  %v1736 = vrot.slane %v1735, 4
  %v1737 = vadd.f32 %v1735, %v1736
  %v1738 = vrot.slane %v1737, 2
  %v1739 = vadd.f32 %v1737, %v1738
  %v1740 = vrot.slane %v1739, 1
  %v1741 = vadd.f32 %v1739, %v1740
  %1742 = vst [vmem:[%s5 + $0x1] sm:$0x1] %v1741
  // Predicated region
  $region18: #{bottleneck_block3d_l.8} parent=0 // pred_check
    _
  $region19: #{bottleneck_block3d_l.8} parent=0 // pred_check_branch
    %1744 = sbr.rel (0) target = $region21
  $region20: #{bottleneck_block3d_l.8} parent=0 // pred_region
    _
  $region21: #{bottleneck_block3d_l.8} parent=0 // pred_fallthru
    _
  // Predicated region
  $region22: #{bottleneck_block3d_l.8} parent=0 // pred_check
    _
  $region23: #{bottleneck_block3d_l.8} parent=0 // pred_check_branch
    %1746 = sbr.rel (0) target = $region25
  $region24: #{bottleneck_block3d_l.8} parent=0 // pred_region
    _
  $region25: #{bottleneck_block3d_l.8} parent=0 // pred_fallthru
    _
  // Predicated region
  $region26: #{bottleneck_block3d_l.8} parent=0 // pred_check
    _
  $region27: #{bottleneck_block3d_l.8} parent=0 // pred_check_branch
    %1748 = sbr.rel (0) target = $region29
  $region28: #{bottleneck_block3d_l.8} parent=0 // pred_region
    _
  $region29: #{bottleneck_block3d_l.8} parent=0 // pred_fallthru
    _
  // Predicated region
  $region30: #{bottleneck_block3d_l.8} parent=0 // pred_check
    _
  $region31: #{bottleneck_block3d_l.8} parent=0 // pred_check_branch
    %1750 = sbr.rel (0) target = $region33
  $region32: #{bottleneck_block3d_l.8} parent=0 // pred_region
    _
  $region33: #{bottleneck_block3d_l.8} parent=0 // pred_fallthru
    _

// kernel: bottleneck_block3d_l.9
$region0: #{bottleneck_block3d_l.9}
  #allocation0 [shape = 'u32[]', space=smem, size = 0x4, offset = 0x4, fixed_abs, tag = 'smem constant byte address 0x4 - core index']
  #allocation1 [shape = 'u32[144,128]{1,0:T(1,128)}', space=vmem, size = 0x12000, scoped, tag = 'internal scratch']
  %s0 = inlined_call_operand.vmem [shape: f32[1024,128], index: 0, kind: input, shape index: {}]
  %s1 = inlined_call_operand.vmem [shape: f32[1,128], index: 1, kind: input, shape index: {}]
  %s2 = inlined_call_operand.vmem [shape: f32[1,128], index: 2, kind: input, shape index: {}]
  %s3 = inlined_call_operand.vmem [shape: f32[1024,128], index: 3, kind: input, shape index: {}]
  %s4 = inlined_call_operand.vmem [shape: f32[1024,128], index: 4, kind: output, shape index: {}]
  %s5 = sld [smem:[#allocation0]]
  $region26: #{bottleneck_block3d_l.9} parent=0
    _
  %s7 = ssub.s32 1, %s5
  %s8 = scalar_select 0, %s7, %s5
  // Predicated region
  $region2: #{bottleneck_block3d_l.9} parent=0 // pred_check
    _
  $region3: #{bottleneck_block3d_l.9} parent=0 // pred_check_branch
    %10 = sbr.rel (0) target = $region5
  $region4: #{bottleneck_block3d_l.9} parent=0 // pred_region
    _
  $region5: #{bottleneck_block3d_l.9} parent=0 // pred_fallthru
    _
  // Predicated region
  $region6: #{bottleneck_block3d_l.9} parent=0 // pred_check
    _
  $region7: #{bottleneck_block3d_l.9} parent=0 // pred_check_branch
    %12 = sbr.rel (0) target = $region9
  $region8: #{bottleneck_block3d_l.9} parent=0 // pred_region
    _
  $region9: #{bottleneck_block3d_l.9} parent=0 // pred_fallthru
    _
  // Predicated region
  $region10: #{bottleneck_block3d_l.9} parent=0 // pred_check
    _
  $region11: #{bottleneck_block3d_l.9} parent=0 // pred_check_branch
    %14 = sbr.rel (0) target = $region13
  $region12: #{bottleneck_block3d_l.9} parent=0 // pred_region
    _
  $region13: #{bottleneck_block3d_l.9} parent=0 // pred_fallthru
    _
  // Predicated region
  $region14: #{bottleneck_block3d_l.9} parent=0 // pred_check
    _
  $region15: #{bottleneck_block3d_l.9} parent=0 // pred_check_branch
    %16 = sbr.rel (0) target = $region17
  $region16: #{bottleneck_block3d_l.9} parent=0 // pred_region
    _
  $region17: #{bottleneck_block3d_l.9} parent=0 // pred_fallthru
    _
  %v17 = vld [vmem:[%s0] sm:$0xff]
  %v18 = vld [vmem:[%s0 + $0x8] sm:$0xff]
  %v19 = vld [vmem:[%s0 + $0x10] sm:$0xff]
  %v20 = vld [vmem:[%s0 + $0x18] sm:$0xff]
  %v21 = vld [vmem:[%s0 + $0x20] sm:$0xff]
  %v22 = vld [vmem:[%s0 + $0x28] sm:$0xff]
  %v23 = vld [vmem:[%s0 + $0x30] sm:$0xff]
  %v24 = vld [vmem:[%s0 + $0x38] sm:$0xff]
  %v25 = vld [vmem:[%s0 + $0x40] sm:$0xff]
  %v26 = vld [vmem:[%s0 + $0x48] sm:$0xff]
  %v27 = vld [vmem:[%s0 + $0x50] sm:$0xff]
  %v28 = vld [vmem:[%s0 + $0x58] sm:$0xff]
  %v29 = vld [vmem:[%s0 + $0x60] sm:$0xff]
  %v30 = vld [vmem:[%s0 + $0x68] sm:$0xff]
  %v31 = vld [vmem:[%s0 + $0x70] sm:$0xff]
  %v32 = vld [vmem:[%s0 + $0x78] sm:$0xff]
  %v33 = vld [vmem:[%s0 + $0x80] sm:$0xff]
  %v34 = vld [vmem:[%s0 + $0x88] sm:$0xff]
  %v35 = vld [vmem:[%s0 + $0x90] sm:$0xff]
  %v36 = vld [vmem:[%s0 + $0x98] sm:$0xff]
  %v37 = vld [vmem:[%s0 + $0xa0] sm:$0xff]
  %v38 = vld [vmem:[%s0 + $0xa8] sm:$0xff]
  %v39 = vld [vmem:[%s0 + $0xb0] sm:$0xff]
  %v40 = vld [vmem:[%s0 + $0xb8] sm:$0xff]
  %v41 = vld [vmem:[%s0 + $0xc0] sm:$0xff]
  %v42 = vld [vmem:[%s0 + $0xc8] sm:$0xff]
  %v43 = vld [vmem:[%s0 + $0xd0] sm:$0xff]
  %v44 = vld [vmem:[%s0 + $0xd8] sm:$0xff]
  %v45 = vld [vmem:[%s0 + $0xe0] sm:$0xff]
  %v46 = vld [vmem:[%s0 + $0xe8] sm:$0xff]
  %v47 = vld [vmem:[%s0 + $0xf0] sm:$0xff]
  %v48 = vld [vmem:[%s0 + $0xf8] sm:$0xff]
  %v49 = vld [vmem:[%s0 + $0x100] sm:$0xff]
  %v50 = vld [vmem:[%s0 + $0x108] sm:$0xff]
  %v51 = vld [vmem:[%s0 + $0x110] sm:$0xff]
  %v52 = vld [vmem:[%s0 + $0x118] sm:$0xff]
  %v53 = vld [vmem:[%s0 + $0x120] sm:$0xff]
  %v54 = vld [vmem:[%s0 + $0x128] sm:$0xff]
  %v55 = vld [vmem:[%s0 + $0x130] sm:$0xff]
  %v56 = vld [vmem:[%s0 + $0x138] sm:$0xff]
  %v57 = vld [vmem:[%s0 + $0x140] sm:$0xff]
  %v58 = vld [vmem:[%s0 + $0x148] sm:$0xff]
  %v59 = vld [vmem:[%s0 + $0x150] sm:$0xff]
  %v60 = vld [vmem:[%s0 + $0x158] sm:$0xff]
  %v61 = vld [vmem:[%s0 + $0x160] sm:$0xff]
  %v62 = vld [vmem:[%s0 + $0x168] sm:$0xff]
  %v63 = vld [vmem:[%s0 + $0x170] sm:$0xff]
  %v64 = vld [vmem:[%s0 + $0x178] sm:$0xff]
  %v65 = vld [vmem:[%s0 + $0x180] sm:$0xff]
  %v66 = vld [vmem:[%s0 + $0x188] sm:$0xff]
  %v67 = vld [vmem:[%s0 + $0x190] sm:$0xff]
  %v68 = vld [vmem:[%s0 + $0x198] sm:$0xff]
  %v69 = vld [vmem:[%s0 + $0x1a0] sm:$0xff]
  %v70 = vld [vmem:[%s0 + $0x1a8] sm:$0xff]
  %v71 = vld [vmem:[%s0 + $0x1b0] sm:$0xff]
  %v72 = vld [vmem:[%s0 + $0x1b8] sm:$0xff]
  %v73 = vld [vmem:[%s0 + $0x1c0] sm:$0xff]
  %v74 = vld [vmem:[%s0 + $0x1c8] sm:$0xff]
  %v75 = vld [vmem:[%s0 + $0x1d0] sm:$0xff]
  %v76 = vld [vmem:[%s0 + $0x1d8] sm:$0xff]
  %v77 = vld [vmem:[%s0 + $0x1e0] sm:$0xff]
  %v78 = vld [vmem:[%s0 + $0x1e8] sm:$0xff]
  %v79 = vld [vmem:[%s0 + $0x1f0] sm:$0xff]
  %v80 = vld [vmem:[%s0 + $0x1f8] sm:$0xff]
  %v81 = vld [vmem:[%s0 + $0x200] sm:$0xff]
  %v82 = vld [vmem:[%s0 + $0x208] sm:$0xff]
  %v83 = vld [vmem:[%s0 + $0x210] sm:$0xff]
  %v84 = vld [vmem:[%s0 + $0x218] sm:$0xff]
  %v85 = vld [vmem:[%s0 + $0x220] sm:$0xff]
  %v86 = vld [vmem:[%s0 + $0x228] sm:$0xff]
  %v87 = vld [vmem:[%s0 + $0x230] sm:$0xff]
  %v88 = vld [vmem:[%s0 + $0x238] sm:$0xff]
  %v89 = vld [vmem:[%s0 + $0x240] sm:$0xff]
  %v90 = vld [vmem:[%s0 + $0x248] sm:$0xff]
  %v91 = vld [vmem:[%s0 + $0x250] sm:$0xff]
  %v92 = vld [vmem:[%s0 + $0x258] sm:$0xff]
  %v93 = vld [vmem:[%s0 + $0x260] sm:$0xff]
  %v94 = vld [vmem:[%s0 + $0x268] sm:$0xff]
  %v95 = vld [vmem:[%s0 + $0x270] sm:$0xff]
  %v96 = vld [vmem:[%s0 + $0x278] sm:$0xff]
  %v97 = vld [vmem:[%s0 + $0x280] sm:$0xff]
  %v98 = vld [vmem:[%s0 + $0x288] sm:$0xff]
  %v99 = vld [vmem:[%s0 + $0x290] sm:$0xff]
  %v100 = vld [vmem:[%s0 + $0x298] sm:$0xff]
  %v101 = vld [vmem:[%s0 + $0x2a0] sm:$0xff]
  %v102 = vld [vmem:[%s0 + $0x2a8] sm:$0xff]
  %v103 = vld [vmem:[%s0 + $0x2b0] sm:$0xff]
  %v104 = vld [vmem:[%s0 + $0x2b8] sm:$0xff]
  %v105 = vld [vmem:[%s0 + $0x2c0] sm:$0xff]
  %v106 = vld [vmem:[%s0 + $0x2c8] sm:$0xff]
  %v107 = vld [vmem:[%s0 + $0x2d0] sm:$0xff]
  %v108 = vld [vmem:[%s0 + $0x2d8] sm:$0xff]
  %v109 = vld [vmem:[%s0 + $0x2e0] sm:$0xff]
  %v110 = vld [vmem:[%s0 + $0x2e8] sm:$0xff]
  %v111 = vld [vmem:[%s0 + $0x2f0] sm:$0xff]
  %v112 = vld [vmem:[%s0 + $0x2f8] sm:$0xff]
  %v113 = vld [vmem:[%s0 + $0x300] sm:$0xff]
  %v114 = vld [vmem:[%s0 + $0x308] sm:$0xff]
  %v115 = vld [vmem:[%s0 + $0x310] sm:$0xff]
  %v116 = vld [vmem:[%s0 + $0x318] sm:$0xff]
  %v117 = vld [vmem:[%s0 + $0x320] sm:$0xff]
  %v118 = vld [vmem:[%s0 + $0x328] sm:$0xff]
  %v119 = vld [vmem:[%s0 + $0x330] sm:$0xff]
  %v120 = vld [vmem:[%s0 + $0x338] sm:$0xff]
  %v121 = vld [vmem:[%s0 + $0x340] sm:$0xff]
  %v122 = vld [vmem:[%s0 + $0x348] sm:$0xff]
  %v123 = vld [vmem:[%s0 + $0x350] sm:$0xff]
  %v124 = vld [vmem:[%s0 + $0x358] sm:$0xff]
  %v125 = vld [vmem:[%s0 + $0x360] sm:$0xff]
  %v126 = vld [vmem:[%s0 + $0x368] sm:$0xff]
  %v127 = vld [vmem:[%s0 + $0x370] sm:$0xff]
  %v128 = vld [vmem:[%s0 + $0x378] sm:$0xff]
  %v129 = vld [vmem:[%s0 + $0x380] sm:$0xff]
  %v130 = vld [vmem:[%s0 + $0x388] sm:$0xff]
  %v131 = vld [vmem:[%s0 + $0x390] sm:$0xff]
  %v132 = vld [vmem:[%s0 + $0x398] sm:$0xff]
  %v133 = vld [vmem:[%s0 + $0x3a0] sm:$0xff]
  %v134 = vld [vmem:[%s0 + $0x3a8] sm:$0xff]
  %v135 = vld [vmem:[%s0 + $0x3b0] sm:$0xff]
  %v136 = vld [vmem:[%s0 + $0x3b8] sm:$0xff]
  %v137 = vld [vmem:[%s0 + $0x3c0] sm:$0xff]
  %v138 = vld [vmem:[%s0 + $0x3c8] sm:$0xff]
  %v139 = vld [vmem:[%s0 + $0x3d0] sm:$0xff]
  %v140 = vld [vmem:[%s0 + $0x3d8] sm:$0xff]
  %v141 = vld [vmem:[%s0 + $0x3e0] sm:$0xff]
  %v142 = vld [vmem:[%s0 + $0x3e8] sm:$0xff]
  %v143 = vld [vmem:[%s0 + $0x3f0] sm:$0xff]
  %v144 = vld [vmem:[%s0 + $0x3f8] sm:$0xff]
  %v145 = vld [vmem:[%s1] sm:$0x1]
  %v147 = vlaneseq
  %v148 = vshrl.u32 %v147, 7
  %v149 = vsub.s32 0, %v148
  %v150 = vrot.slane %v145, %v149
  %v152 = vmul.f32 %v17, %v150
  %v153 = vmul.f32 %v18, %v150
  %v154 = vmul.f32 %v19, %v150
  %v155 = vmul.f32 %v20, %v150
  %v156 = vmul.f32 %v21, %v150
  %v157 = vmul.f32 %v22, %v150
  %v158 = vmul.f32 %v23, %v150
  %v159 = vmul.f32 %v24, %v150
  %v160 = vmul.f32 %v25, %v150
  %v161 = vmul.f32 %v26, %v150
  %v162 = vmul.f32 %v27, %v150
  %v163 = vmul.f32 %v28, %v150
  %v164 = vmul.f32 %v29, %v150
  %v165 = vmul.f32 %v30, %v150
  %v166 = vmul.f32 %v31, %v150
  %v167 = vmul.f32 %v32, %v150
  %v168 = vmul.f32 %v33, %v150
  %v169 = vmul.f32 %v34, %v150
  %v170 = vmul.f32 %v35, %v150
  %v171 = vmul.f32 %v36, %v150
  %v172 = vmul.f32 %v37, %v150
  %v173 = vmul.f32 %v38, %v150
  %v174 = vmul.f32 %v39, %v150
  %v175 = vmul.f32 %v40, %v150
  %v176 = vmul.f32 %v41, %v150
  %v177 = vmul.f32 %v42, %v150
  %v178 = vmul.f32 %v43, %v150
  %v179 = vmul.f32 %v44, %v150
  %v180 = vmul.f32 %v45, %v150
  %v181 = vmul.f32 %v46, %v150
  %v182 = vmul.f32 %v47, %v150
  %v183 = vmul.f32 %v48, %v150
  %v184 = vmul.f32 %v49, %v150
  %v185 = vmul.f32 %v50, %v150
  %v186 = vmul.f32 %v51, %v150
  %v187 = vmul.f32 %v52, %v150
  %v188 = vmul.f32 %v53, %v150
  %v189 = vmul.f32 %v54, %v150
  %v190 = vmul.f32 %v55, %v150
  %v191 = vmul.f32 %v56, %v150
  %v192 = vmul.f32 %v57, %v150
  %v193 = vmul.f32 %v58, %v150
  %v194 = vmul.f32 %v59, %v150
  %v195 = vmul.f32 %v60, %v150
  %v196 = vmul.f32 %v61, %v150
  %v197 = vmul.f32 %v62, %v150
  %v198 = vmul.f32 %v63, %v150
  %v199 = vmul.f32 %v64, %v150
  %v200 = vmul.f32 %v65, %v150
  %v201 = vmul.f32 %v66, %v150
  %v202 = vmul.f32 %v67, %v150
  %v203 = vmul.f32 %v68, %v150
  %v204 = vmul.f32 %v69, %v150
  %v205 = vmul.f32 %v70, %v150
  %v206 = vmul.f32 %v71, %v150
  %v207 = vmul.f32 %v72, %v150
  %v208 = vmul.f32 %v73, %v150
  %v209 = vmul.f32 %v74, %v150
  %v210 = vmul.f32 %v75, %v150
  %v211 = vmul.f32 %v76, %v150
  %v212 = vmul.f32 %v77, %v150
  %v213 = vmul.f32 %v78, %v150
  %v214 = vmul.f32 %v79, %v150
  %v215 = vmul.f32 %v80, %v150
  %v216 = vmul.f32 %v81, %v150
  %v217 = vmul.f32 %v82, %v150
  %v218 = vmul.f32 %v83, %v150
  %v219 = vmul.f32 %v84, %v150
  %v220 = vmul.f32 %v85, %v150
  %v221 = vmul.f32 %v86, %v150
  %v222 = vmul.f32 %v87, %v150
  %v223 = vmul.f32 %v88, %v150
  %v224 = vmul.f32 %v89, %v150
  %v225 = vmul.f32 %v90, %v150
  %v226 = vmul.f32 %v91, %v150
  %v227 = vmul.f32 %v92, %v150
  %v228 = vmul.f32 %v93, %v150
  %v229 = vmul.f32 %v94, %v150
  %v230 = vmul.f32 %v95, %v150
  %v231 = vmul.f32 %v96, %v150
  %v232 = vmul.f32 %v97, %v150
  %v233 = vmul.f32 %v98, %v150
  %v234 = vmul.f32 %v99, %v150
  %v235 = vmul.f32 %v100, %v150
  %v236 = vmul.f32 %v101, %v150
  %v237 = vmul.f32 %v102, %v150
  %v238 = vmul.f32 %v103, %v150
  %v239 = vmul.f32 %v104, %v150
  %v240 = vmul.f32 %v105, %v150
  %v241 = vmul.f32 %v106, %v150
  %v242 = vmul.f32 %v107, %v150
  %v243 = vmul.f32 %v108, %v150
  %v244 = vmul.f32 %v109, %v150
  %v245 = vmul.f32 %v110, %v150
  %v246 = vmul.f32 %v111, %v150
  %v247 = vmul.f32 %v112, %v150
  %v248 = vmul.f32 %v113, %v150
  %v249 = vmul.f32 %v114, %v150
  %v250 = vmul.f32 %v115, %v150
  %v251 = vmul.f32 %v116, %v150
  %v252 = vmul.f32 %v117, %v150
  %v253 = vmul.f32 %v118, %v150
  %v254 = vmul.f32 %v119, %v150
  %v255 = vmul.f32 %v120, %v150
  %v256 = vmul.f32 %v121, %v150
  %v257 = vmul.f32 %v122, %v150
  %v258 = vmul.f32 %v123, %v150
  %v259 = vmul.f32 %v124, %v150
  %v260 = vmul.f32 %v125, %v150
  %v261 = vmul.f32 %v126, %v150
  %v262 = vmul.f32 %v127, %v150
  %v263 = vmul.f32 %v128, %v150
  %v264 = vmul.f32 %v129, %v150
  %v265 = vmul.f32 %v130, %v150
  %v266 = vmul.f32 %v131, %v150
  %v267 = vmul.f32 %v132, %v150
  %v268 = vmul.f32 %v133, %v150
  %v269 = vmul.f32 %v134, %v150
  %v270 = vmul.f32 %v135, %v150
  %v271 = vmul.f32 %v136, %v150
  %v272 = vmul.f32 %v137, %v150
  %v273 = vmul.f32 %v138, %v150
  %v274 = vmul.f32 %v139, %v150
  %v275 = vmul.f32 %v140, %v150
  %v276 = vmul.f32 %v141, %v150
  %v277 = vmul.f32 %v142, %v150
  %v278 = vmul.f32 %v143, %v150
  %v279 = vmul.f32 %v144, %v150
  %v280 = vld [vmem:[%s2] sm:$0x1]
  %v282 = vlaneseq
  %v283 = vshrl.u32 %v282, 7
  %v284 = vsub.s32 0, %v283
  %v285 = vrot.slane %v280, %v284
  %v287 = vadd.f32 %v152, %v285
  %v288 = vadd.f32 %v153, %v285
  %v289 = vadd.f32 %v154, %v285
  %v290 = vadd.f32 %v155, %v285
  %v291 = vadd.f32 %v156, %v285
  %v292 = vadd.f32 %v157, %v285
  %v293 = vadd.f32 %v158, %v285
  %v294 = vadd.f32 %v159, %v285
  %v295 = vadd.f32 %v160, %v285
  %v296 = vadd.f32 %v161, %v285
  %v297 = vadd.f32 %v162, %v285
  %v298 = vadd.f32 %v163, %v285
  %v299 = vadd.f32 %v164, %v285
  %v300 = vadd.f32 %v165, %v285
  %v301 = vadd.f32 %v166, %v285
  %v302 = vadd.f32 %v167, %v285
  %v303 = vadd.f32 %v168, %v285
  %v304 = vadd.f32 %v169, %v285
  %v305 = vadd.f32 %v170, %v285
  %v306 = vadd.f32 %v171, %v285
  %v307 = vadd.f32 %v172, %v285
  %v308 = vadd.f32 %v173, %v285
  %v309 = vadd.f32 %v174, %v285
  %v310 = vadd.f32 %v175, %v285
  %v311 = vadd.f32 %v176, %v285
  %v312 = vadd.f32 %v177, %v285
  %v313 = vadd.f32 %v178, %v285
  %v314 = vadd.f32 %v179, %v285
  %v315 = vadd.f32 %v180, %v285
  %v316 = vadd.f32 %v181, %v285
  %v317 = vadd.f32 %v182, %v285
  %v318 = vadd.f32 %v183, %v285
  %v319 = vadd.f32 %v184, %v285
  %v320 = vadd.f32 %v185, %v285
  %v321 = vadd.f32 %v186, %v285
  %v322 = vadd.f32 %v187, %v285
  %v323 = vadd.f32 %v188, %v285
  %v324 = vadd.f32 %v189, %v285
  %v325 = vadd.f32 %v190, %v285
  %v326 = vadd.f32 %v191, %v285
  %v327 = vadd.f32 %v192, %v285
  %v328 = vadd.f32 %v193, %v285
  %v329 = vadd.f32 %v194, %v285
  %v330 = vadd.f32 %v195, %v285
  %v331 = vadd.f32 %v196, %v285
  %v332 = vadd.f32 %v197, %v285
  %v333 = vadd.f32 %v198, %v285
  %v334 = vadd.f32 %v199, %v285
  %v335 = vadd.f32 %v200, %v285
  %v336 = vadd.f32 %v201, %v285
  %v337 = vadd.f32 %v202, %v285
  %v338 = vadd.f32 %v203, %v285
  %v339 = vadd.f32 %v204, %v285
  %v340 = vadd.f32 %v205, %v285
  %v341 = vadd.f32 %v206, %v285
  %v342 = vadd.f32 %v207, %v285
  %v343 = vadd.f32 %v208, %v285
  %v344 = vadd.f32 %v209, %v285
  %v345 = vadd.f32 %v210, %v285
  %v346 = vadd.f32 %v211, %v285
  %v347 = vadd.f32 %v212, %v285
  %v348 = vadd.f32 %v213, %v285
  %v349 = vadd.f32 %v214, %v285
  %v350 = vadd.f32 %v215, %v285
  %v351 = vadd.f32 %v216, %v285
  %v352 = vadd.f32 %v217, %v285
  %v353 = vadd.f32 %v218, %v285
  %v354 = vadd.f32 %v219, %v285
  %v355 = vadd.f32 %v220, %v285
  %v356 = vadd.f32 %v221, %v285
  %v357 = vadd.f32 %v222, %v285
  %v358 = vadd.f32 %v223, %v285
  %v359 = vadd.f32 %v224, %v285
  %v360 = vadd.f32 %v225, %v285
  %v361 = vadd.f32 %v226, %v285
  %v362 = vadd.f32 %v227, %v285
  %v363 = vadd.f32 %v228, %v285
  %v364 = vadd.f32 %v229, %v285
  %v365 = vadd.f32 %v230, %v285
  %v366 = vadd.f32 %v231, %v285
  %v367 = vadd.f32 %v232, %v285
  %v368 = vadd.f32 %v233, %v285
  %v369 = vadd.f32 %v234, %v285
  %v370 = vadd.f32 %v235, %v285
  %v371 = vadd.f32 %v236, %v285
  %v372 = vadd.f32 %v237, %v285
  %v373 = vadd.f32 %v238, %v285
  %v374 = vadd.f32 %v239, %v285
  %v375 = vadd.f32 %v240, %v285
  %v376 = vadd.f32 %v241, %v285
  %v377 = vadd.f32 %v242, %v285
  %v378 = vadd.f32 %v243, %v285
  %v379 = vadd.f32 %v244, %v285
  %v380 = vadd.f32 %v245, %v285
  %v381 = vadd.f32 %v246, %v285
  %v382 = vadd.f32 %v247, %v285
  %v383 = vadd.f32 %v248, %v285
  %v384 = vadd.f32 %v249, %v285
  %v385 = vadd.f32 %v250, %v285
  %v386 = vadd.f32 %v251, %v285
  %v387 = vadd.f32 %v252, %v285
  %v388 = vadd.f32 %v253, %v285
  %v389 = vadd.f32 %v254, %v285
  %v390 = vadd.f32 %v255, %v285
  %v391 = vadd.f32 %v256, %v285
  %v392 = vadd.f32 %v257, %v285
  %v393 = vadd.f32 %v258, %v285
  %v394 = vadd.f32 %v259, %v285
  %v395 = vadd.f32 %v260, %v285
  %v396 = vadd.f32 %v261, %v285
  %v397 = vadd.f32 %v262, %v285
  %v398 = vadd.f32 %v263, %v285
  %v399 = vadd.f32 %v264, %v285
  %v400 = vadd.f32 %v265, %v285
  %v401 = vadd.f32 %v266, %v285
  %v402 = vadd.f32 %v267, %v285
  %v403 = vadd.f32 %v268, %v285
  %v404 = vadd.f32 %v269, %v285
  %v405 = vadd.f32 %v270, %v285
  %v406 = vadd.f32 %v271, %v285
  %v407 = vadd.f32 %v272, %v285
  %v408 = vadd.f32 %v273, %v285
  %v409 = vadd.f32 %v274, %v285
  %v410 = vadd.f32 %v275, %v285
  %v411 = vadd.f32 %v276, %v285
  %v412 = vadd.f32 %v277, %v285
  %v413 = vadd.f32 %v278, %v285
  %v414 = vadd.f32 %v279, %v285
  %v415 = vld [vmem:[%s3] sm:$0xff]
  %v416 = vld [vmem:[%s3 + $0x8] sm:$0xff]
  %v417 = vld [vmem:[%s3 + $0x10] sm:$0xff]
  %v418 = vld [vmem:[%s3 + $0x18] sm:$0xff]
  %v419 = vld [vmem:[%s3 + $0x20] sm:$0xff]
  %v420 = vld [vmem:[%s3 + $0x28] sm:$0xff]
  %v421 = vld [vmem:[%s3 + $0x30] sm:$0xff]
  %v422 = vld [vmem:[%s3 + $0x38] sm:$0xff]
  %v423 = vld [vmem:[%s3 + $0x40] sm:$0xff]
  %v424 = vld [vmem:[%s3 + $0x48] sm:$0xff]
  %v425 = vld [vmem:[%s3 + $0x50] sm:$0xff]
  %v426 = vld [vmem:[%s3 + $0x58] sm:$0xff]
  %v427 = vld [vmem:[%s3 + $0x60] sm:$0xff]
  %v428 = vld [vmem:[%s3 + $0x68] sm:$0xff]
  %v429 = vld [vmem:[%s3 + $0x70] sm:$0xff]
  %v430 = vld [vmem:[%s3 + $0x78] sm:$0xff]
  %v431 = vld [vmem:[%s3 + $0x80] sm:$0xff]
  %v432 = vld [vmem:[%s3 + $0x88] sm:$0xff]
  %v433 = vld [vmem:[%s3 + $0x90] sm:$0xff]
  %v434 = vld [vmem:[%s3 + $0x98] sm:$0xff]
  %v435 = vld [vmem:[%s3 + $0xa0] sm:$0xff]
  %v436 = vld [vmem:[%s3 + $0xa8] sm:$0xff]
  %v437 = vld [vmem:[%s3 + $0xb0] sm:$0xff]
  %v438 = vld [vmem:[%s3 + $0xb8] sm:$0xff]
  %v439 = vld [vmem:[%s3 + $0xc0] sm:$0xff]
  %v440 = vld [vmem:[%s3 + $0xc8] sm:$0xff]
  %v441 = vld [vmem:[%s3 + $0xd0] sm:$0xff]
  %v442 = vld [vmem:[%s3 + $0xd8] sm:$0xff]
  %v443 = vld [vmem:[%s3 + $0xe0] sm:$0xff]
  %v444 = vld [vmem:[%s3 + $0xe8] sm:$0xff]
  %v445 = vld [vmem:[%s3 + $0xf0] sm:$0xff]
  %v446 = vld [vmem:[%s3 + $0xf8] sm:$0xff]
  %v447 = vld [vmem:[%s3 + $0x100] sm:$0xff]
  %v448 = vld [vmem:[%s3 + $0x108] sm:$0xff]
  %v449 = vld [vmem:[%s3 + $0x110] sm:$0xff]
  %v450 = vld [vmem:[%s3 + $0x118] sm:$0xff]
  %v451 = vld [vmem:[%s3 + $0x120] sm:$0xff]
  %v452 = vld [vmem:[%s3 + $0x128] sm:$0xff]
  %v453 = vld [vmem:[%s3 + $0x130] sm:$0xff]
  %v454 = vld [vmem:[%s3 + $0x138] sm:$0xff]
  %v455 = vld [vmem:[%s3 + $0x140] sm:$0xff]
  %v456 = vld [vmem:[%s3 + $0x148] sm:$0xff]
  %v457 = vld [vmem:[%s3 + $0x150] sm:$0xff]
  %v458 = vld [vmem:[%s3 + $0x158] sm:$0xff]
  %v459 = vld [vmem:[%s3 + $0x160] sm:$0xff]
  %v460 = vld [vmem:[%s3 + $0x168] sm:$0xff]
  %v461 = vld [vmem:[%s3 + $0x170] sm:$0xff]
  %v462 = vld [vmem:[%s3 + $0x178] sm:$0xff]
  %v463 = vld [vmem:[%s3 + $0x180] sm:$0xff]
  %v464 = vld [vmem:[%s3 + $0x188] sm:$0xff]
  %v465 = vld [vmem:[%s3 + $0x190] sm:$0xff]
  %v466 = vld [vmem:[%s3 + $0x198] sm:$0xff]
  %v467 = vld [vmem:[%s3 + $0x1a0] sm:$0xff]
  %v468 = vld [vmem:[%s3 + $0x1a8] sm:$0xff]
  %v469 = vld [vmem:[%s3 + $0x1b0] sm:$0xff]
  %v470 = vld [vmem:[%s3 + $0x1b8] sm:$0xff]
  %v471 = vld [vmem:[%s3 + $0x1c0] sm:$0xff]
  %v472 = vld [vmem:[%s3 + $0x1c8] sm:$0xff]
  %v473 = vld [vmem:[%s3 + $0x1d0] sm:$0xff]
  %v474 = vld [vmem:[%s3 + $0x1d8] sm:$0xff]
  %v475 = vld [vmem:[%s3 + $0x1e0] sm:$0xff]
  %v476 = vld [vmem:[%s3 + $0x1e8] sm:$0xff]
  %v477 = vld [vmem:[%s3 + $0x1f0] sm:$0xff]
  %v478 = vld [vmem:[%s3 + $0x1f8] sm:$0xff]
  %v479 = vld [vmem:[%s3 + $0x200] sm:$0xff]
  %v480 = vld [vmem:[%s3 + $0x208] sm:$0xff]
  %v481 = vld [vmem:[%s3 + $0x210] sm:$0xff]
  %v482 = vld [vmem:[%s3 + $0x218] sm:$0xff]
  %v483 = vld [vmem:[%s3 + $0x220] sm:$0xff]
  %v484 = vld [vmem:[%s3 + $0x228] sm:$0xff]
  %v485 = vld [vmem:[%s3 + $0x230] sm:$0xff]
  %v486 = vld [vmem:[%s3 + $0x238] sm:$0xff]
  %v487 = vld [vmem:[%s3 + $0x240] sm:$0xff]
  %v488 = vld [vmem:[%s3 + $0x248] sm:$0xff]
  %v489 = vld [vmem:[%s3 + $0x250] sm:$0xff]
  %v490 = vld [vmem:[%s3 + $0x258] sm:$0xff]
  %v491 = vld [vmem:[%s3 + $0x260] sm:$0xff]
  %v492 = vld [vmem:[%s3 + $0x268] sm:$0xff]
  %v493 = vld [vmem:[%s3 + $0x270] sm:$0xff]
  %v494 = vld [vmem:[%s3 + $0x278] sm:$0xff]
  %v495 = vld [vmem:[%s3 + $0x280] sm:$0xff]
  %v496 = vld [vmem:[%s3 + $0x288] sm:$0xff]
  %v497 = vld [vmem:[%s3 + $0x290] sm:$0xff]
  %v498 = vld [vmem:[%s3 + $0x298] sm:$0xff]
  %v499 = vld [vmem:[%s3 + $0x2a0] sm:$0xff]
  %v500 = vld [vmem:[%s3 + $0x2a8] sm:$0xff]
  %v501 = vld [vmem:[%s3 + $0x2b0] sm:$0xff]
  %v502 = vld [vmem:[%s3 + $0x2b8] sm:$0xff]
  %v503 = vld [vmem:[%s3 + $0x2c0] sm:$0xff]
  %v504 = vld [vmem:[%s3 + $0x2c8] sm:$0xff]
  %v505 = vld [vmem:[%s3 + $0x2d0] sm:$0xff]
  %v506 = vld [vmem:[%s3 + $0x2d8] sm:$0xff]
  %v507 = vld [vmem:[%s3 + $0x2e0] sm:$0xff]
  %v508 = vld [vmem:[%s3 + $0x2e8] sm:$0xff]
  %v509 = vld [vmem:[%s3 + $0x2f0] sm:$0xff]
  %v510 = vld [vmem:[%s3 + $0x2f8] sm:$0xff]
  %v511 = vld [vmem:[%s3 + $0x300] sm:$0xff]
  %v512 = vld [vmem:[%s3 + $0x308] sm:$0xff]
  %v513 = vld [vmem:[%s3 + $0x310] sm:$0xff]
  %v514 = vld [vmem:[%s3 + $0x318] sm:$0xff]
  %v515 = vld [vmem:[%s3 + $0x320] sm:$0xff]
  %v516 = vld [vmem:[%s3 + $0x328] sm:$0xff]
  %v517 = vld [vmem:[%s3 + $0x330] sm:$0xff]
  %v518 = vld [vmem:[%s3 + $0x338] sm:$0xff]
  %v519 = vld [vmem:[%s3 + $0x340] sm:$0xff]
  %v520 = vld [vmem:[%s3 + $0x348] sm:$0xff]
  %v521 = vld [vmem:[%s3 + $0x350] sm:$0xff]
  %v522 = vld [vmem:[%s3 + $0x358] sm:$0xff]
  %v523 = vld [vmem:[%s3 + $0x360] sm:$0xff]
  %v524 = vld [vmem:[%s3 + $0x368] sm:$0xff]
  %v525 = vld [vmem:[%s3 + $0x370] sm:$0xff]
  %v526 = vld [vmem:[%s3 + $0x378] sm:$0xff]
  %v527 = vld [vmem:[%s3 + $0x380] sm:$0xff]
  %v528 = vld [vmem:[%s3 + $0x388] sm:$0xff]
  %v529 = vld [vmem:[%s3 + $0x390] sm:$0xff]
  %v530 = vld [vmem:[%s3 + $0x398] sm:$0xff]
  %v531 = vld [vmem:[%s3 + $0x3a0] sm:$0xff]
  %v532 = vld [vmem:[%s3 + $0x3a8] sm:$0xff]
  %v533 = vld [vmem:[%s3 + $0x3b0] sm:$0xff]
  %v534 = vld [vmem:[%s3 + $0x3b8] sm:$0xff]
  %v535 = vld [vmem:[%s3 + $0x3c0] sm:$0xff]
  %v536 = vld [vmem:[%s3 + $0x3c8] sm:$0xff]
  %v537 = vld [vmem:[%s3 + $0x3d0] sm:$0xff]
  %v538 = vld [vmem:[%s3 + $0x3d8] sm:$0xff]
  %v539 = vld [vmem:[%s3 + $0x3e0] sm:$0xff]
  %v540 = vld [vmem:[%s3 + $0x3e8] sm:$0xff]
  %v541 = vld [vmem:[%s3 + $0x3f0] sm:$0xff]
  %v542 = vld [vmem:[%s3 + $0x3f8] sm:$0xff]
  %v543 = vadd.f32 %v287, %v415
  %v544 = vadd.f32 %v288, %v416
  %v545 = vadd.f32 %v289, %v417
  %v546 = vadd.f32 %v290, %v418
  %v547 = vadd.f32 %v291, %v419
  %v548 = vadd.f32 %v292, %v420
  %v549 = vadd.f32 %v293, %v421
  %v550 = vadd.f32 %v294, %v422
  %v551 = vadd.f32 %v295, %v423
  %v552 = vadd.f32 %v296, %v424
  %v553 = vadd.f32 %v297, %v425
  %v554 = vadd.f32 %v298, %v426
  %v555 = vadd.f32 %v299, %v427
  %v556 = vadd.f32 %v300, %v428
  %v557 = vadd.f32 %v301, %v429
  %v558 = vadd.f32 %v302, %v430
  %v559 = vadd.f32 %v303, %v431
  %v560 = vadd.f32 %v304, %v432
  %v561 = vadd.f32 %v305, %v433
  %v562 = vadd.f32 %v306, %v434
  %v563 = vadd.f32 %v307, %v435
  %v564 = vadd.f32 %v308, %v436
  %v565 = vadd.f32 %v309, %v437
  %v566 = vadd.f32 %v310, %v438
  %v567 = vadd.f32 %v311, %v439
  %v568 = vadd.f32 %v312, %v440
  %v569 = vadd.f32 %v313, %v441
  %v570 = vadd.f32 %v314, %v442
  %v571 = vadd.f32 %v315, %v443
  %v572 = vadd.f32 %v316, %v444
  %v573 = vadd.f32 %v317, %v445
  %v574 = vadd.f32 %v318, %v446
  %v575 = vadd.f32 %v319, %v447
  %v576 = vadd.f32 %v320, %v448
  %v577 = vadd.f32 %v321, %v449
  %v578 = vadd.f32 %v322, %v450
  %v579 = vadd.f32 %v323, %v451
  %v580 = vadd.f32 %v324, %v452
  %v581 = vadd.f32 %v325, %v453
  %v582 = vadd.f32 %v326, %v454
  %v583 = vadd.f32 %v327, %v455
  %v584 = vadd.f32 %v328, %v456
  %v585 = vadd.f32 %v329, %v457
  %v586 = vadd.f32 %v330, %v458
  %v587 = vadd.f32 %v331, %v459
  %v588 = vadd.f32 %v332, %v460
  %v589 = vadd.f32 %v333, %v461
  %v590 = vadd.f32 %v334, %v462
  %v591 = vadd.f32 %v335, %v463
  %v592 = vadd.f32 %v336, %v464
  %v593 = vadd.f32 %v337, %v465
  %v594 = vadd.f32 %v338, %v466
  %v595 = vadd.f32 %v339, %v467
  %v596 = vadd.f32 %v340, %v468
  %v597 = vadd.f32 %v341, %v469
  %v598 = vadd.f32 %v342, %v470
  %v599 = vadd.f32 %v343, %v471
  %v600 = vadd.f32 %v344, %v472
  %v601 = vadd.f32 %v345, %v473
  %v602 = vadd.f32 %v346, %v474
  %v603 = vadd.f32 %v347, %v475
  %v604 = vadd.f32 %v348, %v476
  %v605 = vadd.f32 %v349, %v477
  %v606 = vadd.f32 %v350, %v478
  %v607 = vadd.f32 %v351, %v479
  %v608 = vadd.f32 %v352, %v480
  %v609 = vadd.f32 %v353, %v481
  %v610 = vadd.f32 %v354, %v482
  %v611 = vadd.f32 %v355, %v483
  %v612 = vadd.f32 %v356, %v484
  %v613 = vadd.f32 %v357, %v485
  %v614 = vadd.f32 %v358, %v486
  %v615 = vadd.f32 %v359, %v487
  %v616 = vadd.f32 %v360, %v488
  %v617 = vadd.f32 %v361, %v489
  %v618 = vadd.f32 %v362, %v490
  %v619 = vadd.f32 %v363, %v491
  %v620 = vadd.f32 %v364, %v492
  %v621 = vadd.f32 %v365, %v493
  %v622 = vadd.f32 %v366, %v494
  %v623 = vadd.f32 %v367, %v495
  %v624 = vadd.f32 %v368, %v496
  %v625 = vadd.f32 %v369, %v497
  %v626 = vadd.f32 %v370, %v498
  %v627 = vadd.f32 %v371, %v499
  %v628 = vadd.f32 %v372, %v500
  %v629 = vadd.f32 %v373, %v501
  %v630 = vadd.f32 %v374, %v502
  %v631 = vadd.f32 %v375, %v503
  %v632 = vadd.f32 %v376, %v504
  %v633 = vadd.f32 %v377, %v505
  %v634 = vadd.f32 %v378, %v506
  %v635 = vadd.f32 %v379, %v507
  %v636 = vadd.f32 %v380, %v508
  %v637 = vadd.f32 %v381, %v509
  %v638 = vadd.f32 %v382, %v510
  %v639 = vadd.f32 %v383, %v511
  %v640 = vadd.f32 %v384, %v512
  %v641 = vadd.f32 %v385, %v513
  %v642 = vadd.f32 %v386, %v514
  %v643 = vadd.f32 %v387, %v515
  %v644 = vadd.f32 %v388, %v516
  %v645 = vadd.f32 %v389, %v517
  %v646 = vadd.f32 %v390, %v518
  %v647 = vadd.f32 %v391, %v519
  %v648 = vadd.f32 %v392, %v520
  %v649 = vadd.f32 %v393, %v521
  %v650 = vadd.f32 %v394, %v522
  %v651 = vadd.f32 %v395, %v523
  %v652 = vadd.f32 %v396, %v524
  %v653 = vadd.f32 %v397, %v525
  %v654 = vadd.f32 %v398, %v526
  %v655 = vadd.f32 %v399, %v527
  %v656 = vadd.f32 %v400, %v528
  %v657 = vadd.f32 %v401, %v529
  %v658 = vadd.f32 %v402, %v530
  %v659 = vadd.f32 %v403, %v531
  %v660 = vadd.f32 %v404, %v532
  %v661 = vadd.f32 %v405, %v533
  %v662 = vadd.f32 %v406, %v534
  %v663 = vadd.f32 %v407, %v535
  %v664 = vadd.f32 %v408, %v536
  %v665 = vadd.f32 %v409, %v537
  %v666 = vadd.f32 %v410, %v538
  %v667 = vadd.f32 %v411, %v539
  %v668 = vadd.f32 %v412, %v540
  %v669 = vadd.f32 %v413, %v541
  %v670 = vadd.f32 %v414, %v542
  %v671 = vmax.f32 %v543, 0.0
  %v672 = vmax.f32 %v544, 0.0
  %v673 = vmax.f32 %v545, 0.0
  %v674 = vmax.f32 %v546, 0.0
  %v675 = vmax.f32 %v547, 0.0
  %v676 = vmax.f32 %v548, 0.0
  %v677 = vmax.f32 %v549, 0.0
  %v678 = vmax.f32 %v550, 0.0
  %v679 = vmax.f32 %v551, 0.0
  %v680 = vmax.f32 %v552, 0.0
  %v681 = vmax.f32 %v553, 0.0
  %v682 = vmax.f32 %v554, 0.0
  %v683 = vmax.f32 %v555, 0.0
  %v684 = vmax.f32 %v556, 0.0
  %v685 = vmax.f32 %v557, 0.0
  %v686 = vmax.f32 %v558, 0.0
  %v687 = vmax.f32 %v559, 0.0
  %v688 = vmax.f32 %v560, 0.0
  %v689 = vmax.f32 %v561, 0.0
  %v690 = vmax.f32 %v562, 0.0
  %v691 = vmax.f32 %v563, 0.0
  %v692 = vmax.f32 %v564, 0.0
  %v693 = vmax.f32 %v565, 0.0
  %v694 = vmax.f32 %v566, 0.0
  %v695 = vmax.f32 %v567, 0.0
  %v696 = vmax.f32 %v568, 0.0
  %v697 = vmax.f32 %v569, 0.0
  %v698 = vmax.f32 %v570, 0.0
  %v699 = vmax.f32 %v571, 0.0
  %v700 = vmax.f32 %v572, 0.0
  %v701 = vmax.f32 %v573, 0.0
  %v702 = vmax.f32 %v574, 0.0
  %v703 = vmax.f32 %v575, 0.0
  %v704 = vmax.f32 %v576, 0.0
  %v705 = vmax.f32 %v577, 0.0
  %v706 = vmax.f32 %v578, 0.0
  %v707 = vmax.f32 %v579, 0.0
  %v708 = vmax.f32 %v580, 0.0
  %v709 = vmax.f32 %v581, 0.0
  %v710 = vmax.f32 %v582, 0.0
  %v711 = vmax.f32 %v583, 0.0
  %v712 = vmax.f32 %v584, 0.0
  %v713 = vmax.f32 %v585, 0.0
  %v714 = vmax.f32 %v586, 0.0
  %v715 = vmax.f32 %v587, 0.0
  %v716 = vmax.f32 %v588, 0.0
  %v717 = vmax.f32 %v589, 0.0
  %v718 = vmax.f32 %v590, 0.0
  %v719 = vmax.f32 %v591, 0.0
  %v720 = vmax.f32 %v592, 0.0
  %v721 = vmax.f32 %v593, 0.0
  %v722 = vmax.f32 %v594, 0.0
  %v723 = vmax.f32 %v595, 0.0
  %v724 = vmax.f32 %v596, 0.0
  %v725 = vmax.f32 %v597, 0.0
  %v726 = vmax.f32 %v598, 0.0
  %v727 = vmax.f32 %v599, 0.0
  %v728 = vmax.f32 %v600, 0.0
  %v729 = vmax.f32 %v601, 0.0
  %v730 = vmax.f32 %v602, 0.0
  %v731 = vmax.f32 %v603, 0.0
  %v732 = vmax.f32 %v604, 0.0
  %v733 = vmax.f32 %v605, 0.0
  %v734 = vmax.f32 %v606, 0.0
  %v735 = vmax.f32 %v607, 0.0
  %v736 = vmax.f32 %v608, 0.0
  %v737 = vmax.f32 %v609, 0.0
  %v738 = vmax.f32 %v610, 0.0
  %v739 = vmax.f32 %v611, 0.0
  %v740 = vmax.f32 %v612, 0.0
  %v741 = vmax.f32 %v613, 0.0
  %v742 = vmax.f32 %v614, 0.0
  %v743 = vmax.f32 %v615, 0.0
  %v744 = vmax.f32 %v616, 0.0
  %v745 = vmax.f32 %v617, 0.0
  %v746 = vmax.f32 %v618, 0.0
  %v747 = vmax.f32 %v619, 0.0
  %v748 = vmax.f32 %v620, 0.0
  %v749 = vmax.f32 %v621, 0.0
  %v750 = vmax.f32 %v622, 0.0
  %v751 = vmax.f32 %v623, 0.0
  %v752 = vmax.f32 %v624, 0.0
  %v753 = vmax.f32 %v625, 0.0
  %v754 = vmax.f32 %v626, 0.0
  %v755 = vmax.f32 %v627, 0.0
  %v756 = vmax.f32 %v628, 0.0
  %v757 = vmax.f32 %v629, 0.0
  %v758 = vmax.f32 %v630, 0.0
  %v759 = vmax.f32 %v631, 0.0
  %v760 = vmax.f32 %v632, 0.0
  %v761 = vmax.f32 %v633, 0.0
  %v762 = vmax.f32 %v634, 0.0
  %v763 = vmax.f32 %v635, 0.0
  %v764 = vmax.f32 %v636, 0.0
  %v765 = vmax.f32 %v637, 0.0
  %v766 = vmax.f32 %v638, 0.0
  %v767 = vmax.f32 %v639, 0.0
  %v768 = vmax.f32 %v640, 0.0
  %v769 = vmax.f32 %v641, 0.0
  %v770 = vmax.f32 %v642, 0.0
  %v771 = vmax.f32 %v643, 0.0
  %v772 = vmax.f32 %v644, 0.0
  %v773 = vmax.f32 %v645, 0.0
  %v774 = vmax.f32 %v646, 0.0
  %v775 = vmax.f32 %v647, 0.0
  %v776 = vmax.f32 %v648, 0.0
  %v777 = vmax.f32 %v649, 0.0
  %v778 = vmax.f32 %v650, 0.0
  %v779 = vmax.f32 %v651, 0.0
  %v780 = vmax.f32 %v652, 0.0
  %v781 = vmax.f32 %v653, 0.0
  %v782 = vmax.f32 %v654, 0.0
  %v783 = vmax.f32 %v655, 0.0
  %v784 = vmax.f32 %v656, 0.0
  %v785 = vmax.f32 %v657, 0.0
  %v786 = vmax.f32 %v658, 0.0
  %v787 = vmax.f32 %v659, 0.0
  %v788 = vmax.f32 %v660, 0.0
  %v789 = vmax.f32 %v661, 0.0
  %v790 = vmax.f32 %v662, 0.0
  %v791 = vmax.f32 %v663, 0.0
  %v792 = vmax.f32 %v664, 0.0
  %v793 = vmax.f32 %v665, 0.0
  %v794 = vmax.f32 %v666, 0.0
  %v795 = vmax.f32 %v667, 0.0
  %v796 = vmax.f32 %v668, 0.0
  %v797 = vmax.f32 %v669, 0.0
  %v798 = vmax.f32 %v670, 0.0
  %799 = vst [vmem:[%s4] sm:$0xff] %v671
  %800 = vst [vmem:[%s4 + $0x8] sm:$0xff] %v672
  %801 = vst [vmem:[%s4 + $0x10] sm:$0xff] %v673
  %802 = vst [vmem:[%s4 + $0x18] sm:$0xff] %v674
  %803 = vst [vmem:[%s4 + $0x20] sm:$0xff] %v675
  %804 = vst [vmem:[%s4 + $0x28] sm:$0xff] %v676
  %805 = vst [vmem:[%s4 + $0x30] sm:$0xff] %v677
  %806 = vst [vmem:[%s4 + $0x38] sm:$0xff] %v678
  %807 = vst [vmem:[%s4 + $0x40] sm:$0xff] %v679
  %808 = vst [vmem:[%s4 + $0x48] sm:$0xff] %v680
  %809 = vst [vmem:[%s4 + $0x50] sm:$0xff] %v681
  %810 = vst [vmem:[%s4 + $0x58] sm:$0xff] %v682
  %811 = vst [vmem:[%s4 + $0x60] sm:$0xff] %v683
  %812 = vst [vmem:[%s4 + $0x68] sm:$0xff] %v684
  %813 = vst [vmem:[%s4 + $0x70] sm:$0xff] %v685
  %814 = vst [vmem:[%s4 + $0x78] sm:$0xff] %v686
  %815 = vst [vmem:[%s4 + $0x80] sm:$0xff] %v687
  %816 = vst [vmem:[%s4 + $0x88] sm:$0xff] %v688
  %817 = vst [vmem:[%s4 + $0x90] sm:$0xff] %v689
  %818 = vst [vmem:[%s4 + $0x98] sm:$0xff] %v690
  %819 = vst [vmem:[%s4 + $0xa0] sm:$0xff] %v691
  %820 = vst [vmem:[%s4 + $0xa8] sm:$0xff] %v692
  %821 = vst [vmem:[%s4 + $0xb0] sm:$0xff] %v693
  %822 = vst [vmem:[%s4 + $0xb8] sm:$0xff] %v694
  %823 = vst [vmem:[%s4 + $0xc0] sm:$0xff] %v695
  %824 = vst [vmem:[%s4 + $0xc8] sm:$0xff] %v696
  %825 = vst [vmem:[%s4 + $0xd0] sm:$0xff] %v697
  %826 = vst [vmem:[%s4 + $0xd8] sm:$0xff] %v698
  %827 = vst [vmem:[%s4 + $0xe0] sm:$0xff] %v699
  %828 = vst [vmem:[%s4 + $0xe8] sm:$0xff] %v700
  %829 = vst [vmem:[%s4 + $0xf0] sm:$0xff] %v701
  %830 = vst [vmem:[%s4 + $0xf8] sm:$0xff] %v702
  %831 = vst [vmem:[%s4 + $0x100] sm:$0xff] %v703
  %832 = vst [vmem:[%s4 + $0x108] sm:$0xff] %v704
  %833 = vst [vmem:[%s4 + $0x110] sm:$0xff] %v705
  %834 = vst [vmem:[%s4 + $0x118] sm:$0xff] %v706
  %835 = vst [vmem:[%s4 + $0x120] sm:$0xff] %v707
  %836 = vst [vmem:[%s4 + $0x128] sm:$0xff] %v708
  %837 = vst [vmem:[%s4 + $0x130] sm:$0xff] %v709
  %838 = vst [vmem:[%s4 + $0x138] sm:$0xff] %v710
  %839 = vst [vmem:[%s4 + $0x140] sm:$0xff] %v711
  %840 = vst [vmem:[%s4 + $0x148] sm:$0xff] %v712
  %841 = vst [vmem:[%s4 + $0x150] sm:$0xff] %v713
  %842 = vst [vmem:[%s4 + $0x158] sm:$0xff] %v714
  %843 = vst [vmem:[%s4 + $0x160] sm:$0xff] %v715
  %844 = vst [vmem:[%s4 + $0x168] sm:$0xff] %v716
  %845 = vst [vmem:[%s4 + $0x170] sm:$0xff] %v717
  %846 = vst [vmem:[%s4 + $0x178] sm:$0xff] %v718
  %847 = vst [vmem:[%s4 + $0x180] sm:$0xff] %v719
  %848 = vst [vmem:[%s4 + $0x188] sm:$0xff] %v720
  %849 = vst [vmem:[%s4 + $0x190] sm:$0xff] %v721
  %850 = vst [vmem:[%s4 + $0x198] sm:$0xff] %v722
  %851 = vst [vmem:[%s4 + $0x1a0] sm:$0xff] %v723
  %852 = vst [vmem:[%s4 + $0x1a8] sm:$0xff] %v724
  %853 = vst [vmem:[%s4 + $0x1b0] sm:$0xff] %v725
  %854 = vst [vmem:[%s4 + $0x1b8] sm:$0xff] %v726
  %855 = vst [vmem:[%s4 + $0x1c0] sm:$0xff] %v727
  %856 = vst [vmem:[%s4 + $0x1c8] sm:$0xff] %v728
  %857 = vst [vmem:[%s4 + $0x1d0] sm:$0xff] %v729
  %858 = vst [vmem:[%s4 + $0x1d8] sm:$0xff] %v730
  %859 = vst [vmem:[%s4 + $0x1e0] sm:$0xff] %v731
  %860 = vst [vmem:[%s4 + $0x1e8] sm:$0xff] %v732
  %861 = vst [vmem:[%s4 + $0x1f0] sm:$0xff] %v733
  %862 = vst [vmem:[%s4 + $0x1f8] sm:$0xff] %v734
  %863 = vst [vmem:[%s4 + $0x200] sm:$0xff] %v735
  %864 = vst [vmem:[%s4 + $0x208] sm:$0xff] %v736
  %865 = vst [vmem:[%s4 + $0x210] sm:$0xff] %v737
  %866 = vst [vmem:[%s4 + $0x218] sm:$0xff] %v738
  %867 = vst [vmem:[%s4 + $0x220] sm:$0xff] %v739
  %868 = vst [vmem:[%s4 + $0x228] sm:$0xff] %v740
  %869 = vst [vmem:[%s4 + $0x230] sm:$0xff] %v741
  %870 = vst [vmem:[%s4 + $0x238] sm:$0xff] %v742
  %871 = vst [vmem:[%s4 + $0x240] sm:$0xff] %v743
  %872 = vst [vmem:[%s4 + $0x248] sm:$0xff] %v744
  %873 = vst [vmem:[%s4 + $0x250] sm:$0xff] %v745
  %874 = vst [vmem:[%s4 + $0x258] sm:$0xff] %v746
  %875 = vst [vmem:[%s4 + $0x260] sm:$0xff] %v747
  %876 = vst [vmem:[%s4 + $0x268] sm:$0xff] %v748
  %877 = vst [vmem:[%s4 + $0x270] sm:$0xff] %v749
  %878 = vst [vmem:[%s4 + $0x278] sm:$0xff] %v750
  %879 = vst [vmem:[%s4 + $0x280] sm:$0xff] %v751
  %880 = vst [vmem:[%s4 + $0x288] sm:$0xff] %v752
  %881 = vst [vmem:[%s4 + $0x290] sm:$0xff] %v753
  %882 = vst [vmem:[%s4 + $0x298] sm:$0xff] %v754
  %883 = vst [vmem:[%s4 + $0x2a0] sm:$0xff] %v755
  %884 = vst [vmem:[%s4 + $0x2a8] sm:$0xff] %v756
  %885 = vst [vmem:[%s4 + $0x2b0] sm:$0xff] %v757
  %886 = vst [vmem:[%s4 + $0x2b8] sm:$0xff] %v758
  %887 = vst [vmem:[%s4 + $0x2c0] sm:$0xff] %v759
  %888 = vst [vmem:[%s4 + $0x2c8] sm:$0xff] %v760
  %889 = vst [vmem:[%s4 + $0x2d0] sm:$0xff] %v761
  %890 = vst [vmem:[%s4 + $0x2d8] sm:$0xff] %v762
  %891 = vst [vmem:[%s4 + $0x2e0] sm:$0xff] %v763
  %892 = vst [vmem:[%s4 + $0x2e8] sm:$0xff] %v764
  %893 = vst [vmem:[%s4 + $0x2f0] sm:$0xff] %v765
  %894 = vst [vmem:[%s4 + $0x2f8] sm:$0xff] %v766
  %895 = vst [vmem:[%s4 + $0x300] sm:$0xff] %v767
  %896 = vst [vmem:[%s4 + $0x308] sm:$0xff] %v768
  %897 = vst [vmem:[%s4 + $0x310] sm:$0xff] %v769
  %898 = vst [vmem:[%s4 + $0x318] sm:$0xff] %v770
  %899 = vst [vmem:[%s4 + $0x320] sm:$0xff] %v771
  %900 = vst [vmem:[%s4 + $0x328] sm:$0xff] %v772
  %901 = vst [vmem:[%s4 + $0x330] sm:$0xff] %v773
  %902 = vst [vmem:[%s4 + $0x338] sm:$0xff] %v774
  %903 = vst [vmem:[%s4 + $0x340] sm:$0xff] %v775
  %904 = vst [vmem:[%s4 + $0x348] sm:$0xff] %v776
  %905 = vst [vmem:[%s4 + $0x350] sm:$0xff] %v777
  %906 = vst [vmem:[%s4 + $0x358] sm:$0xff] %v778
  %907 = vst [vmem:[%s4 + $0x360] sm:$0xff] %v779
  %908 = vst [vmem:[%s4 + $0x368] sm:$0xff] %v780
  %909 = vst [vmem:[%s4 + $0x370] sm:$0xff] %v781
  %910 = vst [vmem:[%s4 + $0x378] sm:$0xff] %v782
  %911 = vst [vmem:[%s4 + $0x380] sm:$0xff] %v783
  %912 = vst [vmem:[%s4 + $0x388] sm:$0xff] %v784
  %913 = vst [vmem:[%s4 + $0x390] sm:$0xff] %v785
  %914 = vst [vmem:[%s4 + $0x398] sm:$0xff] %v786
  %915 = vst [vmem:[%s4 + $0x3a0] sm:$0xff] %v787
  %916 = vst [vmem:[%s4 + $0x3a8] sm:$0xff] %v788
  %917 = vst [vmem:[%s4 + $0x3b0] sm:$0xff] %v789
  %918 = vst [vmem:[%s4 + $0x3b8] sm:$0xff] %v790
  %919 = vst [vmem:[%s4 + $0x3c0] sm:$0xff] %v791
  %920 = vst [vmem:[%s4 + $0x3c8] sm:$0xff] %v792
  %921 = vst [vmem:[%s4 + $0x3d0] sm:$0xff] %v793
  %922 = vst [vmem:[%s4 + $0x3d8] sm:$0xff] %v794
  %923 = vst [vmem:[%s4 + $0x3e0] sm:$0xff] %v795
  %924 = vst [vmem:[%s4 + $0x3e8] sm:$0xff] %v796
  %925 = vst [vmem:[%s4 + $0x3f0] sm:$0xff] %v797
  %926 = vst [vmem:[%s4 + $0x3f8] sm:$0xff] %v798
  // Predicated region
  $region18: #{bottleneck_block3d_l.9} parent=0 // pred_check
    _
  $region19: #{bottleneck_block3d_l.9} parent=0 // pred_check_branch
    %928 = sbr.rel (0) target = $region21
  $region20: #{bottleneck_block3d_l.9} parent=0 // pred_region
    _
  $region21: #{bottleneck_block3d_l.9} parent=0 // pred_fallthru
    _
  // Predicated region
  $region22: #{bottleneck_block3d_l.9} parent=0 // pred_check
    _
  $region23: #{bottleneck_block3d_l.9} parent=0 // pred_check_branch
    %930 = sbr.rel (0) target = $region25
  $region24: #{bottleneck_block3d_l.9} parent=0 // pred_region
    _
  $region25: #{bottleneck_block3d_l.9} parent=0 // pred_fallthru
    _

</llo_original>
